<compile_context>
chip_gen: v6e
topology: v6e:2x2x1
jax: 0.10.0
libtpu: 0.0.40
codegen_flags: <defaults>
</compile_context>

<pallas_src>
import functools
import math

import jax
import jax.numpy as jnp
from jax import lax
from jax.experimental import pallas as pl
from jax.experimental.pallas import tpu as pltpu


_LN_EPS = 1e-5          # nn.LayerNorm default eps
_MASK_FILL = -1e9       # torch masked_fill value (-1000000000.0)

_PREPARED_ORDER = (
    "sa_wq", "sa_bq", "sa_wk", "sa_bk", "sa_wv", "sa_bv", "sa_wo", "sa_bo",
    "ca_wq", "ca_bq", "ca_wk", "ca_bk", "ca_wv", "ca_bv", "ca_wo", "ca_bo",
    "ff_w1", "ff_b1", "ff_w2", "ff_b2",
    "ln_in_g", "ln_in_b", "ln_ci_g", "ln_ci_b",
    "ln_co_g", "ln_co_b", "ln_ff_g", "ln_ff_b",
)


# ---------------------------------------------------------------------------
# Fused kernel: one grid step == one batch element, everything in VMEM.
# ---------------------------------------------------------------------------

def _decoder_layer_kernel(num_heads, *refs):
    (x_ref, enc_ref, tmask_ref, smask_ref,
     sa_wq, sa_bq, sa_wk, sa_bk, sa_wv, sa_bv, sa_wo, sa_bo,
     ca_wq, ca_bq, ca_wk, ca_bk, ca_wv, ca_bv, ca_wo, ca_bo,
     ff_w1, ff_b1, ff_w2, ff_b2,
     ln_in_g, ln_in_b, ln_ci_g, ln_ci_b,
     ln_co_g, ln_co_b, ln_ff_g, ln_ff_b,
     o_ref) = refs

    _, emb = x_ref.shape
    d_k = emb // num_heads
    scale = 1.0 / math.sqrt(d_k)

    def layernorm(v, g_ref, b_ref):
        mu = jnp.mean(v, axis=-1, keepdims=True)
        c = v - mu
        var = jnp.mean(c * c, axis=-1, keepdims=True)
        return c * lax.rsqrt(var + _LN_EPS) * g_ref[...] + b_ref[...]

    def linear(v, w_ref, b_ref):
        # w_ref already stored as (in, out); bias as (1, out)
        return jnp.dot(v, w_ref[...], preferred_element_type=jnp.float32) + b_ref[...]

    def mha(q_in, kv_in, mask, wq, bq, wk, bk, wv, bv, wo, bo):
        """Multi-head attention on (N, E) inputs; heads via weight slices."""
        acc = None
        for h in range(num_heads):
            lo = h * d_k
            col = pl.ds(lo, d_k)
            # Per-head projections: slice the weight columns (ref loads),
            # mathematically identical to projecting then split_heads.
            qh = jnp.dot(q_in, wq[:, col],
                         preferred_element_type=jnp.float32) + bq[:, col]
            kh = jnp.dot(kv_in, wk[:, col],
                         preferred_element_type=jnp.float32) + bk[:, col]
            vh = jnp.dot(kv_in, wv[:, col],
                         preferred_element_type=jnp.float32) + bv[:, col]
            # scores = Q @ K^T / sqrt(d_k) without materializing K^T.
            s = lax.dot_general(qh, kh, (((1,), (1,)), ((), ())),
                                preferred_element_type=jnp.float32) * scale
            s = jnp.where(mask == 0.0, _MASK_FILL, s)
            m = jnp.max(s, axis=-1, keepdims=True)
            e = jnp.exp(s - m)
            p = e * pl.reciprocal(jnp.sum(e, axis=-1, keepdims=True), approx=False)
            ah = jnp.dot(p, vh, preferred_element_type=jnp.float32)
            # combine_heads + W_o fused: accumulate against W_o's rows
            # [h*d_k : (h+1)*d_k] -> lane-dense (N, E) accumulator.
            contrib = jnp.dot(ah, wo[pl.ds(lo, d_k), :],
                              preferred_element_type=jnp.float32)
            acc = contrib if acc is None else acc + contrib
        return acc + bo[...]

    x = x_ref[...]
    enc = enc_ref[...]
    tmask = tmask_ref[...]
    smask = smask_ref[...]

    # --- self-attention sub-layer (dropout = identity in eval mode) ---
    x_norm = layernorm(x, ln_in_g, ln_in_b)
    x = x + mha(x_norm, x_norm, tmask,
                sa_wq, sa_bq, sa_wk, sa_bk, sa_wv, sa_bv, sa_wo, sa_bo)

    # --- cross-attention sub-layer (same norm applied to x and encoder out) ---
    q_in = layernorm(x, ln_ci_g, ln_ci_b)
    kv_in = layernorm(enc, ln_ci_g, ln_ci_b)
    x = x + mha(q_in, kv_in, smask,
                ca_wq, ca_bq, ca_wk, ca_bk, ca_wv, ca_bv, ca_wo, ca_bo)
    x = layernorm(x, ln_co_g, ln_co_b)

    # --- position-wise feed-forward ---
    h1 = jnp.maximum(linear(x, ff_w1, ff_b1), 0.0)
    ff = linear(h1, ff_w2, ff_b2)
    x = layernorm(x + ff, ln_ff_g, ln_ff_b)

    o_ref[...] = x.astype(o_ref.dtype)


# ---------------------------------------------------------------------------
# Wrapper
# ---------------------------------------------------------------------------

def prepare_decoder_params(p):
    """One-time layout prep: weights -> (in, out), biases/LN params -> (1, D)."""
    def w(k):
        return jnp.asarray(p[k], jnp.float32).T
    def b(k):
        return jnp.asarray(p[k], jnp.float32).reshape(1, -1)
    return {
        "sa_wq": w("self_wq_w"), "sa_bq": b("self_wq_b"),
        "sa_wk": w("self_wk_w"), "sa_bk": b("self_wk_b"),
        "sa_wv": w("self_wv_w"), "sa_bv": b("self_wv_b"),
        "sa_wo": w("self_wo_w"), "sa_bo": b("self_wo_b"),
        "ca_wq": w("cross_wq_w"), "ca_bq": b("cross_wq_b"),
        "ca_wk": w("cross_wk_w"), "ca_bk": b("cross_wk_b"),
        "ca_wv": w("cross_wv_w"), "ca_bv": b("cross_wv_b"),
        "ca_wo": w("cross_wo_w"), "ca_bo": b("cross_wo_b"),
        "ff_w1": w("fc1_w"), "ff_b1": b("fc1_b"),
        "ff_w2": w("fc2_w"), "ff_b2": b("fc2_b"),
        "ln_in_g": b("norm_input_g"), "ln_in_b": b("norm_input_b"),
        "ln_ci_g": b("norm_cross_input_g"), "ln_ci_b": b("norm_cross_input_b"),
        "ln_co_g": b("norm_cross_output_g"), "ln_co_b": b("norm_cross_output_b"),
        "ln_ff_g": b("norm_feedforward_output_g"),
        "ln_ff_b": b("norm_feedforward_output_b"),
    }


def decoder_layer_forward(x, encoder_output, target_mask, source_mask,
                          prepared, num_heads):
    """Fused DecoderLayer forward. x/encoder_output: (B, N, E); masks: (B, N, N)."""
    B, N, E = x.shape

    seq_spec = pl.BlockSpec((None, N, E), lambda b: (b, 0, 0))
    mask_spec = pl.BlockSpec((None, N, N), lambda b: (b, 0, 0))

    weights = [prepared[k] for k in _PREPARED_ORDER]

    def full_spec(arr):
        zero = (0,) * arr.ndim
        return pl.BlockSpec(arr.shape, lambda b, _z=zero: _z)

    in_specs = ([seq_spec, seq_spec, mask_spec, mask_spec]
                + [full_spec(w) for w in weights])

    return pl.pallas_call(
        functools.partial(_decoder_layer_kernel, num_heads),
        out_shape=jax.ShapeDtypeStruct((B, N, E), jnp.float32),
        grid=(B,),
        in_specs=in_specs,
        out_specs=seq_spec,
        compiler_params=pltpu.CompilerParams(
            dimension_semantics=("parallel",)),
    )(x, encoder_output, target_mask, source_mask, *weights)


# ---------------------------------------------------------------------------
# Pure-JAX reference (mirrors the PyTorch module, eval mode)
# ---------------------------------------------------------------------------

def reference_decoder_layer(x, enc, tgt_mask, src_mask, p, num_heads):
    E = x.shape[-1]
    d_k = E // num_heads

    def lin(v, wk, bk):
        return v @ p[wk].T + p[bk]

    def ln(v, gk, bk):
        mu = v.mean(-1, keepdims=True)
        var = ((v - mu) ** 2).mean(-1, keepdims=True)
        return (v - mu) * lax.rsqrt(var + _LN_EPS) * p[gk] + p[bk]

    def mha(q_in, k_in, v_in, mask, prefix):
        B, N, _ = q_in.shape

        def split(t):
            return t.reshape(B, N, num_heads, d_k).transpose(0, 2, 1, 3)

        q = split(lin(q_in, f"{prefix}_wq_w", f"{prefix}_wq_b"))
        k = split(lin(k_in, f"{prefix}_wk_w", f"{prefix}_wk_b"))
        v = split(lin(v_in, f"{prefix}_wv_w", f"{prefix}_wv_b"))
        scores = jnp.einsum("bhnc,bhmc->bhnm", q, k) / math.sqrt(d_k)
        scores = jnp.where(mask[:, None, :, :] == 0.0, _MASK_FILL, scores)
        probs = jax.nn.softmax(scores, axis=-1)
        attn = jnp.einsum("bhnm,bhmc->bhnc", probs, v)
        comb = attn.transpose(0, 2, 1, 3).reshape(B, N, E)
        return lin(comb, f"{prefix}_wo_w", f"{prefix}_wo_b")

    x = x.astype(jnp.float32)
    x_norm = ln(x, "norm_input_g", "norm_input_b")
    x = x + mha(x_norm, x_norm, x_norm, tgt_mask, "self")
    q_in = ln(x, "norm_cross_input_g", "norm_cross_input_b")
    kv_in = ln(enc, "norm_cross_input_g", "norm_cross_input_b")
    x = x + mha(q_in, kv_in, kv_in, src_mask, "cross")
    x = ln(x, "norm_cross_output_g", "norm_cross_output_b")
    h1 = jax.nn.relu(lin(x, "fc1_w", "fc1_b"))
    ff = lin(h1, "fc2_w", "fc2_b")
    x = ln(x + ff, "norm_feedforward_output_g", "norm_feedforward_output_b")
    return x


# ---------------------------------------------------------------------------
# Main
# ---------------------------------------------------------------------------

if __name__ == "__main__":
    B, N, E, H, F = 2, 8, 32, 4, 64   # batch, seq, embedding, heads, ffn size

    key = jax.random.PRNGKey(0)
    keys = jax.random.split(key, 12)

    def linear_init(k, fan_in, fan_out):
        kw, kb = jax.random.split(k)
        bound = 1.0 / math.sqrt(fan_in)
        w = jax.random.uniform(kw, (fan_out, fan_in), jnp.float32, -bound, bound)
        b = jax.random.uniform(kb, (fan_out,), jnp.float32, -bound, bound)
        return w, b

    params = {}
    for i, name in enumerate(["self_wq", "self_wk", "self_wv", "self_wo",
                              "cross_wq", "cross_wk", "cross_wv", "cross_wo"]):
        w, b = linear_init(keys[i], E, E)
        params[f"{name}_w"], params[f"{name}_b"] = w, b
    params["fc1_w"], params["fc1_b"] = linear_init(keys[8], E, F)
    params["fc2_w"], params["fc2_b"] = linear_init(keys[9], F, E)
    for name in ["norm_input", "norm_cross_input", "norm_cross_output",
                 "norm_feedforward_output"]:
        params[f"{name}_g"] = jnp.ones((E,), jnp.float32)
        params[f"{name}_b"] = jnp.zeros((E,), jnp.float32)
    # TODO(synk): norm_mask_output exists in the PyTorch module but is unused
    #             in forward(), so it is omitted here.

    x = jax.random.normal(keys[10], (B, N, E), jnp.float32)
    encoder_output = jax.random.normal(keys[11], (B, N, E), jnp.float32)

    # Decoder masks: causal target mask, all-visible source mask
    # (all-ones mask == mask=None path in the PyTorch module).
    target_mask = jnp.broadcast_to(
        jnp.tril(jnp.ones((N, N), jnp.float32)), (B, N, N))
    source_mask = jnp.ones((B, N, N), jnp.float32)

    prepared = prepare_decoder_params(params)

    out = decoder_layer_forward(x, encoder_output, target_mask, source_mask,
                                prepared, H)
    out = jax.block_until_ready(out)

    ref = reference_decoder_layer(x, encoder_output, target_mask, source_mask,
                                  params, H)
    assert out.shape == (B, N, E)
    err = float(jnp.max(jnp.abs(out - ref)))
    assert jnp.allclose(out, ref, atol=1e-4, rtol=1e-4), \
        f"mismatch vs reference: max abs err {err:.3e}"

    print("KERNEL_OK")
</pallas_src>

<mosaic_0001>
module attributes {stable_mosaic.version = 11 : i64} {
  func.func @_decoder_layer_kernel(%arg0: i32, %arg1: memref<1x8x32xf32, #tpu.memory_space<vmem>>, %arg2: memref<1x8x32xf32, #tpu.memory_space<vmem>>, %arg3: memref<1x8x8xf32, #tpu.memory_space<vmem>>, %arg4: memref<1x8x8xf32, #tpu.memory_space<vmem>>, %arg5: memref<32x32xf32, #tpu.memory_space<vmem>>, %arg6: memref<1x32xf32, #tpu.memory_space<vmem>>, %arg7: memref<32x32xf32, #tpu.memory_space<vmem>>, %arg8: memref<1x32xf32, #tpu.memory_space<vmem>>, %arg9: memref<32x32xf32, #tpu.memory_space<vmem>>, %arg10: memref<1x32xf32, #tpu.memory_space<vmem>>, %arg11: memref<32x32xf32, #tpu.memory_space<vmem>>, %arg12: memref<1x32xf32, #tpu.memory_space<vmem>>, %arg13: memref<32x32xf32, #tpu.memory_space<vmem>>, %arg14: memref<1x32xf32, #tpu.memory_space<vmem>>, %arg15: memref<32x32xf32, #tpu.memory_space<vmem>>, %arg16: memref<1x32xf32, #tpu.memory_space<vmem>>, %arg17: memref<32x32xf32, #tpu.memory_space<vmem>>, %arg18: memref<1x32xf32, #tpu.memory_space<vmem>>, %arg19: memref<32x32xf32, #tpu.memory_space<vmem>>, %arg20: memref<1x32xf32, #tpu.memory_space<vmem>>, %arg21: memref<32x64xf32, #tpu.memory_space<vmem>>, %arg22: memref<1x64xf32, #tpu.memory_space<vmem>>, %arg23: memref<64x32xf32, #tpu.memory_space<vmem>>, %arg24: memref<1x32xf32, #tpu.memory_space<vmem>>, %arg25: memref<1x32xf32, #tpu.memory_space<vmem>>, %arg26: memref<1x32xf32, #tpu.memory_space<vmem>>, %arg27: memref<1x32xf32, #tpu.memory_space<vmem>>, %arg28: memref<1x32xf32, #tpu.memory_space<vmem>>, %arg29: memref<1x32xf32, #tpu.memory_space<vmem>>, %arg30: memref<1x32xf32, #tpu.memory_space<vmem>>, %arg31: memref<1x32xf32, #tpu.memory_space<vmem>>, %arg32: memref<1x32xf32, #tpu.memory_space<vmem>>, %arg33: memref<1x8x32xf32, #tpu.memory_space<vmem>>) attributes {dimension_semantics = [#tpu.dimension_semantics<parallel>], iteration_bounds = array<i64: 2>, scalar_prefetch = 0 : i64, scratch_operands = 0 : i64, tpu.core_type = #tpu.core_type<tc>, window_params = [{transform_indices = @transform_0, window_bounds = array<i64: 1, 8, 32>}, {transform_indices = @transform_1, window_bounds = array<i64: 1, 8, 32>}, {transform_indices = @transform_2, window_bounds = array<i64: 1, 8, 8>}, {transform_indices = @transform_3, window_bounds = array<i64: 1, 8, 8>}, {pipeline_mode = #tpu.pipeline_mode<synchronous>, transform_indices = @transform_4, window_bounds = array<i64: 32, 32>}, {pipeline_mode = #tpu.pipeline_mode<synchronous>, transform_indices = @transform_5, window_bounds = array<i64: 1, 32>}, {pipeline_mode = #tpu.pipeline_mode<synchronous>, transform_indices = @transform_6, window_bounds = array<i64: 32, 32>}, {pipeline_mode = #tpu.pipeline_mode<synchronous>, transform_indices = @transform_7, window_bounds = array<i64: 1, 32>}, {pipeline_mode = #tpu.pipeline_mode<synchronous>, transform_indices = @transform_8, window_bounds = array<i64: 32, 32>}, {pipeline_mode = #tpu.pipeline_mode<synchronous>, transform_indices = @transform_9, window_bounds = array<i64: 1, 32>}, {pipeline_mode = #tpu.pipeline_mode<synchronous>, transform_indices = @transform_10, window_bounds = array<i64: 32, 32>}, {pipeline_mode = #tpu.pipeline_mode<synchronous>, transform_indices = @transform_11, window_bounds = array<i64: 1, 32>}, {pipeline_mode = #tpu.pipeline_mode<synchronous>, transform_indices = @transform_12, window_bounds = array<i64: 32, 32>}, {pipeline_mode = #tpu.pipeline_mode<synchronous>, transform_indices = @transform_13, window_bounds = array<i64: 1, 32>}, {pipeline_mode = #tpu.pipeline_mode<synchronous>, transform_indices = @transform_14, window_bounds = array<i64: 32, 32>}, {pipeline_mode = #tpu.pipeline_mode<synchronous>, transform_indices = @transform_15, window_bounds = array<i64: 1, 32>}, {pipeline_mode = #tpu.pipeline_mode<synchronous>, transform_indices = @transform_16, window_bounds = array<i64: 32, 32>}, {pipeline_mode = #tpu.pipeline_mode<synchronous>, transform_indices = @transform_17, window_bounds = array<i64: 1, 32>}, {pipeline_mode = #tpu.pipeline_mode<synchronous>, transform_indices = @transform_18, window_bounds = array<i64: 32, 32>}, {pipeline_mode = #tpu.pipeline_mode<synchronous>, transform_indices = @transform_19, window_bounds = array<i64: 1, 32>}, {pipeline_mode = #tpu.pipeline_mode<synchronous>, transform_indices = @transform_20, window_bounds = array<i64: 32, 64>}, {pipeline_mode = #tpu.pipeline_mode<synchronous>, transform_indices = @transform_21, window_bounds = array<i64: 1, 64>}, {pipeline_mode = #tpu.pipeline_mode<synchronous>, transform_indices = @transform_22, window_bounds = array<i64: 64, 32>}, {pipeline_mode = #tpu.pipeline_mode<synchronous>, transform_indices = @transform_23, window_bounds = array<i64: 1, 32>}, {pipeline_mode = #tpu.pipeline_mode<synchronous>, transform_indices = @transform_24, window_bounds = array<i64: 1, 32>}, {pipeline_mode = #tpu.pipeline_mode<synchronous>, transform_indices = @transform_25, window_bounds = array<i64: 1, 32>}, {pipeline_mode = #tpu.pipeline_mode<synchronous>, transform_indices = @transform_26, window_bounds = array<i64: 1, 32>}, {pipeline_mode = #tpu.pipeline_mode<synchronous>, transform_indices = @transform_27, window_bounds = array<i64: 1, 32>}, {pipeline_mode = #tpu.pipeline_mode<synchronous>, transform_indices = @transform_28, window_bounds = array<i64: 1, 32>}, {pipeline_mode = #tpu.pipeline_mode<synchronous>, transform_indices = @transform_29, window_bounds = array<i64: 1, 32>}, {pipeline_mode = #tpu.pipeline_mode<synchronous>, transform_indices = @transform_30, window_bounds = array<i64: 1, 32>}, {pipeline_mode = #tpu.pipeline_mode<synchronous>, transform_indices = @transform_31, window_bounds = array<i64: 1, 32>}, {transform_indices = @transform_32, window_bounds = array<i64: 1, 8, 32>}]} {
    %c0 = arith.constant 0 : index
    %c0_0 = arith.constant 0 : index
    %c0_1 = arith.constant 0 : index
    %0 = vector.load %arg1[%c0, %c0_0, %c0_1] : memref<1x8x32xf32, #tpu.memory_space<vmem>>, vector<1x8x32xf32>
    %1 = vector.shape_cast %0 : vector<1x8x32xf32> to vector<8x32xf32>
    %c0_2 = arith.constant 0 : index
    %c0_3 = arith.constant 0 : index
    %c0_4 = arith.constant 0 : index
    %2 = vector.load %arg2[%c0_2, %c0_3, %c0_4] : memref<1x8x32xf32, #tpu.memory_space<vmem>>, vector<1x8x32xf32>
    %3 = vector.shape_cast %2 : vector<1x8x32xf32> to vector<8x32xf32>
    %c0_5 = arith.constant 0 : index
    %c0_6 = arith.constant 0 : index
    %c0_7 = arith.constant 0 : index
    %4 = vector.load %arg3[%c0_5, %c0_6, %c0_7] : memref<1x8x8xf32, #tpu.memory_space<vmem>>, vector<1x8x8xf32>
    %5 = vector.shape_cast %4 : vector<1x8x8xf32> to vector<8x8xf32>
    %c0_8 = arith.constant 0 : index
    %c0_9 = arith.constant 0 : index
    %c0_10 = arith.constant 0 : index
    %6 = vector.load %arg4[%c0_8, %c0_9, %c0_10] : memref<1x8x8xf32, #tpu.memory_space<vmem>>, vector<1x8x8xf32>
    %7 = vector.shape_cast %6 : vector<1x8x8xf32> to vector<8x8xf32>
    %cst = arith.constant dense<0.000000e+00> : vector<8xf32>
    %8 = vector.multi_reduction <add>, %1, %cst [1] : vector<8x32xf32> to vector<8xf32>
    %9 = vector.shape_cast %8 : vector<8xf32> to vector<8x1xf32>
    %cst_11 = arith.constant 3.200000e+01 : f32
    %10 = vector.broadcast %cst_11 : f32 to vector<8x1xf32>
    %11 = arith.divf %9, %10 : vector<8x1xf32>
    %12 = vector.broadcast %11 : vector<8x1xf32> to vector<8x32xf32>
    %13 = arith.subf %1, %12 : vector<8x32xf32>
    %14 = arith.mulf %13, %13 : vector<8x32xf32>
    %cst_12 = arith.constant dense<0.000000e+00> : vector<8xf32>
    %15 = vector.multi_reduction <add>, %14, %cst_12 [1] : vector<8x32xf32> to vector<8xf32>
    %16 = vector.shape_cast %15 : vector<8xf32> to vector<8x1xf32>
    %cst_13 = arith.constant 3.200000e+01 : f32
    %17 = vector.broadcast %cst_13 : f32 to vector<8x1xf32>
    %18 = arith.divf %16, %17 : vector<8x1xf32>
    %cst_14 = arith.constant 9.99999974E-6 : f32
    %19 = vector.broadcast %cst_14 : f32 to vector<8x1xf32>
    %20 = arith.addf %18, %19 : vector<8x1xf32>
    %21 = math.rsqrt %20 : vector<8x1xf32>
    %22 = vector.broadcast %21 : vector<8x1xf32> to vector<8x32xf32>
    %23 = arith.mulf %13, %22 : vector<8x32xf32>
    %c0_15 = arith.constant 0 : index
    %c0_16 = arith.constant 0 : index
    %24 = vector.load %arg25[%c0_15, %c0_16] : memref<1x32xf32, #tpu.memory_space<vmem>>, vector<1x32xf32>
    %25 = vector.broadcast %24 : vector<1x32xf32> to vector<8x32xf32>
    %26 = arith.mulf %23, %25 : vector<8x32xf32>
    %c0_17 = arith.constant 0 : index
    %c0_18 = arith.constant 0 : index
    %27 = vector.load %arg26[%c0_17, %c0_18] : memref<1x32xf32, #tpu.memory_space<vmem>>, vector<1x32xf32>
    %28 = vector.broadcast %27 : vector<1x32xf32> to vector<8x32xf32>
    %29 = arith.addf %26, %28 : vector<8x32xf32>
    %c0_19 = arith.constant 0 : index
    %c0_20 = arith.constant 0 : index
    %30 = vector.load %arg5[%c0_19, %c0_20] : memref<32x32xf32, #tpu.memory_space<vmem>>, vector<32x8xf32>
    %cst_21 = arith.constant dense<0.000000e+00> : vector<8x8xf32>
    %31 = tpu.matmul %29, %30, %cst_21 {dimension_numbers = #tpu.dot_dimension_numbers<[1], [0], [0], [1], [0, 0, 1, 1], [], []>} : vector<8x32xf32>, vector<32x8xf32>, vector<8x8xf32> -> vector<8x8xf32>
    %c0_22 = arith.constant 0 : index
    %c0_23 = arith.constant 0 : index
    %32 = vector.load %arg6[%c0_22, %c0_23] : memref<1x32xf32, #tpu.memory_space<vmem>>, vector<1x8xf32>
    %33 = vector.broadcast %32 : vector<1x8xf32> to vector<8x8xf32>
    %34 = arith.addf %31, %33 : vector<8x8xf32>
    %c0_24 = arith.constant 0 : index
    %c0_25 = arith.constant 0 : index
    %35 = vector.load %arg7[%c0_24, %c0_25] : memref<32x32xf32, #tpu.memory_space<vmem>>, vector<32x8xf32>
    %cst_26 = arith.constant dense<0.000000e+00> : vector<8x8xf32>
    %36 = tpu.matmul %29, %35, %cst_26 {dimension_numbers = #tpu.dot_dimension_numbers<[1], [0], [0], [1], [0, 0, 1, 1], [], []>} : vector<8x32xf32>, vector<32x8xf32>, vector<8x8xf32> -> vector<8x8xf32>
    %c0_27 = arith.constant 0 : index
    %c0_28 = arith.constant 0 : index
    %37 = vector.load %arg8[%c0_27, %c0_28] : memref<1x32xf32, #tpu.memory_space<vmem>>, vector<1x8xf32>
    %38 = vector.broadcast %37 : vector<1x8xf32> to vector<8x8xf32>
    %39 = arith.addf %36, %38 : vector<8x8xf32>
    %c0_29 = arith.constant 0 : index
    %c0_30 = arith.constant 0 : index
    %40 = vector.load %arg9[%c0_29, %c0_30] : memref<32x32xf32, #tpu.memory_space<vmem>>, vector<32x8xf32>
    %cst_31 = arith.constant dense<0.000000e+00> : vector<8x8xf32>
    %41 = tpu.matmul %29, %40, %cst_31 {dimension_numbers = #tpu.dot_dimension_numbers<[1], [0], [0], [1], [0, 0, 1, 1], [], []>} : vector<8x32xf32>, vector<32x8xf32>, vector<8x8xf32> -> vector<8x8xf32>
    %c0_32 = arith.constant 0 : index
    %c0_33 = arith.constant 0 : index
    %42 = vector.load %arg10[%c0_32, %c0_33] : memref<1x32xf32, #tpu.memory_space<vmem>>, vector<1x8xf32>
    %43 = vector.broadcast %42 : vector<1x8xf32> to vector<8x8xf32>
    %44 = arith.addf %41, %43 : vector<8x8xf32>
    %cst_34 = arith.constant dense<0.000000e+00> : vector<8x8xf32>
    %45 = tpu.matmul %34, %39, %cst_34 {dimension_numbers = #tpu.dot_dimension_numbers<[1], [1], [0], [0], [0, 0, 1, 0], [], []>} : vector<8x8xf32>, vector<8x8xf32>, vector<8x8xf32> -> vector<8x8xf32>
    %cst_35 = arith.constant 0.353553385 : f32
    %46 = vector.broadcast %cst_35 : f32 to vector<8x8xf32>
    %47 = arith.mulf %45, %46 : vector<8x8xf32>
    %cst_36 = arith.constant 0.000000e+00 : f32
    %48 = vector.broadcast %cst_36 : f32 to vector<8x8xf32>
    %49 = arith.cmpf oeq, %5, %48 : vector<8x8xf32>
    %cst_37 = arith.constant -1.000000e+09 : f32
    %50 = vector.broadcast %cst_37 : f32 to vector<8x8xf32>
    %51 = arith.select %49, %50, %47 : vector<8x8xi1>, vector<8x8xf32>
    %cst_38 = arith.constant dense<0xFF800000> : vector<8xf32>
    %52 = vector.multi_reduction <maximumf>, %51, %cst_38 [1] : vector<8x8xf32> to vector<8xf32>
    %53 = vector.shape_cast %52 : vector<8xf32> to vector<8x1xf32>
    %54 = vector.broadcast %53 : vector<8x1xf32> to vector<8x8xf32>
    %55 = arith.subf %51, %54 : vector<8x8xf32>
    %56 = math.exp %55 : vector<8x8xf32>
    %cst_39 = arith.constant dense<0.000000e+00> : vector<8xf32>
    %57 = vector.multi_reduction <add>, %56, %cst_39 [1] : vector<8x8xf32> to vector<8xf32>
    %58 = vector.shape_cast %57 : vector<8xf32> to vector<8x1xf32>
    %59 = tpu.reciprocal %58 : vector<8x1xf32> -> vector<8x1xf32>
    %60 = vector.broadcast %59 : vector<8x1xf32> to vector<8x8xf32>
    %61 = arith.mulf %56, %60 : vector<8x8xf32>
    %cst_40 = arith.constant dense<0.000000e+00> : vector<8x8xf32>
    %62 = tpu.matmul %61, %44, %cst_40 {dimension_numbers = #tpu.dot_dimension_numbers<[1], [0], [0], [1], [0, 0, 1, 1], [], []>} : vector<8x8xf32>, vector<8x8xf32>, vector<8x8xf32> -> vector<8x8xf32>
    %c0_41 = arith.constant 0 : index
    %c0_42 = arith.constant 0 : index
    %63 = vector.load %arg11[%c0_41, %c0_42] : memref<32x32xf32, #tpu.memory_space<vmem>>, vector<8x32xf32>
    %cst_43 = arith.constant dense<0.000000e+00> : vector<8x32xf32>
    %64 = tpu.matmul %62, %63, %cst_43 {dimension_numbers = #tpu.dot_dimension_numbers<[1], [0], [0], [1], [0, 0, 1, 1], [], []>} : vector<8x8xf32>, vector<8x32xf32>, vector<8x32xf32> -> vector<8x32xf32>
    %c0_44 = arith.constant 0 : index
    %c8 = arith.constant 8 : index
    %65 = vector.load %arg5[%c0_44, %c8] : memref<32x32xf32, #tpu.memory_space<vmem>>, vector<32x8xf32>
    %cst_45 = arith.constant dense<0.000000e+00> : vector<8x8xf32>
    %66 = tpu.matmul %29, %65, %cst_45 {dimension_numbers = #tpu.dot_dimension_numbers<[1], [0], [0], [1], [0, 0, 1, 1], [], []>} : vector<8x32xf32>, vector<32x8xf32>, vector<8x8xf32> -> vector<8x8xf32>
    %c0_46 = arith.constant 0 : index
    %c8_47 = arith.constant 8 : index
    %67 = vector.load %arg6[%c0_46, %c8_47] : memref<1x32xf32, #tpu.memory_space<vmem>>, vector<1x8xf32>
    %68 = vector.broadcast %67 : vector<1x8xf32> to vector<8x8xf32>
    %69 = arith.addf %66, %68 : vector<8x8xf32>
    %c0_48 = arith.constant 0 : index
    %c8_49 = arith.constant 8 : index
    %70 = vector.load %arg7[%c0_48, %c8_49] : memref<32x32xf32, #tpu.memory_space<vmem>>, vector<32x8xf32>
    %cst_50 = arith.constant dense<0.000000e+00> : vector<8x8xf32>
    %71 = tpu.matmul %29, %70, %cst_50 {dimension_numbers = #tpu.dot_dimension_numbers<[1], [0], [0], [1], [0, 0, 1, 1], [], []>} : vector<8x32xf32>, vector<32x8xf32>, vector<8x8xf32> -> vector<8x8xf32>
    %c0_51 = arith.constant 0 : index
    %c8_52 = arith.constant 8 : index
    %72 = vector.load %arg8[%c0_51, %c8_52] : memref<1x32xf32, #tpu.memory_space<vmem>>, vector<1x8xf32>
    %73 = vector.broadcast %72 : vector<1x8xf32> to vector<8x8xf32>
    %74 = arith.addf %71, %73 : vector<8x8xf32>
    %c0_53 = arith.constant 0 : index
    %c8_54 = arith.constant 8 : index
    %75 = vector.load %arg9[%c0_53, %c8_54] : memref<32x32xf32, #tpu.memory_space<vmem>>, vector<32x8xf32>
    %cst_55 = arith.constant dense<0.000000e+00> : vector<8x8xf32>
    %76 = tpu.matmul %29, %75, %cst_55 {dimension_numbers = #tpu.dot_dimension_numbers<[1], [0], [0], [1], [0, 0, 1, 1], [], []>} : vector<8x32xf32>, vector<32x8xf32>, vector<8x8xf32> -> vector<8x8xf32>
    %c0_56 = arith.constant 0 : index
    %c8_57 = arith.constant 8 : index
    %77 = vector.load %arg10[%c0_56, %c8_57] : memref<1x32xf32, #tpu.memory_space<vmem>>, vector<1x8xf32>
    %78 = vector.broadcast %77 : vector<1x8xf32> to vector<8x8xf32>
    %79 = arith.addf %76, %78 : vector<8x8xf32>
    %cst_58 = arith.constant dense<0.000000e+00> : vector<8x8xf32>
    %80 = tpu.matmul %69, %74, %cst_58 {dimension_numbers = #tpu.dot_dimension_numbers<[1], [1], [0], [0], [0, 0, 1, 0], [], []>} : vector<8x8xf32>, vector<8x8xf32>, vector<8x8xf32> -> vector<8x8xf32>
    %cst_59 = arith.constant 0.353553385 : f32
    %81 = vector.broadcast %cst_59 : f32 to vector<8x8xf32>
    %82 = arith.mulf %80, %81 : vector<8x8xf32>
    %cst_60 = arith.constant 0.000000e+00 : f32
    %83 = vector.broadcast %cst_60 : f32 to vector<8x8xf32>
    %84 = arith.cmpf oeq, %5, %83 : vector<8x8xf32>
    %cst_61 = arith.constant -1.000000e+09 : f32
    %85 = vector.broadcast %cst_61 : f32 to vector<8x8xf32>
    %86 = arith.select %84, %85, %82 : vector<8x8xi1>, vector<8x8xf32>
    %cst_62 = arith.constant dense<0xFF800000> : vector<8xf32>
    %87 = vector.multi_reduction <maximumf>, %86, %cst_62 [1] : vector<8x8xf32> to vector<8xf32>
    %88 = vector.shape_cast %87 : vector<8xf32> to vector<8x1xf32>
    %89 = vector.broadcast %88 : vector<8x1xf32> to vector<8x8xf32>
    %90 = arith.subf %86, %89 : vector<8x8xf32>
    %91 = math.exp %90 : vector<8x8xf32>
    %cst_63 = arith.constant dense<0.000000e+00> : vector<8xf32>
    %92 = vector.multi_reduction <add>, %91, %cst_63 [1] : vector<8x8xf32> to vector<8xf32>
    %93 = vector.shape_cast %92 : vector<8xf32> to vector<8x1xf32>
    %94 = tpu.reciprocal %93 : vector<8x1xf32> -> vector<8x1xf32>
    %95 = vector.broadcast %94 : vector<8x1xf32> to vector<8x8xf32>
    %96 = arith.mulf %91, %95 : vector<8x8xf32>
    %cst_64 = arith.constant dense<0.000000e+00> : vector<8x8xf32>
    %97 = tpu.matmul %96, %79, %cst_64 {dimension_numbers = #tpu.dot_dimension_numbers<[1], [0], [0], [1], [0, 0, 1, 1], [], []>} : vector<8x8xf32>, vector<8x8xf32>, vector<8x8xf32> -> vector<8x8xf32>
    %c8_65 = arith.constant 8 : index
    %c0_66 = arith.constant 0 : index
    %98 = vector.load %arg11[%c8_65, %c0_66] : memref<32x32xf32, #tpu.memory_space<vmem>>, vector<8x32xf32>
    %cst_67 = arith.constant dense<0.000000e+00> : vector<8x32xf32>
    %99 = tpu.matmul %97, %98, %cst_67 {dimension_numbers = #tpu.dot_dimension_numbers<[1], [0], [0], [1], [0, 0, 1, 1], [], []>} : vector<8x8xf32>, vector<8x32xf32>, vector<8x32xf32> -> vector<8x32xf32>
    %100 = arith.addf %64, %99 : vector<8x32xf32>
    %c0_68 = arith.constant 0 : index
    %c16 = arith.constant 16 : index
    %101 = vector.load %arg5[%c0_68, %c16] : memref<32x32xf32, #tpu.memory_space<vmem>>, vector<32x8xf32>
    %cst_69 = arith.constant dense<0.000000e+00> : vector<8x8xf32>
    %102 = tpu.matmul %29, %101, %cst_69 {dimension_numbers = #tpu.dot_dimension_numbers<[1], [0], [0], [1], [0, 0, 1, 1], [], []>} : vector<8x32xf32>, vector<32x8xf32>, vector<8x8xf32> -> vector<8x8xf32>
    %c0_70 = arith.constant 0 : index
    %c16_71 = arith.constant 16 : index
    %103 = vector.load %arg6[%c0_70, %c16_71] : memref<1x32xf32, #tpu.memory_space<vmem>>, vector<1x8xf32>
    %104 = vector.broadcast %103 : vector<1x8xf32> to vector<8x8xf32>
    %105 = arith.addf %102, %104 : vector<8x8xf32>
    %c0_72 = arith.constant 0 : index
    %c16_73 = arith.constant 16 : index
    %106 = vector.load %arg7[%c0_72, %c16_73] : memref<32x32xf32, #tpu.memory_space<vmem>>, vector<32x8xf32>
    %cst_74 = arith.constant dense<0.000000e+00> : vector<8x8xf32>
    %107 = tpu.matmul %29, %106, %cst_74 {dimension_numbers = #tpu.dot_dimension_numbers<[1], [0], [0], [1], [0, 0, 1, 1], [], []>} : vector<8x32xf32>, vector<32x8xf32>, vector<8x8xf32> -> vector<8x8xf32>
    %c0_75 = arith.constant 0 : index
    %c16_76 = arith.constant 16 : index
    %108 = vector.load %arg8[%c0_75, %c16_76] : memref<1x32xf32, #tpu.memory_space<vmem>>, vector<1x8xf32>
    %109 = vector.broadcast %108 : vector<1x8xf32> to vector<8x8xf32>
    %110 = arith.addf %107, %109 : vector<8x8xf32>
    %c0_77 = arith.constant 0 : index
    %c16_78 = arith.constant 16 : index
    %111 = vector.load %arg9[%c0_77, %c16_78] : memref<32x32xf32, #tpu.memory_space<vmem>>, vector<32x8xf32>
    %cst_79 = arith.constant dense<0.000000e+00> : vector<8x8xf32>
    %112 = tpu.matmul %29, %111, %cst_79 {dimension_numbers = #tpu.dot_dimension_numbers<[1], [0], [0], [1], [0, 0, 1, 1], [], []>} : vector<8x32xf32>, vector<32x8xf32>, vector<8x8xf32> -> vector<8x8xf32>
    %c0_80 = arith.constant 0 : index
    %c16_81 = arith.constant 16 : index
    %113 = vector.load %arg10[%c0_80, %c16_81] : memref<1x32xf32, #tpu.memory_space<vmem>>, vector<1x8xf32>
    %114 = vector.broadcast %113 : vector<1x8xf32> to vector<8x8xf32>
    %115 = arith.addf %112, %114 : vector<8x8xf32>
    %cst_82 = arith.constant dense<0.000000e+00> : vector<8x8xf32>
    %116 = tpu.matmul %105, %110, %cst_82 {dimension_numbers = #tpu.dot_dimension_numbers<[1], [1], [0], [0], [0, 0, 1, 0], [], []>} : vector<8x8xf32>, vector<8x8xf32>, vector<8x8xf32> -> vector<8x8xf32>
    %cst_83 = arith.constant 0.353553385 : f32
    %117 = vector.broadcast %cst_83 : f32 to vector<8x8xf32>
    %118 = arith.mulf %116, %117 : vector<8x8xf32>
    %cst_84 = arith.constant 0.000000e+00 : f32
    %119 = vector.broadcast %cst_84 : f32 to vector<8x8xf32>
    %120 = arith.cmpf oeq, %5, %119 : vector<8x8xf32>
    %cst_85 = arith.constant -1.000000e+09 : f32
    %121 = vector.broadcast %cst_85 : f32 to vector<8x8xf32>
    %122 = arith.select %120, %121, %118 : vector<8x8xi1>, vector<8x8xf32>
    %cst_86 = arith.constant dense<0xFF800000> : vector<8xf32>
    %123 = vector.multi_reduction <maximumf>, %122, %cst_86 [1] : vector<8x8xf32> to vector<8xf32>
    %124 = vector.shape_cast %123 : vector<8xf32> to vector<8x1xf32>
    %125 = vector.broadcast %124 : vector<8x1xf32> to vector<8x8xf32>
    %126 = arith.subf %122, %125 : vector<8x8xf32>
    %127 = math.exp %126 : vector<8x8xf32>
    %cst_87 = arith.constant dense<0.000000e+00> : vector<8xf32>
    %128 = vector.multi_reduction <add>, %127, %cst_87 [1] : vector<8x8xf32> to vector<8xf32>
    %129 = vector.shape_cast %128 : vector<8xf32> to vector<8x1xf32>
    %130 = tpu.reciprocal %129 : vector<8x1xf32> -> vector<8x1xf32>
    %131 = vector.broadcast %130 : vector<8x1xf32> to vector<8x8xf32>
    %132 = arith.mulf %127, %131 : vector<8x8xf32>
    %cst_88 = arith.constant dense<0.000000e+00> : vector<8x8xf32>
    %133 = tpu.matmul %132, %115, %cst_88 {dimension_numbers = #tpu.dot_dimension_numbers<[1], [0], [0], [1], [0, 0, 1, 1], [], []>} : vector<8x8xf32>, vector<8x8xf32>, vector<8x8xf32> -> vector<8x8xf32>
    %c16_89 = arith.constant 16 : index
    %c0_90 = arith.constant 0 : index
    %134 = vector.load %arg11[%c16_89, %c0_90] : memref<32x32xf32, #tpu.memory_space<vmem>>, vector<8x32xf32>
    %cst_91 = arith.constant dense<0.000000e+00> : vector<8x32xf32>
    %135 = tpu.matmul %133, %134, %cst_91 {dimension_numbers = #tpu.dot_dimension_numbers<[1], [0], [0], [1], [0, 0, 1, 1], [], []>} : vector<8x8xf32>, vector<8x32xf32>, vector<8x32xf32> -> vector<8x32xf32>
    %136 = arith.addf %100, %135 : vector<8x32xf32>
    %c0_92 = arith.constant 0 : index
    %c24 = arith.constant 24 : index
    %137 = vector.load %arg5[%c0_92, %c24] : memref<32x32xf32, #tpu.memory_space<vmem>>, vector<32x8xf32>
    %cst_93 = arith.constant dense<0.000000e+00> : vector<8x8xf32>
    %138 = tpu.matmul %29, %137, %cst_93 {dimension_numbers = #tpu.dot_dimension_numbers<[1], [0], [0], [1], [0, 0, 1, 1], [], []>} : vector<8x32xf32>, vector<32x8xf32>, vector<8x8xf32> -> vector<8x8xf32>
    %c0_94 = arith.constant 0 : index
    %c24_95 = arith.constant 24 : index
    %139 = vector.load %arg6[%c0_94, %c24_95] : memref<1x32xf32, #tpu.memory_space<vmem>>, vector<1x8xf32>
    %140 = vector.broadcast %139 : vector<1x8xf32> to vector<8x8xf32>
    %141 = arith.addf %138, %140 : vector<8x8xf32>
    %c0_96 = arith.constant 0 : index
    %c24_97 = arith.constant 24 : index
    %142 = vector.load %arg7[%c0_96, %c24_97] : memref<32x32xf32, #tpu.memory_space<vmem>>, vector<32x8xf32>
    %cst_98 = arith.constant dense<0.000000e+00> : vector<8x8xf32>
    %143 = tpu.matmul %29, %142, %cst_98 {dimension_numbers = #tpu.dot_dimension_numbers<[1], [0], [0], [1], [0, 0, 1, 1], [], []>} : vector<8x32xf32>, vector<32x8xf32>, vector<8x8xf32> -> vector<8x8xf32>
    %c0_99 = arith.constant 0 : index
    %c24_100 = arith.constant 24 : index
    %144 = vector.load %arg8[%c0_99, %c24_100] : memref<1x32xf32, #tpu.memory_space<vmem>>, vector<1x8xf32>
    %145 = vector.broadcast %144 : vector<1x8xf32> to vector<8x8xf32>
    %146 = arith.addf %143, %145 : vector<8x8xf32>
    %c0_101 = arith.constant 0 : index
    %c24_102 = arith.constant 24 : index
    %147 = vector.load %arg9[%c0_101, %c24_102] : memref<32x32xf32, #tpu.memory_space<vmem>>, vector<32x8xf32>
    %cst_103 = arith.constant dense<0.000000e+00> : vector<8x8xf32>
    %148 = tpu.matmul %29, %147, %cst_103 {dimension_numbers = #tpu.dot_dimension_numbers<[1], [0], [0], [1], [0, 0, 1, 1], [], []>} : vector<8x32xf32>, vector<32x8xf32>, vector<8x8xf32> -> vector<8x8xf32>
    %c0_104 = arith.constant 0 : index
    %c24_105 = arith.constant 24 : index
    %149 = vector.load %arg10[%c0_104, %c24_105] : memref<1x32xf32, #tpu.memory_space<vmem>>, vector<1x8xf32>
    %150 = vector.broadcast %149 : vector<1x8xf32> to vector<8x8xf32>
    %151 = arith.addf %148, %150 : vector<8x8xf32>
    %cst_106 = arith.constant dense<0.000000e+00> : vector<8x8xf32>
    %152 = tpu.matmul %141, %146, %cst_106 {dimension_numbers = #tpu.dot_dimension_numbers<[1], [1], [0], [0], [0, 0, 1, 0], [], []>} : vector<8x8xf32>, vector<8x8xf32>, vector<8x8xf32> -> vector<8x8xf32>
    %cst_107 = arith.constant 0.353553385 : f32
    %153 = vector.broadcast %cst_107 : f32 to vector<8x8xf32>
    %154 = arith.mulf %152, %153 : vector<8x8xf32>
    %cst_108 = arith.constant 0.000000e+00 : f32
    %155 = vector.broadcast %cst_108 : f32 to vector<8x8xf32>
    %156 = arith.cmpf oeq, %5, %155 : vector<8x8xf32>
    %cst_109 = arith.constant -1.000000e+09 : f32
    %157 = vector.broadcast %cst_109 : f32 to vector<8x8xf32>
    %158 = arith.select %156, %157, %154 : vector<8x8xi1>, vector<8x8xf32>
    %cst_110 = arith.constant dense<0xFF800000> : vector<8xf32>
    %159 = vector.multi_reduction <maximumf>, %158, %cst_110 [1] : vector<8x8xf32> to vector<8xf32>
    %160 = vector.shape_cast %159 : vector<8xf32> to vector<8x1xf32>
    %161 = vector.broadcast %160 : vector<8x1xf32> to vector<8x8xf32>
    %162 = arith.subf %158, %161 : vector<8x8xf32>
    %163 = math.exp %162 : vector<8x8xf32>
    %cst_111 = arith.constant dense<0.000000e+00> : vector<8xf32>
    %164 = vector.multi_reduction <add>, %163, %cst_111 [1] : vector<8x8xf32> to vector<8xf32>
    %165 = vector.shape_cast %164 : vector<8xf32> to vector<8x1xf32>
    %166 = tpu.reciprocal %165 : vector<8x1xf32> -> vector<8x1xf32>
    %167 = vector.broadcast %166 : vector<8x1xf32> to vector<8x8xf32>
    %168 = arith.mulf %163, %167 : vector<8x8xf32>
    %cst_112 = arith.constant dense<0.000000e+00> : vector<8x8xf32>
    %169 = tpu.matmul %168, %151, %cst_112 {dimension_numbers = #tpu.dot_dimension_numbers<[1], [0], [0], [1], [0, 0, 1, 1], [], []>} : vector<8x8xf32>, vector<8x8xf32>, vector<8x8xf32> -> vector<8x8xf32>
    %c24_113 = arith.constant 24 : index
    %c0_114 = arith.constant 0 : index
    %170 = vector.load %arg11[%c24_113, %c0_114] : memref<32x32xf32, #tpu.memory_space<vmem>>, vector<8x32xf32>
    %cst_115 = arith.constant dense<0.000000e+00> : vector<8x32xf32>
    %171 = tpu.matmul %169, %170, %cst_115 {dimension_numbers = #tpu.dot_dimension_numbers<[1], [0], [0], [1], [0, 0, 1, 1], [], []>} : vector<8x8xf32>, vector<8x32xf32>, vector<8x32xf32> -> vector<8x32xf32>
    %172 = arith.addf %136, %171 : vector<8x32xf32>
    %c0_116 = arith.constant 0 : index
    %c0_117 = arith.constant 0 : index
    %173 = vector.load %arg12[%c0_116, %c0_117] : memref<1x32xf32, #tpu.memory_space<vmem>>, vector<1x32xf32>
    %174 = vector.broadcast %173 : vector<1x32xf32> to vector<8x32xf32>
    %175 = arith.addf %172, %174 : vector<8x32xf32>
    %176 = arith.addf %1, %175 : vector<8x32xf32>
    %cst_118 = arith.constant dense<0.000000e+00> : vector<8xf32>
    %177 = vector.multi_reduction <add>, %176, %cst_118 [1] : vector<8x32xf32> to vector<8xf32>
    %178 = vector.shape_cast %177 : vector<8xf32> to vector<8x1xf32>
    %cst_119 = arith.constant 3.200000e+01 : f32
    %179 = vector.broadcast %cst_119 : f32 to vector<8x1xf32>
    %180 = arith.divf %178, %179 : vector<8x1xf32>
    %181 = vector.broadcast %180 : vector<8x1xf32> to vector<8x32xf32>
    %182 = arith.subf %176, %181 : vector<8x32xf32>
    %183 = arith.mulf %182, %182 : vector<8x32xf32>
    %cst_120 = arith.constant dense<0.000000e+00> : vector<8xf32>
    %184 = vector.multi_reduction <add>, %183, %cst_120 [1] : vector<8x32xf32> to vector<8xf32>
    %185 = vector.shape_cast %184 : vector<8xf32> to vector<8x1xf32>
    %cst_121 = arith.constant 3.200000e+01 : f32
    %186 = vector.broadcast %cst_121 : f32 to vector<8x1xf32>
    %187 = arith.divf %185, %186 : vector<8x1xf32>
    %cst_122 = arith.constant 9.99999974E-6 : f32
    %188 = vector.broadcast %cst_122 : f32 to vector<8x1xf32>
    %189 = arith.addf %187, %188 : vector<8x1xf32>
    %190 = math.rsqrt %189 : vector<8x1xf32>
    %191 = vector.broadcast %190 : vector<8x1xf32> to vector<8x32xf32>
    %192 = arith.mulf %182, %191 : vector<8x32xf32>
    %c0_123 = arith.constant 0 : index
    %c0_124 = arith.constant 0 : index
    %193 = vector.load %arg27[%c0_123, %c0_124] : memref<1x32xf32, #tpu.memory_space<vmem>>, vector<1x32xf32>
    %194 = vector.broadcast %193 : vector<1x32xf32> to vector<8x32xf32>
    %195 = arith.mulf %192, %194 : vector<8x32xf32>
    %c0_125 = arith.constant 0 : index
    %c0_126 = arith.constant 0 : index
    %196 = vector.load %arg28[%c0_125, %c0_126] : memref<1x32xf32, #tpu.memory_space<vmem>>, vector<1x32xf32>
    %197 = vector.broadcast %196 : vector<1x32xf32> to vector<8x32xf32>
    %198 = arith.addf %195, %197 : vector<8x32xf32>
    %cst_127 = arith.constant dense<0.000000e+00> : vector<8xf32>
    %199 = vector.multi_reduction <add>, %3, %cst_127 [1] : vector<8x32xf32> to vector<8xf32>
    %200 = vector.shape_cast %199 : vector<8xf32> to vector<8x1xf32>
    %cst_128 = arith.constant 3.200000e+01 : f32
    %201 = vector.broadcast %cst_128 : f32 to vector<8x1xf32>
    %202 = arith.divf %200, %201 : vector<8x1xf32>
    %203 = vector.broadcast %202 : vector<8x1xf32> to vector<8x32xf32>
    %204 = arith.subf %3, %203 : vector<8x32xf32>
    %205 = arith.mulf %204, %204 : vector<8x32xf32>
    %cst_129 = arith.constant dense<0.000000e+00> : vector<8xf32>
    %206 = vector.multi_reduction <add>, %205, %cst_129 [1] : vector<8x32xf32> to vector<8xf32>
    %207 = vector.shape_cast %206 : vector<8xf32> to vector<8x1xf32>
    %cst_130 = arith.constant 3.200000e+01 : f32
    %208 = vector.broadcast %cst_130 : f32 to vector<8x1xf32>
    %209 = arith.divf %207, %208 : vector<8x1xf32>
    %cst_131 = arith.constant 9.99999974E-6 : f32
    %210 = vector.broadcast %cst_131 : f32 to vector<8x1xf32>
    %211 = arith.addf %209, %210 : vector<8x1xf32>
    %212 = math.rsqrt %211 : vector<8x1xf32>
    %213 = vector.broadcast %212 : vector<8x1xf32> to vector<8x32xf32>
    %214 = arith.mulf %204, %213 : vector<8x32xf32>
    %c0_132 = arith.constant 0 : index
    %c0_133 = arith.constant 0 : index
    %215 = vector.load %arg27[%c0_132, %c0_133] : memref<1x32xf32, #tpu.memory_space<vmem>>, vector<1x32xf32>
    %216 = vector.broadcast %215 : vector<1x32xf32> to vector<8x32xf32>
    %217 = arith.mulf %214, %216 : vector<8x32xf32>
    %c0_134 = arith.constant 0 : index
    %c0_135 = arith.constant 0 : index
    %218 = vector.load %arg28[%c0_134, %c0_135] : memref<1x32xf32, #tpu.memory_space<vmem>>, vector<1x32xf32>
    %219 = vector.broadcast %218 : vector<1x32xf32> to vector<8x32xf32>
    %220 = arith.addf %217, %219 : vector<8x32xf32>
    %c0_136 = arith.constant 0 : index
    %c0_137 = arith.constant 0 : index
    %221 = vector.load %arg13[%c0_136, %c0_137] : memref<32x32xf32, #tpu.memory_space<vmem>>, vector<32x8xf32>
    %cst_138 = arith.constant dense<0.000000e+00> : vector<8x8xf32>
    %222 = tpu.matmul %198, %221, %cst_138 {dimension_numbers = #tpu.dot_dimension_numbers<[1], [0], [0], [1], [0, 0, 1, 1], [], []>} : vector<8x32xf32>, vector<32x8xf32>, vector<8x8xf32> -> vector<8x8xf32>
    %c0_139 = arith.constant 0 : index
    %c0_140 = arith.constant 0 : index
    %223 = vector.load %arg14[%c0_139, %c0_140] : memref<1x32xf32, #tpu.memory_space<vmem>>, vector<1x8xf32>
    %224 = vector.broadcast %223 : vector<1x8xf32> to vector<8x8xf32>
    %225 = arith.addf %222, %224 : vector<8x8xf32>
    %c0_141 = arith.constant 0 : index
    %c0_142 = arith.constant 0 : index
    %226 = vector.load %arg15[%c0_141, %c0_142] : memref<32x32xf32, #tpu.memory_space<vmem>>, vector<32x8xf32>
    %cst_143 = arith.constant dense<0.000000e+00> : vector<8x8xf32>
    %227 = tpu.matmul %220, %226, %cst_143 {dimension_numbers = #tpu.dot_dimension_numbers<[1], [0], [0], [1], [0, 0, 1, 1], [], []>} : vector<8x32xf32>, vector<32x8xf32>, vector<8x8xf32> -> vector<8x8xf32>
    %c0_144 = arith.constant 0 : index
    %c0_145 = arith.constant 0 : index
    %228 = vector.load %arg16[%c0_144, %c0_145] : memref<1x32xf32, #tpu.memory_space<vmem>>, vector<1x8xf32>
    %229 = vector.broadcast %228 : vector<1x8xf32> to vector<8x8xf32>
    %230 = arith.addf %227, %229 : vector<8x8xf32>
    %c0_146 = arith.constant 0 : index
    %c0_147 = arith.constant 0 : index
    %231 = vector.load %arg17[%c0_146, %c0_147] : memref<32x32xf32, #tpu.memory_space<vmem>>, vector<32x8xf32>
    %cst_148 = arith.constant dense<0.000000e+00> : vector<8x8xf32>
    %232 = tpu.matmul %220, %231, %cst_148 {dimension_numbers = #tpu.dot_dimension_numbers<[1], [0], [0], [1], [0, 0, 1, 1], [], []>} : vector<8x32xf32>, vector<32x8xf32>, vector<8x8xf32> -> vector<8x8xf32>
    %c0_149 = arith.constant 0 : index
    %c0_150 = arith.constant 0 : index
    %233 = vector.load %arg18[%c0_149, %c0_150] : memref<1x32xf32, #tpu.memory_space<vmem>>, vector<1x8xf32>
    %234 = vector.broadcast %233 : vector<1x8xf32> to vector<8x8xf32>
    %235 = arith.addf %232, %234 : vector<8x8xf32>
    %cst_151 = arith.constant dense<0.000000e+00> : vector<8x8xf32>
    %236 = tpu.matmul %225, %230, %cst_151 {dimension_numbers = #tpu.dot_dimension_numbers<[1], [1], [0], [0], [0, 0, 1, 0], [], []>} : vector<8x8xf32>, vector<8x8xf32>, vector<8x8xf32> -> vector<8x8xf32>
    %cst_152 = arith.constant 0.353553385 : f32
    %237 = vector.broadcast %cst_152 : f32 to vector<8x8xf32>
    %238 = arith.mulf %236, %237 : vector<8x8xf32>
    %cst_153 = arith.constant 0.000000e+00 : f32
    %239 = vector.broadcast %cst_153 : f32 to vector<8x8xf32>
    %240 = arith.cmpf oeq, %7, %239 : vector<8x8xf32>
    %cst_154 = arith.constant -1.000000e+09 : f32
    %241 = vector.broadcast %cst_154 : f32 to vector<8x8xf32>
    %242 = arith.select %240, %241, %238 : vector<8x8xi1>, vector<8x8xf32>
    %cst_155 = arith.constant dense<0xFF800000> : vector<8xf32>
    %243 = vector.multi_reduction <maximumf>, %242, %cst_155 [1] : vector<8x8xf32> to vector<8xf32>
    %244 = vector.shape_cast %243 : vector<8xf32> to vector<8x1xf32>
    %245 = vector.broadcast %244 : vector<8x1xf32> to vector<8x8xf32>
    %246 = arith.subf %242, %245 : vector<8x8xf32>
    %247 = math.exp %246 : vector<8x8xf32>
    %cst_156 = arith.constant dense<0.000000e+00> : vector<8xf32>
    %248 = vector.multi_reduction <add>, %247, %cst_156 [1] : vector<8x8xf32> to vector<8xf32>
    %249 = vector.shape_cast %248 : vector<8xf32> to vector<8x1xf32>
    %250 = tpu.reciprocal %249 : vector<8x1xf32> -> vector<8x1xf32>
    %251 = vector.broadcast %250 : vector<8x1xf32> to vector<8x8xf32>
    %252 = arith.mulf %247, %251 : vector<8x8xf32>
    %cst_157 = arith.constant dense<0.000000e+00> : vector<8x8xf32>
    %253 = tpu.matmul %252, %235, %cst_157 {dimension_numbers = #tpu.dot_dimension_numbers<[1], [0], [0], [1], [0, 0, 1, 1], [], []>} : vector<8x8xf32>, vector<8x8xf32>, vector<8x8xf32> -> vector<8x8xf32>
    %c0_158 = arith.constant 0 : index
    %c0_159 = arith.constant 0 : index
    %254 = vector.load %arg19[%c0_158, %c0_159] : memref<32x32xf32, #tpu.memory_space<vmem>>, vector<8x32xf32>
    %cst_160 = arith.constant dense<0.000000e+00> : vector<8x32xf32>
    %255 = tpu.matmul %253, %254, %cst_160 {dimension_numbers = #tpu.dot_dimension_numbers<[1], [0], [0], [1], [0, 0, 1, 1], [], []>} : vector<8x8xf32>, vector<8x32xf32>, vector<8x32xf32> -> vector<8x32xf32>
    %c0_161 = arith.constant 0 : index
    %c8_162 = arith.constant 8 : index
    %256 = vector.load %arg13[%c0_161, %c8_162] : memref<32x32xf32, #tpu.memory_space<vmem>>, vector<32x8xf32>
    %cst_163 = arith.constant dense<0.000000e+00> : vector<8x8xf32>
    %257 = tpu.matmul %198, %256, %cst_163 {dimension_numbers = #tpu.dot_dimension_numbers<[1], [0], [0], [1], [0, 0, 1, 1], [], []>} : vector<8x32xf32>, vector<32x8xf32>, vector<8x8xf32> -> vector<8x8xf32>
    %c0_164 = arith.constant 0 : index
    %c8_165 = arith.constant 8 : index
    %258 = vector.load %arg14[%c0_164, %c8_165] : memref<1x32xf32, #tpu.memory_space<vmem>>, vector<1x8xf32>
    %259 = vector.broadcast %258 : vector<1x8xf32> to vector<8x8xf32>
    %260 = arith.addf %257, %259 : vector<8x8xf32>
    %c0_166 = arith.constant 0 : index
    %c8_167 = arith.constant 8 : index
    %261 = vector.load %arg15[%c0_166, %c8_167] : memref<32x32xf32, #tpu.memory_space<vmem>>, vector<32x8xf32>
    %cst_168 = arith.constant dense<0.000000e+00> : vector<8x8xf32>
    %262 = tpu.matmul %220, %261, %cst_168 {dimension_numbers = #tpu.dot_dimension_numbers<[1], [0], [0], [1], [0, 0, 1, 1], [], []>} : vector<8x32xf32>, vector<32x8xf32>, vector<8x8xf32> -> vector<8x8xf32>
    %c0_169 = arith.constant 0 : index
    %c8_170 = arith.constant 8 : index
    %263 = vector.load %arg16[%c0_169, %c8_170] : memref<1x32xf32, #tpu.memory_space<vmem>>, vector<1x8xf32>
    %264 = vector.broadcast %263 : vector<1x8xf32> to vector<8x8xf32>
    %265 = arith.addf %262, %264 : vector<8x8xf32>
    %c0_171 = arith.constant 0 : index
    %c8_172 = arith.constant 8 : index
    %266 = vector.load %arg17[%c0_171, %c8_172] : memref<32x32xf32, #tpu.memory_space<vmem>>, vector<32x8xf32>
    %cst_173 = arith.constant dense<0.000000e+00> : vector<8x8xf32>
    %267 = tpu.matmul %220, %266, %cst_173 {dimension_numbers = #tpu.dot_dimension_numbers<[1], [0], [0], [1], [0, 0, 1, 1], [], []>} : vector<8x32xf32>, vector<32x8xf32>, vector<8x8xf32> -> vector<8x8xf32>
    %c0_174 = arith.constant 0 : index
    %c8_175 = arith.constant 8 : index
    %268 = vector.load %arg18[%c0_174, %c8_175] : memref<1x32xf32, #tpu.memory_space<vmem>>, vector<1x8xf32>
    %269 = vector.broadcast %268 : vector<1x8xf32> to vector<8x8xf32>
    %270 = arith.addf %267, %269 : vector<8x8xf32>
    %cst_176 = arith.constant dense<0.000000e+00> : vector<8x8xf32>
    %271 = tpu.matmul %260, %265, %cst_176 {dimension_numbers = #tpu.dot_dimension_numbers<[1], [1], [0], [0], [0, 0, 1, 0], [], []>} : vector<8x8xf32>, vector<8x8xf32>, vector<8x8xf32> -> vector<8x8xf32>
    %cst_177 = arith.constant 0.353553385 : f32
    %272 = vector.broadcast %cst_177 : f32 to vector<8x8xf32>
    %273 = arith.mulf %271, %272 : vector<8x8xf32>
    %cst_178 = arith.constant 0.000000e+00 : f32
    %274 = vector.broadcast %cst_178 : f32 to vector<8x8xf32>
    %275 = arith.cmpf oeq, %7, %274 : vector<8x8xf32>
    %cst_179 = arith.constant -1.000000e+09 : f32
    %276 = vector.broadcast %cst_179 : f32 to vector<8x8xf32>
    %277 = arith.select %275, %276, %273 : vector<8x8xi1>, vector<8x8xf32>
    %cst_180 = arith.constant dense<0xFF800000> : vector<8xf32>
    %278 = vector.multi_reduction <maximumf>, %277, %cst_180 [1] : vector<8x8xf32> to vector<8xf32>
    %279 = vector.shape_cast %278 : vector<8xf32> to vector<8x1xf32>
    %280 = vector.broadcast %279 : vector<8x1xf32> to vector<8x8xf32>
    %281 = arith.subf %277, %280 : vector<8x8xf32>
    %282 = math.exp %281 : vector<8x8xf32>
    %cst_181 = arith.constant dense<0.000000e+00> : vector<8xf32>
    %283 = vector.multi_reduction <add>, %282, %cst_181 [1] : vector<8x8xf32> to vector<8xf32>
    %284 = vector.shape_cast %283 : vector<8xf32> to vector<8x1xf32>
    %285 = tpu.reciprocal %284 : vector<8x1xf32> -> vector<8x1xf32>
    %286 = vector.broadcast %285 : vector<8x1xf32> to vector<8x8xf32>
    %287 = arith.mulf %282, %286 : vector<8x8xf32>
    %cst_182 = arith.constant dense<0.000000e+00> : vector<8x8xf32>
    %288 = tpu.matmul %287, %270, %cst_182 {dimension_numbers = #tpu.dot_dimension_numbers<[1], [0], [0], [1], [0, 0, 1, 1], [], []>} : vector<8x8xf32>, vector<8x8xf32>, vector<8x8xf32> -> vector<8x8xf32>
    %c8_183 = arith.constant 8 : index
    %c0_184 = arith.constant 0 : index
    %289 = vector.load %arg19[%c8_183, %c0_184] : memref<32x32xf32, #tpu.memory_space<vmem>>, vector<8x32xf32>
    %cst_185 = arith.constant dense<0.000000e+00> : vector<8x32xf32>
    %290 = tpu.matmul %288, %289, %cst_185 {dimension_numbers = #tpu.dot_dimension_numbers<[1], [0], [0], [1], [0, 0, 1, 1], [], []>} : vector<8x8xf32>, vector<8x32xf32>, vector<8x32xf32> -> vector<8x32xf32>
    %291 = arith.addf %255, %290 : vector<8x32xf32>
    %c0_186 = arith.constant 0 : index
    %c16_187 = arith.constant 16 : index
    %292 = vector.load %arg13[%c0_186, %c16_187] : memref<32x32xf32, #tpu.memory_space<vmem>>, vector<32x8xf32>
    %cst_188 = arith.constant dense<0.000000e+00> : vector<8x8xf32>
    %293 = tpu.matmul %198, %292, %cst_188 {dimension_numbers = #tpu.dot_dimension_numbers<[1], [0], [0], [1], [0, 0, 1, 1], [], []>} : vector<8x32xf32>, vector<32x8xf32>, vector<8x8xf32> -> vector<8x8xf32>
    %c0_189 = arith.constant 0 : index
    %c16_190 = arith.constant 16 : index
    %294 = vector.load %arg14[%c0_189, %c16_190] : memref<1x32xf32, #tpu.memory_space<vmem>>, vector<1x8xf32>
    %295 = vector.broadcast %294 : vector<1x8xf32> to vector<8x8xf32>
    %296 = arith.addf %293, %295 : vector<8x8xf32>
    %c0_191 = arith.constant 0 : index
    %c16_192 = arith.constant 16 : index
    %297 = vector.load %arg15[%c0_191, %c16_192] : memref<32x32xf32, #tpu.memory_space<vmem>>, vector<32x8xf32>
    %cst_193 = arith.constant dense<0.000000e+00> : vector<8x8xf32>
    %298 = tpu.matmul %220, %297, %cst_193 {dimension_numbers = #tpu.dot_dimension_numbers<[1], [0], [0], [1], [0, 0, 1, 1], [], []>} : vector<8x32xf32>, vector<32x8xf32>, vector<8x8xf32> -> vector<8x8xf32>
    %c0_194 = arith.constant 0 : index
    %c16_195 = arith.constant 16 : index
    %299 = vector.load %arg16[%c0_194, %c16_195] : memref<1x32xf32, #tpu.memory_space<vmem>>, vector<1x8xf32>
    %300 = vector.broadcast %299 : vector<1x8xf32> to vector<8x8xf32>
    %301 = arith.addf %298, %300 : vector<8x8xf32>
    %c0_196 = arith.constant 0 : index
    %c16_197 = arith.constant 16 : index
    %302 = vector.load %arg17[%c0_196, %c16_197] : memref<32x32xf32, #tpu.memory_space<vmem>>, vector<32x8xf32>
    %cst_198 = arith.constant dense<0.000000e+00> : vector<8x8xf32>
    %303 = tpu.matmul %220, %302, %cst_198 {dimension_numbers = #tpu.dot_dimension_numbers<[1], [0], [0], [1], [0, 0, 1, 1], [], []>} : vector<8x32xf32>, vector<32x8xf32>, vector<8x8xf32> -> vector<8x8xf32>
    %c0_199 = arith.constant 0 : index
    %c16_200 = arith.constant 16 : index
    %304 = vector.load %arg18[%c0_199, %c16_200] : memref<1x32xf32, #tpu.memory_space<vmem>>, vector<1x8xf32>
    %305 = vector.broadcast %304 : vector<1x8xf32> to vector<8x8xf32>
    %306 = arith.addf %303, %305 : vector<8x8xf32>
    %cst_201 = arith.constant dense<0.000000e+00> : vector<8x8xf32>
    %307 = tpu.matmul %296, %301, %cst_201 {dimension_numbers = #tpu.dot_dimension_numbers<[1], [1], [0], [0], [0, 0, 1, 0], [], []>} : vector<8x8xf32>, vector<8x8xf32>, vector<8x8xf32> -> vector<8x8xf32>
    %cst_202 = arith.constant 0.353553385 : f32
    %308 = vector.broadcast %cst_202 : f32 to vector<8x8xf32>
    %309 = arith.mulf %307, %308 : vector<8x8xf32>
    %cst_203 = arith.constant 0.000000e+00 : f32
    %310 = vector.broadcast %cst_203 : f32 to vector<8x8xf32>
    %311 = arith.cmpf oeq, %7, %310 : vector<8x8xf32>
    %cst_204 = arith.constant -1.000000e+09 : f32
    %312 = vector.broadcast %cst_204 : f32 to vector<8x8xf32>
    %313 = arith.select %311, %312, %309 : vector<8x8xi1>, vector<8x8xf32>
    %cst_205 = arith.constant dense<0xFF800000> : vector<8xf32>
    %314 = vector.multi_reduction <maximumf>, %313, %cst_205 [1] : vector<8x8xf32> to vector<8xf32>
    %315 = vector.shape_cast %314 : vector<8xf32> to vector<8x1xf32>
    %316 = vector.broadcast %315 : vector<8x1xf32> to vector<8x8xf32>
    %317 = arith.subf %313, %316 : vector<8x8xf32>
    %318 = math.exp %317 : vector<8x8xf32>
    %cst_206 = arith.constant dense<0.000000e+00> : vector<8xf32>
    %319 = vector.multi_reduction <add>, %318, %cst_206 [1] : vector<8x8xf32> to vector<8xf32>
    %320 = vector.shape_cast %319 : vector<8xf32> to vector<8x1xf32>
    %321 = tpu.reciprocal %320 : vector<8x1xf32> -> vector<8x1xf32>
    %322 = vector.broadcast %321 : vector<8x1xf32> to vector<8x8xf32>
    %323 = arith.mulf %318, %322 : vector<8x8xf32>
    %cst_207 = arith.constant dense<0.000000e+00> : vector<8x8xf32>
    %324 = tpu.matmul %323, %306, %cst_207 {dimension_numbers = #tpu.dot_dimension_numbers<[1], [0], [0], [1], [0, 0, 1, 1], [], []>} : vector<8x8xf32>, vector<8x8xf32>, vector<8x8xf32> -> vector<8x8xf32>
    %c16_208 = arith.constant 16 : index
    %c0_209 = arith.constant 0 : index
    %325 = vector.load %arg19[%c16_208, %c0_209] : memref<32x32xf32, #tpu.memory_space<vmem>>, vector<8x32xf32>
    %cst_210 = arith.constant dense<0.000000e+00> : vector<8x32xf32>
    %326 = tpu.matmul %324, %325, %cst_210 {dimension_numbers = #tpu.dot_dimension_numbers<[1], [0], [0], [1], [0, 0, 1, 1], [], []>} : vector<8x8xf32>, vector<8x32xf32>, vector<8x32xf32> -> vector<8x32xf32>
    %327 = arith.addf %291, %326 : vector<8x32xf32>
    %c0_211 = arith.constant 0 : index
    %c24_212 = arith.constant 24 : index
    %328 = vector.load %arg13[%c0_211, %c24_212] : memref<32x32xf32, #tpu.memory_space<vmem>>, vector<32x8xf32>
    %cst_213 = arith.constant dense<0.000000e+00> : vector<8x8xf32>
    %329 = tpu.matmul %198, %328, %cst_213 {dimension_numbers = #tpu.dot_dimension_numbers<[1], [0], [0], [1], [0, 0, 1, 1], [], []>} : vector<8x32xf32>, vector<32x8xf32>, vector<8x8xf32> -> vector<8x8xf32>
    %c0_214 = arith.constant 0 : index
    %c24_215 = arith.constant 24 : index
    %330 = vector.load %arg14[%c0_214, %c24_215] : memref<1x32xf32, #tpu.memory_space<vmem>>, vector<1x8xf32>
    %331 = vector.broadcast %330 : vector<1x8xf32> to vector<8x8xf32>
    %332 = arith.addf %329, %331 : vector<8x8xf32>
    %c0_216 = arith.constant 0 : index
    %c24_217 = arith.constant 24 : index
    %333 = vector.load %arg15[%c0_216, %c24_217] : memref<32x32xf32, #tpu.memory_space<vmem>>, vector<32x8xf32>
    %cst_218 = arith.constant dense<0.000000e+00> : vector<8x8xf32>
    %334 = tpu.matmul %220, %333, %cst_218 {dimension_numbers = #tpu.dot_dimension_numbers<[1], [0], [0], [1], [0, 0, 1, 1], [], []>} : vector<8x32xf32>, vector<32x8xf32>, vector<8x8xf32> -> vector<8x8xf32>
    %c0_219 = arith.constant 0 : index
    %c24_220 = arith.constant 24 : index
    %335 = vector.load %arg16[%c0_219, %c24_220] : memref<1x32xf32, #tpu.memory_space<vmem>>, vector<1x8xf32>
    %336 = vector.broadcast %335 : vector<1x8xf32> to vector<8x8xf32>
    %337 = arith.addf %334, %336 : vector<8x8xf32>
    %c0_221 = arith.constant 0 : index
    %c24_222 = arith.constant 24 : index
    %338 = vector.load %arg17[%c0_221, %c24_222] : memref<32x32xf32, #tpu.memory_space<vmem>>, vector<32x8xf32>
    %cst_223 = arith.constant dense<0.000000e+00> : vector<8x8xf32>
    %339 = tpu.matmul %220, %338, %cst_223 {dimension_numbers = #tpu.dot_dimension_numbers<[1], [0], [0], [1], [0, 0, 1, 1], [], []>} : vector<8x32xf32>, vector<32x8xf32>, vector<8x8xf32> -> vector<8x8xf32>
    %c0_224 = arith.constant 0 : index
    %c24_225 = arith.constant 24 : index
    %340 = vector.load %arg18[%c0_224, %c24_225] : memref<1x32xf32, #tpu.memory_space<vmem>>, vector<1x8xf32>
    %341 = vector.broadcast %340 : vector<1x8xf32> to vector<8x8xf32>
    %342 = arith.addf %339, %341 : vector<8x8xf32>
    %cst_226 = arith.constant dense<0.000000e+00> : vector<8x8xf32>
    %343 = tpu.matmul %332, %337, %cst_226 {dimension_numbers = #tpu.dot_dimension_numbers<[1], [1], [0], [0], [0, 0, 1, 0], [], []>} : vector<8x8xf32>, vector<8x8xf32>, vector<8x8xf32> -> vector<8x8xf32>
    %cst_227 = arith.constant 0.353553385 : f32
    %344 = vector.broadcast %cst_227 : f32 to vector<8x8xf32>
    %345 = arith.mulf %343, %344 : vector<8x8xf32>
    %cst_228 = arith.constant 0.000000e+00 : f32
    %346 = vector.broadcast %cst_228 : f32 to vector<8x8xf32>
    %347 = arith.cmpf oeq, %7, %346 : vector<8x8xf32>
    %cst_229 = arith.constant -1.000000e+09 : f32
    %348 = vector.broadcast %cst_229 : f32 to vector<8x8xf32>
    %349 = arith.select %347, %348, %345 : vector<8x8xi1>, vector<8x8xf32>
    %cst_230 = arith.constant dense<0xFF800000> : vector<8xf32>
    %350 = vector.multi_reduction <maximumf>, %349, %cst_230 [1] : vector<8x8xf32> to vector<8xf32>
    %351 = vector.shape_cast %350 : vector<8xf32> to vector<8x1xf32>
    %352 = vector.broadcast %351 : vector<8x1xf32> to vector<8x8xf32>
    %353 = arith.subf %349, %352 : vector<8x8xf32>
    %354 = math.exp %353 : vector<8x8xf32>
    %cst_231 = arith.constant dense<0.000000e+00> : vector<8xf32>
    %355 = vector.multi_reduction <add>, %354, %cst_231 [1] : vector<8x8xf32> to vector<8xf32>
    %356 = vector.shape_cast %355 : vector<8xf32> to vector<8x1xf32>
    %357 = tpu.reciprocal %356 : vector<8x1xf32> -> vector<8x1xf32>
    %358 = vector.broadcast %357 : vector<8x1xf32> to vector<8x8xf32>
    %359 = arith.mulf %354, %358 : vector<8x8xf32>
    %cst_232 = arith.constant dense<0.000000e+00> : vector<8x8xf32>
    %360 = tpu.matmul %359, %342, %cst_232 {dimension_numbers = #tpu.dot_dimension_numbers<[1], [0], [0], [1], [0, 0, 1, 1], [], []>} : vector<8x8xf32>, vector<8x8xf32>, vector<8x8xf32> -> vector<8x8xf32>
    %c24_233 = arith.constant 24 : index
    %c0_234 = arith.constant 0 : index
    %361 = vector.load %arg19[%c24_233, %c0_234] : memref<32x32xf32, #tpu.memory_space<vmem>>, vector<8x32xf32>
    %cst_235 = arith.constant dense<0.000000e+00> : vector<8x32xf32>
    %362 = tpu.matmul %360, %361, %cst_235 {dimension_numbers = #tpu.dot_dimension_numbers<[1], [0], [0], [1], [0, 0, 1, 1], [], []>} : vector<8x8xf32>, vector<8x32xf32>, vector<8x32xf32> -> vector<8x32xf32>
    %363 = arith.addf %327, %362 : vector<8x32xf32>
    %c0_236 = arith.constant 0 : index
    %c0_237 = arith.constant 0 : index
    %364 = vector.load %arg20[%c0_236, %c0_237] : memref<1x32xf32, #tpu.memory_space<vmem>>, vector<1x32xf32>
    %365 = vector.broadcast %364 : vector<1x32xf32> to vector<8x32xf32>
    %366 = arith.addf %363, %365 : vector<8x32xf32>
    %367 = arith.addf %176, %366 : vector<8x32xf32>
    %cst_238 = arith.constant dense<0.000000e+00> : vector<8xf32>
    %368 = vector.multi_reduction <add>, %367, %cst_238 [1] : vector<8x32xf32> to vector<8xf32>
    %369 = vector.shape_cast %368 : vector<8xf32> to vector<8x1xf32>
    %cst_239 = arith.constant 3.200000e+01 : f32
    %370 = vector.broadcast %cst_239 : f32 to vector<8x1xf32>
    %371 = arith.divf %369, %370 : vector<8x1xf32>
    %372 = vector.broadcast %371 : vector<8x1xf32> to vector<8x32xf32>
    %373 = arith.subf %367, %372 : vector<8x32xf32>
    %374 = arith.mulf %373, %373 : vector<8x32xf32>
    %cst_240 = arith.constant dense<0.000000e+00> : vector<8xf32>
    %375 = vector.multi_reduction <add>, %374, %cst_240 [1] : vector<8x32xf32> to vector<8xf32>
    %376 = vector.shape_cast %375 : vector<8xf32> to vector<8x1xf32>
    %cst_241 = arith.constant 3.200000e+01 : f32
    %377 = vector.broadcast %cst_241 : f32 to vector<8x1xf32>
    %378 = arith.divf %376, %377 : vector<8x1xf32>
    %cst_242 = arith.constant 9.99999974E-6 : f32
    %379 = vector.broadcast %cst_242 : f32 to vector<8x1xf32>
    %380 = arith.addf %378, %379 : vector<8x1xf32>
    %381 = math.rsqrt %380 : vector<8x1xf32>
    %382 = vector.broadcast %381 : vector<8x1xf32> to vector<8x32xf32>
    %383 = arith.mulf %373, %382 : vector<8x32xf32>
    %c0_243 = arith.constant 0 : index
    %c0_244 = arith.constant 0 : index
    %384 = vector.load %arg29[%c0_243, %c0_244] : memref<1x32xf32, #tpu.memory_space<vmem>>, vector<1x32xf32>
    %385 = vector.broadcast %384 : vector<1x32xf32> to vector<8x32xf32>
    %386 = arith.mulf %383, %385 : vector<8x32xf32>
    %c0_245 = arith.constant 0 : index
    %c0_246 = arith.constant 0 : index
    %387 = vector.load %arg30[%c0_245, %c0_246] : memref<1x32xf32, #tpu.memory_space<vmem>>, vector<1x32xf32>
    %388 = vector.broadcast %387 : vector<1x32xf32> to vector<8x32xf32>
    %389 = arith.addf %386, %388 : vector<8x32xf32>
    %c0_247 = arith.constant 0 : index
    %c0_248 = arith.constant 0 : index
    %390 = vector.load %arg21[%c0_247, %c0_248] : memref<32x64xf32, #tpu.memory_space<vmem>>, vector<32x64xf32>
    %cst_249 = arith.constant dense<0.000000e+00> : vector<8x64xf32>
    %391 = tpu.matmul %389, %390, %cst_249 {dimension_numbers = #tpu.dot_dimension_numbers<[1], [0], [0], [1], [0, 0, 1, 1], [], []>} : vector<8x32xf32>, vector<32x64xf32>, vector<8x64xf32> -> vector<8x64xf32>
    %c0_250 = arith.constant 0 : index
    %c0_251 = arith.constant 0 : index
    %392 = vector.load %arg22[%c0_250, %c0_251] : memref<1x64xf32, #tpu.memory_space<vmem>>, vector<1x64xf32>
    %393 = vector.broadcast %392 : vector<1x64xf32> to vector<8x64xf32>
    %394 = arith.addf %391, %393 : vector<8x64xf32>
    %cst_252 = arith.constant 0.000000e+00 : f32
    %395 = vector.broadcast %cst_252 : f32 to vector<8x64xf32>
    %396 = arith.maximumf %394, %395 : vector<8x64xf32>
    %c0_253 = arith.constant 0 : index
    %c0_254 = arith.constant 0 : index
    %397 = vector.load %arg23[%c0_253, %c0_254] : memref<64x32xf32, #tpu.memory_space<vmem>>, vector<64x32xf32>
    %cst_255 = arith.constant dense<0.000000e+00> : vector<8x32xf32>
    %398 = tpu.matmul %396, %397, %cst_255 {dimension_numbers = #tpu.dot_dimension_numbers<[1], [0], [0], [1], [0, 0, 1, 1], [], []>} : vector<8x64xf32>, vector<64x32xf32>, vector<8x32xf32> -> vector<8x32xf32>
    %c0_256 = arith.constant 0 : index
    %c0_257 = arith.constant 0 : index
    %399 = vector.load %arg24[%c0_256, %c0_257] : memref<1x32xf32, #tpu.memory_space<vmem>>, vector<1x32xf32>
    %400 = vector.broadcast %399 : vector<1x32xf32> to vector<8x32xf32>
    %401 = arith.addf %398, %400 : vector<8x32xf32>
    %402 = arith.addf %389, %401 : vector<8x32xf32>
    %cst_258 = arith.constant dense<0.000000e+00> : vector<8xf32>
    %403 = vector.multi_reduction <add>, %402, %cst_258 [1] : vector<8x32xf32> to vector<8xf32>
    %404 = vector.shape_cast %403 : vector<8xf32> to vector<8x1xf32>
    %cst_259 = arith.constant 3.200000e+01 : f32
    %405 = vector.broadcast %cst_259 : f32 to vector<8x1xf32>
    %406 = arith.divf %404, %405 : vector<8x1xf32>
    %407 = vector.broadcast %406 : vector<8x1xf32> to vector<8x32xf32>
    %408 = arith.subf %402, %407 : vector<8x32xf32>
    %409 = arith.mulf %408, %408 : vector<8x32xf32>
    %cst_260 = arith.constant dense<0.000000e+00> : vector<8xf32>
    %410 = vector.multi_reduction <add>, %409, %cst_260 [1] : vector<8x32xf32> to vector<8xf32>
    %411 = vector.shape_cast %410 : vector<8xf32> to vector<8x1xf32>
    %cst_261 = arith.constant 3.200000e+01 : f32
    %412 = vector.broadcast %cst_261 : f32 to vector<8x1xf32>
    %413 = arith.divf %411, %412 : vector<8x1xf32>
    %cst_262 = arith.constant 9.99999974E-6 : f32
    %414 = vector.broadcast %cst_262 : f32 to vector<8x1xf32>
    %415 = arith.addf %413, %414 : vector<8x1xf32>
    %416 = math.rsqrt %415 : vector<8x1xf32>
    %417 = vector.broadcast %416 : vector<8x1xf32> to vector<8x32xf32>
    %418 = arith.mulf %408, %417 : vector<8x32xf32>
    %c0_263 = arith.constant 0 : index
    %c0_264 = arith.constant 0 : index
    %419 = vector.load %arg31[%c0_263, %c0_264] : memref<1x32xf32, #tpu.memory_space<vmem>>, vector<1x32xf32>
    %420 = vector.broadcast %419 : vector<1x32xf32> to vector<8x32xf32>
    %421 = arith.mulf %418, %420 : vector<8x32xf32>
    %c0_265 = arith.constant 0 : index
    %c0_266 = arith.constant 0 : index
    %422 = vector.load %arg32[%c0_265, %c0_266] : memref<1x32xf32, #tpu.memory_space<vmem>>, vector<1x32xf32>
    %423 = vector.broadcast %422 : vector<1x32xf32> to vector<8x32xf32>
    %424 = arith.addf %421, %423 : vector<8x32xf32>
    %c0_267 = arith.constant 0 : index
    %c0_268 = arith.constant 0 : index
    %c0_269 = arith.constant 0 : index
    %425 = vector.load %arg33[%c0_267, %c0_268, %c0_269] : memref<1x8x32xf32, #tpu.memory_space<vmem>>, vector<1x8x32xf32>
    %426 = vector.shape_cast %425 : vector<1x8x32xf32> to vector<8x32xf32>
    %427 = vector.shape_cast %424 : vector<8x32xf32> to vector<1x8x32xf32>
    tpu.vector_store %arg33[%c0_267, %c0_268, %c0_269], %427 {strides = array<i32>} : memref<1x8x32xf32, #tpu.memory_space<vmem>>, vector<1x8x32xf32>,
    return
  }
  func.func @transform_0(%arg0: i32) -> (i32, i32, i32) {
    %c0_i32 = arith.constant 0 : i32
    %c0_i32_0 = arith.constant 0 : i32
    %c0_i32_1 = arith.constant 0 : i32
    return %arg0, %c0_i32, %c0_i32_0 : i32, i32, i32
  }
  func.func @transform_1(%arg0: i32) -> (i32, i32, i32) {
    %c0_i32 = arith.constant 0 : i32
    %c0_i32_0 = arith.constant 0 : i32
    %c0_i32_1 = arith.constant 0 : i32
    return %arg0, %c0_i32, %c0_i32_0 : i32, i32, i32
  }
  func.func @transform_2(%arg0: i32) -> (i32, i32, i32) {
    %c0_i32 = arith.constant 0 : i32
    %c0_i32_0 = arith.constant 0 : i32
    %c0_i32_1 = arith.constant 0 : i32
    return %arg0, %c0_i32, %c0_i32_0 : i32, i32, i32
  }
  func.func @transform_3(%arg0: i32) -> (i32, i32, i32) {
    %c0_i32 = arith.constant 0 : i32
    %c0_i32_0 = arith.constant 0 : i32
    %c0_i32_1 = arith.constant 0 : i32
    return %arg0, %c0_i32, %c0_i32_0 : i32, i32, i32
  }
  func.func @transform_4(%arg0: i32) -> (i32, i32) {
    %c0_i32 = arith.constant 0 : i32
    %c0_i32_0 = arith.constant 0 : i32
    %c0_i32_1 = arith.constant 0 : i32
    return %c0_i32, %c0_i32_0 : i32, i32
  }
  func.func @transform_5(%arg0: i32) -> (i32, i32) {
    %c0_i32 = arith.constant 0 : i32
    %c0_i32_0 = arith.constant 0 : i32
    %c0_i32_1 = arith.constant 0 : i32
    return %c0_i32, %c0_i32_0 : i32, i32
  }
  func.func @transform_6(%arg0: i32) -> (i32, i32) {
    %c0_i32 = arith.constant 0 : i32
    %c0_i32_0 = arith.constant 0 : i32
    %c0_i32_1 = arith.constant 0 : i32
    return %c0_i32, %c0_i32_0 : i32, i32
  }
  func.func @transform_7(%arg0: i32) -> (i32, i32) {
    %c0_i32 = arith.constant 0 : i32
    %c0_i32_0 = arith.constant 0 : i32
    %c0_i32_1 = arith.constant 0 : i32
    return %c0_i32, %c0_i32_0 : i32, i32
  }
  func.func @transform_8(%arg0: i32) -> (i32, i32) {
    %c0_i32 = arith.constant 0 : i32
    %c0_i32_0 = arith.constant 0 : i32
    %c0_i32_1 = arith.constant 0 : i32
    return %c0_i32, %c0_i32_0 : i32, i32
  }
  func.func @transform_9(%arg0: i32) -> (i32, i32) {
    %c0_i32 = arith.constant 0 : i32
    %c0_i32_0 = arith.constant 0 : i32
    %c0_i32_1 = arith.constant 0 : i32
    return %c0_i32, %c0_i32_0 : i32, i32
  }
  func.func @transform_10(%arg0: i32) -> (i32, i32) {
    %c0_i32 = arith.constant 0 : i32
    %c0_i32_0 = arith.constant 0 : i32
    %c0_i32_1 = arith.constant 0 : i32
    return %c0_i32, %c0_i32_0 : i32, i32
  }
  func.func @transform_11(%arg0: i32) -> (i32, i32) {
    %c0_i32 = arith.constant 0 : i32
    %c0_i32_0 = arith.constant 0 : i32
    %c0_i32_1 = arith.constant 0 : i32
    return %c0_i32, %c0_i32_0 : i32, i32
  }
  func.func @transform_12(%arg0: i32) -> (i32, i32) {
    %c0_i32 = arith.constant 0 : i32
    %c0_i32_0 = arith.constant 0 : i32
    %c0_i32_1 = arith.constant 0 : i32
    return %c0_i32, %c0_i32_0 : i32, i32
  }
  func.func @transform_13(%arg0: i32) -> (i32, i32) {
    %c0_i32 = arith.constant 0 : i32
    %c0_i32_0 = arith.constant 0 : i32
    %c0_i32_1 = arith.constant 0 : i32
    return %c0_i32, %c0_i32_0 : i32, i32
  }
  func.func @transform_14(%arg0: i32) -> (i32, i32) {
    %c0_i32 = arith.constant 0 : i32
    %c0_i32_0 = arith.constant 0 : i32
    %c0_i32_1 = arith.constant 0 : i32
    return %c0_i32, %c0_i32_0 : i32, i32
  }
  func.func @transform_15(%arg0: i32) -> (i32, i32) {
    %c0_i32 = arith.constant 0 : i32
    %c0_i32_0 = arith.constant 0 : i32
    %c0_i32_1 = arith.constant 0 : i32
    return %c0_i32, %c0_i32_0 : i32, i32
  }
  func.func @transform_16(%arg0: i32) -> (i32, i32) {
    %c0_i32 = arith.constant 0 : i32
    %c0_i32_0 = arith.constant 0 : i32
    %c0_i32_1 = arith.constant 0 : i32
    return %c0_i32, %c0_i32_0 : i32, i32
  }
  func.func @transform_17(%arg0: i32) -> (i32, i32) {
    %c0_i32 = arith.constant 0 : i32
    %c0_i32_0 = arith.constant 0 : i32
    %c0_i32_1 = arith.constant 0 : i32
    return %c0_i32, %c0_i32_0 : i32, i32
  }
  func.func @transform_18(%arg0: i32) -> (i32, i32) {
    %c0_i32 = arith.constant 0 : i32
    %c0_i32_0 = arith.constant 0 : i32
    %c0_i32_1 = arith.constant 0 : i32
    return %c0_i32, %c0_i32_0 : i32, i32
  }
  func.func @transform_19(%arg0: i32) -> (i32, i32) {
    %c0_i32 = arith.constant 0 : i32
    %c0_i32_0 = arith.constant 0 : i32
    %c0_i32_1 = arith.constant 0 : i32
    return %c0_i32, %c0_i32_0 : i32, i32
  }
  func.func @transform_20(%arg0: i32) -> (i32, i32) {
    %c0_i32 = arith.constant 0 : i32
    %c0_i32_0 = arith.constant 0 : i32
    %c0_i32_1 = arith.constant 0 : i32
    return %c0_i32, %c0_i32_0 : i32, i32
  }
  func.func @transform_21(%arg0: i32) -> (i32, i32) {
    %c0_i32 = arith.constant 0 : i32
    %c0_i32_0 = arith.constant 0 : i32
    %c0_i32_1 = arith.constant 0 : i32
    return %c0_i32, %c0_i32_0 : i32, i32
  }
  func.func @transform_22(%arg0: i32) -> (i32, i32) {
    %c0_i32 = arith.constant 0 : i32
    %c0_i32_0 = arith.constant 0 : i32
    %c0_i32_1 = arith.constant 0 : i32
    return %c0_i32, %c0_i32_0 : i32, i32
  }
  func.func @transform_23(%arg0: i32) -> (i32, i32) {
    %c0_i32 = arith.constant 0 : i32
    %c0_i32_0 = arith.constant 0 : i32
    %c0_i32_1 = arith.constant 0 : i32
    return %c0_i32, %c0_i32_0 : i32, i32
  }
  func.func @transform_24(%arg0: i32) -> (i32, i32) {
    %c0_i32 = arith.constant 0 : i32
    %c0_i32_0 = arith.constant 0 : i32
    %c0_i32_1 = arith.constant 0 : i32
    return %c0_i32, %c0_i32_0 : i32, i32
  }
  func.func @transform_25(%arg0: i32) -> (i32, i32) {
    %c0_i32 = arith.constant 0 : i32
    %c0_i32_0 = arith.constant 0 : i32
    %c0_i32_1 = arith.constant 0 : i32
    return %c0_i32, %c0_i32_0 : i32, i32
  }
  func.func @transform_26(%arg0: i32) -> (i32, i32) {
    %c0_i32 = arith.constant 0 : i32
    %c0_i32_0 = arith.constant 0 : i32
    %c0_i32_1 = arith.constant 0 : i32
    return %c0_i32, %c0_i32_0 : i32, i32
  }
  func.func @transform_27(%arg0: i32) -> (i32, i32) {
    %c0_i32 = arith.constant 0 : i32
    %c0_i32_0 = arith.constant 0 : i32
    %c0_i32_1 = arith.constant 0 : i32
    return %c0_i32, %c0_i32_0 : i32, i32
  }
  func.func @transform_28(%arg0: i32) -> (i32, i32) {
    %c0_i32 = arith.constant 0 : i32
    %c0_i32_0 = arith.constant 0 : i32
    %c0_i32_1 = arith.constant 0 : i32
    return %c0_i32, %c0_i32_0 : i32, i32
  }
  func.func @transform_29(%arg0: i32) -> (i32, i32) {
    %c0_i32 = arith.constant 0 : i32
    %c0_i32_0 = arith.constant 0 : i32
    %c0_i32_1 = arith.constant 0 : i32
    return %c0_i32, %c0_i32_0 : i32, i32
  }
  func.func @transform_30(%arg0: i32) -> (i32, i32) {
    %c0_i32 = arith.constant 0 : i32
    %c0_i32_0 = arith.constant 0 : i32
    %c0_i32_1 = arith.constant 0 : i32
    return %c0_i32, %c0_i32_0 : i32, i32
  }
  func.func @transform_31(%arg0: i32) -> (i32, i32) {
    %c0_i32 = arith.constant 0 : i32
    %c0_i32_0 = arith.constant 0 : i32
    %c0_i32_1 = arith.constant 0 : i32
    return %c0_i32, %c0_i32_0 : i32, i32
  }
  func.func @transform_32(%arg0: i32) -> (i32, i32, i32) {
    %c0_i32 = arith.constant 0 : i32
    %c0_i32_0 = arith.constant 0 : i32
    %c0_i32_1 = arith.constant 0 : i32
    return %arg0, %c0_i32, %c0_i32_0 : i32, i32, i32
  }
}

</mosaic_0001>

<llo_original>
// kernel: tpu_custom_call.1
$region0: #{tpu_custom_call.1}
  #allocation0 [shape = 'u32[]', space=smem, size = 0x4, offset = 0x4, fixed_abs, tag = 'smem constant byte address 0x4 - core index']
  #allocation1 [shape = 'u32[144,128]{1,0:T(1,128)}', space=vmem, size = 0x12000, scoped, tag = 'internal scratch']
  %s0 = inlined_call_operand.smem [shape: u32[33], index: -1, kind: input, shape index: {}]
  %s1 = sld [smem:[%s0]]
  %s2 = scalar_lea.smem %s0, 1
  %s3 = sld [smem:[%s2]]
  %s4 = scalar_lea.smem %s0, 2
  %s5 = sld [smem:[%s4]]
  %s6 = scalar_lea.smem %s0, 3
  %s7 = sld [smem:[%s6]]
  %s8 = scalar_lea.smem %s0, 4
  %s9 = sld [smem:[%s8]]
  %s10 = scalar_lea.smem %s0, 5
  %s11 = sld [smem:[%s10]]
  %s12 = scalar_lea.smem %s0, 6
  %s13 = sld [smem:[%s12]]
  %s14 = scalar_lea.smem %s0, 7
  %s15 = sld [smem:[%s14]]
  %s16 = scalar_lea.smem %s0, 8
  %s17 = sld [smem:[%s16]]
  %s18 = scalar_lea.smem %s0, 9
  %s19 = sld [smem:[%s18]]
  %s20 = scalar_lea.smem %s0, 10
  %s21 = sld [smem:[%s20]]
  %s22 = scalar_lea.smem %s0, 11
  %s23 = sld [smem:[%s22]]
  %s24 = scalar_lea.smem %s0, 12
  %s25 = sld [smem:[%s24]]
  %s26 = scalar_lea.smem %s0, 13
  %s27 = sld [smem:[%s26]]
  %s28 = scalar_lea.smem %s0, 14
  %s29 = sld [smem:[%s28]]
  %s30 = scalar_lea.smem %s0, 15
  %s31 = sld [smem:[%s30]]
  %s32 = scalar_lea.smem %s0, 16
  %s33 = sld [smem:[%s32]]
  %s34 = scalar_lea.smem %s0, 17
  %s35 = sld [smem:[%s34]]
  %s36 = scalar_lea.smem %s0, 18
  %s37 = sld [smem:[%s36]]
  %s38 = scalar_lea.smem %s0, 19
  %s39 = sld [smem:[%s38]]
  %s40 = scalar_lea.smem %s0, 20
  %s41 = sld [smem:[%s40]]
  %s42 = scalar_lea.smem %s0, 21
  %s43 = sld [smem:[%s42]]
  %s44 = scalar_lea.smem %s0, 22
  %s45 = sld [smem:[%s44]]
  %s46 = scalar_lea.smem %s0, 23
  %s47 = sld [smem:[%s46]]
  %s48 = scalar_lea.smem %s0, 24
  %s49 = sld [smem:[%s48]]
  %s50 = scalar_lea.smem %s0, 25
  %s51 = sld [smem:[%s50]]
  %s52 = scalar_lea.smem %s0, 26
  %s53 = sld [smem:[%s52]]
  %s54 = scalar_lea.smem %s0, 27
  %s55 = sld [smem:[%s54]]
  %s56 = scalar_lea.smem %s0, 28
  %s57 = sld [smem:[%s56]]
  %s58 = scalar_lea.smem %s0, 29
  %s59 = sld [smem:[%s58]]
  %s60 = scalar_lea.smem %s0, 30
  %s61 = sld [smem:[%s60]]
  %s62 = scalar_lea.smem %s0, 31
  %s63 = sld [smem:[%s62]]
  %s64 = scalar_lea.smem %s0, 32
  %s65 = sld [smem:[%s64]]
  %s66 = sld [smem:[#allocation0]]
  $region205: #{tpu_custom_call.1} parent=0
    _
  %s68 = ssub.s32 1, %s66
  %s69 = scalar_select 0, %s68, %s66
  $region1: #{tpu_custom_call.1} parent=0
    #allocation2 [shape = 'u8[8192]{0}', space=vmem, size = 0x2000, scoped, tag = 'input window, operand 0']
    #allocation3 [shape = 's32[2]{0}', space=sflag, size = 0x8, scoped, tag = 'scoped memory for tpu_custom_call.1']
    #allocation4 [shape = 's32[2]{0}', space=sflag, size = 0x8, scoped, tag = 'scoped memory for tpu_custom_call.1']
    #allocation5 [shape = 'u8[8192]{0}', space=vmem, size = 0x2000, scoped, tag = 'input window, operand 1']
    #allocation6 [shape = 's32[2]{0}', space=sflag, size = 0x8, scoped, tag = 'scoped memory for tpu_custom_call.1']
    #allocation7 [shape = 'u8[8192]{0}', space=vmem, size = 0x2000, scoped, tag = 'input window, operand 2']
    #allocation8 [shape = 'u8[8192]{0}', space=vmem, size = 0x2000, scoped, tag = 'input window, operand 3']
    #allocation9 [shape = 's32[2]{0}', space=sflag, size = 0x8, scoped, tag = 'scoped memory for tpu_custom_call.1']
    #allocation10 [shape = 'u8[16384]{0}', space=vmem, size = 0x4000, scoped, tag = 'input window, operand 10, single buffered']
    #allocation11 [shape = 'u8[16384]{0}', space=vmem, size = 0x4000, scoped, tag = 'input window, operand 12, single buffered']
    #allocation12 [shape = 's32[1]{0}', space=sflag, size = 0x4, scoped, tag = 'scoped memory for tpu_custom_call.1']
    #allocation13 [shape = 'u8[16384]{0}', space=vmem, size = 0x4000, scoped, tag = 'input window, operand 14, single buffered']
    #allocation14 [shape = 'u8[16384]{0}', space=vmem, size = 0x4000, scoped, tag = 'input window, operand 16, single buffered']
    #allocation15 [shape = 's32[1]{0}', space=sflag, size = 0x4, scoped, tag = 'scoped memory for tpu_custom_call.1']
    #allocation16 [shape = 'u8[16384]{0}', space=vmem, size = 0x4000, scoped, tag = 'input window, operand 18, single buffered']
    #allocation17 [shape = 'u8[16384]{0}', space=vmem, size = 0x4000, scoped, tag = 'input window, operand 20, single buffered']
    #allocation18 [shape = 's32[1]{0}', space=sflag, size = 0x4, scoped, tag = 'scoped memory for tpu_custom_call.1']
    #allocation19 [shape = 'u8[512]{0}', space=vmem, size = 0x400, scoped, tag = 'input window, operand 21, single buffered']
    #allocation20 [shape = 'u8[8192]{0}', space=vmem, size = 0x2000, scoped, tag = 'output window, operand 0']
    %70 = vsyncpa [#allocation3], 0
    %s71 = scalar_lea.sflag [#allocation3], 1
    %72 = vsyncpa %s71, 0
    %73 = vsyncpa [#allocation6], 0
    %s74 = scalar_lea.sflag [#allocation6], 1
    %75 = vsyncpa %s74, 0
    %76 = vsyncpa [#allocation9], 0
    %s77 = scalar_lea.sflag [#allocation9], 1
    %78 = vsyncpa %s77, 0
    %79 = vsyncpa [#allocation12], 0
    %80 = vsyncpa [#allocation15], 0
    %81 = vsyncpa [#allocation18], 0
    %82 = vsyncpa [#allocation4], 0
    %s83 = scalar_lea.sflag [#allocation4], 1
    %84 = vsyncpa %s83, 0
    loop: start=0, step=1, limit=4
    $region2: #{tpu_custom_call.1} parent=1 // loop_pre_header
      _
    $region3: #{tpu_custom_call.1} parent=1 // loop_header
      %s86 = sphi 0, %s90
      %p87 = scmp.ge.s32.totalorder %s86, 4
      %s96 = sphi 0, %s98
      %s99 = sphi 0, %s96
      %s100 = sphi 0, %s99
      %s116 = sphi 0, %s100
      %s122 = sphi 0, %s124
      %s125 = sphi 0, %s122
      %s126 = sphi 0, %s125
      %s142 = sphi 0, %s126
      %s148 = sphi 0, %s150
      %s151 = sphi 0, %s148
      %s152 = sphi 0, %s151
      %s168 = sphi 0, %s152
      %s174 = sphi 0, %s176
      %s177 = sphi 0, %s174
      %s178 = sphi 0, %s177
      %s194 = sphi 0, %s178
      %s198 = sphi 0, %s198
      %s200 = sphi 0, %s198
      %s201 = sphi 0, %s200
      %s215 = sphi 0, %s201
      %s219 = sphi 0, %s219
      %s221 = sphi 0, %s219
      %s222 = sphi 0, %s221
      %s236 = sphi 0, %s222
      %s240 = sphi 0, %s240
      %s242 = sphi 0, %s240
      %s243 = sphi 0, %s242
      %s257 = sphi 0, %s243
      %s261 = sphi 0, %s261
      %s263 = sphi 0, %s261
      %s264 = sphi 0, %s263
      %s278 = sphi 0, %s264
      %s282 = sphi 0, %s282
      %s284 = sphi 0, %s282
      %s285 = sphi 0, %s284
      %s299 = sphi 0, %s285
      %s303 = sphi 0, %s303
      %s305 = sphi 0, %s303
      %s306 = sphi 0, %s305
      %s320 = sphi 0, %s306
      %s324 = sphi 0, %s324
      %s326 = sphi 0, %s324
      %s327 = sphi 0, %s326
      %s341 = sphi 0, %s327
      %s345 = sphi 0, %s345
      %s347 = sphi 0, %s345
      %s348 = sphi 0, %s347
      %s362 = sphi 0, %s348
      %s366 = sphi 0, %s366
      %s368 = sphi 0, %s366
      %s369 = sphi 0, %s368
      %s383 = sphi 0, %s369
      %s387 = sphi 0, %s387
      %s389 = sphi 0, %s387
      %s390 = sphi 0, %s389
      %s404 = sphi 0, %s390
      %s408 = sphi 0, %s408
      %s410 = sphi 0, %s408
      %s411 = sphi 0, %s410
      %s425 = sphi 0, %s411
      %s429 = sphi 0, %s429
      %s431 = sphi 0, %s429
      %s432 = sphi 0, %s431
      %s446 = sphi 0, %s432
      %s450 = sphi 0, %s450
      %s452 = sphi 0, %s450
      %s453 = sphi 0, %s452
      %s467 = sphi 0, %s453
      %s471 = sphi 0, %s471
      %s473 = sphi 0, %s471
      %s474 = sphi 0, %s473
      %s488 = sphi 0, %s474
      %s492 = sphi 0, %s492
      %s494 = sphi 0, %s492
      %s495 = sphi 0, %s494
      %s509 = sphi 0, %s495
      %s513 = sphi 0, %s513
      %s515 = sphi 0, %s513
      %s516 = sphi 0, %s515
      %s530 = sphi 0, %s516
      %s534 = sphi 0, %s534
      %s536 = sphi 0, %s534
      %s537 = sphi 0, %s536
      %s551 = sphi 0, %s537
      %s555 = sphi 0, %s555
      %s557 = sphi 0, %s555
      %s558 = sphi 0, %s557
      %s572 = sphi 0, %s558
      %s576 = sphi 0, %s576
      %s578 = sphi 0, %s576
      %s579 = sphi 0, %s578
      %s593 = sphi 0, %s579
      %s597 = sphi 0, %s597
      %s599 = sphi 0, %s597
      %s600 = sphi 0, %s599
      %s614 = sphi 0, %s600
      %s618 = sphi 0, %s618
      %s620 = sphi 0, %s618
      %s621 = sphi 0, %s620
      %s635 = sphi 0, %s621
      %s639 = sphi 0, %s639
      %s641 = sphi 0, %s639
      %s642 = sphi 0, %s641
      %s656 = sphi 0, %s642
      %s660 = sphi 0, %s660
      %s662 = sphi 0, %s660
      %s663 = sphi 0, %s662
      %s677 = sphi 0, %s663
      %s681 = sphi 0, %s681
      %s683 = sphi 0, %s681
      %s684 = sphi 0, %s683
      %s698 = sphi 0, %s684
      %s702 = sphi 0, %s702
      %s704 = sphi 0, %s702
      %s705 = sphi 0, %s704
      %s719 = sphi 0, %s705
      %s723 = sphi 0, %s723
      %s725 = sphi 0, %s723
      %s726 = sphi 0, %s725
      %s740 = sphi 0, %s726
      %s744 = sphi 0, %s744
      %s746 = sphi 0, %s744
      %s747 = sphi 0, %s746
      %s761 = sphi 0, %s747
      %s765 = sphi 0, %s765
      %s767 = sphi 0, %s765
      %s768 = sphi 0, %s767
      %s782 = sphi 0, %s768
      %s788 = sphi 0, %s790
      %s791 = sphi 0, %s788
      %s792 = sphi 0, %s791
      %s808 = sphi 0, %s792
    $region4: #{tpu_custom_call.1} parent=1 // loop_header_branch
      %89 = sbr.rel (%p87) target = $region8
    $region5: #{tpu_custom_call.1} parent=1 // loop_body
      %s91 = ssub.s32 %s86, 1
      %s92 = ssub.s32 %s86, 2
      %s93 = sadd.s32 %s86, 1
      %s94 = ssub.s32 %s86, %s93
      %p95 = scmp.eq.s32.totalorder %s94, 0
      %s97 = sadd.s32 %s96, 1
      %s98 = scalar_select %p95, %s96, %s97
      %p101 = pneg %p95
      %p102 = scmp.eq.s32.totalorder %s86, 1
      %p103 = por %p101, %p102
      %p104 = scmp.ne.s32.totalorder %s96, %s99
      %p105 = scmp.eq.s32.totalorder %s86, 0
      %p106 = por %p104, %p105
      %p107 = scmp.ne.s32.totalorder %s96, %s99
      %p108 = scmp.eq.s32.totalorder %s91, 1
      %p109 = por %p107, %p108
      %p110 = scmp.ne.s32.totalorder %s99, %s100
      %p111 = scmp.eq.s32.totalorder %s91, 0
      %p112 = por %p110, %p111
      %p113 = scmp.ne.s32.totalorder %s99, %s100
      %p114 = scmp.eq.s32.totalorder %s92, 1
      %p115 = por %p113, %p114
      %p117 = scmp.ne.s32.totalorder %s100, %s116
      %p118 = scmp.eq.s32.totalorder %s92, 0
      %p119 = por %p117, %p118
      %s120 = ssub.s32 %s86, %s93
      %p121 = scmp.eq.s32.totalorder %s120, 0
      %s123 = sadd.s32 %s122, 1
      %s124 = scalar_select %p121, %s122, %s123
      %p127 = pneg %p121
      %p128 = scmp.eq.s32.totalorder %s86, 1
      %p129 = por %p127, %p128
      %p130 = scmp.ne.s32.totalorder %s122, %s125
      %p131 = scmp.eq.s32.totalorder %s86, 0
      %p132 = por %p130, %p131
      %p133 = scmp.ne.s32.totalorder %s122, %s125
      %p134 = scmp.eq.s32.totalorder %s91, 1
      %p135 = por %p133, %p134
      %p136 = scmp.ne.s32.totalorder %s125, %s126
      %p137 = scmp.eq.s32.totalorder %s91, 0
      %p138 = por %p136, %p137
      %p139 = scmp.ne.s32.totalorder %s125, %s126
      %p140 = scmp.eq.s32.totalorder %s92, 1
      %p141 = por %p139, %p140
      %p143 = scmp.ne.s32.totalorder %s126, %s142
      %p144 = scmp.eq.s32.totalorder %s92, 0
      %p145 = por %p143, %p144
      %s146 = ssub.s32 %s86, %s93
      %p147 = scmp.eq.s32.totalorder %s146, 0
      %s149 = sadd.s32 %s148, 1
      %s150 = scalar_select %p147, %s148, %s149
      %p153 = pneg %p147
      %p154 = scmp.eq.s32.totalorder %s86, 1
      %p155 = por %p153, %p154
      %p156 = scmp.ne.s32.totalorder %s148, %s151
      %p157 = scmp.eq.s32.totalorder %s86, 0
      %p158 = por %p156, %p157
      %p159 = scmp.ne.s32.totalorder %s148, %s151
      %p160 = scmp.eq.s32.totalorder %s91, 1
      %p161 = por %p159, %p160
      %p162 = scmp.ne.s32.totalorder %s151, %s152
      %p163 = scmp.eq.s32.totalorder %s91, 0
      %p164 = por %p162, %p163
      %p165 = scmp.ne.s32.totalorder %s151, %s152
      %p166 = scmp.eq.s32.totalorder %s92, 1
      %p167 = por %p165, %p166
      %p169 = scmp.ne.s32.totalorder %s152, %s168
      %p170 = scmp.eq.s32.totalorder %s92, 0
      %p171 = por %p169, %p170
      %s172 = ssub.s32 %s86, %s93
      %p173 = scmp.eq.s32.totalorder %s172, 0
      %s175 = sadd.s32 %s174, 1
      %s176 = scalar_select %p173, %s174, %s175
      %p179 = pneg %p173
      %p180 = scmp.eq.s32.totalorder %s86, 1
      %p181 = por %p179, %p180
      %p182 = scmp.ne.s32.totalorder %s174, %s177
      %p183 = scmp.eq.s32.totalorder %s86, 0
      %p184 = por %p182, %p183
      %p185 = scmp.ne.s32.totalorder %s174, %s177
      %p186 = scmp.eq.s32.totalorder %s91, 1
      %p187 = por %p185, %p186
      %p188 = scmp.ne.s32.totalorder %s177, %s178
      %p189 = scmp.eq.s32.totalorder %s91, 0
      %p190 = por %p188, %p189
      %p191 = scmp.ne.s32.totalorder %s177, %s178
      %p192 = scmp.eq.s32.totalorder %s92, 1
      %p193 = por %p191, %p192
      %p195 = scmp.ne.s32.totalorder %s178, %s194
      %p196 = scmp.eq.s32.totalorder %s92, 0
      %p197 = por %p195, %p196
      %s199 = sadd.s32 %s198, 1
      %p202 = scmp.eq.s32.totalorder %s86, 1
      %p203 = scmp.ne.s32.totalorder %s198, %s200
      %p204 = scmp.eq.s32.totalorder %s86, 0
      %p205 = por %p203, %p204
      %p206 = scmp.ne.s32.totalorder %s198, %s200
      %p207 = scmp.eq.s32.totalorder %s91, 1
      %p208 = por %p206, %p207
      %p209 = scmp.ne.s32.totalorder %s200, %s201
      %p210 = scmp.eq.s32.totalorder %s91, 0
      %p211 = por %p209, %p210
      %p212 = scmp.ne.s32.totalorder %s200, %s201
      %p213 = scmp.eq.s32.totalorder %s92, 1
      %p214 = por %p212, %p213
      %p216 = scmp.ne.s32.totalorder %s201, %s215
      %p217 = scmp.eq.s32.totalorder %s92, 0
      %p218 = por %p216, %p217
      %s220 = sadd.s32 %s219, 1
      %p223 = scmp.eq.s32.totalorder %s86, 1
      %p224 = scmp.ne.s32.totalorder %s219, %s221
      %p225 = scmp.eq.s32.totalorder %s86, 0
      %p226 = por %p224, %p225
      %p227 = scmp.ne.s32.totalorder %s219, %s221
      %p228 = scmp.eq.s32.totalorder %s91, 1
      %p229 = por %p227, %p228
      %p230 = scmp.ne.s32.totalorder %s221, %s222
      %p231 = scmp.eq.s32.totalorder %s91, 0
      %p232 = por %p230, %p231
      %p233 = scmp.ne.s32.totalorder %s221, %s222
      %p234 = scmp.eq.s32.totalorder %s92, 1
      %p235 = por %p233, %p234
      %p237 = scmp.ne.s32.totalorder %s222, %s236
      %p238 = scmp.eq.s32.totalorder %s92, 0
      %p239 = por %p237, %p238
      %s241 = sadd.s32 %s240, 1
      %p244 = scmp.eq.s32.totalorder %s86, 1
      %p245 = scmp.ne.s32.totalorder %s240, %s242
      %p246 = scmp.eq.s32.totalorder %s86, 0
      %p247 = por %p245, %p246
      %p248 = scmp.ne.s32.totalorder %s240, %s242
      %p249 = scmp.eq.s32.totalorder %s91, 1
      %p250 = por %p248, %p249
      %p251 = scmp.ne.s32.totalorder %s242, %s243
      %p252 = scmp.eq.s32.totalorder %s91, 0
      %p253 = por %p251, %p252
      %p254 = scmp.ne.s32.totalorder %s242, %s243
      %p255 = scmp.eq.s32.totalorder %s92, 1
      %p256 = por %p254, %p255
      %p258 = scmp.ne.s32.totalorder %s243, %s257
      %p259 = scmp.eq.s32.totalorder %s92, 0
      %p260 = por %p258, %p259
      %s262 = sadd.s32 %s261, 1
      %p265 = scmp.eq.s32.totalorder %s86, 1
      %p266 = scmp.ne.s32.totalorder %s261, %s263
      %p267 = scmp.eq.s32.totalorder %s86, 0
      %p268 = por %p266, %p267
      %p269 = scmp.ne.s32.totalorder %s261, %s263
      %p270 = scmp.eq.s32.totalorder %s91, 1
      %p271 = por %p269, %p270
      %p272 = scmp.ne.s32.totalorder %s263, %s264
      %p273 = scmp.eq.s32.totalorder %s91, 0
      %p274 = por %p272, %p273
      %p275 = scmp.ne.s32.totalorder %s263, %s264
      %p276 = scmp.eq.s32.totalorder %s92, 1
      %p277 = por %p275, %p276
      %p279 = scmp.ne.s32.totalorder %s264, %s278
      %p280 = scmp.eq.s32.totalorder %s92, 0
      %p281 = por %p279, %p280
      %s283 = sadd.s32 %s282, 1
      %p286 = scmp.eq.s32.totalorder %s86, 1
      %p287 = scmp.ne.s32.totalorder %s282, %s284
      %p288 = scmp.eq.s32.totalorder %s86, 0
      %p289 = por %p287, %p288
      %p290 = scmp.ne.s32.totalorder %s282, %s284
      %p291 = scmp.eq.s32.totalorder %s91, 1
      %p292 = por %p290, %p291
      %p293 = scmp.ne.s32.totalorder %s284, %s285
      %p294 = scmp.eq.s32.totalorder %s91, 0
      %p295 = por %p293, %p294
      %p296 = scmp.ne.s32.totalorder %s284, %s285
      %p297 = scmp.eq.s32.totalorder %s92, 1
      %p298 = por %p296, %p297
      %p300 = scmp.ne.s32.totalorder %s285, %s299
      %p301 = scmp.eq.s32.totalorder %s92, 0
      %p302 = por %p300, %p301
      %s304 = sadd.s32 %s303, 1
      %p307 = scmp.eq.s32.totalorder %s86, 1
      %p308 = scmp.ne.s32.totalorder %s303, %s305
      %p309 = scmp.eq.s32.totalorder %s86, 0
      %p310 = por %p308, %p309
      %p311 = scmp.ne.s32.totalorder %s303, %s305
      %p312 = scmp.eq.s32.totalorder %s91, 1
      %p313 = por %p311, %p312
      %p314 = scmp.ne.s32.totalorder %s305, %s306
      %p315 = scmp.eq.s32.totalorder %s91, 0
      %p316 = por %p314, %p315
      %p317 = scmp.ne.s32.totalorder %s305, %s306
      %p318 = scmp.eq.s32.totalorder %s92, 1
      %p319 = por %p317, %p318
      %p321 = scmp.ne.s32.totalorder %s306, %s320
      %p322 = scmp.eq.s32.totalorder %s92, 0
      %p323 = por %p321, %p322
      %s325 = sadd.s32 %s324, 1
      %p328 = scmp.eq.s32.totalorder %s86, 1
      %p329 = scmp.ne.s32.totalorder %s324, %s326
      %p330 = scmp.eq.s32.totalorder %s86, 0
      %p331 = por %p329, %p330
      %p332 = scmp.ne.s32.totalorder %s324, %s326
      %p333 = scmp.eq.s32.totalorder %s91, 1
      %p334 = por %p332, %p333
      %p335 = scmp.ne.s32.totalorder %s326, %s327
      %p336 = scmp.eq.s32.totalorder %s91, 0
      %p337 = por %p335, %p336
      %p338 = scmp.ne.s32.totalorder %s326, %s327
      %p339 = scmp.eq.s32.totalorder %s92, 1
      %p340 = por %p338, %p339
      %p342 = scmp.ne.s32.totalorder %s327, %s341
      %p343 = scmp.eq.s32.totalorder %s92, 0
      %p344 = por %p342, %p343
      %s346 = sadd.s32 %s345, 1
      %p349 = scmp.eq.s32.totalorder %s86, 1
      %p350 = scmp.ne.s32.totalorder %s345, %s347
      %p351 = scmp.eq.s32.totalorder %s86, 0
      %p352 = por %p350, %p351
      %p353 = scmp.ne.s32.totalorder %s345, %s347
      %p354 = scmp.eq.s32.totalorder %s91, 1
      %p355 = por %p353, %p354
      %p356 = scmp.ne.s32.totalorder %s347, %s348
      %p357 = scmp.eq.s32.totalorder %s91, 0
      %p358 = por %p356, %p357
      %p359 = scmp.ne.s32.totalorder %s347, %s348
      %p360 = scmp.eq.s32.totalorder %s92, 1
      %p361 = por %p359, %p360
      %p363 = scmp.ne.s32.totalorder %s348, %s362
      %p364 = scmp.eq.s32.totalorder %s92, 0
      %p365 = por %p363, %p364
      %s367 = sadd.s32 %s366, 1
      %p370 = scmp.eq.s32.totalorder %s86, 1
      %p371 = scmp.ne.s32.totalorder %s366, %s368
      %p372 = scmp.eq.s32.totalorder %s86, 0
      %p373 = por %p371, %p372
      %p374 = scmp.ne.s32.totalorder %s366, %s368
      %p375 = scmp.eq.s32.totalorder %s91, 1
      %p376 = por %p374, %p375
      %p377 = scmp.ne.s32.totalorder %s368, %s369
      %p378 = scmp.eq.s32.totalorder %s91, 0
      %p379 = por %p377, %p378
      %p380 = scmp.ne.s32.totalorder %s368, %s369
      %p381 = scmp.eq.s32.totalorder %s92, 1
      %p382 = por %p380, %p381
      %p384 = scmp.ne.s32.totalorder %s369, %s383
      %p385 = scmp.eq.s32.totalorder %s92, 0
      %p386 = por %p384, %p385
      %s388 = sadd.s32 %s387, 1
      %p391 = scmp.eq.s32.totalorder %s86, 1
      %p392 = scmp.ne.s32.totalorder %s387, %s389
      %p393 = scmp.eq.s32.totalorder %s86, 0
      %p394 = por %p392, %p393
      %p395 = scmp.ne.s32.totalorder %s387, %s389
      %p396 = scmp.eq.s32.totalorder %s91, 1
      %p397 = por %p395, %p396
      %p398 = scmp.ne.s32.totalorder %s389, %s390
      %p399 = scmp.eq.s32.totalorder %s91, 0
      %p400 = por %p398, %p399
      %p401 = scmp.ne.s32.totalorder %s389, %s390
      %p402 = scmp.eq.s32.totalorder %s92, 1
      %p403 = por %p401, %p402
      %p405 = scmp.ne.s32.totalorder %s390, %s404
      %p406 = scmp.eq.s32.totalorder %s92, 0
      %p407 = por %p405, %p406
      %s409 = sadd.s32 %s408, 1
      %p412 = scmp.eq.s32.totalorder %s86, 1
      %p413 = scmp.ne.s32.totalorder %s408, %s410
      %p414 = scmp.eq.s32.totalorder %s86, 0
      %p415 = por %p413, %p414
      %p416 = scmp.ne.s32.totalorder %s408, %s410
      %p417 = scmp.eq.s32.totalorder %s91, 1
      %p418 = por %p416, %p417
      %p419 = scmp.ne.s32.totalorder %s410, %s411
      %p420 = scmp.eq.s32.totalorder %s91, 0
      %p421 = por %p419, %p420
      %p422 = scmp.ne.s32.totalorder %s410, %s411
      %p423 = scmp.eq.s32.totalorder %s92, 1
      %p424 = por %p422, %p423
      %p426 = scmp.ne.s32.totalorder %s411, %s425
      %p427 = scmp.eq.s32.totalorder %s92, 0
      %p428 = por %p426, %p427
      %s430 = sadd.s32 %s429, 1
      %p433 = scmp.eq.s32.totalorder %s86, 1
      %p434 = scmp.ne.s32.totalorder %s429, %s431
      %p435 = scmp.eq.s32.totalorder %s86, 0
      %p436 = por %p434, %p435
      %p437 = scmp.ne.s32.totalorder %s429, %s431
      %p438 = scmp.eq.s32.totalorder %s91, 1
      %p439 = por %p437, %p438
      %p440 = scmp.ne.s32.totalorder %s431, %s432
      %p441 = scmp.eq.s32.totalorder %s91, 0
      %p442 = por %p440, %p441
      %p443 = scmp.ne.s32.totalorder %s431, %s432
      %p444 = scmp.eq.s32.totalorder %s92, 1
      %p445 = por %p443, %p444
      %p447 = scmp.ne.s32.totalorder %s432, %s446
      %p448 = scmp.eq.s32.totalorder %s92, 0
      %p449 = por %p447, %p448
      %s451 = sadd.s32 %s450, 1
      %p454 = scmp.eq.s32.totalorder %s86, 1
      %p455 = scmp.ne.s32.totalorder %s450, %s452
      %p456 = scmp.eq.s32.totalorder %s86, 0
      %p457 = por %p455, %p456
      %p458 = scmp.ne.s32.totalorder %s450, %s452
      %p459 = scmp.eq.s32.totalorder %s91, 1
      %p460 = por %p458, %p459
      %p461 = scmp.ne.s32.totalorder %s452, %s453
      %p462 = scmp.eq.s32.totalorder %s91, 0
      %p463 = por %p461, %p462
      %p464 = scmp.ne.s32.totalorder %s452, %s453
      %p465 = scmp.eq.s32.totalorder %s92, 1
      %p466 = por %p464, %p465
      %p468 = scmp.ne.s32.totalorder %s453, %s467
      %p469 = scmp.eq.s32.totalorder %s92, 0
      %p470 = por %p468, %p469
      %s472 = sadd.s32 %s471, 1
      %p475 = scmp.eq.s32.totalorder %s86, 1
      %p476 = scmp.ne.s32.totalorder %s471, %s473
      %p477 = scmp.eq.s32.totalorder %s86, 0
      %p478 = por %p476, %p477
      %p479 = scmp.ne.s32.totalorder %s471, %s473
      %p480 = scmp.eq.s32.totalorder %s91, 1
      %p481 = por %p479, %p480
      %p482 = scmp.ne.s32.totalorder %s473, %s474
      %p483 = scmp.eq.s32.totalorder %s91, 0
      %p484 = por %p482, %p483
      %p485 = scmp.ne.s32.totalorder %s473, %s474
      %p486 = scmp.eq.s32.totalorder %s92, 1
      %p487 = por %p485, %p486
      %p489 = scmp.ne.s32.totalorder %s474, %s488
      %p490 = scmp.eq.s32.totalorder %s92, 0
      %p491 = por %p489, %p490
      %s493 = sadd.s32 %s492, 1
      %p496 = scmp.eq.s32.totalorder %s86, 1
      %p497 = scmp.ne.s32.totalorder %s492, %s494
      %p498 = scmp.eq.s32.totalorder %s86, 0
      %p499 = por %p497, %p498
      %p500 = scmp.ne.s32.totalorder %s492, %s494
      %p501 = scmp.eq.s32.totalorder %s91, 1
      %p502 = por %p500, %p501
      %p503 = scmp.ne.s32.totalorder %s494, %s495
      %p504 = scmp.eq.s32.totalorder %s91, 0
      %p505 = por %p503, %p504
      %p506 = scmp.ne.s32.totalorder %s494, %s495
      %p507 = scmp.eq.s32.totalorder %s92, 1
      %p508 = por %p506, %p507
      %p510 = scmp.ne.s32.totalorder %s495, %s509
      %p511 = scmp.eq.s32.totalorder %s92, 0
      %p512 = por %p510, %p511
      %s514 = sadd.s32 %s513, 1
      %p517 = scmp.eq.s32.totalorder %s86, 1
      %p518 = scmp.ne.s32.totalorder %s513, %s515
      %p519 = scmp.eq.s32.totalorder %s86, 0
      %p520 = por %p518, %p519
      %p521 = scmp.ne.s32.totalorder %s513, %s515
      %p522 = scmp.eq.s32.totalorder %s91, 1
      %p523 = por %p521, %p522
      %p524 = scmp.ne.s32.totalorder %s515, %s516
      %p525 = scmp.eq.s32.totalorder %s91, 0
      %p526 = por %p524, %p525
      %p527 = scmp.ne.s32.totalorder %s515, %s516
      %p528 = scmp.eq.s32.totalorder %s92, 1
      %p529 = por %p527, %p528
      %p531 = scmp.ne.s32.totalorder %s516, %s530
      %p532 = scmp.eq.s32.totalorder %s92, 0
      %p533 = por %p531, %p532
      %s535 = sadd.s32 %s534, 1
      %p538 = scmp.eq.s32.totalorder %s86, 1
      %p539 = scmp.ne.s32.totalorder %s534, %s536
      %p540 = scmp.eq.s32.totalorder %s86, 0
      %p541 = por %p539, %p540
      %p542 = scmp.ne.s32.totalorder %s534, %s536
      %p543 = scmp.eq.s32.totalorder %s91, 1
      %p544 = por %p542, %p543
      %p545 = scmp.ne.s32.totalorder %s536, %s537
      %p546 = scmp.eq.s32.totalorder %s91, 0
      %p547 = por %p545, %p546
      %p548 = scmp.ne.s32.totalorder %s536, %s537
      %p549 = scmp.eq.s32.totalorder %s92, 1
      %p550 = por %p548, %p549
      %p552 = scmp.ne.s32.totalorder %s537, %s551
      %p553 = scmp.eq.s32.totalorder %s92, 0
      %p554 = por %p552, %p553
      %s556 = sadd.s32 %s555, 1
      %p559 = scmp.eq.s32.totalorder %s86, 1
      %p560 = scmp.ne.s32.totalorder %s555, %s557
      %p561 = scmp.eq.s32.totalorder %s86, 0
      %p562 = por %p560, %p561
      %p563 = scmp.ne.s32.totalorder %s555, %s557
      %p564 = scmp.eq.s32.totalorder %s91, 1
      %p565 = por %p563, %p564
      %p566 = scmp.ne.s32.totalorder %s557, %s558
      %p567 = scmp.eq.s32.totalorder %s91, 0
      %p568 = por %p566, %p567
      %p569 = scmp.ne.s32.totalorder %s557, %s558
      %p570 = scmp.eq.s32.totalorder %s92, 1
      %p571 = por %p569, %p570
      %p573 = scmp.ne.s32.totalorder %s558, %s572
      %p574 = scmp.eq.s32.totalorder %s92, 0
      %p575 = por %p573, %p574
      %s577 = sadd.s32 %s576, 1
      %p580 = scmp.eq.s32.totalorder %s86, 1
      %p581 = scmp.ne.s32.totalorder %s576, %s578
      %p582 = scmp.eq.s32.totalorder %s86, 0
      %p583 = por %p581, %p582
      %p584 = scmp.ne.s32.totalorder %s576, %s578
      %p585 = scmp.eq.s32.totalorder %s91, 1
      %p586 = por %p584, %p585
      %p587 = scmp.ne.s32.totalorder %s578, %s579
      %p588 = scmp.eq.s32.totalorder %s91, 0
      %p589 = por %p587, %p588
      %p590 = scmp.ne.s32.totalorder %s578, %s579
      %p591 = scmp.eq.s32.totalorder %s92, 1
      %p592 = por %p590, %p591
      %p594 = scmp.ne.s32.totalorder %s579, %s593
      %p595 = scmp.eq.s32.totalorder %s92, 0
      %p596 = por %p594, %p595
      %s598 = sadd.s32 %s597, 1
      %p601 = scmp.eq.s32.totalorder %s86, 1
      %p602 = scmp.ne.s32.totalorder %s597, %s599
      %p603 = scmp.eq.s32.totalorder %s86, 0
      %p604 = por %p602, %p603
      %p605 = scmp.ne.s32.totalorder %s597, %s599
      %p606 = scmp.eq.s32.totalorder %s91, 1
      %p607 = por %p605, %p606
      %p608 = scmp.ne.s32.totalorder %s599, %s600
      %p609 = scmp.eq.s32.totalorder %s91, 0
      %p610 = por %p608, %p609
      %p611 = scmp.ne.s32.totalorder %s599, %s600
      %p612 = scmp.eq.s32.totalorder %s92, 1
      %p613 = por %p611, %p612
      %p615 = scmp.ne.s32.totalorder %s600, %s614
      %p616 = scmp.eq.s32.totalorder %s92, 0
      %p617 = por %p615, %p616
      %s619 = sadd.s32 %s618, 1
      %p622 = scmp.eq.s32.totalorder %s86, 1
      %p623 = scmp.ne.s32.totalorder %s618, %s620
      %p624 = scmp.eq.s32.totalorder %s86, 0
      %p625 = por %p623, %p624
      %p626 = scmp.ne.s32.totalorder %s618, %s620
      %p627 = scmp.eq.s32.totalorder %s91, 1
      %p628 = por %p626, %p627
      %p629 = scmp.ne.s32.totalorder %s620, %s621
      %p630 = scmp.eq.s32.totalorder %s91, 0
      %p631 = por %p629, %p630
      %p632 = scmp.ne.s32.totalorder %s620, %s621
      %p633 = scmp.eq.s32.totalorder %s92, 1
      %p634 = por %p632, %p633
      %p636 = scmp.ne.s32.totalorder %s621, %s635
      %p637 = scmp.eq.s32.totalorder %s92, 0
      %p638 = por %p636, %p637
      %s640 = sadd.s32 %s639, 1
      %p643 = scmp.eq.s32.totalorder %s86, 1
      %p644 = scmp.ne.s32.totalorder %s639, %s641
      %p645 = scmp.eq.s32.totalorder %s86, 0
      %p646 = por %p644, %p645
      %p647 = scmp.ne.s32.totalorder %s639, %s641
      %p648 = scmp.eq.s32.totalorder %s91, 1
      %p649 = por %p647, %p648
      %p650 = scmp.ne.s32.totalorder %s641, %s642
      %p651 = scmp.eq.s32.totalorder %s91, 0
      %p652 = por %p650, %p651
      %p653 = scmp.ne.s32.totalorder %s641, %s642
      %p654 = scmp.eq.s32.totalorder %s92, 1
      %p655 = por %p653, %p654
      %p657 = scmp.ne.s32.totalorder %s642, %s656
      %p658 = scmp.eq.s32.totalorder %s92, 0
      %p659 = por %p657, %p658
      %s661 = sadd.s32 %s660, 1
      %p664 = scmp.eq.s32.totalorder %s86, 1
      %p665 = scmp.ne.s32.totalorder %s660, %s662
      %p666 = scmp.eq.s32.totalorder %s86, 0
      %p667 = por %p665, %p666
      %p668 = scmp.ne.s32.totalorder %s660, %s662
      %p669 = scmp.eq.s32.totalorder %s91, 1
      %p670 = por %p668, %p669
      %p671 = scmp.ne.s32.totalorder %s662, %s663
      %p672 = scmp.eq.s32.totalorder %s91, 0
      %p673 = por %p671, %p672
      %p674 = scmp.ne.s32.totalorder %s662, %s663
      %p675 = scmp.eq.s32.totalorder %s92, 1
      %p676 = por %p674, %p675
      %p678 = scmp.ne.s32.totalorder %s663, %s677
      %p679 = scmp.eq.s32.totalorder %s92, 0
      %p680 = por %p678, %p679
      %s682 = sadd.s32 %s681, 1
      %p685 = scmp.eq.s32.totalorder %s86, 1
      %p686 = scmp.ne.s32.totalorder %s681, %s683
      %p687 = scmp.eq.s32.totalorder %s86, 0
      %p688 = por %p686, %p687
      %p689 = scmp.ne.s32.totalorder %s681, %s683
      %p690 = scmp.eq.s32.totalorder %s91, 1
      %p691 = por %p689, %p690
      %p692 = scmp.ne.s32.totalorder %s683, %s684
      %p693 = scmp.eq.s32.totalorder %s91, 0
      %p694 = por %p692, %p693
      %p695 = scmp.ne.s32.totalorder %s683, %s684
      %p696 = scmp.eq.s32.totalorder %s92, 1
      %p697 = por %p695, %p696
      %p699 = scmp.ne.s32.totalorder %s684, %s698
      %p700 = scmp.eq.s32.totalorder %s92, 0
      %p701 = por %p699, %p700
      %s703 = sadd.s32 %s702, 1
      %p706 = scmp.eq.s32.totalorder %s86, 1
      %p707 = scmp.ne.s32.totalorder %s702, %s704
      %p708 = scmp.eq.s32.totalorder %s86, 0
      %p709 = por %p707, %p708
      %p710 = scmp.ne.s32.totalorder %s702, %s704
      %p711 = scmp.eq.s32.totalorder %s91, 1
      %p712 = por %p710, %p711
      %p713 = scmp.ne.s32.totalorder %s704, %s705
      %p714 = scmp.eq.s32.totalorder %s91, 0
      %p715 = por %p713, %p714
      %p716 = scmp.ne.s32.totalorder %s704, %s705
      %p717 = scmp.eq.s32.totalorder %s92, 1
      %p718 = por %p716, %p717
      %p720 = scmp.ne.s32.totalorder %s705, %s719
      %p721 = scmp.eq.s32.totalorder %s92, 0
      %p722 = por %p720, %p721
      %s724 = sadd.s32 %s723, 1
      %p727 = scmp.eq.s32.totalorder %s86, 1
      %p728 = scmp.ne.s32.totalorder %s723, %s725
      %p729 = scmp.eq.s32.totalorder %s86, 0
      %p730 = por %p728, %p729
      %p731 = scmp.ne.s32.totalorder %s723, %s725
      %p732 = scmp.eq.s32.totalorder %s91, 1
      %p733 = por %p731, %p732
      %p734 = scmp.ne.s32.totalorder %s725, %s726
      %p735 = scmp.eq.s32.totalorder %s91, 0
      %p736 = por %p734, %p735
      %p737 = scmp.ne.s32.totalorder %s725, %s726
      %p738 = scmp.eq.s32.totalorder %s92, 1
      %p739 = por %p737, %p738
      %p741 = scmp.ne.s32.totalorder %s726, %s740
      %p742 = scmp.eq.s32.totalorder %s92, 0
      %p743 = por %p741, %p742
      %s745 = sadd.s32 %s744, 1
      %p748 = scmp.eq.s32.totalorder %s86, 1
      %p749 = scmp.ne.s32.totalorder %s744, %s746
      %p750 = scmp.eq.s32.totalorder %s86, 0
      %p751 = por %p749, %p750
      %p752 = scmp.ne.s32.totalorder %s744, %s746
      %p753 = scmp.eq.s32.totalorder %s91, 1
      %p754 = por %p752, %p753
      %p755 = scmp.ne.s32.totalorder %s746, %s747
      %p756 = scmp.eq.s32.totalorder %s91, 0
      %p757 = por %p755, %p756
      %p758 = scmp.ne.s32.totalorder %s746, %s747
      %p759 = scmp.eq.s32.totalorder %s92, 1
      %p760 = por %p758, %p759
      %p762 = scmp.ne.s32.totalorder %s747, %s761
      %p763 = scmp.eq.s32.totalorder %s92, 0
      %p764 = por %p762, %p763
      %s766 = sadd.s32 %s765, 1
      %p769 = scmp.eq.s32.totalorder %s86, 1
      %p770 = scmp.ne.s32.totalorder %s765, %s767
      %p771 = scmp.eq.s32.totalorder %s86, 0
      %p772 = por %p770, %p771
      %p773 = scmp.ne.s32.totalorder %s765, %s767
      %p774 = scmp.eq.s32.totalorder %s91, 1
      %p775 = por %p773, %p774
      %p776 = scmp.ne.s32.totalorder %s767, %s768
      %p777 = scmp.eq.s32.totalorder %s91, 0
      %p778 = por %p776, %p777
      %p779 = scmp.ne.s32.totalorder %s767, %s768
      %p780 = scmp.eq.s32.totalorder %s92, 1
      %p781 = por %p779, %p780
      %p783 = scmp.ne.s32.totalorder %s768, %s782
      %p784 = scmp.eq.s32.totalorder %s92, 0
      %p785 = por %p783, %p784
      %s786 = ssub.s32 %s86, %s93
      %p787 = scmp.eq.s32.totalorder %s786, 0
      %s789 = sadd.s32 %s788, 1
      %s790 = scalar_select %p787, %s788, %s789
      %p793 = pneg %p787
      %p794 = scmp.eq.s32.totalorder %s86, 1
      %p795 = por %p793, %p794
      %p796 = scmp.ne.s32.totalorder %s788, %s791
      %p797 = scmp.eq.s32.totalorder %s86, 0
      %p798 = por %p796, %p797
      %p799 = scmp.ne.s32.totalorder %s788, %s791
      %p800 = scmp.eq.s32.totalorder %s91, 1
      %p801 = por %p799, %p800
      %p802 = scmp.ne.s32.totalorder %s791, %s792
      %p803 = scmp.eq.s32.totalorder %s91, 0
      %p804 = por %p802, %p803
      %p805 = scmp.ne.s32.totalorder %s791, %s792
      %p806 = scmp.eq.s32.totalorder %s92, 1
      %p807 = por %p805, %p806
      %p809 = scmp.ne.s32.totalorder %s792, %s808
      %p810 = scmp.eq.s32.totalorder %s92, 0
      %p811 = por %p809, %p810
      %p812 = scmp.le.s32.totalorder 1, %s86
      %p813 = scmp.lt.s32.totalorder %s86, 3
      %p814 = pnand %p812, %p813
      %p815 = pneg %p814
      // Predicated region
      $region9: #{tpu_custom_call.1} parent=5 // pred_check
        _
      $region10: #{tpu_custom_call.1} parent=5 // pred_check_branch
        %817 = sbr.rel (%p814) target = $region12
      $region11: #{tpu_custom_call.1} parent=5 // pred_region
        %s818 = ssub.s32 %s86, 1
        // Predicated region
        $region13: #{tpu_custom_call.1} parent=11 // pred_check
          %p819 = pneg %p211
        $region14: #{tpu_custom_call.1} parent=11 // pred_check_branch
          %821 = sbr.rel (%p819) target = $region16
        $region15: #{tpu_custom_call.1} parent=11 // pred_region
          _
        $region16: #{tpu_custom_call.1} parent=11 // pred_fallthru
          _
        // Predicated region
        $region17: #{tpu_custom_call.1} parent=11 // pred_check
          %p822 = pneg %p232
        $region18: #{tpu_custom_call.1} parent=11 // pred_check_branch
          %824 = sbr.rel (%p822) target = $region20
        $region19: #{tpu_custom_call.1} parent=11 // pred_region
          _
        $region20: #{tpu_custom_call.1} parent=11 // pred_fallthru
          _
        // Predicated region
        $region21: #{tpu_custom_call.1} parent=11 // pred_check
          %p825 = pneg %p253
        $region22: #{tpu_custom_call.1} parent=11 // pred_check_branch
          %827 = sbr.rel (%p825) target = $region24
        $region23: #{tpu_custom_call.1} parent=11 // pred_region
          _
        $region24: #{tpu_custom_call.1} parent=11 // pred_fallthru
          _
        // Predicated region
        $region25: #{tpu_custom_call.1} parent=11 // pred_check
          %p828 = pneg %p274
        $region26: #{tpu_custom_call.1} parent=11 // pred_check_branch
          %830 = sbr.rel (%p828) target = $region28
        $region27: #{tpu_custom_call.1} parent=11 // pred_region
          _
        $region28: #{tpu_custom_call.1} parent=11 // pred_fallthru
          _
        // Predicated region
        $region29: #{tpu_custom_call.1} parent=11 // pred_check
          %p831 = pneg %p295
        $region30: #{tpu_custom_call.1} parent=11 // pred_check_branch
          %833 = sbr.rel (%p831) target = $region32
        $region31: #{tpu_custom_call.1} parent=11 // pred_region
          _
        $region32: #{tpu_custom_call.1} parent=11 // pred_fallthru
          _
        // Predicated region
        $region33: #{tpu_custom_call.1} parent=11 // pred_check
          %p834 = pneg %p316
        $region34: #{tpu_custom_call.1} parent=11 // pred_check_branch
          %836 = sbr.rel (%p834) target = $region36
        $region35: #{tpu_custom_call.1} parent=11 // pred_region
          _
        $region36: #{tpu_custom_call.1} parent=11 // pred_fallthru
          _
        // Predicated region
        $region37: #{tpu_custom_call.1} parent=11 // pred_check
          %p837 = pneg %p337
        $region38: #{tpu_custom_call.1} parent=11 // pred_check_branch
          %839 = sbr.rel (%p837) target = $region40
        $region39: #{tpu_custom_call.1} parent=11 // pred_region
          %s841 = ssub.s32 512, 512
          %842 = vsyncadd [#allocation9], %s841
          %s843 = sshll.u32 [#allocation10], 4
          %s844 = int_to_ptr.vmem [resolvable:$true] %s843
          %849 = dma.hbm_to_vmem [thread:$0]  %s21, 512, %s844, [#allocation9], 128, 128, 8
        $region40: #{tpu_custom_call.1} parent=11 // pred_fallthru
          _
        // Predicated region
        $region41: #{tpu_custom_call.1} parent=11 // pred_check
          %p850 = pneg %p358
        $region42: #{tpu_custom_call.1} parent=11 // pred_check_branch
          %852 = sbr.rel (%p850) target = $region44
        $region43: #{tpu_custom_call.1} parent=11 // pred_region
          _
        $region44: #{tpu_custom_call.1} parent=11 // pred_fallthru
          _
        // Predicated region
        $region45: #{tpu_custom_call.1} parent=11 // pred_check
          %p853 = pneg %p379
        $region46: #{tpu_custom_call.1} parent=11 // pred_check_branch
          %855 = sbr.rel (%p853) target = $region48
        $region47: #{tpu_custom_call.1} parent=11 // pred_region
          %s857 = ssub.s32 512, 512
          %858 = vsyncadd [#allocation12], %s857
          %s859 = sshll.u32 [#allocation11], 4
          %s860 = int_to_ptr.vmem [resolvable:$true] %s859
          %865 = dma.hbm_to_vmem [thread:$0]  %s25, 512, %s860, [#allocation12], 128, 128, 8
        $region48: #{tpu_custom_call.1} parent=11 // pred_fallthru
          _
        // Predicated region
        $region49: #{tpu_custom_call.1} parent=11 // pred_check
          %p866 = pneg %p400
        $region50: #{tpu_custom_call.1} parent=11 // pred_check_branch
          %868 = sbr.rel (%p866) target = $region52
        $region51: #{tpu_custom_call.1} parent=11 // pred_region
          _
        $region52: #{tpu_custom_call.1} parent=11 // pred_fallthru
          _
        // Predicated region
        $region53: #{tpu_custom_call.1} parent=11 // pred_check
          %p869 = pneg %p421
        $region54: #{tpu_custom_call.1} parent=11 // pred_check_branch
          %871 = sbr.rel (%p869) target = $region56
        $region55: #{tpu_custom_call.1} parent=11 // pred_region
          %s873 = ssub.s32 512, 512
          %874 = vsyncadd [#allocation12], %s873
          %s875 = sshll.u32 [#allocation13], 4
          %s876 = int_to_ptr.vmem [resolvable:$true] %s875
          %881 = dma.hbm_to_vmem [thread:$0]  %s29, 512, %s876, [#allocation12], 128, 128, 8
        $region56: #{tpu_custom_call.1} parent=11 // pred_fallthru
          _
        // Predicated region
        $region57: #{tpu_custom_call.1} parent=11 // pred_check
          %p882 = pneg %p442
        $region58: #{tpu_custom_call.1} parent=11 // pred_check_branch
          %884 = sbr.rel (%p882) target = $region60
        $region59: #{tpu_custom_call.1} parent=11 // pred_region
          _
        $region60: #{tpu_custom_call.1} parent=11 // pred_fallthru
          _
        // Predicated region
        $region61: #{tpu_custom_call.1} parent=11 // pred_check
          %p885 = pneg %p463
        $region62: #{tpu_custom_call.1} parent=11 // pred_check_branch
          %887 = sbr.rel (%p885) target = $region64
        $region63: #{tpu_custom_call.1} parent=11 // pred_region
          %s889 = ssub.s32 512, 512
          %890 = vsyncadd [#allocation15], %s889
          %s891 = sshll.u32 [#allocation14], 4
          %s892 = int_to_ptr.vmem [resolvable:$true] %s891
          %897 = dma.hbm_to_vmem [thread:$0]  %s33, 512, %s892, [#allocation15], 128, 128, 8
        $region64: #{tpu_custom_call.1} parent=11 // pred_fallthru
          _
        // Predicated region
        $region65: #{tpu_custom_call.1} parent=11 // pred_check
          %p898 = pneg %p484
        $region66: #{tpu_custom_call.1} parent=11 // pred_check_branch
          %900 = sbr.rel (%p898) target = $region68
        $region67: #{tpu_custom_call.1} parent=11 // pred_region
          _
        $region68: #{tpu_custom_call.1} parent=11 // pred_fallthru
          _
        // Predicated region
        $region69: #{tpu_custom_call.1} parent=11 // pred_check
          %p901 = pneg %p505
        $region70: #{tpu_custom_call.1} parent=11 // pred_check_branch
          %903 = sbr.rel (%p901) target = $region72
        $region71: #{tpu_custom_call.1} parent=11 // pred_region
          %s905 = ssub.s32 512, 512
          %906 = vsyncadd [#allocation15], %s905
          %s907 = sshll.u32 [#allocation16], 4
          %s908 = int_to_ptr.vmem [resolvable:$true] %s907
          %913 = dma.hbm_to_vmem [thread:$0]  %s37, 512, %s908, [#allocation15], 128, 128, 8
        $region72: #{tpu_custom_call.1} parent=11 // pred_fallthru
          _
        // Predicated region
        $region73: #{tpu_custom_call.1} parent=11 // pred_check
          %p914 = pneg %p526
        $region74: #{tpu_custom_call.1} parent=11 // pred_check_branch
          %916 = sbr.rel (%p914) target = $region76
        $region75: #{tpu_custom_call.1} parent=11 // pred_region
          _
        $region76: #{tpu_custom_call.1} parent=11 // pred_fallthru
          _
        // Predicated region
        $region77: #{tpu_custom_call.1} parent=11 // pred_check
          %p917 = pneg %p547
        $region78: #{tpu_custom_call.1} parent=11 // pred_check_branch
          %919 = sbr.rel (%p917) target = $region80
        $region79: #{tpu_custom_call.1} parent=11 // pred_region
          %s921 = ssub.s32 512, 512
          %922 = vsyncadd [#allocation18], %s921
          %s923 = sshll.u32 [#allocation17], 4
          %s924 = int_to_ptr.vmem [resolvable:$true] %s923
          %929 = dma.hbm_to_vmem [thread:$0]  %s41, 512, %s924, [#allocation18], 128, 128, 8
        $region80: #{tpu_custom_call.1} parent=11 // pred_fallthru
          _
        // Predicated region
        $region81: #{tpu_custom_call.1} parent=11 // pred_check
          %p930 = pneg %p568
        $region82: #{tpu_custom_call.1} parent=11 // pred_check_branch
          %932 = sbr.rel (%p930) target = $region84
        $region83: #{tpu_custom_call.1} parent=11 // pred_region
          %s934 = ssub.s32 16, 16
          %935 = vsyncadd [#allocation18], %s934
          %s937 = sshll.u32 [#allocation19], 4
          %s938 = int_to_ptr.vmem [resolvable:$true] %s937
          %940 = dma.hbm_to_vmem [thread:$0]  %s43, 16, %s938, [#allocation18]
        $region84: #{tpu_custom_call.1} parent=11 // pred_fallthru
          _
        // Predicated region
        $region85: #{tpu_custom_call.1} parent=11 // pred_check
          %p941 = pneg %p589
        $region86: #{tpu_custom_call.1} parent=11 // pred_check_branch
          %943 = sbr.rel (%p941) target = $region88
        $region87: #{tpu_custom_call.1} parent=11 // pred_region
          _
        $region88: #{tpu_custom_call.1} parent=11 // pred_fallthru
          _
        // Predicated region
        $region89: #{tpu_custom_call.1} parent=11 // pred_check
          %p944 = pneg %p610
        $region90: #{tpu_custom_call.1} parent=11 // pred_check_branch
          %946 = sbr.rel (%p944) target = $region92
        $region91: #{tpu_custom_call.1} parent=11 // pred_region
          _
        $region92: #{tpu_custom_call.1} parent=11 // pred_fallthru
          _
        // Predicated region
        $region93: #{tpu_custom_call.1} parent=11 // pred_check
          %p947 = pneg %p631
        $region94: #{tpu_custom_call.1} parent=11 // pred_check_branch
          %949 = sbr.rel (%p947) target = $region96
        $region95: #{tpu_custom_call.1} parent=11 // pred_region
          _
        $region96: #{tpu_custom_call.1} parent=11 // pred_fallthru
          _
        // Predicated region
        $region97: #{tpu_custom_call.1} parent=11 // pred_check
          %p950 = pneg %p652
        $region98: #{tpu_custom_call.1} parent=11 // pred_check_branch
          %952 = sbr.rel (%p950) target = $region100
        $region99: #{tpu_custom_call.1} parent=11 // pred_region
          _
        $region100: #{tpu_custom_call.1} parent=11 // pred_fallthru
          _
        // Predicated region
        $region101: #{tpu_custom_call.1} parent=11 // pred_check
          %p953 = pneg %p673
        $region102: #{tpu_custom_call.1} parent=11 // pred_check_branch
          %955 = sbr.rel (%p953) target = $region104
        $region103: #{tpu_custom_call.1} parent=11 // pred_region
          _
        $region104: #{tpu_custom_call.1} parent=11 // pred_fallthru
          _
        // Predicated region
        $region105: #{tpu_custom_call.1} parent=11 // pred_check
          %p956 = pneg %p694
        $region106: #{tpu_custom_call.1} parent=11 // pred_check_branch
          %958 = sbr.rel (%p956) target = $region108
        $region107: #{tpu_custom_call.1} parent=11 // pred_region
          _
        $region108: #{tpu_custom_call.1} parent=11 // pred_fallthru
          _
        // Predicated region
        $region109: #{tpu_custom_call.1} parent=11 // pred_check
          %p959 = pneg %p715
        $region110: #{tpu_custom_call.1} parent=11 // pred_check_branch
          %961 = sbr.rel (%p959) target = $region112
        $region111: #{tpu_custom_call.1} parent=11 // pred_region
          _
        $region112: #{tpu_custom_call.1} parent=11 // pred_fallthru
          _
        // Predicated region
        $region113: #{tpu_custom_call.1} parent=11 // pred_check
          %p962 = pneg %p736
        $region114: #{tpu_custom_call.1} parent=11 // pred_check_branch
          %964 = sbr.rel (%p962) target = $region116
        $region115: #{tpu_custom_call.1} parent=11 // pred_region
          _
        $region116: #{tpu_custom_call.1} parent=11 // pred_fallthru
          _
        // Predicated region
        $region117: #{tpu_custom_call.1} parent=11 // pred_check
          %p965 = pneg %p757
        $region118: #{tpu_custom_call.1} parent=11 // pred_check_branch
          %967 = sbr.rel (%p965) target = $region120
        $region119: #{tpu_custom_call.1} parent=11 // pred_region
          _
        $region120: #{tpu_custom_call.1} parent=11 // pred_fallthru
          _
        // Predicated region
        $region121: #{tpu_custom_call.1} parent=11 // pred_check
          %p968 = pneg %p778
        $region122: #{tpu_custom_call.1} parent=11 // pred_check_branch
          %970 = sbr.rel (%p968) target = $region124
        $region123: #{tpu_custom_call.1} parent=11 // pred_region
          _
        $region124: #{tpu_custom_call.1} parent=11 // pred_fallthru
          _
      $region12: #{tpu_custom_call.1} parent=5 // pred_fallthru
        _
      %p971 = scmp.lt.s32.totalorder %s86, 2
      // Predicated region
      $region125: #{tpu_custom_call.1} parent=5 // pred_check
        %p972 = pneg %p971
      $region126: #{tpu_custom_call.1} parent=5 // pred_check_branch
        %974 = sbr.rel (%p972) target = $region128
      $region127: #{tpu_custom_call.1} parent=5 // pred_region
        // Predicated region
        $region129: #{tpu_custom_call.1} parent=127 // pred_check
          %p975 = pneg %p106
        $region130: #{tpu_custom_call.1} parent=127 // pred_check_branch
          %977 = sbr.rel (%p975) target = $region132
        $region131: #{tpu_custom_call.1} parent=127 // pred_region
          %s978 = sand.u32 %s96, 1
          %s979 = scalar_lea.sflag [#allocation3], %s978
          %s980 = sand.u32 %s96, 1
          %s981 = smul.addr %s980, 8
          %s982 = scalar_lea.vmem [#allocation2], %s981
          %s984 = ssub.s32 128, 128
          %985 = vsyncadd %s979, %s984
          %s986 = smul.addr %s86, 128
          %s987 = scalar_lea.hbm %s1, %s986
          %s989 = sshll.u32 %s982, 4
          %s990 = int_to_ptr.vmem [resolvable:$true] %s989
          %992 = dma.hbm_to_vmem [thread:$0]  %s987, 128, %s990, %s979
        $region132: #{tpu_custom_call.1} parent=127 // pred_fallthru
          _
        // Predicated region
        $region133: #{tpu_custom_call.1} parent=127 // pred_check
          %p993 = pneg %p132
        $region134: #{tpu_custom_call.1} parent=127 // pred_check_branch
          %995 = sbr.rel (%p993) target = $region136
        $region135: #{tpu_custom_call.1} parent=127 // pred_region
          %s996 = sand.u32 %s86, 1
          %s997 = scalar_lea.sflag [#allocation6], %s996
          %s998 = sand.u32 %s122, 1
          %s999 = smul.addr %s998, 8
          %s1000 = scalar_lea.vmem [#allocation5], %s999
          %s1002 = ssub.s32 128, 128
          %1003 = vsyncadd %s997, %s1002
          %s1004 = smul.addr %s86, 128
          %s1005 = scalar_lea.hbm %s3, %s1004
          %s1007 = sshll.u32 %s1000, 4
          %s1008 = int_to_ptr.vmem [resolvable:$true] %s1007
          %1010 = dma.hbm_to_vmem [thread:$0]  %s1005, 128, %s1008, %s997
        $region136: #{tpu_custom_call.1} parent=127 // pred_fallthru
          _
        // Predicated region
        $region137: #{tpu_custom_call.1} parent=127 // pred_check
          %p1011 = pneg %p158
        $region138: #{tpu_custom_call.1} parent=127 // pred_check_branch
          %1013 = sbr.rel (%p1011) target = $region140
        $region139: #{tpu_custom_call.1} parent=127 // pred_region
          %s1014 = sand.u32 %s86, 1
          %s1015 = scalar_lea.sflag [#allocation6], %s1014
          %s1016 = sand.u32 %s148, 1
          %s1017 = smul.addr %s1016, 8
          %s1018 = scalar_lea.vmem [#allocation7], %s1017
          %s1020 = ssub.s32 128, 128
          %1021 = vsyncadd %s1015, %s1020
          %s1022 = smul.addr %s86, 128
          %s1023 = scalar_lea.hbm %s5, %s1022
          %s1025 = sshll.u32 %s1018, 4
          %s1026 = int_to_ptr.vmem [resolvable:$true] %s1025
          %1028 = dma.hbm_to_vmem [thread:$0]  %s1023, 128, %s1026, %s1015
        $region140: #{tpu_custom_call.1} parent=127 // pred_fallthru
          _
        // Predicated region
        $region141: #{tpu_custom_call.1} parent=127 // pred_check
          %p1029 = pneg %p184
        $region142: #{tpu_custom_call.1} parent=127 // pred_check_branch
          %1031 = sbr.rel (%p1029) target = $region144
        $region143: #{tpu_custom_call.1} parent=127 // pred_region
          %s1032 = sand.u32 %s86, 1
          %s1033 = scalar_lea.sflag [#allocation9], %s1032
          %s1034 = sand.u32 %s174, 1
          %s1035 = smul.addr %s1034, 8
          %s1036 = scalar_lea.vmem [#allocation8], %s1035
          %s1038 = ssub.s32 128, 128
          %1039 = vsyncadd %s1033, %s1038
          %s1040 = smul.addr %s86, 128
          %s1041 = scalar_lea.hbm %s7, %s1040
          %s1043 = sshll.u32 %s1036, 4
          %s1044 = int_to_ptr.vmem [resolvable:$true] %s1043
          %1046 = dma.hbm_to_vmem [thread:$0]  %s1041, 128, %s1044, %s1033
        $region144: #{tpu_custom_call.1} parent=127 // pred_fallthru
          _
      $region128: #{tpu_custom_call.1} parent=5 // pred_fallthru
        _
      %p1047 = scmp.le.s32.totalorder 1, %s86
      %p1048 = scmp.lt.s32.totalorder %s86, 3
      %p1049 = pnand %p1047, %p1048
      %p1050 = pneg %p1049
      // Predicated region
      $region145: #{tpu_custom_call.1} parent=5 // pred_check
        _
      $region146: #{tpu_custom_call.1} parent=5 // pred_check_branch
        %1052 = sbr.rel (%p1049) target = $region148
      $region147: #{tpu_custom_call.1} parent=5 // pred_region
        %s1053 = ssub.s32 %s86, 1
        %s1054 = sand.u32 %s99, 1
        %s1055 = scalar_lea.sflag [#allocation3], %s1054
        %s1056 = sand.u32 %s99, 1
        %s1057 = smul.addr %s1056, 8
        %s1058 = scalar_lea.vmem [#allocation2], %s1057
        // Predicated region
        $region149: #{tpu_custom_call.1} parent=147 // pred_check
          %p1059 = pneg %p112
        $region150: #{tpu_custom_call.1} parent=147 // pred_check_branch
          %1061 = sbr.rel (%p1059) target = $region152
        $region151: #{tpu_custom_call.1} parent=147 // pred_region
          %1062 = dma.done %s1055, 128
        $region152: #{tpu_custom_call.1} parent=147 // pred_fallthru
          _
        %s1063 = sand.u32 %s91, 1
        %s1064 = scalar_lea.sflag [#allocation6], %s1063
        %s1065 = sand.u32 %s125, 1
        %s1066 = smul.addr %s1065, 8
        %s1067 = scalar_lea.vmem [#allocation5], %s1066
        // Predicated region
        $region153: #{tpu_custom_call.1} parent=147 // pred_check
          %p1068 = pneg %p138
        $region154: #{tpu_custom_call.1} parent=147 // pred_check_branch
          %1070 = sbr.rel (%p1068) target = $region156
        $region155: #{tpu_custom_call.1} parent=147 // pred_region
          %1071 = dma.done %s1064, 128
        $region156: #{tpu_custom_call.1} parent=147 // pred_fallthru
          _
        %s1072 = sand.u32 %s91, 1
        %s1073 = scalar_lea.sflag [#allocation6], %s1072
        %s1074 = sand.u32 %s151, 1
        %s1075 = smul.addr %s1074, 8
        %s1076 = scalar_lea.vmem [#allocation7], %s1075
        // Predicated region
        $region157: #{tpu_custom_call.1} parent=147 // pred_check
          %p1077 = pneg %p164
        $region158: #{tpu_custom_call.1} parent=147 // pred_check_branch
          %1079 = sbr.rel (%p1077) target = $region160
        $region159: #{tpu_custom_call.1} parent=147 // pred_region
          %1080 = dma.done %s1073, 128
        $region160: #{tpu_custom_call.1} parent=147 // pred_fallthru
          _
        %s1081 = sand.u32 %s91, 1
        %s1082 = scalar_lea.sflag [#allocation9], %s1081
        %s1083 = sand.u32 %s177, 1
        %s1084 = smul.addr %s1083, 8
        %s1085 = scalar_lea.vmem [#allocation8], %s1084
        // Predicated region
        $region161: #{tpu_custom_call.1} parent=147 // pred_check
          %p1086 = pneg %p190
        $region162: #{tpu_custom_call.1} parent=147 // pred_check_branch
          %1088 = sbr.rel (%p1086) target = $region164
        $region163: #{tpu_custom_call.1} parent=147 // pred_region
          %1089 = dma.done %s1082, 128
        $region164: #{tpu_custom_call.1} parent=147 // pred_fallthru
          _
        // Predicated region
        $region165: #{tpu_custom_call.1} parent=147 // pred_check
          %p1090 = pneg %p337
        $region166: #{tpu_custom_call.1} parent=147 // pred_check_branch
          %1092 = sbr.rel (%p1090) target = $region168
        $region167: #{tpu_custom_call.1} parent=147 // pred_region
          %1093 = dma.done [#allocation9], 512
        $region168: #{tpu_custom_call.1} parent=147 // pred_fallthru
          _
        // Predicated region
        $region169: #{tpu_custom_call.1} parent=147 // pred_check
          %p1094 = pneg %p379
        $region170: #{tpu_custom_call.1} parent=147 // pred_check_branch
          %1096 = sbr.rel (%p1094) target = $region172
        $region171: #{tpu_custom_call.1} parent=147 // pred_region
          %1097 = dma.done [#allocation12], 512
        $region172: #{tpu_custom_call.1} parent=147 // pred_fallthru
          _
        // Predicated region
        $region173: #{tpu_custom_call.1} parent=147 // pred_check
          %p1098 = pneg %p421
        $region174: #{tpu_custom_call.1} parent=147 // pred_check_branch
          %1100 = sbr.rel (%p1098) target = $region176
        $region175: #{tpu_custom_call.1} parent=147 // pred_region
          %1101 = dma.done [#allocation12], 512
        $region176: #{tpu_custom_call.1} parent=147 // pred_fallthru
          _
        // Predicated region
        $region177: #{tpu_custom_call.1} parent=147 // pred_check
          %p1102 = pneg %p463
        $region178: #{tpu_custom_call.1} parent=147 // pred_check_branch
          %1104 = sbr.rel (%p1102) target = $region180
        $region179: #{tpu_custom_call.1} parent=147 // pred_region
          %1105 = dma.done [#allocation15], 512
        $region180: #{tpu_custom_call.1} parent=147 // pred_fallthru
          _
        // Predicated region
        $region181: #{tpu_custom_call.1} parent=147 // pred_check
          %p1106 = pneg %p505
        $region182: #{tpu_custom_call.1} parent=147 // pred_check_branch
          %1108 = sbr.rel (%p1106) target = $region184
        $region183: #{tpu_custom_call.1} parent=147 // pred_region
          %1109 = dma.done [#allocation15], 512
        $region184: #{tpu_custom_call.1} parent=147 // pred_fallthru
          _
        // Predicated region
        $region185: #{tpu_custom_call.1} parent=147 // pred_check
          %p1110 = pneg %p547
        $region186: #{tpu_custom_call.1} parent=147 // pred_check_branch
          %1112 = sbr.rel (%p1110) target = $region188
        $region187: #{tpu_custom_call.1} parent=147 // pred_region
          %1113 = dma.done [#allocation18], 512
        $region188: #{tpu_custom_call.1} parent=147 // pred_fallthru
          _
        // Predicated region
        $region189: #{tpu_custom_call.1} parent=147 // pred_check
          %p1114 = pneg %p568
        $region190: #{tpu_custom_call.1} parent=147 // pred_check_branch
          %1116 = sbr.rel (%p1114) target = $region192
        $region191: #{tpu_custom_call.1} parent=147 // pred_region
          %1117 = dma.done [#allocation18], 16
        $region192: #{tpu_custom_call.1} parent=147 // pred_fallthru
          _
        %s1118 = sand.u32 %s99, 1
        %s1119 = scalar_lea.sflag [#allocation3], %s1118
        %s1120 = sand.u32 %s99, 1
        %s1121 = smul.addr %s1120, 8
        %s1122 = scalar_lea.vmem [#allocation2], %s1121
        %p1123 = pneg %p112
        %p1124 = pneg %p109
        %s1125 = sand.u32 %s91, 1
        %s1126 = scalar_lea.sflag [#allocation6], %s1125
        %s1127 = sand.u32 %s125, 1
        %s1128 = smul.addr %s1127, 8
        %s1129 = scalar_lea.vmem [#allocation5], %s1128
        %p1130 = pneg %p138
        %p1131 = pneg %p135
        %s1132 = sand.u32 %s91, 1
        %s1133 = scalar_lea.sflag [#allocation6], %s1132
        %s1134 = sand.u32 %s151, 1
        %s1135 = smul.addr %s1134, 8
        %s1136 = scalar_lea.vmem [#allocation7], %s1135
        %p1137 = pneg %p164
        %p1138 = pneg %p161
        %s1139 = sand.u32 %s91, 1
        %s1140 = scalar_lea.sflag [#allocation9], %s1139
        %s1141 = sand.u32 %s177, 1
        %s1142 = smul.addr %s1141, 8
        %s1143 = scalar_lea.vmem [#allocation8], %s1142
        %p1144 = pneg %p190
        %p1145 = pneg %p187
        %p1146 = pneg %p211
        %p1147 = pneg %p208
        %p1148 = pneg %p232
        %p1149 = pneg %p229
        %p1150 = pneg %p253
        %p1151 = pneg %p250
        %p1152 = pneg %p274
        %p1153 = pneg %p271
        %p1154 = pneg %p295
        %p1155 = pneg %p292
        %p1156 = pneg %p316
        %p1157 = pneg %p313
        %p1158 = pneg %p337
        %p1159 = pneg %p334
        %p1160 = pneg %p358
        %p1161 = pneg %p355
        %p1162 = pneg %p379
        %p1163 = pneg %p376
        %p1164 = pneg %p400
        %p1165 = pneg %p397
        %p1166 = pneg %p421
        %p1167 = pneg %p418
        %p1168 = pneg %p442
        %p1169 = pneg %p439
        %p1170 = pneg %p463
        %p1171 = pneg %p460
        %p1172 = pneg %p484
        %p1173 = pneg %p481
        %p1174 = pneg %p505
        %p1175 = pneg %p502
        %p1176 = pneg %p526
        %p1177 = pneg %p523
        %p1178 = pneg %p547
        %p1179 = pneg %p544
        %p1180 = pneg %p568
        %p1181 = pneg %p565
        %p1182 = pneg %p589
        %p1183 = pneg %p586
        %p1184 = pneg %p610
        %p1185 = pneg %p607
        %p1186 = pneg %p631
        %p1187 = pneg %p628
        %p1188 = pneg %p652
        %p1189 = pneg %p649
        %p1190 = pneg %p673
        %p1191 = pneg %p670
        %p1192 = pneg %p694
        %p1193 = pneg %p691
        %p1194 = pneg %p715
        %p1195 = pneg %p712
        %p1196 = pneg %p736
        %p1197 = pneg %p733
        %p1198 = pneg %p757
        %p1199 = pneg %p754
        %p1200 = pneg %p778
        %p1201 = pneg %p775
        %p1202 = pneg %p804
        %p1203 = pneg %p801
        %s1204 = sand.u32 %s791, 1
        %s1205 = scalar_lea.sflag [#allocation4], %s1204
        %s1206 = sand.u32 %s791, 1
        %s1207 = smul.addr %s1206, 8
        %s1208 = scalar_lea.vmem [#allocation20], %s1207
        %v1209 = vld [vmem:[%s1058] sm:$0xff]
        %v1210 = vld [vmem:[%s1067] sm:$0xff]
        %v1211 = vld [vmem:[%s1076] sm:$0xff]
        %v1212 = vld [vmem:[%s1085] sm:$0xff]
        %vm1213 = vcmask 261120
        %v1214 = vsel %vm1213, %v1209, 0.0
        %1215 = vadd.xlane.f32.xlu0 %v1214
        %v1216 = vpop.xlane.xlu0 %1215
        %v1217 = vrcp.pop 32.0
        %v1218 = vmul.f32 %v1216, %v1217
        %v1219 = vsub.f32 %v1209, %v1218
        %v1220 = vmul.f32 %v1219, %v1219
        %v1221 = vsel %vm1213, %v1220, 0.0
        %1222 = vadd.xlane.f32.xlu0 %v1221
        %v1223 = vpop.xlane.xlu0 %1222
        %v1224 = vmul.f32 %v1223, %v1217
        %v1225 = vadd.f32 %v1224, 1e-05
        %v1226 = vrsqrt.pop %v1225
        %v1227 = vmul.f32 %v1219, %v1226
        %v1228 = vld [vmem:[%s49] sm:$0x1]
        %v1230 = vlaneseq
        %v1231 = vshrl.u32 %v1230, 7
        %v1232 = vsub.s32 0, %v1231
        %v1233 = vrot.slane %v1228, %v1232
        %v1235 = vmul.f32 %v1227, %v1233
        %v1236 = vld [vmem:[%s51] sm:$0x1]
        %v1238 = vlaneseq
        %v1239 = vshrl.u32 %v1238, 7
        %v1240 = vsub.s32 0, %v1239
        %v1241 = vrot.slane %v1236, %v1240
        %v1243 = vadd.f32 %v1235, %v1241
        %v1244 = vld [vmem:[%s9] sm:$0xff]
        %v1245 = vld [vmem:[%s9 + $0x8] sm:$0xff]
        %v1246 = vld [vmem:[%s9 + $0x10] sm:$0xff]
        %v1247 = vld [vmem:[%s9 + $0x18] sm:$0xff]
        %v1248 = vld [vmem:[%s11] sm:$0x1]
        %v1250 = vlaneseq
        %v1251 = vshrl.u32 %v1250, 7
        %v1252 = vsub.s32 0, %v1251
        %v1253 = vrot.slane %v1248, %v1252
        %v1256 = vsel %vm1213, %v1243, 0
        %1258 = vmatprep.subr.mxu0 0.0
        %1259 = vmatpush1.msra.mxu0 0.0
        %1260 = vmatprep.subr.mxu0 0.0
        %1261 = vmatpush1.msra.mxu0 0.0
        %1262 = vmatprep.subr.mxu0 0.0
        %1263 = vmatpush1.msra.mxu0 0.0
        %1264 = vmatprep.subr.mxu0 0.0
        %1265 = vmatpush1.msra.mxu0 0.0
        %1266 = vmatprep.subr.mxu0 0.0
        %1267 = vmatpush1.msra.mxu0 0.0
        %1268 = vmatprep.subr.mxu0 0.0
        %1269 = vmatpush1.msra.mxu0 0.0
        %1270 = vmatprep.subr.mxu0 0.0
        %1271 = vmatpush1.msra.mxu0 0.0
        %1272 = vmatprep.subr.mxu0 0.0
        %1273 = vmatpush1.msra.mxu0 0.0
        %1274 = vmatprep.subr.mxu0 0.0
        %1275 = vmatpush1.msra.mxu0 0.0
        %1276 = vmatprep.subr.mxu0 0.0
        %1277 = vmatpush1.msra.mxu0 0.0
        %1278 = vmatprep.subr.mxu0 0.0
        %1279 = vmatpush1.msra.mxu0 0.0
        %1280 = vmatprep.subr.mxu0 0.0
        %1281 = vmatpush1.msra.mxu0 0.0
        %1282 = vmatprep.subr.mxu0 0.0
        %1283 = vmatpush1.msra.mxu0 %v1247
        %1284 = vmatprep.subr.mxu0 0.0
        %1285 = vmatpush1.msra.mxu0 %v1246
        %1286 = vmatprep.subr.mxu0 0.0
        %1287 = vmatpush1.msra.mxu0 %v1245
        %1288 = vmatprep.subr.mxu0 0.0
        %1289 = vmatpush1.msra.mxu0 %v1244
        %1290 = vmatprep.subr.mxu0 0.0
        %1291 = vmatpush2.msra.mxu0 0.0
        %1292 = vmatprep.subr.mxu0 0.0
        %1293 = vmatpush2.msra.mxu0 0.0
        %1294 = vmatprep.subr.mxu0 0.0
        %1295 = vmatpush2.msra.mxu0 0.0
        %1296 = vmatprep.subr.mxu0 0.0
        %1297 = vmatpush2.msra.mxu0 0.0
        %1298 = vmatprep.subr.mxu0 0.0
        %1299 = vmatpush2.msra.mxu0 0.0
        %1300 = vmatprep.subr.mxu0 0.0
        %1301 = vmatpush2.msra.mxu0 0.0
        %1302 = vmatprep.subr.mxu0 0.0
        %1303 = vmatpush2.msra.mxu0 0.0
        %1304 = vmatprep.subr.mxu0 0.0
        %1305 = vmatpush2.msra.mxu0 0.0
        %1306 = vmatprep.subr.mxu0 0.0
        %1307 = vmatpush2.msra.mxu0 0.0
        %1308 = vmatprep.subr.mxu0 0.0
        %1309 = vmatpush2.msra.mxu0 0.0
        %1310 = vmatprep.subr.mxu0 0.0
        %1311 = vmatpush2.msra.mxu0 0.0
        %1312 = vmatprep.subr.mxu0 0.0
        %1313 = vmatpush2.msra.mxu0 0.0
        %1314 = vmatprep.subr.mxu0 0.0
        %1315 = vmatpush2.msra.mxu0 0.0
        %1316 = vmatprep.subr.mxu0 0.0
        %1317 = vmatpush2.msra.mxu0 0.0
        %1318 = vmatprep.subr.mxu0 0.0
        %1319 = vmatpush2.msra.mxu0 0.0
        %1320 = vmatprep.subr.mxu0 0.0
        %1321 = vmatpush2.msra.mxu0 0.0
        %1322 = vmatprep.mubr.f32.mxu0 0.0
        %1323 = vmatmul.mubr.f32.gmra.mxu0 %v1256
        %v1324 = vpop.f32.mrf.mxu0
        %v1325 = vadd.f32 %v1253, %v1324
        %v1326 = vpop.f32.mrf.mxu0
        %1327 = vdwg.mxu0
        %v1328 = vld [vmem:[%s13] sm:$0xff]
        %v1329 = vld [vmem:[%s13 + $0x8] sm:$0xff]
        %v1330 = vld [vmem:[%s13 + $0x10] sm:$0xff]
        %v1331 = vld [vmem:[%s13 + $0x18] sm:$0xff]
        %v1332 = vld [vmem:[%s15] sm:$0x1]
        %v1334 = vlaneseq
        %v1335 = vshrl.u32 %v1334, 7
        %v1336 = vsub.s32 0, %v1335
        %v1337 = vrot.slane %v1332, %v1336
        %1339 = vmatprep.subr.mxu0 0.0
        %1340 = vmatpush1.msra.mxu0 0.0
        %1341 = vmatprep.subr.mxu0 0.0
        %1342 = vmatpush1.msra.mxu0 0.0
        %1343 = vmatprep.subr.mxu0 0.0
        %1344 = vmatpush1.msra.mxu0 0.0
        %1345 = vmatprep.subr.mxu0 0.0
        %1346 = vmatpush1.msra.mxu0 0.0
        %1347 = vmatprep.subr.mxu0 0.0
        %1348 = vmatpush1.msra.mxu0 0.0
        %1349 = vmatprep.subr.mxu0 0.0
        %1350 = vmatpush1.msra.mxu0 0.0
        %1351 = vmatprep.subr.mxu0 0.0
        %1352 = vmatpush1.msra.mxu0 0.0
        %1353 = vmatprep.subr.mxu0 0.0
        %1354 = vmatpush1.msra.mxu0 0.0
        %1355 = vmatprep.subr.mxu0 0.0
        %1356 = vmatpush1.msra.mxu0 0.0
        %1357 = vmatprep.subr.mxu0 0.0
        %1358 = vmatpush1.msra.mxu0 0.0
        %1359 = vmatprep.subr.mxu0 0.0
        %1360 = vmatpush1.msra.mxu0 0.0
        %1361 = vmatprep.subr.mxu0 0.0
        %1362 = vmatpush1.msra.mxu0 0.0
        %1363 = vmatprep.subr.mxu0 0.0
        %1364 = vmatpush1.msra.mxu0 %v1331
        %1365 = vmatprep.subr.mxu0 0.0
        %1366 = vmatpush1.msra.mxu0 %v1330
        %1367 = vmatprep.subr.mxu0 0.0
        %1368 = vmatpush1.msra.mxu0 %v1329
        %1369 = vmatprep.subr.mxu0 0.0
        %1370 = vmatpush1.msra.mxu0 %v1328
        %1371 = vmatprep.subr.mxu0 0.0
        %1372 = vmatpush2.msra.mxu0 0.0
        %1373 = vmatprep.subr.mxu0 0.0
        %1374 = vmatpush2.msra.mxu0 0.0
        %1375 = vmatprep.subr.mxu0 0.0
        %1376 = vmatpush2.msra.mxu0 0.0
        %1377 = vmatprep.subr.mxu0 0.0
        %1378 = vmatpush2.msra.mxu0 0.0
        %1379 = vmatprep.subr.mxu0 0.0
        %1380 = vmatpush2.msra.mxu0 0.0
        %1381 = vmatprep.subr.mxu0 0.0
        %1382 = vmatpush2.msra.mxu0 0.0
        %1383 = vmatprep.subr.mxu0 0.0
        %1384 = vmatpush2.msra.mxu0 0.0
        %1385 = vmatprep.subr.mxu0 0.0
        %1386 = vmatpush2.msra.mxu0 0.0
        %1387 = vmatprep.subr.mxu0 0.0
        %1388 = vmatpush2.msra.mxu0 0.0
        %1389 = vmatprep.subr.mxu0 0.0
        %1390 = vmatpush2.msra.mxu0 0.0
        %1391 = vmatprep.subr.mxu0 0.0
        %1392 = vmatpush2.msra.mxu0 0.0
        %1393 = vmatprep.subr.mxu0 0.0
        %1394 = vmatpush2.msra.mxu0 0.0
        %1395 = vmatprep.subr.mxu0 0.0
        %1396 = vmatpush2.msra.mxu0 0.0
        %1397 = vmatprep.subr.mxu0 0.0
        %1398 = vmatpush2.msra.mxu0 0.0
        %1399 = vmatprep.subr.mxu0 0.0
        %1400 = vmatpush2.msra.mxu0 0.0
        %1401 = vmatprep.subr.mxu0 0.0
        %1402 = vmatpush2.msra.mxu0 0.0
        %1403 = vmatprep.mubr.f32.mxu0 0.0
        %1404 = vmatmul.mubr.f32.gmra.mxu0 %v1256
        %v1405 = vpop.f32.mrf.mxu0
        %v1406 = vadd.f32 %v1337, %v1405
        %v1407 = vpop.f32.mrf.mxu0
        %1408 = vdwg.mxu0
        %v1409 = vld [vmem:[%s17] sm:$0xff]
        %v1410 = vld [vmem:[%s17 + $0x8] sm:$0xff]
        %v1411 = vld [vmem:[%s17 + $0x10] sm:$0xff]
        %v1412 = vld [vmem:[%s17 + $0x18] sm:$0xff]
        %v1413 = vld [vmem:[%s19] sm:$0x1]
        %v1415 = vlaneseq
        %v1416 = vshrl.u32 %v1415, 7
        %v1417 = vsub.s32 0, %v1416
        %v1418 = vrot.slane %v1413, %v1417
        %1420 = vmatprep.subr.mxu0 0.0
        %1421 = vmatpush1.msra.mxu0 0.0
        %1422 = vmatprep.subr.mxu0 0.0
        %1423 = vmatpush1.msra.mxu0 0.0
        %1424 = vmatprep.subr.mxu0 0.0
        %1425 = vmatpush1.msra.mxu0 0.0
        %1426 = vmatprep.subr.mxu0 0.0
        %1427 = vmatpush1.msra.mxu0 0.0
        %1428 = vmatprep.subr.mxu0 0.0
        %1429 = vmatpush1.msra.mxu0 0.0
        %1430 = vmatprep.subr.mxu0 0.0
        %1431 = vmatpush1.msra.mxu0 0.0
        %1432 = vmatprep.subr.mxu0 0.0
        %1433 = vmatpush1.msra.mxu0 0.0
        %1434 = vmatprep.subr.mxu0 0.0
        %1435 = vmatpush1.msra.mxu0 0.0
        %1436 = vmatprep.subr.mxu0 0.0
        %1437 = vmatpush1.msra.mxu0 0.0
        %1438 = vmatprep.subr.mxu0 0.0
        %1439 = vmatpush1.msra.mxu0 0.0
        %1440 = vmatprep.subr.mxu0 0.0
        %1441 = vmatpush1.msra.mxu0 0.0
        %1442 = vmatprep.subr.mxu0 0.0
        %1443 = vmatpush1.msra.mxu0 0.0
        %1444 = vmatprep.subr.mxu0 0.0
        %1445 = vmatpush1.msra.mxu0 %v1412
        %1446 = vmatprep.subr.mxu0 0.0
        %1447 = vmatpush1.msra.mxu0 %v1411
        %1448 = vmatprep.subr.mxu0 0.0
        %1449 = vmatpush1.msra.mxu0 %v1410
        %1450 = vmatprep.subr.mxu0 0.0
        %1451 = vmatpush1.msra.mxu0 %v1409
        %1452 = vmatprep.subr.mxu0 0.0
        %1453 = vmatpush2.msra.mxu0 0.0
        %1454 = vmatprep.subr.mxu0 0.0
        %1455 = vmatpush2.msra.mxu0 0.0
        %1456 = vmatprep.subr.mxu0 0.0
        %1457 = vmatpush2.msra.mxu0 0.0
        %1458 = vmatprep.subr.mxu0 0.0
        %1459 = vmatpush2.msra.mxu0 0.0
        %1460 = vmatprep.subr.mxu0 0.0
        %1461 = vmatpush2.msra.mxu0 0.0
        %1462 = vmatprep.subr.mxu0 0.0
        %1463 = vmatpush2.msra.mxu0 0.0
        %1464 = vmatprep.subr.mxu0 0.0
        %1465 = vmatpush2.msra.mxu0 0.0
        %1466 = vmatprep.subr.mxu0 0.0
        %1467 = vmatpush2.msra.mxu0 0.0
        %1468 = vmatprep.subr.mxu0 0.0
        %1469 = vmatpush2.msra.mxu0 0.0
        %1470 = vmatprep.subr.mxu0 0.0
        %1471 = vmatpush2.msra.mxu0 0.0
        %1472 = vmatprep.subr.mxu0 0.0
        %1473 = vmatpush2.msra.mxu0 0.0
        %1474 = vmatprep.subr.mxu0 0.0
        %1475 = vmatpush2.msra.mxu0 0.0
        %1476 = vmatprep.subr.mxu0 0.0
        %1477 = vmatpush2.msra.mxu0 0.0
        %1478 = vmatprep.subr.mxu0 0.0
        %1479 = vmatpush2.msra.mxu0 0.0
        %1480 = vmatprep.subr.mxu0 0.0
        %1481 = vmatpush2.msra.mxu0 0.0
        %1482 = vmatprep.subr.mxu0 0.0
        %1483 = vmatpush2.msra.mxu0 0.0
        %1484 = vmatprep.mubr.f32.mxu0 0.0
        %1485 = vmatmul.mubr.f32.gmra.mxu0 %v1256
        %v1486 = vpop.f32.mrf.mxu0
        %v1487 = vadd.f32 %v1418, %v1486
        %v1488 = vpop.f32.mrf.mxu0
        %1489 = vdwg.mxu0
        %vm1490 = vcmask 64512
        %v1492 = vsel %vm1490, %v1325, 0
        %v1495 = vsel %vm1490, %v1406, 0
        %1497 = vmatprep.subr.mxu0 0.0
        %1498 = vmatpush1.xpose.msra.mxu0 0.0
        %1499 = vmatprep.subr.mxu0 0.0
        %1500 = vmatpush1.xpose.msra.mxu0 0.0
        %1501 = vmatprep.subr.mxu0 0.0
        %1502 = vmatpush1.xpose.msra.mxu0 0.0
        %1503 = vmatprep.subr.mxu0 0.0
        %1504 = vmatpush1.xpose.msra.mxu0 0.0
        %1505 = vmatprep.subr.mxu0 0.0
        %1506 = vmatpush1.xpose.msra.mxu0 0.0
        %1507 = vmatprep.subr.mxu0 0.0
        %1508 = vmatpush1.xpose.msra.mxu0 0.0
        %1509 = vmatprep.subr.mxu0 0.0
        %1510 = vmatpush1.xpose.msra.mxu0 0.0
        %1511 = vmatprep.subr.mxu0 0.0
        %1512 = vmatpush1.xpose.msra.mxu0 0.0
        %1513 = vmatprep.subr.mxu0 0.0
        %1514 = vmatpush1.xpose.msra.mxu0 0.0
        %1515 = vmatprep.subr.mxu0 0.0
        %1516 = vmatpush1.xpose.msra.mxu0 0.0
        %1517 = vmatprep.subr.mxu0 0.0
        %1518 = vmatpush1.xpose.msra.mxu0 0.0
        %1519 = vmatprep.subr.mxu0 0.0
        %1520 = vmatpush1.xpose.msra.mxu0 0.0
        %1521 = vmatprep.subr.mxu0 0.0
        %1522 = vmatpush1.xpose.msra.mxu0 0.0
        %1523 = vmatprep.subr.mxu0 0.0
        %1524 = vmatpush1.xpose.msra.mxu0 0.0
        %1525 = vmatprep.subr.mxu0 0.0
        %1526 = vmatpush1.xpose.msra.mxu0 0.0
        %1527 = vmatprep.subr.mxu0 0.0
        %1528 = vmatpush1.xpose.msra.mxu0 %v1495
        %1529 = vmatprep.subr.mxu0 0.0
        %1530 = vmatpush2.xpose.msra.mxu0 0.0
        %1531 = vmatprep.subr.mxu0 0.0
        %1532 = vmatpush2.xpose.msra.mxu0 0.0
        %1533 = vmatprep.subr.mxu0 0.0
        %1534 = vmatpush2.xpose.msra.mxu0 0.0
        %1535 = vmatprep.subr.mxu0 0.0
        %1536 = vmatpush2.xpose.msra.mxu0 0.0
        %1537 = vmatprep.subr.mxu0 0.0
        %1538 = vmatpush2.xpose.msra.mxu0 0.0
        %1539 = vmatprep.subr.mxu0 0.0
        %1540 = vmatpush2.xpose.msra.mxu0 0.0
        %1541 = vmatprep.subr.mxu0 0.0
        %1542 = vmatpush2.xpose.msra.mxu0 0.0
        %1543 = vmatprep.subr.mxu0 0.0
        %1544 = vmatpush2.xpose.msra.mxu0 0.0
        %1545 = vmatprep.subr.mxu0 0.0
        %1546 = vmatpush2.xpose.msra.mxu0 0.0
        %1547 = vmatprep.subr.mxu0 0.0
        %1548 = vmatpush2.xpose.msra.mxu0 0.0
        %1549 = vmatprep.subr.mxu0 0.0
        %1550 = vmatpush2.xpose.msra.mxu0 0.0
        %1551 = vmatprep.subr.mxu0 0.0
        %1552 = vmatpush2.xpose.msra.mxu0 0.0
        %1553 = vmatprep.subr.mxu0 0.0
        %1554 = vmatpush2.xpose.msra.mxu0 0.0
        %1555 = vmatprep.subr.mxu0 0.0
        %1556 = vmatpush2.xpose.msra.mxu0 0.0
        %1557 = vmatprep.subr.mxu0 0.0
        %1558 = vmatpush2.xpose.msra.mxu0 0.0
        %1559 = vmatprep.subr.mxu0 0.0
        %1560 = vmatpush2.xpose.msra.mxu0 0.0
        %1561 = vmatprep.mubr.f32.mxu0 0.0
        %1562 = vmatmul.mubr.f32.gmra.mxu0 %v1492
        %v1563 = vpop.f32.mrf.mxu0
        %v1564 = vadd.f32 0.0, %v1563
        %v1565 = vpop.f32.mrf.mxu0
        %1566 = vdwg.mxu0
        %v1567 = vmul.f32 %v1564, 0.35355338
        %vm1568 = vcmp.eq.f32.partialorder %v1211, 0.0
        %v1569 = vsel %vm1568, -1e+09, %v1567
        %v1570 = vsel %vm1490, %v1569, -inf
        %1571 = vmax.xlane.f32.xlu0 %v1570
        %v1572 = vpop.xlane.xlu0 %1571
        %v1573 = vsub.f32 %v1569, %v1572
        %v1574 = vmul.f32 %v1573, 1.442695
        %v1575 = vpow.pop %v1574
        %v1576 = vsel %vm1490, %v1575, 0.0
        %1577 = vadd.xlane.f32.xlu0 %v1576
        %v1578 = vpop.xlane.xlu0 %1577
        %v1579 = vrcp.pop %v1578
        %v1580 = vmul.f32 %v1575, %v1579
        %v1582 = vsel %vm1490, %v1580, 0
        %1584 = vmatprep.subr.mxu0 0.0
        %1585 = vmatpush1.msra.mxu0 0.0
        %1586 = vmatprep.subr.mxu0 0.0
        %1587 = vmatpush1.msra.mxu0 0.0
        %1588 = vmatprep.subr.mxu0 0.0
        %1589 = vmatpush1.msra.mxu0 0.0
        %1590 = vmatprep.subr.mxu0 0.0
        %1591 = vmatpush1.msra.mxu0 0.0
        %1592 = vmatprep.subr.mxu0 0.0
        %1593 = vmatpush1.msra.mxu0 0.0
        %1594 = vmatprep.subr.mxu0 0.0
        %1595 = vmatpush1.msra.mxu0 0.0
        %1596 = vmatprep.subr.mxu0 0.0
        %1597 = vmatpush1.msra.mxu0 0.0
        %1598 = vmatprep.subr.mxu0 0.0
        %1599 = vmatpush1.msra.mxu0 0.0
        %1600 = vmatprep.subr.mxu0 0.0
        %1601 = vmatpush1.msra.mxu0 0.0
        %1602 = vmatprep.subr.mxu0 0.0
        %1603 = vmatpush1.msra.mxu0 0.0
        %1604 = vmatprep.subr.mxu0 0.0
        %1605 = vmatpush1.msra.mxu0 0.0
        %1606 = vmatprep.subr.mxu0 0.0
        %1607 = vmatpush1.msra.mxu0 0.0
        %1608 = vmatprep.subr.mxu0 0.0
        %1609 = vmatpush1.msra.mxu0 0.0
        %1610 = vmatprep.subr.mxu0 0.0
        %1611 = vmatpush1.msra.mxu0 0.0
        %1612 = vmatprep.subr.mxu0 0.0
        %1613 = vmatpush1.msra.mxu0 0.0
        %1614 = vmatprep.subr.mxu0 0.0
        %1615 = vmatpush1.msra.mxu0 %v1487
        %1616 = vmatprep.subr.mxu0 0.0
        %1617 = vmatpush2.msra.mxu0 0.0
        %1618 = vmatprep.subr.mxu0 0.0
        %1619 = vmatpush2.msra.mxu0 0.0
        %1620 = vmatprep.subr.mxu0 0.0
        %1621 = vmatpush2.msra.mxu0 0.0
        %1622 = vmatprep.subr.mxu0 0.0
        %1623 = vmatpush2.msra.mxu0 0.0
        %1624 = vmatprep.subr.mxu0 0.0
        %1625 = vmatpush2.msra.mxu0 0.0
        %1626 = vmatprep.subr.mxu0 0.0
        %1627 = vmatpush2.msra.mxu0 0.0
        %1628 = vmatprep.subr.mxu0 0.0
        %1629 = vmatpush2.msra.mxu0 0.0
        %1630 = vmatprep.subr.mxu0 0.0
        %1631 = vmatpush2.msra.mxu0 0.0
        %1632 = vmatprep.subr.mxu0 0.0
        %1633 = vmatpush2.msra.mxu0 0.0
        %1634 = vmatprep.subr.mxu0 0.0
        %1635 = vmatpush2.msra.mxu0 0.0
        %1636 = vmatprep.subr.mxu0 0.0
        %1637 = vmatpush2.msra.mxu0 0.0
        %1638 = vmatprep.subr.mxu0 0.0
        %1639 = vmatpush2.msra.mxu0 0.0
        %1640 = vmatprep.subr.mxu0 0.0
        %1641 = vmatpush2.msra.mxu0 0.0
        %1642 = vmatprep.subr.mxu0 0.0
        %1643 = vmatpush2.msra.mxu0 0.0
        %1644 = vmatprep.subr.mxu0 0.0
        %1645 = vmatpush2.msra.mxu0 0.0
        %1646 = vmatprep.subr.mxu0 0.0
        %1647 = vmatpush2.msra.mxu0 0.0
        %1648 = vmatprep.mubr.f32.mxu0 0.0
        %1649 = vmatmul.mubr.f32.gmra.mxu0 %v1582
        %v1650 = vpop.f32.mrf.mxu0
        %v1651 = vadd.f32 0.0, %v1650
        %v1652 = vpop.f32.mrf.mxu0
        %1653 = vdwg.mxu0
        %v1654 = vld [vmem:[#allocation10] sm:$0xff]
        %1659 = vrot.lane.b32.xlu0 %v1244, 120
        %v1660 = vpop.permute.xlu0 %1659
        %1661 = vrot.lane.b32.xlu0 %v1245, 120
        %v1662 = vpop.permute.xlu0 %1661
        %1663 = vrot.lane.b32.xlu0 %v1246, 120
        %v1664 = vpop.permute.xlu0 %1663
        %1665 = vrot.lane.b32.xlu0 %v1247, 120
        %v1666 = vpop.permute.xlu0 %1665
        %1671 = vrot.lane.b32.xlu0 %v1253, 120
        %v1672 = vpop.permute.xlu0 %1671
        %1674 = vmatprep.subr.mxu0 0.0
        %1675 = vmatpush1.msra.mxu0 0.0
        %1676 = vmatprep.subr.mxu0 0.0
        %1677 = vmatpush1.msra.mxu0 0.0
        %1678 = vmatprep.subr.mxu0 0.0
        %1679 = vmatpush1.msra.mxu0 0.0
        %1680 = vmatprep.subr.mxu0 0.0
        %1681 = vmatpush1.msra.mxu0 0.0
        %1682 = vmatprep.subr.mxu0 0.0
        %1683 = vmatpush1.msra.mxu0 0.0
        %1684 = vmatprep.subr.mxu0 0.0
        %1685 = vmatpush1.msra.mxu0 0.0
        %1686 = vmatprep.subr.mxu0 0.0
        %1687 = vmatpush1.msra.mxu0 0.0
        %1688 = vmatprep.subr.mxu0 0.0
        %1689 = vmatpush1.msra.mxu0 0.0
        %1690 = vmatprep.subr.mxu0 0.0
        %1691 = vmatpush1.msra.mxu0 0.0
        %1692 = vmatprep.subr.mxu0 0.0
        %1693 = vmatpush1.msra.mxu0 0.0
        %1694 = vmatprep.subr.mxu0 0.0
        %1695 = vmatpush1.msra.mxu0 0.0
        %1696 = vmatprep.subr.mxu0 0.0
        %1697 = vmatpush1.msra.mxu0 0.0
        %1698 = vmatprep.subr.mxu0 0.0
        %1699 = vmatpush1.msra.mxu0 %v1666
        %1700 = vmatprep.subr.mxu0 0.0
        %1701 = vmatpush1.msra.mxu0 %v1664
        %1702 = vmatprep.subr.mxu0 0.0
        %1703 = vmatpush1.msra.mxu0 %v1662
        %1704 = vmatprep.subr.mxu0 0.0
        %1705 = vmatpush1.msra.mxu0 %v1660
        %1706 = vmatprep.subr.mxu0 0.0
        %1707 = vmatpush2.msra.mxu0 0.0
        %1708 = vmatprep.subr.mxu0 0.0
        %1709 = vmatpush2.msra.mxu0 0.0
        %1710 = vmatprep.subr.mxu0 0.0
        %1711 = vmatpush2.msra.mxu0 0.0
        %1712 = vmatprep.subr.mxu0 0.0
        %1713 = vmatpush2.msra.mxu0 0.0
        %1714 = vmatprep.subr.mxu0 0.0
        %1715 = vmatpush2.msra.mxu0 0.0
        %1716 = vmatprep.subr.mxu0 0.0
        %1717 = vmatpush2.msra.mxu0 0.0
        %1718 = vmatprep.subr.mxu0 0.0
        %1719 = vmatpush2.msra.mxu0 0.0
        %1720 = vmatprep.subr.mxu0 0.0
        %1721 = vmatpush2.msra.mxu0 0.0
        %1722 = vmatprep.subr.mxu0 0.0
        %1723 = vmatpush2.msra.mxu0 0.0
        %1724 = vmatprep.subr.mxu0 0.0
        %1725 = vmatpush2.msra.mxu0 0.0
        %1726 = vmatprep.subr.mxu0 0.0
        %1727 = vmatpush2.msra.mxu0 0.0
        %1728 = vmatprep.subr.mxu0 0.0
        %1729 = vmatpush2.msra.mxu0 0.0
        %1730 = vmatprep.subr.mxu0 0.0
        %1731 = vmatpush2.msra.mxu0 0.0
        %1732 = vmatprep.subr.mxu0 0.0
        %1733 = vmatpush2.msra.mxu0 0.0
        %1734 = vmatprep.subr.mxu0 0.0
        %1735 = vmatpush2.msra.mxu0 0.0
        %1736 = vmatprep.subr.mxu0 0.0
        %1737 = vmatpush2.msra.mxu0 0.0
        %1738 = vmatprep.mubr.f32.mxu0 0.0
        %1739 = vmatmul.mubr.f32.gmra.mxu0 %v1256
        %v1740 = vpop.f32.mrf.mxu0
        %v1741 = vadd.f32 %v1672, %v1740
        %v1742 = vpop.f32.mrf.mxu0
        %1743 = vdwg.mxu0
        %1748 = vrot.lane.b32.xlu0 %v1328, 120
        %v1749 = vpop.permute.xlu0 %1748
        %1750 = vrot.lane.b32.xlu0 %v1329, 120
        %v1751 = vpop.permute.xlu0 %1750
        %1752 = vrot.lane.b32.xlu0 %v1330, 120
        %v1753 = vpop.permute.xlu0 %1752
        %1754 = vrot.lane.b32.xlu0 %v1331, 120
        %v1755 = vpop.permute.xlu0 %1754
        %1760 = vrot.lane.b32.xlu0 %v1337, 120
        %v1761 = vpop.permute.xlu0 %1760
        %1763 = vmatprep.subr.mxu0 0.0
        %1764 = vmatpush1.msra.mxu0 0.0
        %1765 = vmatprep.subr.mxu0 0.0
        %1766 = vmatpush1.msra.mxu0 0.0
        %1767 = vmatprep.subr.mxu0 0.0
        %1768 = vmatpush1.msra.mxu0 0.0
        %1769 = vmatprep.subr.mxu0 0.0
        %1770 = vmatpush1.msra.mxu0 0.0
        %1771 = vmatprep.subr.mxu0 0.0
        %1772 = vmatpush1.msra.mxu0 0.0
        %1773 = vmatprep.subr.mxu0 0.0
        %1774 = vmatpush1.msra.mxu0 0.0
        %1775 = vmatprep.subr.mxu0 0.0
        %1776 = vmatpush1.msra.mxu0 0.0
        %1777 = vmatprep.subr.mxu0 0.0
        %1778 = vmatpush1.msra.mxu0 0.0
        %1779 = vmatprep.subr.mxu0 0.0
        %1780 = vmatpush1.msra.mxu0 0.0
        %1781 = vmatprep.subr.mxu0 0.0
        %1782 = vmatpush1.msra.mxu0 0.0
        %1783 = vmatprep.subr.mxu0 0.0
        %1784 = vmatpush1.msra.mxu0 0.0
        %1785 = vmatprep.subr.mxu0 0.0
        %1786 = vmatpush1.msra.mxu0 0.0
        %1787 = vmatprep.subr.mxu0 0.0
        %1788 = vmatpush1.msra.mxu0 %v1755
        %1789 = vmatprep.subr.mxu0 0.0
        %1790 = vmatpush1.msra.mxu0 %v1753
        %1791 = vmatprep.subr.mxu0 0.0
        %1792 = vmatpush1.msra.mxu0 %v1751
        %1793 = vmatprep.subr.mxu0 0.0
        %1794 = vmatpush1.msra.mxu0 %v1749
        %1795 = vmatprep.subr.mxu0 0.0
        %1796 = vmatpush2.msra.mxu0 0.0
        %1797 = vmatprep.subr.mxu0 0.0
        %1798 = vmatpush2.msra.mxu0 0.0
        %1799 = vmatprep.subr.mxu0 0.0
        %1800 = vmatpush2.msra.mxu0 0.0
        %1801 = vmatprep.subr.mxu0 0.0
        %1802 = vmatpush2.msra.mxu0 0.0
        %1803 = vmatprep.subr.mxu0 0.0
        %1804 = vmatpush2.msra.mxu0 0.0
        %1805 = vmatprep.subr.mxu0 0.0
        %1806 = vmatpush2.msra.mxu0 0.0
        %1807 = vmatprep.subr.mxu0 0.0
        %1808 = vmatpush2.msra.mxu0 0.0
        %1809 = vmatprep.subr.mxu0 0.0
        %1810 = vmatpush2.msra.mxu0 0.0
        %1811 = vmatprep.subr.mxu0 0.0
        %1812 = vmatpush2.msra.mxu0 0.0
        %1813 = vmatprep.subr.mxu0 0.0
        %1814 = vmatpush2.msra.mxu0 0.0
        %1815 = vmatprep.subr.mxu0 0.0
        %1816 = vmatpush2.msra.mxu0 0.0
        %1817 = vmatprep.subr.mxu0 0.0
        %1818 = vmatpush2.msra.mxu0 0.0
        %1819 = vmatprep.subr.mxu0 0.0
        %1820 = vmatpush2.msra.mxu0 0.0
        %1821 = vmatprep.subr.mxu0 0.0
        %1822 = vmatpush2.msra.mxu0 0.0
        %1823 = vmatprep.subr.mxu0 0.0
        %1824 = vmatpush2.msra.mxu0 0.0
        %1825 = vmatprep.subr.mxu0 0.0
        %1826 = vmatpush2.msra.mxu0 0.0
        %1827 = vmatprep.mubr.f32.mxu0 0.0
        %1828 = vmatmul.mubr.f32.gmra.mxu0 %v1256
        %v1829 = vpop.f32.mrf.mxu0
        %v1830 = vadd.f32 %v1761, %v1829
        %v1831 = vpop.f32.mrf.mxu0
        %1832 = vdwg.mxu0
        %1837 = vrot.lane.b32.xlu0 %v1409, 120
        %v1838 = vpop.permute.xlu0 %1837
        %1839 = vrot.lane.b32.xlu0 %v1410, 120
        %v1840 = vpop.permute.xlu0 %1839
        %1841 = vrot.lane.b32.xlu0 %v1411, 120
        %v1842 = vpop.permute.xlu0 %1841
        %1843 = vrot.lane.b32.xlu0 %v1412, 120
        %v1844 = vpop.permute.xlu0 %1843
        %1849 = vrot.lane.b32.xlu0 %v1418, 120
        %v1850 = vpop.permute.xlu0 %1849
        %1852 = vmatprep.subr.mxu0 0.0
        %1853 = vmatpush1.msra.mxu0 0.0
        %1854 = vmatprep.subr.mxu0 0.0
        %1855 = vmatpush1.msra.mxu0 0.0
        %1856 = vmatprep.subr.mxu0 0.0
        %1857 = vmatpush1.msra.mxu0 0.0
        %1858 = vmatprep.subr.mxu0 0.0
        %1859 = vmatpush1.msra.mxu0 0.0
        %1860 = vmatprep.subr.mxu0 0.0
        %1861 = vmatpush1.msra.mxu0 0.0
        %1862 = vmatprep.subr.mxu0 0.0
        %1863 = vmatpush1.msra.mxu0 0.0
        %1864 = vmatprep.subr.mxu0 0.0
        %1865 = vmatpush1.msra.mxu0 0.0
        %1866 = vmatprep.subr.mxu0 0.0
        %1867 = vmatpush1.msra.mxu0 0.0
        %1868 = vmatprep.subr.mxu0 0.0
        %1869 = vmatpush1.msra.mxu0 0.0
        %1870 = vmatprep.subr.mxu0 0.0
        %1871 = vmatpush1.msra.mxu0 0.0
        %1872 = vmatprep.subr.mxu0 0.0
        %1873 = vmatpush1.msra.mxu0 0.0
        %1874 = vmatprep.subr.mxu0 0.0
        %1875 = vmatpush1.msra.mxu0 0.0
        %1876 = vmatprep.subr.mxu0 0.0
        %1877 = vmatpush1.msra.mxu0 %v1844
        %1878 = vmatprep.subr.mxu0 0.0
        %1879 = vmatpush1.msra.mxu0 %v1842
        %1880 = vmatprep.subr.mxu0 0.0
        %1881 = vmatpush1.msra.mxu0 %v1840
        %1882 = vmatprep.subr.mxu0 0.0
        %1883 = vmatpush1.msra.mxu0 %v1838
        %1884 = vmatprep.subr.mxu0 0.0
        %1885 = vmatpush2.msra.mxu0 0.0
        %1886 = vmatprep.subr.mxu0 0.0
        %1887 = vmatpush2.msra.mxu0 0.0
        %1888 = vmatprep.subr.mxu0 0.0
        %1889 = vmatpush2.msra.mxu0 0.0
        %1890 = vmatprep.subr.mxu0 0.0
        %1891 = vmatpush2.msra.mxu0 0.0
        %1892 = vmatprep.subr.mxu0 0.0
        %1893 = vmatpush2.msra.mxu0 0.0
        %1894 = vmatprep.subr.mxu0 0.0
        %1895 = vmatpush2.msra.mxu0 0.0
        %1896 = vmatprep.subr.mxu0 0.0
        %1897 = vmatpush2.msra.mxu0 0.0
        %1898 = vmatprep.subr.mxu0 0.0
        %1899 = vmatpush2.msra.mxu0 0.0
        %1900 = vmatprep.subr.mxu0 0.0
        %1901 = vmatpush2.msra.mxu0 0.0
        %1902 = vmatprep.subr.mxu0 0.0
        %1903 = vmatpush2.msra.mxu0 0.0
        %1904 = vmatprep.subr.mxu0 0.0
        %1905 = vmatpush2.msra.mxu0 0.0
        %1906 = vmatprep.subr.mxu0 0.0
        %1907 = vmatpush2.msra.mxu0 0.0
        %1908 = vmatprep.subr.mxu0 0.0
        %1909 = vmatpush2.msra.mxu0 0.0
        %1910 = vmatprep.subr.mxu0 0.0
        %1911 = vmatpush2.msra.mxu0 0.0
        %1912 = vmatprep.subr.mxu0 0.0
        %1913 = vmatpush2.msra.mxu0 0.0
        %1914 = vmatprep.subr.mxu0 0.0
        %1915 = vmatpush2.msra.mxu0 0.0
        %1916 = vmatprep.mubr.f32.mxu0 0.0
        %1917 = vmatmul.mubr.f32.gmra.mxu0 %v1256
        %v1918 = vpop.f32.mrf.mxu0
        %v1919 = vadd.f32 %v1850, %v1918
        %v1920 = vpop.f32.mrf.mxu0
        %1921 = vdwg.mxu0
        %v1923 = vsel %vm1490, %v1741, 0
        %v1926 = vsel %vm1490, %v1830, 0
        %1928 = vmatprep.subr.mxu0 0.0
        %1929 = vmatpush1.xpose.msra.mxu0 0.0
        %1930 = vmatprep.subr.mxu0 0.0
        %1931 = vmatpush1.xpose.msra.mxu0 0.0
        %1932 = vmatprep.subr.mxu0 0.0
        %1933 = vmatpush1.xpose.msra.mxu0 0.0
        %1934 = vmatprep.subr.mxu0 0.0
        %1935 = vmatpush1.xpose.msra.mxu0 0.0
        %1936 = vmatprep.subr.mxu0 0.0
        %1937 = vmatpush1.xpose.msra.mxu0 0.0
        %1938 = vmatprep.subr.mxu0 0.0
        %1939 = vmatpush1.xpose.msra.mxu0 0.0
        %1940 = vmatprep.subr.mxu0 0.0
        %1941 = vmatpush1.xpose.msra.mxu0 0.0
        %1942 = vmatprep.subr.mxu0 0.0
        %1943 = vmatpush1.xpose.msra.mxu0 0.0
        %1944 = vmatprep.subr.mxu0 0.0
        %1945 = vmatpush1.xpose.msra.mxu0 0.0
        %1946 = vmatprep.subr.mxu0 0.0
        %1947 = vmatpush1.xpose.msra.mxu0 0.0
        %1948 = vmatprep.subr.mxu0 0.0
        %1949 = vmatpush1.xpose.msra.mxu0 0.0
        %1950 = vmatprep.subr.mxu0 0.0
        %1951 = vmatpush1.xpose.msra.mxu0 0.0
        %1952 = vmatprep.subr.mxu0 0.0
        %1953 = vmatpush1.xpose.msra.mxu0 0.0
        %1954 = vmatprep.subr.mxu0 0.0
        %1955 = vmatpush1.xpose.msra.mxu0 0.0
        %1956 = vmatprep.subr.mxu0 0.0
        %1957 = vmatpush1.xpose.msra.mxu0 0.0
        %1958 = vmatprep.subr.mxu0 0.0
        %1959 = vmatpush1.xpose.msra.mxu0 %v1926
        %1960 = vmatprep.subr.mxu0 0.0
        %1961 = vmatpush2.xpose.msra.mxu0 0.0
        %1962 = vmatprep.subr.mxu0 0.0
        %1963 = vmatpush2.xpose.msra.mxu0 0.0
        %1964 = vmatprep.subr.mxu0 0.0
        %1965 = vmatpush2.xpose.msra.mxu0 0.0
        %1966 = vmatprep.subr.mxu0 0.0
        %1967 = vmatpush2.xpose.msra.mxu0 0.0
        %1968 = vmatprep.subr.mxu0 0.0
        %1969 = vmatpush2.xpose.msra.mxu0 0.0
        %1970 = vmatprep.subr.mxu0 0.0
        %1971 = vmatpush2.xpose.msra.mxu0 0.0
        %1972 = vmatprep.subr.mxu0 0.0
        %1973 = vmatpush2.xpose.msra.mxu0 0.0
        %1974 = vmatprep.subr.mxu0 0.0
        %1975 = vmatpush2.xpose.msra.mxu0 0.0
        %1976 = vmatprep.subr.mxu0 0.0
        %1977 = vmatpush2.xpose.msra.mxu0 0.0
        %1978 = vmatprep.subr.mxu0 0.0
        %1979 = vmatpush2.xpose.msra.mxu0 0.0
        %1980 = vmatprep.subr.mxu0 0.0
        %1981 = vmatpush2.xpose.msra.mxu0 0.0
        %1982 = vmatprep.subr.mxu0 0.0
        %1983 = vmatpush2.xpose.msra.mxu0 0.0
        %1984 = vmatprep.subr.mxu0 0.0
        %1985 = vmatpush2.xpose.msra.mxu0 0.0
        %1986 = vmatprep.subr.mxu0 0.0
        %1987 = vmatpush2.xpose.msra.mxu0 0.0
        %1988 = vmatprep.subr.mxu0 0.0
        %1989 = vmatpush2.xpose.msra.mxu0 0.0
        %1990 = vmatprep.subr.mxu0 0.0
        %1991 = vmatpush2.xpose.msra.mxu0 0.0
        %1992 = vmatprep.mubr.f32.mxu0 0.0
        %1993 = vmatmul.mubr.f32.gmra.mxu0 %v1923
        %v1994 = vpop.f32.mrf.mxu0
        %v1995 = vadd.f32 0.0, %v1994
        %v1996 = vpop.f32.mrf.mxu0
        %1997 = vdwg.mxu0
        %v1998 = vmul.f32 %v1995, 0.35355338
        %v1999 = vsel %vm1568, -1e+09, %v1998
        %v2000 = vsel %vm1490, %v1999, -inf
        %2001 = vmax.xlane.f32.xlu0 %v2000
        %v2002 = vpop.xlane.xlu0 %2001
        %v2003 = vsub.f32 %v1999, %v2002
        %v2004 = vmul.f32 %v2003, 1.442695
        %v2005 = vpow.pop %v2004
        %v2006 = vsel %vm1490, %v2005, 0.0
        %2007 = vadd.xlane.f32.xlu0 %v2006
        %v2008 = vpop.xlane.xlu0 %2007
        %v2009 = vrcp.pop %v2008
        %v2010 = vmul.f32 %v2005, %v2009
        %v2012 = vsel %vm1490, %v2010, 0
        %2014 = vmatprep.subr.mxu0 0.0
        %2015 = vmatpush1.msra.mxu0 0.0
        %2016 = vmatprep.subr.mxu0 0.0
        %2017 = vmatpush1.msra.mxu0 0.0
        %2018 = vmatprep.subr.mxu0 0.0
        %2019 = vmatpush1.msra.mxu0 0.0
        %2020 = vmatprep.subr.mxu0 0.0
        %2021 = vmatpush1.msra.mxu0 0.0
        %2022 = vmatprep.subr.mxu0 0.0
        %2023 = vmatpush1.msra.mxu0 0.0
        %2024 = vmatprep.subr.mxu0 0.0
        %2025 = vmatpush1.msra.mxu0 0.0
        %2026 = vmatprep.subr.mxu0 0.0
        %2027 = vmatpush1.msra.mxu0 0.0
        %2028 = vmatprep.subr.mxu0 0.0
        %2029 = vmatpush1.msra.mxu0 0.0
        %2030 = vmatprep.subr.mxu0 0.0
        %2031 = vmatpush1.msra.mxu0 0.0
        %2032 = vmatprep.subr.mxu0 0.0
        %2033 = vmatpush1.msra.mxu0 0.0
        %2034 = vmatprep.subr.mxu0 0.0
        %2035 = vmatpush1.msra.mxu0 0.0
        %2036 = vmatprep.subr.mxu0 0.0
        %2037 = vmatpush1.msra.mxu0 0.0
        %2038 = vmatprep.subr.mxu0 0.0
        %2039 = vmatpush1.msra.mxu0 0.0
        %2040 = vmatprep.subr.mxu0 0.0
        %2041 = vmatpush1.msra.mxu0 0.0
        %2042 = vmatprep.subr.mxu0 0.0
        %2043 = vmatpush1.msra.mxu0 0.0
        %2044 = vmatprep.subr.mxu0 0.0
        %2045 = vmatpush1.msra.mxu0 %v1919
        %2046 = vmatprep.subr.mxu0 0.0
        %2047 = vmatpush2.msra.mxu0 0.0
        %2048 = vmatprep.subr.mxu0 0.0
        %2049 = vmatpush2.msra.mxu0 0.0
        %2050 = vmatprep.subr.mxu0 0.0
        %2051 = vmatpush2.msra.mxu0 0.0
        %2052 = vmatprep.subr.mxu0 0.0
        %2053 = vmatpush2.msra.mxu0 0.0
        %2054 = vmatprep.subr.mxu0 0.0
        %2055 = vmatpush2.msra.mxu0 0.0
        %2056 = vmatprep.subr.mxu0 0.0
        %2057 = vmatpush2.msra.mxu0 0.0
        %2058 = vmatprep.subr.mxu0 0.0
        %2059 = vmatpush2.msra.mxu0 0.0
        %2060 = vmatprep.subr.mxu0 0.0
        %2061 = vmatpush2.msra.mxu0 0.0
        %2062 = vmatprep.subr.mxu0 0.0
        %2063 = vmatpush2.msra.mxu0 0.0
        %2064 = vmatprep.subr.mxu0 0.0
        %2065 = vmatpush2.msra.mxu0 0.0
        %2066 = vmatprep.subr.mxu0 0.0
        %2067 = vmatpush2.msra.mxu0 0.0
        %2068 = vmatprep.subr.mxu0 0.0
        %2069 = vmatpush2.msra.mxu0 0.0
        %2070 = vmatprep.subr.mxu0 0.0
        %2071 = vmatpush2.msra.mxu0 0.0
        %2072 = vmatprep.subr.mxu0 0.0
        %2073 = vmatpush2.msra.mxu0 0.0
        %2074 = vmatprep.subr.mxu0 0.0
        %2075 = vmatpush2.msra.mxu0 0.0
        %2076 = vmatprep.subr.mxu0 0.0
        %2077 = vmatpush2.msra.mxu0 0.0
        %2078 = vmatprep.mubr.f32.mxu0 0.0
        %2079 = vmatmul.mubr.f32.gmra.mxu0 %v2012
        %v2080 = vpop.f32.mrf.mxu0
        %v2081 = vadd.f32 0.0, %v2080
        %v2082 = vpop.f32.mrf.mxu0
        %2083 = vdwg.mxu0
        %v2084 = vld [vmem:[#allocation10 + $0x8] sm:$0xff]
        %v2086 = vsel %vm1490, %v2081, 0
        %2088 = vmatprep.subr.mxu0 0.0
        %2089 = vmatpush1.msra.mxu0 0.0
        %2090 = vmatprep.subr.mxu0 0.0
        %2091 = vmatpush1.msra.mxu0 0.0
        %2092 = vmatprep.subr.mxu0 0.0
        %2093 = vmatpush1.msra.mxu0 0.0
        %2094 = vmatprep.subr.mxu0 0.0
        %2095 = vmatpush1.msra.mxu0 0.0
        %2096 = vmatprep.subr.mxu0 0.0
        %2097 = vmatpush1.msra.mxu0 0.0
        %2098 = vmatprep.subr.mxu0 0.0
        %2099 = vmatpush1.msra.mxu0 0.0
        %2100 = vmatprep.subr.mxu0 0.0
        %2101 = vmatpush1.msra.mxu0 0.0
        %2102 = vmatprep.subr.mxu0 0.0
        %2103 = vmatpush1.msra.mxu0 0.0
        %2104 = vmatprep.subr.mxu0 0.0
        %2105 = vmatpush1.msra.mxu0 0.0
        %2106 = vmatprep.subr.mxu0 0.0
        %2107 = vmatpush1.msra.mxu0 0.0
        %2108 = vmatprep.subr.mxu0 0.0
        %2109 = vmatpush1.msra.mxu0 0.0
        %2110 = vmatprep.subr.mxu0 0.0
        %2111 = vmatpush1.msra.mxu0 0.0
        %2112 = vmatprep.subr.mxu0 0.0
        %2113 = vmatpush1.msra.mxu0 0.0
        %2114 = vmatprep.subr.mxu0 0.0
        %2115 = vmatpush1.msra.mxu0 0.0
        %2116 = vmatprep.subr.mxu0 0.0
        %2117 = vmatpush1.msra.mxu0 0.0
        %2118 = vmatprep.subr.mxu0 0.0
        %2119 = vmatpush1.msra.mxu0 %v2084
        %2120 = vmatprep.subr.mxu0 0.0
        %2121 = vmatpush2.msra.mxu0 0.0
        %2122 = vmatprep.subr.mxu0 0.0
        %2123 = vmatpush2.msra.mxu0 0.0
        %2124 = vmatprep.subr.mxu0 0.0
        %2125 = vmatpush2.msra.mxu0 0.0
        %2126 = vmatprep.subr.mxu0 0.0
        %2127 = vmatpush2.msra.mxu0 0.0
        %2128 = vmatprep.subr.mxu0 0.0
        %2129 = vmatpush2.msra.mxu0 0.0
        %2130 = vmatprep.subr.mxu0 0.0
        %2131 = vmatpush2.msra.mxu0 0.0
        %2132 = vmatprep.subr.mxu0 0.0
        %2133 = vmatpush2.msra.mxu0 0.0
        %2134 = vmatprep.subr.mxu0 0.0
        %2135 = vmatpush2.msra.mxu0 0.0
        %2136 = vmatprep.subr.mxu0 0.0
        %2137 = vmatpush2.msra.mxu0 0.0
        %2138 = vmatprep.subr.mxu0 0.0
        %2139 = vmatpush2.msra.mxu0 0.0
        %2140 = vmatprep.subr.mxu0 0.0
        %2141 = vmatpush2.msra.mxu0 0.0
        %2142 = vmatprep.subr.mxu0 0.0
        %2143 = vmatpush2.msra.mxu0 0.0
        %2144 = vmatprep.subr.mxu0 0.0
        %2145 = vmatpush2.msra.mxu0 0.0
        %2146 = vmatprep.subr.mxu0 0.0
        %2147 = vmatpush2.msra.mxu0 0.0
        %2148 = vmatprep.subr.mxu0 0.0
        %2149 = vmatpush2.msra.mxu0 0.0
        %2150 = vmatprep.subr.mxu0 0.0
        %2151 = vmatpush2.msra.mxu0 0.0
        %2152 = vmatprep.mubr.f32.mxu0 0.0
        %2153 = vmatmul.mubr.f32.gmra.mxu0 %v2086
        %v2154 = vpop.f32.mrf.mxu0
        %v2155 = vadd.f32 0.0, %v2154
        %v2156 = vpop.f32.mrf.mxu0
        %2157 = vdwg.mxu0
        %v2159 = vsel %vm1490, %v1651, 0
        %2161 = vmatprep.subr.mxu0 0.0
        %2162 = vmatpush1.msra.mxu0 0.0
        %2163 = vmatprep.subr.mxu0 0.0
        %2164 = vmatpush1.msra.mxu0 0.0
        %2165 = vmatprep.subr.mxu0 0.0
        %2166 = vmatpush1.msra.mxu0 0.0
        %2167 = vmatprep.subr.mxu0 0.0
        %2168 = vmatpush1.msra.mxu0 0.0
        %2169 = vmatprep.subr.mxu0 0.0
        %2170 = vmatpush1.msra.mxu0 0.0
        %2171 = vmatprep.subr.mxu0 0.0
        %2172 = vmatpush1.msra.mxu0 0.0
        %2173 = vmatprep.subr.mxu0 0.0
        %2174 = vmatpush1.msra.mxu0 0.0
        %2175 = vmatprep.subr.mxu0 0.0
        %2176 = vmatpush1.msra.mxu0 0.0
        %2177 = vmatprep.subr.mxu0 0.0
        %2178 = vmatpush1.msra.mxu0 0.0
        %2179 = vmatprep.subr.mxu0 0.0
        %2180 = vmatpush1.msra.mxu0 0.0
        %2181 = vmatprep.subr.mxu0 0.0
        %2182 = vmatpush1.msra.mxu0 0.0
        %2183 = vmatprep.subr.mxu0 0.0
        %2184 = vmatpush1.msra.mxu0 0.0
        %2185 = vmatprep.subr.mxu0 0.0
        %2186 = vmatpush1.msra.mxu0 0.0
        %2187 = vmatprep.subr.mxu0 0.0
        %2188 = vmatpush1.msra.mxu0 0.0
        %2189 = vmatprep.subr.mxu0 0.0
        %2190 = vmatpush1.msra.mxu0 0.0
        %2191 = vmatprep.subr.mxu0 0.0
        %2192 = vmatpush1.msra.mxu0 %v1654
        %2193 = vmatprep.subr.mxu0 0.0
        %2194 = vmatpush2.msra.mxu0 0.0
        %2195 = vmatprep.subr.mxu0 0.0
        %2196 = vmatpush2.msra.mxu0 0.0
        %2197 = vmatprep.subr.mxu0 0.0
        %2198 = vmatpush2.msra.mxu0 0.0
        %2199 = vmatprep.subr.mxu0 0.0
        %2200 = vmatpush2.msra.mxu0 0.0
        %2201 = vmatprep.subr.mxu0 0.0
        %2202 = vmatpush2.msra.mxu0 0.0
        %2203 = vmatprep.subr.mxu0 0.0
        %2204 = vmatpush2.msra.mxu0 0.0
        %2205 = vmatprep.subr.mxu0 0.0
        %2206 = vmatpush2.msra.mxu0 0.0
        %2207 = vmatprep.subr.mxu0 0.0
        %2208 = vmatpush2.msra.mxu0 0.0
        %2209 = vmatprep.subr.mxu0 0.0
        %2210 = vmatpush2.msra.mxu0 0.0
        %2211 = vmatprep.subr.mxu0 0.0
        %2212 = vmatpush2.msra.mxu0 0.0
        %2213 = vmatprep.subr.mxu0 0.0
        %2214 = vmatpush2.msra.mxu0 0.0
        %2215 = vmatprep.subr.mxu0 0.0
        %2216 = vmatpush2.msra.mxu0 0.0
        %2217 = vmatprep.subr.mxu0 0.0
        %2218 = vmatpush2.msra.mxu0 0.0
        %2219 = vmatprep.subr.mxu0 0.0
        %2220 = vmatpush2.msra.mxu0 0.0
        %2221 = vmatprep.subr.mxu0 0.0
        %2222 = vmatpush2.msra.mxu0 0.0
        %2223 = vmatprep.subr.mxu0 0.0
        %2224 = vmatpush2.msra.mxu0 0.0
        %2225 = vmatprep.mubr.f32.mxu0 0.0
        %2226 = vmatmul.mubr.f32.gmra.mxu0 %v2159
        %v2227 = vpop.f32.mrf.mxu0
        %v2228 = vadd.f32 %v2155, %v2227
        %v2229 = vpop.f32.mrf.mxu0
        %2230 = vdwg.mxu0
        %2231 = vrot.lane.b32.xlu0 %v1244, 112
        %v2232 = vpop.permute.xlu0 %2231
        %2233 = vrot.lane.b32.xlu0 %v1245, 112
        %v2234 = vpop.permute.xlu0 %2233
        %2235 = vrot.lane.b32.xlu0 %v1246, 112
        %v2236 = vpop.permute.xlu0 %2235
        %2237 = vrot.lane.b32.xlu0 %v1247, 112
        %v2238 = vpop.permute.xlu0 %2237
        %2243 = vrot.lane.b32.xlu0 %v1253, 112
        %v2244 = vpop.permute.xlu0 %2243
        %2246 = vmatprep.subr.mxu0 0.0
        %2247 = vmatpush1.msra.mxu0 0.0
        %2248 = vmatprep.subr.mxu0 0.0
        %2249 = vmatpush1.msra.mxu0 0.0
        %2250 = vmatprep.subr.mxu0 0.0
        %2251 = vmatpush1.msra.mxu0 0.0
        %2252 = vmatprep.subr.mxu0 0.0
        %2253 = vmatpush1.msra.mxu0 0.0
        %2254 = vmatprep.subr.mxu0 0.0
        %2255 = vmatpush1.msra.mxu0 0.0
        %2256 = vmatprep.subr.mxu0 0.0
        %2257 = vmatpush1.msra.mxu0 0.0
        %2258 = vmatprep.subr.mxu0 0.0
        %2259 = vmatpush1.msra.mxu0 0.0
        %2260 = vmatprep.subr.mxu0 0.0
        %2261 = vmatpush1.msra.mxu0 0.0
        %2262 = vmatprep.subr.mxu0 0.0
        %2263 = vmatpush1.msra.mxu0 0.0
        %2264 = vmatprep.subr.mxu0 0.0
        %2265 = vmatpush1.msra.mxu0 0.0
        %2266 = vmatprep.subr.mxu0 0.0
        %2267 = vmatpush1.msra.mxu0 0.0
        %2268 = vmatprep.subr.mxu0 0.0
        %2269 = vmatpush1.msra.mxu0 0.0
        %2270 = vmatprep.subr.mxu0 0.0
        %2271 = vmatpush1.msra.mxu0 %v2238
        %2272 = vmatprep.subr.mxu0 0.0
        %2273 = vmatpush1.msra.mxu0 %v2236
        %2274 = vmatprep.subr.mxu0 0.0
        %2275 = vmatpush1.msra.mxu0 %v2234
        %2276 = vmatprep.subr.mxu0 0.0
        %2277 = vmatpush1.msra.mxu0 %v2232
        %2278 = vmatprep.subr.mxu0 0.0
        %2279 = vmatpush2.msra.mxu0 0.0
        %2280 = vmatprep.subr.mxu0 0.0
        %2281 = vmatpush2.msra.mxu0 0.0
        %2282 = vmatprep.subr.mxu0 0.0
        %2283 = vmatpush2.msra.mxu0 0.0
        %2284 = vmatprep.subr.mxu0 0.0
        %2285 = vmatpush2.msra.mxu0 0.0
        %2286 = vmatprep.subr.mxu0 0.0
        %2287 = vmatpush2.msra.mxu0 0.0
        %2288 = vmatprep.subr.mxu0 0.0
        %2289 = vmatpush2.msra.mxu0 0.0
        %2290 = vmatprep.subr.mxu0 0.0
        %2291 = vmatpush2.msra.mxu0 0.0
        %2292 = vmatprep.subr.mxu0 0.0
        %2293 = vmatpush2.msra.mxu0 0.0
        %2294 = vmatprep.subr.mxu0 0.0
        %2295 = vmatpush2.msra.mxu0 0.0
        %2296 = vmatprep.subr.mxu0 0.0
        %2297 = vmatpush2.msra.mxu0 0.0
        %2298 = vmatprep.subr.mxu0 0.0
        %2299 = vmatpush2.msra.mxu0 0.0
        %2300 = vmatprep.subr.mxu0 0.0
        %2301 = vmatpush2.msra.mxu0 0.0
        %2302 = vmatprep.subr.mxu0 0.0
        %2303 = vmatpush2.msra.mxu0 0.0
        %2304 = vmatprep.subr.mxu0 0.0
        %2305 = vmatpush2.msra.mxu0 0.0
        %2306 = vmatprep.subr.mxu0 0.0
        %2307 = vmatpush2.msra.mxu0 0.0
        %2308 = vmatprep.subr.mxu0 0.0
        %2309 = vmatpush2.msra.mxu0 0.0
        %2310 = vmatprep.mubr.f32.mxu0 0.0
        %2311 = vmatmul.mubr.f32.gmra.mxu0 %v1256
        %v2312 = vpop.f32.mrf.mxu0
        %v2313 = vadd.f32 %v2244, %v2312
        %v2314 = vpop.f32.mrf.mxu0
        %2315 = vdwg.mxu0
        %2316 = vrot.lane.b32.xlu0 %v1328, 112
        %v2317 = vpop.permute.xlu0 %2316
        %2318 = vrot.lane.b32.xlu0 %v1329, 112
        %v2319 = vpop.permute.xlu0 %2318
        %2320 = vrot.lane.b32.xlu0 %v1330, 112
        %v2321 = vpop.permute.xlu0 %2320
        %2322 = vrot.lane.b32.xlu0 %v1331, 112
        %v2323 = vpop.permute.xlu0 %2322
        %2328 = vrot.lane.b32.xlu0 %v1337, 112
        %v2329 = vpop.permute.xlu0 %2328
        %2331 = vmatprep.subr.mxu0 0.0
        %2332 = vmatpush1.msra.mxu0 0.0
        %2333 = vmatprep.subr.mxu0 0.0
        %2334 = vmatpush1.msra.mxu0 0.0
        %2335 = vmatprep.subr.mxu0 0.0
        %2336 = vmatpush1.msra.mxu0 0.0
        %2337 = vmatprep.subr.mxu0 0.0
        %2338 = vmatpush1.msra.mxu0 0.0
        %2339 = vmatprep.subr.mxu0 0.0
        %2340 = vmatpush1.msra.mxu0 0.0
        %2341 = vmatprep.subr.mxu0 0.0
        %2342 = vmatpush1.msra.mxu0 0.0
        %2343 = vmatprep.subr.mxu0 0.0
        %2344 = vmatpush1.msra.mxu0 0.0
        %2345 = vmatprep.subr.mxu0 0.0
        %2346 = vmatpush1.msra.mxu0 0.0
        %2347 = vmatprep.subr.mxu0 0.0
        %2348 = vmatpush1.msra.mxu0 0.0
        %2349 = vmatprep.subr.mxu0 0.0
        %2350 = vmatpush1.msra.mxu0 0.0
        %2351 = vmatprep.subr.mxu0 0.0
        %2352 = vmatpush1.msra.mxu0 0.0
        %2353 = vmatprep.subr.mxu0 0.0
        %2354 = vmatpush1.msra.mxu0 0.0
        %2355 = vmatprep.subr.mxu0 0.0
        %2356 = vmatpush1.msra.mxu0 %v2323
        %2357 = vmatprep.subr.mxu0 0.0
        %2358 = vmatpush1.msra.mxu0 %v2321
        %2359 = vmatprep.subr.mxu0 0.0
        %2360 = vmatpush1.msra.mxu0 %v2319
        %2361 = vmatprep.subr.mxu0 0.0
        %2362 = vmatpush1.msra.mxu0 %v2317
        %2363 = vmatprep.subr.mxu0 0.0
        %2364 = vmatpush2.msra.mxu0 0.0
        %2365 = vmatprep.subr.mxu0 0.0
        %2366 = vmatpush2.msra.mxu0 0.0
        %2367 = vmatprep.subr.mxu0 0.0
        %2368 = vmatpush2.msra.mxu0 0.0
        %2369 = vmatprep.subr.mxu0 0.0
        %2370 = vmatpush2.msra.mxu0 0.0
        %2371 = vmatprep.subr.mxu0 0.0
        %2372 = vmatpush2.msra.mxu0 0.0
        %2373 = vmatprep.subr.mxu0 0.0
        %2374 = vmatpush2.msra.mxu0 0.0
        %2375 = vmatprep.subr.mxu0 0.0
        %2376 = vmatpush2.msra.mxu0 0.0
        %2377 = vmatprep.subr.mxu0 0.0
        %2378 = vmatpush2.msra.mxu0 0.0
        %2379 = vmatprep.subr.mxu0 0.0
        %2380 = vmatpush2.msra.mxu0 0.0
        %2381 = vmatprep.subr.mxu0 0.0
        %2382 = vmatpush2.msra.mxu0 0.0
        %2383 = vmatprep.subr.mxu0 0.0
        %2384 = vmatpush2.msra.mxu0 0.0
        %2385 = vmatprep.subr.mxu0 0.0
        %2386 = vmatpush2.msra.mxu0 0.0
        %2387 = vmatprep.subr.mxu0 0.0
        %2388 = vmatpush2.msra.mxu0 0.0
        %2389 = vmatprep.subr.mxu0 0.0
        %2390 = vmatpush2.msra.mxu0 0.0
        %2391 = vmatprep.subr.mxu0 0.0
        %2392 = vmatpush2.msra.mxu0 0.0
        %2393 = vmatprep.subr.mxu0 0.0
        %2394 = vmatpush2.msra.mxu0 0.0
        %2395 = vmatprep.mubr.f32.mxu0 0.0
        %2396 = vmatmul.mubr.f32.gmra.mxu0 %v1256
        %v2397 = vpop.f32.mrf.mxu0
        %v2398 = vadd.f32 %v2329, %v2397
        %v2399 = vpop.f32.mrf.mxu0
        %2400 = vdwg.mxu0
        %2401 = vrot.lane.b32.xlu0 %v1409, 112
        %v2402 = vpop.permute.xlu0 %2401
        %2403 = vrot.lane.b32.xlu0 %v1410, 112
        %v2404 = vpop.permute.xlu0 %2403
        %2405 = vrot.lane.b32.xlu0 %v1411, 112
        %v2406 = vpop.permute.xlu0 %2405
        %2407 = vrot.lane.b32.xlu0 %v1412, 112
        %v2408 = vpop.permute.xlu0 %2407
        %2413 = vrot.lane.b32.xlu0 %v1418, 112
        %v2414 = vpop.permute.xlu0 %2413
        %2416 = vmatprep.subr.mxu0 0.0
        %2417 = vmatpush1.msra.mxu0 0.0
        %2418 = vmatprep.subr.mxu0 0.0
        %2419 = vmatpush1.msra.mxu0 0.0
        %2420 = vmatprep.subr.mxu0 0.0
        %2421 = vmatpush1.msra.mxu0 0.0
        %2422 = vmatprep.subr.mxu0 0.0
        %2423 = vmatpush1.msra.mxu0 0.0
        %2424 = vmatprep.subr.mxu0 0.0
        %2425 = vmatpush1.msra.mxu0 0.0
        %2426 = vmatprep.subr.mxu0 0.0
        %2427 = vmatpush1.msra.mxu0 0.0
        %2428 = vmatprep.subr.mxu0 0.0
        %2429 = vmatpush1.msra.mxu0 0.0
        %2430 = vmatprep.subr.mxu0 0.0
        %2431 = vmatpush1.msra.mxu0 0.0
        %2432 = vmatprep.subr.mxu0 0.0
        %2433 = vmatpush1.msra.mxu0 0.0
        %2434 = vmatprep.subr.mxu0 0.0
        %2435 = vmatpush1.msra.mxu0 0.0
        %2436 = vmatprep.subr.mxu0 0.0
        %2437 = vmatpush1.msra.mxu0 0.0
        %2438 = vmatprep.subr.mxu0 0.0
        %2439 = vmatpush1.msra.mxu0 0.0
        %2440 = vmatprep.subr.mxu0 0.0
        %2441 = vmatpush1.msra.mxu0 %v2408
        %2442 = vmatprep.subr.mxu0 0.0
        %2443 = vmatpush1.msra.mxu0 %v2406
        %2444 = vmatprep.subr.mxu0 0.0
        %2445 = vmatpush1.msra.mxu0 %v2404
        %2446 = vmatprep.subr.mxu0 0.0
        %2447 = vmatpush1.msra.mxu0 %v2402
        %2448 = vmatprep.subr.mxu0 0.0
        %2449 = vmatpush2.msra.mxu0 0.0
        %2450 = vmatprep.subr.mxu0 0.0
        %2451 = vmatpush2.msra.mxu0 0.0
        %2452 = vmatprep.subr.mxu0 0.0
        %2453 = vmatpush2.msra.mxu0 0.0
        %2454 = vmatprep.subr.mxu0 0.0
        %2455 = vmatpush2.msra.mxu0 0.0
        %2456 = vmatprep.subr.mxu0 0.0
        %2457 = vmatpush2.msra.mxu0 0.0
        %2458 = vmatprep.subr.mxu0 0.0
        %2459 = vmatpush2.msra.mxu0 0.0
        %2460 = vmatprep.subr.mxu0 0.0
        %2461 = vmatpush2.msra.mxu0 0.0
        %2462 = vmatprep.subr.mxu0 0.0
        %2463 = vmatpush2.msra.mxu0 0.0
        %2464 = vmatprep.subr.mxu0 0.0
        %2465 = vmatpush2.msra.mxu0 0.0
        %2466 = vmatprep.subr.mxu0 0.0
        %2467 = vmatpush2.msra.mxu0 0.0
        %2468 = vmatprep.subr.mxu0 0.0
        %2469 = vmatpush2.msra.mxu0 0.0
        %2470 = vmatprep.subr.mxu0 0.0
        %2471 = vmatpush2.msra.mxu0 0.0
        %2472 = vmatprep.subr.mxu0 0.0
        %2473 = vmatpush2.msra.mxu0 0.0
        %2474 = vmatprep.subr.mxu0 0.0
        %2475 = vmatpush2.msra.mxu0 0.0
        %2476 = vmatprep.subr.mxu0 0.0
        %2477 = vmatpush2.msra.mxu0 0.0
        %2478 = vmatprep.subr.mxu0 0.0
        %2479 = vmatpush2.msra.mxu0 0.0
        %2480 = vmatprep.mubr.f32.mxu0 0.0
        %2481 = vmatmul.mubr.f32.gmra.mxu0 %v1256
        %v2482 = vpop.f32.mrf.mxu0
        %v2483 = vadd.f32 %v2414, %v2482
        %v2484 = vpop.f32.mrf.mxu0
        %2485 = vdwg.mxu0
        %v2487 = vsel %vm1490, %v2313, 0
        %v2490 = vsel %vm1490, %v2398, 0
        %2492 = vmatprep.subr.mxu0 0.0
        %2493 = vmatpush1.xpose.msra.mxu0 0.0
        %2494 = vmatprep.subr.mxu0 0.0
        %2495 = vmatpush1.xpose.msra.mxu0 0.0
        %2496 = vmatprep.subr.mxu0 0.0
        %2497 = vmatpush1.xpose.msra.mxu0 0.0
        %2498 = vmatprep.subr.mxu0 0.0
        %2499 = vmatpush1.xpose.msra.mxu0 0.0
        %2500 = vmatprep.subr.mxu0 0.0
        %2501 = vmatpush1.xpose.msra.mxu0 0.0
        %2502 = vmatprep.subr.mxu0 0.0
        %2503 = vmatpush1.xpose.msra.mxu0 0.0
        %2504 = vmatprep.subr.mxu0 0.0
        %2505 = vmatpush1.xpose.msra.mxu0 0.0
        %2506 = vmatprep.subr.mxu0 0.0
        %2507 = vmatpush1.xpose.msra.mxu0 0.0
        %2508 = vmatprep.subr.mxu0 0.0
        %2509 = vmatpush1.xpose.msra.mxu0 0.0
        %2510 = vmatprep.subr.mxu0 0.0
        %2511 = vmatpush1.xpose.msra.mxu0 0.0
        %2512 = vmatprep.subr.mxu0 0.0
        %2513 = vmatpush1.xpose.msra.mxu0 0.0
        %2514 = vmatprep.subr.mxu0 0.0
        %2515 = vmatpush1.xpose.msra.mxu0 0.0
        %2516 = vmatprep.subr.mxu0 0.0
        %2517 = vmatpush1.xpose.msra.mxu0 0.0
        %2518 = vmatprep.subr.mxu0 0.0
        %2519 = vmatpush1.xpose.msra.mxu0 0.0
        %2520 = vmatprep.subr.mxu0 0.0
        %2521 = vmatpush1.xpose.msra.mxu0 0.0
        %2522 = vmatprep.subr.mxu0 0.0
        %2523 = vmatpush1.xpose.msra.mxu0 %v2490
        %2524 = vmatprep.subr.mxu0 0.0
        %2525 = vmatpush2.xpose.msra.mxu0 0.0
        %2526 = vmatprep.subr.mxu0 0.0
        %2527 = vmatpush2.xpose.msra.mxu0 0.0
        %2528 = vmatprep.subr.mxu0 0.0
        %2529 = vmatpush2.xpose.msra.mxu0 0.0
        %2530 = vmatprep.subr.mxu0 0.0
        %2531 = vmatpush2.xpose.msra.mxu0 0.0
        %2532 = vmatprep.subr.mxu0 0.0
        %2533 = vmatpush2.xpose.msra.mxu0 0.0
        %2534 = vmatprep.subr.mxu0 0.0
        %2535 = vmatpush2.xpose.msra.mxu0 0.0
        %2536 = vmatprep.subr.mxu0 0.0
        %2537 = vmatpush2.xpose.msra.mxu0 0.0
        %2538 = vmatprep.subr.mxu0 0.0
        %2539 = vmatpush2.xpose.msra.mxu0 0.0
        %2540 = vmatprep.subr.mxu0 0.0
        %2541 = vmatpush2.xpose.msra.mxu0 0.0
        %2542 = vmatprep.subr.mxu0 0.0
        %2543 = vmatpush2.xpose.msra.mxu0 0.0
        %2544 = vmatprep.subr.mxu0 0.0
        %2545 = vmatpush2.xpose.msra.mxu0 0.0
        %2546 = vmatprep.subr.mxu0 0.0
        %2547 = vmatpush2.xpose.msra.mxu0 0.0
        %2548 = vmatprep.subr.mxu0 0.0
        %2549 = vmatpush2.xpose.msra.mxu0 0.0
        %2550 = vmatprep.subr.mxu0 0.0
        %2551 = vmatpush2.xpose.msra.mxu0 0.0
        %2552 = vmatprep.subr.mxu0 0.0
        %2553 = vmatpush2.xpose.msra.mxu0 0.0
        %2554 = vmatprep.subr.mxu0 0.0
        %2555 = vmatpush2.xpose.msra.mxu0 0.0
        %2556 = vmatprep.mubr.f32.mxu0 0.0
        %2557 = vmatmul.mubr.f32.gmra.mxu0 %v2487
        %v2558 = vpop.f32.mrf.mxu0
        %v2559 = vadd.f32 0.0, %v2558
        %v2560 = vpop.f32.mrf.mxu0
        %2561 = vdwg.mxu0
        %v2562 = vmul.f32 %v2559, 0.35355338
        %v2563 = vsel %vm1568, -1e+09, %v2562
        %v2564 = vsel %vm1490, %v2563, -inf
        %2565 = vmax.xlane.f32.xlu0 %v2564
        %v2566 = vpop.xlane.xlu0 %2565
        %v2567 = vsub.f32 %v2563, %v2566
        %v2568 = vmul.f32 %v2567, 1.442695
        %v2569 = vpow.pop %v2568
        %v2570 = vsel %vm1490, %v2569, 0.0
        %2571 = vadd.xlane.f32.xlu0 %v2570
        %v2572 = vpop.xlane.xlu0 %2571
        %v2573 = vrcp.pop %v2572
        %v2574 = vmul.f32 %v2569, %v2573
        %v2576 = vsel %vm1490, %v2574, 0
        %2578 = vmatprep.subr.mxu0 0.0
        %2579 = vmatpush1.msra.mxu0 0.0
        %2580 = vmatprep.subr.mxu0 0.0
        %2581 = vmatpush1.msra.mxu0 0.0
        %2582 = vmatprep.subr.mxu0 0.0
        %2583 = vmatpush1.msra.mxu0 0.0
        %2584 = vmatprep.subr.mxu0 0.0
        %2585 = vmatpush1.msra.mxu0 0.0
        %2586 = vmatprep.subr.mxu0 0.0
        %2587 = vmatpush1.msra.mxu0 0.0
        %2588 = vmatprep.subr.mxu0 0.0
        %2589 = vmatpush1.msra.mxu0 0.0
        %2590 = vmatprep.subr.mxu0 0.0
        %2591 = vmatpush1.msra.mxu0 0.0
        %2592 = vmatprep.subr.mxu0 0.0
        %2593 = vmatpush1.msra.mxu0 0.0
        %2594 = vmatprep.subr.mxu0 0.0
        %2595 = vmatpush1.msra.mxu0 0.0
        %2596 = vmatprep.subr.mxu0 0.0
        %2597 = vmatpush1.msra.mxu0 0.0
        %2598 = vmatprep.subr.mxu0 0.0
        %2599 = vmatpush1.msra.mxu0 0.0
        %2600 = vmatprep.subr.mxu0 0.0
        %2601 = vmatpush1.msra.mxu0 0.0
        %2602 = vmatprep.subr.mxu0 0.0
        %2603 = vmatpush1.msra.mxu0 0.0
        %2604 = vmatprep.subr.mxu0 0.0
        %2605 = vmatpush1.msra.mxu0 0.0
        %2606 = vmatprep.subr.mxu0 0.0
        %2607 = vmatpush1.msra.mxu0 0.0
        %2608 = vmatprep.subr.mxu0 0.0
        %2609 = vmatpush1.msra.mxu0 %v2483
        %2610 = vmatprep.subr.mxu0 0.0
        %2611 = vmatpush2.msra.mxu0 0.0
        %2612 = vmatprep.subr.mxu0 0.0
        %2613 = vmatpush2.msra.mxu0 0.0
        %2614 = vmatprep.subr.mxu0 0.0
        %2615 = vmatpush2.msra.mxu0 0.0
        %2616 = vmatprep.subr.mxu0 0.0
        %2617 = vmatpush2.msra.mxu0 0.0
        %2618 = vmatprep.subr.mxu0 0.0
        %2619 = vmatpush2.msra.mxu0 0.0
        %2620 = vmatprep.subr.mxu0 0.0
        %2621 = vmatpush2.msra.mxu0 0.0
        %2622 = vmatprep.subr.mxu0 0.0
        %2623 = vmatpush2.msra.mxu0 0.0
        %2624 = vmatprep.subr.mxu0 0.0
        %2625 = vmatpush2.msra.mxu0 0.0
        %2626 = vmatprep.subr.mxu0 0.0
        %2627 = vmatpush2.msra.mxu0 0.0
        %2628 = vmatprep.subr.mxu0 0.0
        %2629 = vmatpush2.msra.mxu0 0.0
        %2630 = vmatprep.subr.mxu0 0.0
        %2631 = vmatpush2.msra.mxu0 0.0
        %2632 = vmatprep.subr.mxu0 0.0
        %2633 = vmatpush2.msra.mxu0 0.0
        %2634 = vmatprep.subr.mxu0 0.0
        %2635 = vmatpush2.msra.mxu0 0.0
        %2636 = vmatprep.subr.mxu0 0.0
        %2637 = vmatpush2.msra.mxu0 0.0
        %2638 = vmatprep.subr.mxu0 0.0
        %2639 = vmatpush2.msra.mxu0 0.0
        %2640 = vmatprep.subr.mxu0 0.0
        %2641 = vmatpush2.msra.mxu0 0.0
        %2642 = vmatprep.mubr.f32.mxu0 0.0
        %2643 = vmatmul.mubr.f32.gmra.mxu0 %v2576
        %v2644 = vpop.f32.mrf.mxu0
        %v2645 = vadd.f32 0.0, %v2644
        %v2646 = vpop.f32.mrf.mxu0
        %2647 = vdwg.mxu0
        %v2648 = vld [vmem:[#allocation10 + $0x10] sm:$0xff]
        %v2650 = vsel %vm1490, %v2645, 0
        %2652 = vmatprep.subr.mxu0 0.0
        %2653 = vmatpush1.msra.mxu0 0.0
        %2654 = vmatprep.subr.mxu0 0.0
        %2655 = vmatpush1.msra.mxu0 0.0
        %2656 = vmatprep.subr.mxu0 0.0
        %2657 = vmatpush1.msra.mxu0 0.0
        %2658 = vmatprep.subr.mxu0 0.0
        %2659 = vmatpush1.msra.mxu0 0.0
        %2660 = vmatprep.subr.mxu0 0.0
        %2661 = vmatpush1.msra.mxu0 0.0
        %2662 = vmatprep.subr.mxu0 0.0
        %2663 = vmatpush1.msra.mxu0 0.0
        %2664 = vmatprep.subr.mxu0 0.0
        %2665 = vmatpush1.msra.mxu0 0.0
        %2666 = vmatprep.subr.mxu0 0.0
        %2667 = vmatpush1.msra.mxu0 0.0
        %2668 = vmatprep.subr.mxu0 0.0
        %2669 = vmatpush1.msra.mxu0 0.0
        %2670 = vmatprep.subr.mxu0 0.0
        %2671 = vmatpush1.msra.mxu0 0.0
        %2672 = vmatprep.subr.mxu0 0.0
        %2673 = vmatpush1.msra.mxu0 0.0
        %2674 = vmatprep.subr.mxu0 0.0
        %2675 = vmatpush1.msra.mxu0 0.0
        %2676 = vmatprep.subr.mxu0 0.0
        %2677 = vmatpush1.msra.mxu0 0.0
        %2678 = vmatprep.subr.mxu0 0.0
        %2679 = vmatpush1.msra.mxu0 0.0
        %2680 = vmatprep.subr.mxu0 0.0
        %2681 = vmatpush1.msra.mxu0 0.0
        %2682 = vmatprep.subr.mxu0 0.0
        %2683 = vmatpush1.msra.mxu0 %v2648
        %2684 = vmatprep.subr.mxu0 0.0
        %2685 = vmatpush2.msra.mxu0 0.0
        %2686 = vmatprep.subr.mxu0 0.0
        %2687 = vmatpush2.msra.mxu0 0.0
        %2688 = vmatprep.subr.mxu0 0.0
        %2689 = vmatpush2.msra.mxu0 0.0
        %2690 = vmatprep.subr.mxu0 0.0
        %2691 = vmatpush2.msra.mxu0 0.0
        %2692 = vmatprep.subr.mxu0 0.0
        %2693 = vmatpush2.msra.mxu0 0.0
        %2694 = vmatprep.subr.mxu0 0.0
        %2695 = vmatpush2.msra.mxu0 0.0
        %2696 = vmatprep.subr.mxu0 0.0
        %2697 = vmatpush2.msra.mxu0 0.0
        %2698 = vmatprep.subr.mxu0 0.0
        %2699 = vmatpush2.msra.mxu0 0.0
        %2700 = vmatprep.subr.mxu0 0.0
        %2701 = vmatpush2.msra.mxu0 0.0
        %2702 = vmatprep.subr.mxu0 0.0
        %2703 = vmatpush2.msra.mxu0 0.0
        %2704 = vmatprep.subr.mxu0 0.0
        %2705 = vmatpush2.msra.mxu0 0.0
        %2706 = vmatprep.subr.mxu0 0.0
        %2707 = vmatpush2.msra.mxu0 0.0
        %2708 = vmatprep.subr.mxu0 0.0
        %2709 = vmatpush2.msra.mxu0 0.0
        %2710 = vmatprep.subr.mxu0 0.0
        %2711 = vmatpush2.msra.mxu0 0.0
        %2712 = vmatprep.subr.mxu0 0.0
        %2713 = vmatpush2.msra.mxu0 0.0
        %2714 = vmatprep.subr.mxu0 0.0
        %2715 = vmatpush2.msra.mxu0 0.0
        %2716 = vmatprep.mubr.f32.mxu0 0.0
        %2717 = vmatmul.mubr.f32.gmra.mxu0 %v2650
        %v2718 = vpop.f32.mrf.mxu0
        %v2719 = vadd.f32 0.0, %v2718
        %v2720 = vpop.f32.mrf.mxu0
        %2721 = vdwg.mxu0
        %v2722 = vadd.f32 %v2228, %v2719
        %2723 = vrot.lane.b32.xlu0 %v1244, 104
        %v2724 = vpop.permute.xlu0 %2723
        %2725 = vrot.lane.b32.xlu0 %v1245, 104
        %v2726 = vpop.permute.xlu0 %2725
        %2727 = vrot.lane.b32.xlu0 %v1246, 104
        %v2728 = vpop.permute.xlu0 %2727
        %2729 = vrot.lane.b32.xlu0 %v1247, 104
        %v2730 = vpop.permute.xlu0 %2729
        %2735 = vrot.lane.b32.xlu0 %v1253, 104
        %v2736 = vpop.permute.xlu0 %2735
        %2738 = vmatprep.subr.mxu0 0.0
        %2739 = vmatpush1.msra.mxu0 0.0
        %2740 = vmatprep.subr.mxu0 0.0
        %2741 = vmatpush1.msra.mxu0 0.0
        %2742 = vmatprep.subr.mxu0 0.0
        %2743 = vmatpush1.msra.mxu0 0.0
        %2744 = vmatprep.subr.mxu0 0.0
        %2745 = vmatpush1.msra.mxu0 0.0
        %2746 = vmatprep.subr.mxu0 0.0
        %2747 = vmatpush1.msra.mxu0 0.0
        %2748 = vmatprep.subr.mxu0 0.0
        %2749 = vmatpush1.msra.mxu0 0.0
        %2750 = vmatprep.subr.mxu0 0.0
        %2751 = vmatpush1.msra.mxu0 0.0
        %2752 = vmatprep.subr.mxu0 0.0
        %2753 = vmatpush1.msra.mxu0 0.0
        %2754 = vmatprep.subr.mxu0 0.0
        %2755 = vmatpush1.msra.mxu0 0.0
        %2756 = vmatprep.subr.mxu0 0.0
        %2757 = vmatpush1.msra.mxu0 0.0
        %2758 = vmatprep.subr.mxu0 0.0
        %2759 = vmatpush1.msra.mxu0 0.0
        %2760 = vmatprep.subr.mxu0 0.0
        %2761 = vmatpush1.msra.mxu0 0.0
        %2762 = vmatprep.subr.mxu0 0.0
        %2763 = vmatpush1.msra.mxu0 %v2730
        %2764 = vmatprep.subr.mxu0 0.0
        %2765 = vmatpush1.msra.mxu0 %v2728
        %2766 = vmatprep.subr.mxu0 0.0
        %2767 = vmatpush1.msra.mxu0 %v2726
        %2768 = vmatprep.subr.mxu0 0.0
        %2769 = vmatpush1.msra.mxu0 %v2724
        %2770 = vmatprep.subr.mxu0 0.0
        %2771 = vmatpush2.msra.mxu0 0.0
        %2772 = vmatprep.subr.mxu0 0.0
        %2773 = vmatpush2.msra.mxu0 0.0
        %2774 = vmatprep.subr.mxu0 0.0
        %2775 = vmatpush2.msra.mxu0 0.0
        %2776 = vmatprep.subr.mxu0 0.0
        %2777 = vmatpush2.msra.mxu0 0.0
        %2778 = vmatprep.subr.mxu0 0.0
        %2779 = vmatpush2.msra.mxu0 0.0
        %2780 = vmatprep.subr.mxu0 0.0
        %2781 = vmatpush2.msra.mxu0 0.0
        %2782 = vmatprep.subr.mxu0 0.0
        %2783 = vmatpush2.msra.mxu0 0.0
        %2784 = vmatprep.subr.mxu0 0.0
        %2785 = vmatpush2.msra.mxu0 0.0
        %2786 = vmatprep.subr.mxu0 0.0
        %2787 = vmatpush2.msra.mxu0 0.0
        %2788 = vmatprep.subr.mxu0 0.0
        %2789 = vmatpush2.msra.mxu0 0.0
        %2790 = vmatprep.subr.mxu0 0.0
        %2791 = vmatpush2.msra.mxu0 0.0
        %2792 = vmatprep.subr.mxu0 0.0
        %2793 = vmatpush2.msra.mxu0 0.0
        %2794 = vmatprep.subr.mxu0 0.0
        %2795 = vmatpush2.msra.mxu0 0.0
        %2796 = vmatprep.subr.mxu0 0.0
        %2797 = vmatpush2.msra.mxu0 0.0
        %2798 = vmatprep.subr.mxu0 0.0
        %2799 = vmatpush2.msra.mxu0 0.0
        %2800 = vmatprep.subr.mxu0 0.0
        %2801 = vmatpush2.msra.mxu0 0.0
        %2802 = vmatprep.mubr.f32.mxu0 0.0
        %2803 = vmatmul.mubr.f32.gmra.mxu0 %v1256
        %v2804 = vpop.f32.mrf.mxu0
        %v2805 = vadd.f32 %v2736, %v2804
        %v2806 = vpop.f32.mrf.mxu0
        %2807 = vdwg.mxu0
        %2808 = vrot.lane.b32.xlu0 %v1328, 104
        %v2809 = vpop.permute.xlu0 %2808
        %2810 = vrot.lane.b32.xlu0 %v1329, 104
        %v2811 = vpop.permute.xlu0 %2810
        %2812 = vrot.lane.b32.xlu0 %v1330, 104
        %v2813 = vpop.permute.xlu0 %2812
        %2814 = vrot.lane.b32.xlu0 %v1331, 104
        %v2815 = vpop.permute.xlu0 %2814
        %2820 = vrot.lane.b32.xlu0 %v1337, 104
        %v2821 = vpop.permute.xlu0 %2820
        %2823 = vmatprep.subr.mxu0 0.0
        %2824 = vmatpush1.msra.mxu0 0.0
        %2825 = vmatprep.subr.mxu0 0.0
        %2826 = vmatpush1.msra.mxu0 0.0
        %2827 = vmatprep.subr.mxu0 0.0
        %2828 = vmatpush1.msra.mxu0 0.0
        %2829 = vmatprep.subr.mxu0 0.0
        %2830 = vmatpush1.msra.mxu0 0.0
        %2831 = vmatprep.subr.mxu0 0.0
        %2832 = vmatpush1.msra.mxu0 0.0
        %2833 = vmatprep.subr.mxu0 0.0
        %2834 = vmatpush1.msra.mxu0 0.0
        %2835 = vmatprep.subr.mxu0 0.0
        %2836 = vmatpush1.msra.mxu0 0.0
        %2837 = vmatprep.subr.mxu0 0.0
        %2838 = vmatpush1.msra.mxu0 0.0
        %2839 = vmatprep.subr.mxu0 0.0
        %2840 = vmatpush1.msra.mxu0 0.0
        %2841 = vmatprep.subr.mxu0 0.0
        %2842 = vmatpush1.msra.mxu0 0.0
        %2843 = vmatprep.subr.mxu0 0.0
        %2844 = vmatpush1.msra.mxu0 0.0
        %2845 = vmatprep.subr.mxu0 0.0
        %2846 = vmatpush1.msra.mxu0 0.0
        %2847 = vmatprep.subr.mxu0 0.0
        %2848 = vmatpush1.msra.mxu0 %v2815
        %2849 = vmatprep.subr.mxu0 0.0
        %2850 = vmatpush1.msra.mxu0 %v2813
        %2851 = vmatprep.subr.mxu0 0.0
        %2852 = vmatpush1.msra.mxu0 %v2811
        %2853 = vmatprep.subr.mxu0 0.0
        %2854 = vmatpush1.msra.mxu0 %v2809
        %2855 = vmatprep.subr.mxu0 0.0
        %2856 = vmatpush2.msra.mxu0 0.0
        %2857 = vmatprep.subr.mxu0 0.0
        %2858 = vmatpush2.msra.mxu0 0.0
        %2859 = vmatprep.subr.mxu0 0.0
        %2860 = vmatpush2.msra.mxu0 0.0
        %2861 = vmatprep.subr.mxu0 0.0
        %2862 = vmatpush2.msra.mxu0 0.0
        %2863 = vmatprep.subr.mxu0 0.0
        %2864 = vmatpush2.msra.mxu0 0.0
        %2865 = vmatprep.subr.mxu0 0.0
        %2866 = vmatpush2.msra.mxu0 0.0
        %2867 = vmatprep.subr.mxu0 0.0
        %2868 = vmatpush2.msra.mxu0 0.0
        %2869 = vmatprep.subr.mxu0 0.0
        %2870 = vmatpush2.msra.mxu0 0.0
        %2871 = vmatprep.subr.mxu0 0.0
        %2872 = vmatpush2.msra.mxu0 0.0
        %2873 = vmatprep.subr.mxu0 0.0
        %2874 = vmatpush2.msra.mxu0 0.0
        %2875 = vmatprep.subr.mxu0 0.0
        %2876 = vmatpush2.msra.mxu0 0.0
        %2877 = vmatprep.subr.mxu0 0.0
        %2878 = vmatpush2.msra.mxu0 0.0
        %2879 = vmatprep.subr.mxu0 0.0
        %2880 = vmatpush2.msra.mxu0 0.0
        %2881 = vmatprep.subr.mxu0 0.0
        %2882 = vmatpush2.msra.mxu0 0.0
        %2883 = vmatprep.subr.mxu0 0.0
        %2884 = vmatpush2.msra.mxu0 0.0
        %2885 = vmatprep.subr.mxu0 0.0
        %2886 = vmatpush2.msra.mxu0 0.0
        %2887 = vmatprep.mubr.f32.mxu0 0.0
        %2888 = vmatmul.mubr.f32.gmra.mxu0 %v1256
        %v2889 = vpop.f32.mrf.mxu0
        %v2890 = vadd.f32 %v2821, %v2889
        %v2891 = vpop.f32.mrf.mxu0
        %2892 = vdwg.mxu0
        %2893 = vrot.lane.b32.xlu0 %v1409, 104
        %v2894 = vpop.permute.xlu0 %2893
        %2895 = vrot.lane.b32.xlu0 %v1410, 104
        %v2896 = vpop.permute.xlu0 %2895
        %2897 = vrot.lane.b32.xlu0 %v1411, 104
        %v2898 = vpop.permute.xlu0 %2897
        %2899 = vrot.lane.b32.xlu0 %v1412, 104
        %v2900 = vpop.permute.xlu0 %2899
        %2905 = vrot.lane.b32.xlu0 %v1418, 104
        %v2906 = vpop.permute.xlu0 %2905
        %2908 = vmatprep.subr.mxu0 0.0
        %2909 = vmatpush1.msra.mxu0 0.0
        %2910 = vmatprep.subr.mxu0 0.0
        %2911 = vmatpush1.msra.mxu0 0.0
        %2912 = vmatprep.subr.mxu0 0.0
        %2913 = vmatpush1.msra.mxu0 0.0
        %2914 = vmatprep.subr.mxu0 0.0
        %2915 = vmatpush1.msra.mxu0 0.0
        %2916 = vmatprep.subr.mxu0 0.0
        %2917 = vmatpush1.msra.mxu0 0.0
        %2918 = vmatprep.subr.mxu0 0.0
        %2919 = vmatpush1.msra.mxu0 0.0
        %2920 = vmatprep.subr.mxu0 0.0
        %2921 = vmatpush1.msra.mxu0 0.0
        %2922 = vmatprep.subr.mxu0 0.0
        %2923 = vmatpush1.msra.mxu0 0.0
        %2924 = vmatprep.subr.mxu0 0.0
        %2925 = vmatpush1.msra.mxu0 0.0
        %2926 = vmatprep.subr.mxu0 0.0
        %2927 = vmatpush1.msra.mxu0 0.0
        %2928 = vmatprep.subr.mxu0 0.0
        %2929 = vmatpush1.msra.mxu0 0.0
        %2930 = vmatprep.subr.mxu0 0.0
        %2931 = vmatpush1.msra.mxu0 0.0
        %2932 = vmatprep.subr.mxu0 0.0
        %2933 = vmatpush1.msra.mxu0 %v2900
        %2934 = vmatprep.subr.mxu0 0.0
        %2935 = vmatpush1.msra.mxu0 %v2898
        %2936 = vmatprep.subr.mxu0 0.0
        %2937 = vmatpush1.msra.mxu0 %v2896
        %2938 = vmatprep.subr.mxu0 0.0
        %2939 = vmatpush1.msra.mxu0 %v2894
        %2940 = vmatprep.subr.mxu0 0.0
        %2941 = vmatpush2.msra.mxu0 0.0
        %2942 = vmatprep.subr.mxu0 0.0
        %2943 = vmatpush2.msra.mxu0 0.0
        %2944 = vmatprep.subr.mxu0 0.0
        %2945 = vmatpush2.msra.mxu0 0.0
        %2946 = vmatprep.subr.mxu0 0.0
        %2947 = vmatpush2.msra.mxu0 0.0
        %2948 = vmatprep.subr.mxu0 0.0
        %2949 = vmatpush2.msra.mxu0 0.0
        %2950 = vmatprep.subr.mxu0 0.0
        %2951 = vmatpush2.msra.mxu0 0.0
        %2952 = vmatprep.subr.mxu0 0.0
        %2953 = vmatpush2.msra.mxu0 0.0
        %2954 = vmatprep.subr.mxu0 0.0
        %2955 = vmatpush2.msra.mxu0 0.0
        %2956 = vmatprep.subr.mxu0 0.0
        %2957 = vmatpush2.msra.mxu0 0.0
        %2958 = vmatprep.subr.mxu0 0.0
        %2959 = vmatpush2.msra.mxu0 0.0
        %2960 = vmatprep.subr.mxu0 0.0
        %2961 = vmatpush2.msra.mxu0 0.0
        %2962 = vmatprep.subr.mxu0 0.0
        %2963 = vmatpush2.msra.mxu0 0.0
        %2964 = vmatprep.subr.mxu0 0.0
        %2965 = vmatpush2.msra.mxu0 0.0
        %2966 = vmatprep.subr.mxu0 0.0
        %2967 = vmatpush2.msra.mxu0 0.0
        %2968 = vmatprep.subr.mxu0 0.0
        %2969 = vmatpush2.msra.mxu0 0.0
        %2970 = vmatprep.subr.mxu0 0.0
        %2971 = vmatpush2.msra.mxu0 0.0
        %2972 = vmatprep.mubr.f32.mxu0 0.0
        %2973 = vmatmul.mubr.f32.gmra.mxu0 %v1256
        %v2974 = vpop.f32.mrf.mxu0
        %v2975 = vadd.f32 %v2906, %v2974
        %v2976 = vpop.f32.mrf.mxu0
        %2977 = vdwg.mxu0
        %v2979 = vsel %vm1490, %v2805, 0
        %v2982 = vsel %vm1490, %v2890, 0
        %2984 = vmatprep.subr.mxu0 0.0
        %2985 = vmatpush1.xpose.msra.mxu0 0.0
        %2986 = vmatprep.subr.mxu0 0.0
        %2987 = vmatpush1.xpose.msra.mxu0 0.0
        %2988 = vmatprep.subr.mxu0 0.0
        %2989 = vmatpush1.xpose.msra.mxu0 0.0
        %2990 = vmatprep.subr.mxu0 0.0
        %2991 = vmatpush1.xpose.msra.mxu0 0.0
        %2992 = vmatprep.subr.mxu0 0.0
        %2993 = vmatpush1.xpose.msra.mxu0 0.0
        %2994 = vmatprep.subr.mxu0 0.0
        %2995 = vmatpush1.xpose.msra.mxu0 0.0
        %2996 = vmatprep.subr.mxu0 0.0
        %2997 = vmatpush1.xpose.msra.mxu0 0.0
        %2998 = vmatprep.subr.mxu0 0.0
        %2999 = vmatpush1.xpose.msra.mxu0 0.0
        %3000 = vmatprep.subr.mxu0 0.0
        %3001 = vmatpush1.xpose.msra.mxu0 0.0
        %3002 = vmatprep.subr.mxu0 0.0
        %3003 = vmatpush1.xpose.msra.mxu0 0.0
        %3004 = vmatprep.subr.mxu0 0.0
        %3005 = vmatpush1.xpose.msra.mxu0 0.0
        %3006 = vmatprep.subr.mxu0 0.0
        %3007 = vmatpush1.xpose.msra.mxu0 0.0
        %3008 = vmatprep.subr.mxu0 0.0
        %3009 = vmatpush1.xpose.msra.mxu0 0.0
        %3010 = vmatprep.subr.mxu0 0.0
        %3011 = vmatpush1.xpose.msra.mxu0 0.0
        %3012 = vmatprep.subr.mxu0 0.0
        %3013 = vmatpush1.xpose.msra.mxu0 0.0
        %3014 = vmatprep.subr.mxu0 0.0
        %3015 = vmatpush1.xpose.msra.mxu0 %v2982
        %3016 = vmatprep.subr.mxu0 0.0
        %3017 = vmatpush2.xpose.msra.mxu0 0.0
        %3018 = vmatprep.subr.mxu0 0.0
        %3019 = vmatpush2.xpose.msra.mxu0 0.0
        %3020 = vmatprep.subr.mxu0 0.0
        %3021 = vmatpush2.xpose.msra.mxu0 0.0
        %3022 = vmatprep.subr.mxu0 0.0
        %3023 = vmatpush2.xpose.msra.mxu0 0.0
        %3024 = vmatprep.subr.mxu0 0.0
        %3025 = vmatpush2.xpose.msra.mxu0 0.0
        %3026 = vmatprep.subr.mxu0 0.0
        %3027 = vmatpush2.xpose.msra.mxu0 0.0
        %3028 = vmatprep.subr.mxu0 0.0
        %3029 = vmatpush2.xpose.msra.mxu0 0.0
        %3030 = vmatprep.subr.mxu0 0.0
        %3031 = vmatpush2.xpose.msra.mxu0 0.0
        %3032 = vmatprep.subr.mxu0 0.0
        %3033 = vmatpush2.xpose.msra.mxu0 0.0
        %3034 = vmatprep.subr.mxu0 0.0
        %3035 = vmatpush2.xpose.msra.mxu0 0.0
        %3036 = vmatprep.subr.mxu0 0.0
        %3037 = vmatpush2.xpose.msra.mxu0 0.0
        %3038 = vmatprep.subr.mxu0 0.0
        %3039 = vmatpush2.xpose.msra.mxu0 0.0
        %3040 = vmatprep.subr.mxu0 0.0
        %3041 = vmatpush2.xpose.msra.mxu0 0.0
        %3042 = vmatprep.subr.mxu0 0.0
        %3043 = vmatpush2.xpose.msra.mxu0 0.0
        %3044 = vmatprep.subr.mxu0 0.0
        %3045 = vmatpush2.xpose.msra.mxu0 0.0
        %3046 = vmatprep.subr.mxu0 0.0
        %3047 = vmatpush2.xpose.msra.mxu0 0.0
        %3048 = vmatprep.mubr.f32.mxu0 0.0
        %3049 = vmatmul.mubr.f32.gmra.mxu0 %v2979
        %v3050 = vpop.f32.mrf.mxu0
        %v3051 = vadd.f32 0.0, %v3050
        %v3052 = vpop.f32.mrf.mxu0
        %3053 = vdwg.mxu0
        %v3054 = vmul.f32 %v3051, 0.35355338
        %v3055 = vsel %vm1568, -1e+09, %v3054
        %v3056 = vsel %vm1490, %v3055, -inf
        %3057 = vmax.xlane.f32.xlu0 %v3056
        %v3058 = vpop.xlane.xlu0 %3057
        %v3059 = vsub.f32 %v3055, %v3058
        %v3060 = vmul.f32 %v3059, 1.442695
        %v3061 = vpow.pop %v3060
        %v3062 = vsel %vm1490, %v3061, 0.0
        %3063 = vadd.xlane.f32.xlu0 %v3062
        %v3064 = vpop.xlane.xlu0 %3063
        %v3065 = vrcp.pop %v3064
        %v3066 = vmul.f32 %v3061, %v3065
        %v3068 = vsel %vm1490, %v3066, 0
        %3070 = vmatprep.subr.mxu0 0.0
        %3071 = vmatpush1.msra.mxu0 0.0
        %3072 = vmatprep.subr.mxu0 0.0
        %3073 = vmatpush1.msra.mxu0 0.0
        %3074 = vmatprep.subr.mxu0 0.0
        %3075 = vmatpush1.msra.mxu0 0.0
        %3076 = vmatprep.subr.mxu0 0.0
        %3077 = vmatpush1.msra.mxu0 0.0
        %3078 = vmatprep.subr.mxu0 0.0
        %3079 = vmatpush1.msra.mxu0 0.0
        %3080 = vmatprep.subr.mxu0 0.0
        %3081 = vmatpush1.msra.mxu0 0.0
        %3082 = vmatprep.subr.mxu0 0.0
        %3083 = vmatpush1.msra.mxu0 0.0
        %3084 = vmatprep.subr.mxu0 0.0
        %3085 = vmatpush1.msra.mxu0 0.0
        %3086 = vmatprep.subr.mxu0 0.0
        %3087 = vmatpush1.msra.mxu0 0.0
        %3088 = vmatprep.subr.mxu0 0.0
        %3089 = vmatpush1.msra.mxu0 0.0
        %3090 = vmatprep.subr.mxu0 0.0
        %3091 = vmatpush1.msra.mxu0 0.0
        %3092 = vmatprep.subr.mxu0 0.0
        %3093 = vmatpush1.msra.mxu0 0.0
        %3094 = vmatprep.subr.mxu0 0.0
        %3095 = vmatpush1.msra.mxu0 0.0
        %3096 = vmatprep.subr.mxu0 0.0
        %3097 = vmatpush1.msra.mxu0 0.0
        %3098 = vmatprep.subr.mxu0 0.0
        %3099 = vmatpush1.msra.mxu0 0.0
        %3100 = vmatprep.subr.mxu0 0.0
        %3101 = vmatpush1.msra.mxu0 %v2975
        %3102 = vmatprep.subr.mxu0 0.0
        %3103 = vmatpush2.msra.mxu0 0.0
        %3104 = vmatprep.subr.mxu0 0.0
        %3105 = vmatpush2.msra.mxu0 0.0
        %3106 = vmatprep.subr.mxu0 0.0
        %3107 = vmatpush2.msra.mxu0 0.0
        %3108 = vmatprep.subr.mxu0 0.0
        %3109 = vmatpush2.msra.mxu0 0.0
        %3110 = vmatprep.subr.mxu0 0.0
        %3111 = vmatpush2.msra.mxu0 0.0
        %3112 = vmatprep.subr.mxu0 0.0
        %3113 = vmatpush2.msra.mxu0 0.0
        %3114 = vmatprep.subr.mxu0 0.0
        %3115 = vmatpush2.msra.mxu0 0.0
        %3116 = vmatprep.subr.mxu0 0.0
        %3117 = vmatpush2.msra.mxu0 0.0
        %3118 = vmatprep.subr.mxu0 0.0
        %3119 = vmatpush2.msra.mxu0 0.0
        %3120 = vmatprep.subr.mxu0 0.0
        %3121 = vmatpush2.msra.mxu0 0.0
        %3122 = vmatprep.subr.mxu0 0.0
        %3123 = vmatpush2.msra.mxu0 0.0
        %3124 = vmatprep.subr.mxu0 0.0
        %3125 = vmatpush2.msra.mxu0 0.0
        %3126 = vmatprep.subr.mxu0 0.0
        %3127 = vmatpush2.msra.mxu0 0.0
        %3128 = vmatprep.subr.mxu0 0.0
        %3129 = vmatpush2.msra.mxu0 0.0
        %3130 = vmatprep.subr.mxu0 0.0
        %3131 = vmatpush2.msra.mxu0 0.0
        %3132 = vmatprep.subr.mxu0 0.0
        %3133 = vmatpush2.msra.mxu0 0.0
        %3134 = vmatprep.mubr.f32.mxu0 0.0
        %3135 = vmatmul.mubr.f32.gmra.mxu0 %v3068
        %v3136 = vpop.f32.mrf.mxu0
        %v3137 = vadd.f32 0.0, %v3136
        %v3138 = vpop.f32.mrf.mxu0
        %3139 = vdwg.mxu0
        %v3140 = vld [vmem:[#allocation10 + $0x18] sm:$0xff]
        %v3142 = vsel %vm1490, %v3137, 0
        %3144 = vmatprep.subr.mxu0 0.0
        %3145 = vmatpush1.msra.mxu0 0.0
        %3146 = vmatprep.subr.mxu0 0.0
        %3147 = vmatpush1.msra.mxu0 0.0
        %3148 = vmatprep.subr.mxu0 0.0
        %3149 = vmatpush1.msra.mxu0 0.0
        %3150 = vmatprep.subr.mxu0 0.0
        %3151 = vmatpush1.msra.mxu0 0.0
        %3152 = vmatprep.subr.mxu0 0.0
        %3153 = vmatpush1.msra.mxu0 0.0
        %3154 = vmatprep.subr.mxu0 0.0
        %3155 = vmatpush1.msra.mxu0 0.0
        %3156 = vmatprep.subr.mxu0 0.0
        %3157 = vmatpush1.msra.mxu0 0.0
        %3158 = vmatprep.subr.mxu0 0.0
        %3159 = vmatpush1.msra.mxu0 0.0
        %3160 = vmatprep.subr.mxu0 0.0
        %3161 = vmatpush1.msra.mxu0 0.0
        %3162 = vmatprep.subr.mxu0 0.0
        %3163 = vmatpush1.msra.mxu0 0.0
        %3164 = vmatprep.subr.mxu0 0.0
        %3165 = vmatpush1.msra.mxu0 0.0
        %3166 = vmatprep.subr.mxu0 0.0
        %3167 = vmatpush1.msra.mxu0 0.0
        %3168 = vmatprep.subr.mxu0 0.0
        %3169 = vmatpush1.msra.mxu0 0.0
        %3170 = vmatprep.subr.mxu0 0.0
        %3171 = vmatpush1.msra.mxu0 0.0
        %3172 = vmatprep.subr.mxu0 0.0
        %3173 = vmatpush1.msra.mxu0 0.0
        %3174 = vmatprep.subr.mxu0 0.0
        %3175 = vmatpush1.msra.mxu0 %v3140
        %3176 = vmatprep.subr.mxu0 0.0
        %3177 = vmatpush2.msra.mxu0 0.0
        %3178 = vmatprep.subr.mxu0 0.0
        %3179 = vmatpush2.msra.mxu0 0.0
        %3180 = vmatprep.subr.mxu0 0.0
        %3181 = vmatpush2.msra.mxu0 0.0
        %3182 = vmatprep.subr.mxu0 0.0
        %3183 = vmatpush2.msra.mxu0 0.0
        %3184 = vmatprep.subr.mxu0 0.0
        %3185 = vmatpush2.msra.mxu0 0.0
        %3186 = vmatprep.subr.mxu0 0.0
        %3187 = vmatpush2.msra.mxu0 0.0
        %3188 = vmatprep.subr.mxu0 0.0
        %3189 = vmatpush2.msra.mxu0 0.0
        %3190 = vmatprep.subr.mxu0 0.0
        %3191 = vmatpush2.msra.mxu0 0.0
        %3192 = vmatprep.subr.mxu0 0.0
        %3193 = vmatpush2.msra.mxu0 0.0
        %3194 = vmatprep.subr.mxu0 0.0
        %3195 = vmatpush2.msra.mxu0 0.0
        %3196 = vmatprep.subr.mxu0 0.0
        %3197 = vmatpush2.msra.mxu0 0.0
        %3198 = vmatprep.subr.mxu0 0.0
        %3199 = vmatpush2.msra.mxu0 0.0
        %3200 = vmatprep.subr.mxu0 0.0
        %3201 = vmatpush2.msra.mxu0 0.0
        %3202 = vmatprep.subr.mxu0 0.0
        %3203 = vmatpush2.msra.mxu0 0.0
        %3204 = vmatprep.subr.mxu0 0.0
        %3205 = vmatpush2.msra.mxu0 0.0
        %3206 = vmatprep.subr.mxu0 0.0
        %3207 = vmatpush2.msra.mxu0 0.0
        %3208 = vmatprep.mubr.f32.mxu0 0.0
        %3209 = vmatmul.mubr.f32.gmra.mxu0 %v3142
        %v3210 = vpop.f32.mrf.mxu0
        %v3211 = vadd.f32 0.0, %v3210
        %v3212 = vpop.f32.mrf.mxu0
        %3213 = vdwg.mxu0
        %v3214 = vadd.f32 %v2722, %v3211
        %v3215 = vld [vmem:[%s23] sm:$0x1]
        %v3217 = vlaneseq
        %v3218 = vshrl.u32 %v3217, 7
        %v3219 = vsub.s32 0, %v3218
        %v3220 = vrot.slane %v3215, %v3219
        %v3222 = vadd.f32 %v3214, %v3220
        %v3223 = vadd.f32 %v1209, %v3222
        %v3224 = vsel %vm1213, %v3223, 0.0
        %3225 = vadd.xlane.f32.xlu0 %v3224
        %v3226 = vpop.xlane.xlu0 %3225
        %v3227 = vmul.f32 %v3226, %v1217
        %v3228 = vsub.f32 %v3223, %v3227
        %v3229 = vmul.f32 %v3228, %v3228
        %v3230 = vsel %vm1213, %v3229, 0.0
        %3231 = vadd.xlane.f32.xlu0 %v3230
        %v3232 = vpop.xlane.xlu0 %3231
        %v3233 = vmul.f32 %v3232, %v1217
        %v3234 = vadd.f32 %v3233, 1e-05
        %v3235 = vrsqrt.pop %v3234
        %v3236 = vmul.f32 %v3228, %v3235
        %v3237 = vld [vmem:[%s53] sm:$0x1]
        %v3239 = vlaneseq
        %v3240 = vshrl.u32 %v3239, 7
        %v3241 = vsub.s32 0, %v3240
        %v3242 = vrot.slane %v3237, %v3241
        %v3244 = vmul.f32 %v3236, %v3242
        %v3245 = vld [vmem:[%s55] sm:$0x1]
        %v3247 = vlaneseq
        %v3248 = vshrl.u32 %v3247, 7
        %v3249 = vsub.s32 0, %v3248
        %v3250 = vrot.slane %v3245, %v3249
        %v3252 = vadd.f32 %v3244, %v3250
        %v3253 = vsel %vm1213, %v1210, 0.0
        %3254 = vadd.xlane.f32.xlu0 %v3253
        %v3255 = vpop.xlane.xlu0 %3254
        %v3256 = vmul.f32 %v3255, %v1217
        %v3257 = vsub.f32 %v1210, %v3256
        %v3258 = vmul.f32 %v3257, %v3257
        %v3259 = vsel %vm1213, %v3258, 0.0
        %3260 = vadd.xlane.f32.xlu0 %v3259
        %v3261 = vpop.xlane.xlu0 %3260
        %v3262 = vmul.f32 %v3261, %v1217
        %v3263 = vadd.f32 %v3262, 1e-05
        %v3264 = vrsqrt.pop %v3263
        %v3265 = vmul.f32 %v3257, %v3264
        %v3266 = vmul.f32 %v3265, %v3242
        %v3267 = vadd.f32 %v3266, %v3250
        %v3268 = vld [vmem:[#allocation11] sm:$0xff]
        %v3269 = vld [vmem:[#allocation11 + $0x8] sm:$0xff]
        %v3270 = vld [vmem:[#allocation11 + $0x10] sm:$0xff]
        %v3271 = vld [vmem:[#allocation11 + $0x18] sm:$0xff]
        %v3272 = vld [vmem:[%s27] sm:$0x1]
        %v3274 = vlaneseq
        %v3275 = vshrl.u32 %v3274, 7
        %v3276 = vsub.s32 0, %v3275
        %v3277 = vrot.slane %v3272, %v3276
        %v3280 = vsel %vm1213, %v3252, 0
        %3282 = vmatprep.subr.mxu0 0.0
        %3283 = vmatpush1.msra.mxu0 0.0
        %3284 = vmatprep.subr.mxu0 0.0
        %3285 = vmatpush1.msra.mxu0 0.0
        %3286 = vmatprep.subr.mxu0 0.0
        %3287 = vmatpush1.msra.mxu0 0.0
        %3288 = vmatprep.subr.mxu0 0.0
        %3289 = vmatpush1.msra.mxu0 0.0
        %3290 = vmatprep.subr.mxu0 0.0
        %3291 = vmatpush1.msra.mxu0 0.0
        %3292 = vmatprep.subr.mxu0 0.0
        %3293 = vmatpush1.msra.mxu0 0.0
        %3294 = vmatprep.subr.mxu0 0.0
        %3295 = vmatpush1.msra.mxu0 0.0
        %3296 = vmatprep.subr.mxu0 0.0
        %3297 = vmatpush1.msra.mxu0 0.0
        %3298 = vmatprep.subr.mxu0 0.0
        %3299 = vmatpush1.msra.mxu0 0.0
        %3300 = vmatprep.subr.mxu0 0.0
        %3301 = vmatpush1.msra.mxu0 0.0
        %3302 = vmatprep.subr.mxu0 0.0
        %3303 = vmatpush1.msra.mxu0 0.0
        %3304 = vmatprep.subr.mxu0 0.0
        %3305 = vmatpush1.msra.mxu0 0.0
        %3306 = vmatprep.subr.mxu0 0.0
        %3307 = vmatpush1.msra.mxu0 %v3271
        %3308 = vmatprep.subr.mxu0 0.0
        %3309 = vmatpush1.msra.mxu0 %v3270
        %3310 = vmatprep.subr.mxu0 0.0
        %3311 = vmatpush1.msra.mxu0 %v3269
        %3312 = vmatprep.subr.mxu0 0.0
        %3313 = vmatpush1.msra.mxu0 %v3268
        %3314 = vmatprep.subr.mxu0 0.0
        %3315 = vmatpush2.msra.mxu0 0.0
        %3316 = vmatprep.subr.mxu0 0.0
        %3317 = vmatpush2.msra.mxu0 0.0
        %3318 = vmatprep.subr.mxu0 0.0
        %3319 = vmatpush2.msra.mxu0 0.0
        %3320 = vmatprep.subr.mxu0 0.0
        %3321 = vmatpush2.msra.mxu0 0.0
        %3322 = vmatprep.subr.mxu0 0.0
        %3323 = vmatpush2.msra.mxu0 0.0
        %3324 = vmatprep.subr.mxu0 0.0
        %3325 = vmatpush2.msra.mxu0 0.0
        %3326 = vmatprep.subr.mxu0 0.0
        %3327 = vmatpush2.msra.mxu0 0.0
        %3328 = vmatprep.subr.mxu0 0.0
        %3329 = vmatpush2.msra.mxu0 0.0
        %3330 = vmatprep.subr.mxu0 0.0
        %3331 = vmatpush2.msra.mxu0 0.0
        %3332 = vmatprep.subr.mxu0 0.0
        %3333 = vmatpush2.msra.mxu0 0.0
        %3334 = vmatprep.subr.mxu0 0.0
        %3335 = vmatpush2.msra.mxu0 0.0
        %3336 = vmatprep.subr.mxu0 0.0
        %3337 = vmatpush2.msra.mxu0 0.0
        %3338 = vmatprep.subr.mxu0 0.0
        %3339 = vmatpush2.msra.mxu0 0.0
        %3340 = vmatprep.subr.mxu0 0.0
        %3341 = vmatpush2.msra.mxu0 0.0
        %3342 = vmatprep.subr.mxu0 0.0
        %3343 = vmatpush2.msra.mxu0 0.0
        %3344 = vmatprep.subr.mxu0 0.0
        %3345 = vmatpush2.msra.mxu0 0.0
        %3346 = vmatprep.mubr.f32.mxu0 0.0
        %3347 = vmatmul.mubr.f32.gmra.mxu0 %v3280
        %v3348 = vpop.f32.mrf.mxu0
        %v3349 = vadd.f32 %v3277, %v3348
        %v3350 = vpop.f32.mrf.mxu0
        %3351 = vdwg.mxu0
        %v3352 = vld [vmem:[#allocation13] sm:$0xff]
        %v3353 = vld [vmem:[#allocation13 + $0x8] sm:$0xff]
        %v3354 = vld [vmem:[#allocation13 + $0x10] sm:$0xff]
        %v3355 = vld [vmem:[#allocation13 + $0x18] sm:$0xff]
        %v3356 = vld [vmem:[%s31] sm:$0x1]
        %v3358 = vlaneseq
        %v3359 = vshrl.u32 %v3358, 7
        %v3360 = vsub.s32 0, %v3359
        %v3361 = vrot.slane %v3356, %v3360
        %v3364 = vsel %vm1213, %v3267, 0
        %3366 = vmatprep.subr.mxu0 0.0
        %3367 = vmatpush1.msra.mxu0 0.0
        %3368 = vmatprep.subr.mxu0 0.0
        %3369 = vmatpush1.msra.mxu0 0.0
        %3370 = vmatprep.subr.mxu0 0.0
        %3371 = vmatpush1.msra.mxu0 0.0
        %3372 = vmatprep.subr.mxu0 0.0
        %3373 = vmatpush1.msra.mxu0 0.0
        %3374 = vmatprep.subr.mxu0 0.0
        %3375 = vmatpush1.msra.mxu0 0.0
        %3376 = vmatprep.subr.mxu0 0.0
        %3377 = vmatpush1.msra.mxu0 0.0
        %3378 = vmatprep.subr.mxu0 0.0
        %3379 = vmatpush1.msra.mxu0 0.0
        %3380 = vmatprep.subr.mxu0 0.0
        %3381 = vmatpush1.msra.mxu0 0.0
        %3382 = vmatprep.subr.mxu0 0.0
        %3383 = vmatpush1.msra.mxu0 0.0
        %3384 = vmatprep.subr.mxu0 0.0
        %3385 = vmatpush1.msra.mxu0 0.0
        %3386 = vmatprep.subr.mxu0 0.0
        %3387 = vmatpush1.msra.mxu0 0.0
        %3388 = vmatprep.subr.mxu0 0.0
        %3389 = vmatpush1.msra.mxu0 0.0
        %3390 = vmatprep.subr.mxu0 0.0
        %3391 = vmatpush1.msra.mxu0 %v3355
        %3392 = vmatprep.subr.mxu0 0.0
        %3393 = vmatpush1.msra.mxu0 %v3354
        %3394 = vmatprep.subr.mxu0 0.0
        %3395 = vmatpush1.msra.mxu0 %v3353
        %3396 = vmatprep.subr.mxu0 0.0
        %3397 = vmatpush1.msra.mxu0 %v3352
        %3398 = vmatprep.subr.mxu0 0.0
        %3399 = vmatpush2.msra.mxu0 0.0
        %3400 = vmatprep.subr.mxu0 0.0
        %3401 = vmatpush2.msra.mxu0 0.0
        %3402 = vmatprep.subr.mxu0 0.0
        %3403 = vmatpush2.msra.mxu0 0.0
        %3404 = vmatprep.subr.mxu0 0.0
        %3405 = vmatpush2.msra.mxu0 0.0
        %3406 = vmatprep.subr.mxu0 0.0
        %3407 = vmatpush2.msra.mxu0 0.0
        %3408 = vmatprep.subr.mxu0 0.0
        %3409 = vmatpush2.msra.mxu0 0.0
        %3410 = vmatprep.subr.mxu0 0.0
        %3411 = vmatpush2.msra.mxu0 0.0
        %3412 = vmatprep.subr.mxu0 0.0
        %3413 = vmatpush2.msra.mxu0 0.0
        %3414 = vmatprep.subr.mxu0 0.0
        %3415 = vmatpush2.msra.mxu0 0.0
        %3416 = vmatprep.subr.mxu0 0.0
        %3417 = vmatpush2.msra.mxu0 0.0
        %3418 = vmatprep.subr.mxu0 0.0
        %3419 = vmatpush2.msra.mxu0 0.0
        %3420 = vmatprep.subr.mxu0 0.0
        %3421 = vmatpush2.msra.mxu0 0.0
        %3422 = vmatprep.subr.mxu0 0.0
        %3423 = vmatpush2.msra.mxu0 0.0
        %3424 = vmatprep.subr.mxu0 0.0
        %3425 = vmatpush2.msra.mxu0 0.0
        %3426 = vmatprep.subr.mxu0 0.0
        %3427 = vmatpush2.msra.mxu0 0.0
        %3428 = vmatprep.subr.mxu0 0.0
        %3429 = vmatpush2.msra.mxu0 0.0
        %3430 = vmatprep.mubr.f32.mxu0 0.0
        %3431 = vmatmul.mubr.f32.gmra.mxu0 %v3364
        %v3432 = vpop.f32.mrf.mxu0
        %v3433 = vadd.f32 %v3361, %v3432
        %v3434 = vpop.f32.mrf.mxu0
        %3435 = vdwg.mxu0
        %v3436 = vld [vmem:[#allocation14] sm:$0xff]
        %v3437 = vld [vmem:[#allocation14 + $0x8] sm:$0xff]
        %v3438 = vld [vmem:[#allocation14 + $0x10] sm:$0xff]
        %v3439 = vld [vmem:[#allocation14 + $0x18] sm:$0xff]
        %v3440 = vld [vmem:[%s35] sm:$0x1]
        %v3442 = vlaneseq
        %v3443 = vshrl.u32 %v3442, 7
        %v3444 = vsub.s32 0, %v3443
        %v3445 = vrot.slane %v3440, %v3444
        %3447 = vmatprep.subr.mxu0 0.0
        %3448 = vmatpush1.msra.mxu0 0.0
        %3449 = vmatprep.subr.mxu0 0.0
        %3450 = vmatpush1.msra.mxu0 0.0
        %3451 = vmatprep.subr.mxu0 0.0
        %3452 = vmatpush1.msra.mxu0 0.0
        %3453 = vmatprep.subr.mxu0 0.0
        %3454 = vmatpush1.msra.mxu0 0.0
        %3455 = vmatprep.subr.mxu0 0.0
        %3456 = vmatpush1.msra.mxu0 0.0
        %3457 = vmatprep.subr.mxu0 0.0
        %3458 = vmatpush1.msra.mxu0 0.0
        %3459 = vmatprep.subr.mxu0 0.0
        %3460 = vmatpush1.msra.mxu0 0.0
        %3461 = vmatprep.subr.mxu0 0.0
        %3462 = vmatpush1.msra.mxu0 0.0
        %3463 = vmatprep.subr.mxu0 0.0
        %3464 = vmatpush1.msra.mxu0 0.0
        %3465 = vmatprep.subr.mxu0 0.0
        %3466 = vmatpush1.msra.mxu0 0.0
        %3467 = vmatprep.subr.mxu0 0.0
        %3468 = vmatpush1.msra.mxu0 0.0
        %3469 = vmatprep.subr.mxu0 0.0
        %3470 = vmatpush1.msra.mxu0 0.0
        %3471 = vmatprep.subr.mxu0 0.0
        %3472 = vmatpush1.msra.mxu0 %v3439
        %3473 = vmatprep.subr.mxu0 0.0
        %3474 = vmatpush1.msra.mxu0 %v3438
        %3475 = vmatprep.subr.mxu0 0.0
        %3476 = vmatpush1.msra.mxu0 %v3437
        %3477 = vmatprep.subr.mxu0 0.0
        %3478 = vmatpush1.msra.mxu0 %v3436
        %3479 = vmatprep.subr.mxu0 0.0
        %3480 = vmatpush2.msra.mxu0 0.0
        %3481 = vmatprep.subr.mxu0 0.0
        %3482 = vmatpush2.msra.mxu0 0.0
        %3483 = vmatprep.subr.mxu0 0.0
        %3484 = vmatpush2.msra.mxu0 0.0
        %3485 = vmatprep.subr.mxu0 0.0
        %3486 = vmatpush2.msra.mxu0 0.0
        %3487 = vmatprep.subr.mxu0 0.0
        %3488 = vmatpush2.msra.mxu0 0.0
        %3489 = vmatprep.subr.mxu0 0.0
        %3490 = vmatpush2.msra.mxu0 0.0
        %3491 = vmatprep.subr.mxu0 0.0
        %3492 = vmatpush2.msra.mxu0 0.0
        %3493 = vmatprep.subr.mxu0 0.0
        %3494 = vmatpush2.msra.mxu0 0.0
        %3495 = vmatprep.subr.mxu0 0.0
        %3496 = vmatpush2.msra.mxu0 0.0
        %3497 = vmatprep.subr.mxu0 0.0
        %3498 = vmatpush2.msra.mxu0 0.0
        %3499 = vmatprep.subr.mxu0 0.0
        %3500 = vmatpush2.msra.mxu0 0.0
        %3501 = vmatprep.subr.mxu0 0.0
        %3502 = vmatpush2.msra.mxu0 0.0
        %3503 = vmatprep.subr.mxu0 0.0
        %3504 = vmatpush2.msra.mxu0 0.0
        %3505 = vmatprep.subr.mxu0 0.0
        %3506 = vmatpush2.msra.mxu0 0.0
        %3507 = vmatprep.subr.mxu0 0.0
        %3508 = vmatpush2.msra.mxu0 0.0
        %3509 = vmatprep.subr.mxu0 0.0
        %3510 = vmatpush2.msra.mxu0 0.0
        %3511 = vmatprep.mubr.f32.mxu0 0.0
        %3512 = vmatmul.mubr.f32.gmra.mxu0 %v3364
        %v3513 = vpop.f32.mrf.mxu0
        %v3514 = vadd.f32 %v3445, %v3513
        %v3515 = vpop.f32.mrf.mxu0
        %3516 = vdwg.mxu0
        %v3518 = vsel %vm1490, %v3349, 0
        %v3521 = vsel %vm1490, %v3433, 0
        %3523 = vmatprep.subr.mxu0 0.0
        %3524 = vmatpush1.xpose.msra.mxu0 0.0
        %3525 = vmatprep.subr.mxu0 0.0
        %3526 = vmatpush1.xpose.msra.mxu0 0.0
        %3527 = vmatprep.subr.mxu0 0.0
        %3528 = vmatpush1.xpose.msra.mxu0 0.0
        %3529 = vmatprep.subr.mxu0 0.0
        %3530 = vmatpush1.xpose.msra.mxu0 0.0
        %3531 = vmatprep.subr.mxu0 0.0
        %3532 = vmatpush1.xpose.msra.mxu0 0.0
        %3533 = vmatprep.subr.mxu0 0.0
        %3534 = vmatpush1.xpose.msra.mxu0 0.0
        %3535 = vmatprep.subr.mxu0 0.0
        %3536 = vmatpush1.xpose.msra.mxu0 0.0
        %3537 = vmatprep.subr.mxu0 0.0
        %3538 = vmatpush1.xpose.msra.mxu0 0.0
        %3539 = vmatprep.subr.mxu0 0.0
        %3540 = vmatpush1.xpose.msra.mxu0 0.0
        %3541 = vmatprep.subr.mxu0 0.0
        %3542 = vmatpush1.xpose.msra.mxu0 0.0
        %3543 = vmatprep.subr.mxu0 0.0
        %3544 = vmatpush1.xpose.msra.mxu0 0.0
        %3545 = vmatprep.subr.mxu0 0.0
        %3546 = vmatpush1.xpose.msra.mxu0 0.0
        %3547 = vmatprep.subr.mxu0 0.0
        %3548 = vmatpush1.xpose.msra.mxu0 0.0
        %3549 = vmatprep.subr.mxu0 0.0
        %3550 = vmatpush1.xpose.msra.mxu0 0.0
        %3551 = vmatprep.subr.mxu0 0.0
        %3552 = vmatpush1.xpose.msra.mxu0 0.0
        %3553 = vmatprep.subr.mxu0 0.0
        %3554 = vmatpush1.xpose.msra.mxu0 %v3521
        %3555 = vmatprep.subr.mxu0 0.0
        %3556 = vmatpush2.xpose.msra.mxu0 0.0
        %3557 = vmatprep.subr.mxu0 0.0
        %3558 = vmatpush2.xpose.msra.mxu0 0.0
        %3559 = vmatprep.subr.mxu0 0.0
        %3560 = vmatpush2.xpose.msra.mxu0 0.0
        %3561 = vmatprep.subr.mxu0 0.0
        %3562 = vmatpush2.xpose.msra.mxu0 0.0
        %3563 = vmatprep.subr.mxu0 0.0
        %3564 = vmatpush2.xpose.msra.mxu0 0.0
        %3565 = vmatprep.subr.mxu0 0.0
        %3566 = vmatpush2.xpose.msra.mxu0 0.0
        %3567 = vmatprep.subr.mxu0 0.0
        %3568 = vmatpush2.xpose.msra.mxu0 0.0
        %3569 = vmatprep.subr.mxu0 0.0
        %3570 = vmatpush2.xpose.msra.mxu0 0.0
        %3571 = vmatprep.subr.mxu0 0.0
        %3572 = vmatpush2.xpose.msra.mxu0 0.0
        %3573 = vmatprep.subr.mxu0 0.0
        %3574 = vmatpush2.xpose.msra.mxu0 0.0
        %3575 = vmatprep.subr.mxu0 0.0
        %3576 = vmatpush2.xpose.msra.mxu0 0.0
        %3577 = vmatprep.subr.mxu0 0.0
        %3578 = vmatpush2.xpose.msra.mxu0 0.0
        %3579 = vmatprep.subr.mxu0 0.0
        %3580 = vmatpush2.xpose.msra.mxu0 0.0
        %3581 = vmatprep.subr.mxu0 0.0
        %3582 = vmatpush2.xpose.msra.mxu0 0.0
        %3583 = vmatprep.subr.mxu0 0.0
        %3584 = vmatpush2.xpose.msra.mxu0 0.0
        %3585 = vmatprep.subr.mxu0 0.0
        %3586 = vmatpush2.xpose.msra.mxu0 0.0
        %3587 = vmatprep.mubr.f32.mxu0 0.0
        %3588 = vmatmul.mubr.f32.gmra.mxu0 %v3518
        %v3589 = vpop.f32.mrf.mxu0
        %v3590 = vadd.f32 0.0, %v3589
        %v3591 = vpop.f32.mrf.mxu0
        %3592 = vdwg.mxu0
        %v3593 = vmul.f32 %v3590, 0.35355338
        %vm3594 = vcmp.eq.f32.partialorder %v1212, 0.0
        %v3595 = vsel %vm3594, -1e+09, %v3593
        %v3596 = vsel %vm1490, %v3595, -inf
        %3597 = vmax.xlane.f32.xlu0 %v3596
        %v3598 = vpop.xlane.xlu0 %3597
        %v3599 = vsub.f32 %v3595, %v3598
        %v3600 = vmul.f32 %v3599, 1.442695
        %v3601 = vpow.pop %v3600
        %v3602 = vsel %vm1490, %v3601, 0.0
        %3603 = vadd.xlane.f32.xlu0 %v3602
        %v3604 = vpop.xlane.xlu0 %3603
        %v3605 = vrcp.pop %v3604
        %v3606 = vmul.f32 %v3601, %v3605
        %v3608 = vsel %vm1490, %v3606, 0
        %3610 = vmatprep.subr.mxu0 0.0
        %3611 = vmatpush1.msra.mxu0 0.0
        %3612 = vmatprep.subr.mxu0 0.0
        %3613 = vmatpush1.msra.mxu0 0.0
        %3614 = vmatprep.subr.mxu0 0.0
        %3615 = vmatpush1.msra.mxu0 0.0
        %3616 = vmatprep.subr.mxu0 0.0
        %3617 = vmatpush1.msra.mxu0 0.0
        %3618 = vmatprep.subr.mxu0 0.0
        %3619 = vmatpush1.msra.mxu0 0.0
        %3620 = vmatprep.subr.mxu0 0.0
        %3621 = vmatpush1.msra.mxu0 0.0
        %3622 = vmatprep.subr.mxu0 0.0
        %3623 = vmatpush1.msra.mxu0 0.0
        %3624 = vmatprep.subr.mxu0 0.0
        %3625 = vmatpush1.msra.mxu0 0.0
        %3626 = vmatprep.subr.mxu0 0.0
        %3627 = vmatpush1.msra.mxu0 0.0
        %3628 = vmatprep.subr.mxu0 0.0
        %3629 = vmatpush1.msra.mxu0 0.0
        %3630 = vmatprep.subr.mxu0 0.0
        %3631 = vmatpush1.msra.mxu0 0.0
        %3632 = vmatprep.subr.mxu0 0.0
        %3633 = vmatpush1.msra.mxu0 0.0
        %3634 = vmatprep.subr.mxu0 0.0
        %3635 = vmatpush1.msra.mxu0 0.0
        %3636 = vmatprep.subr.mxu0 0.0
        %3637 = vmatpush1.msra.mxu0 0.0
        %3638 = vmatprep.subr.mxu0 0.0
        %3639 = vmatpush1.msra.mxu0 0.0
        %3640 = vmatprep.subr.mxu0 0.0
        %3641 = vmatpush1.msra.mxu0 %v3514
        %3642 = vmatprep.subr.mxu0 0.0
        %3643 = vmatpush2.msra.mxu0 0.0
        %3644 = vmatprep.subr.mxu0 0.0
        %3645 = vmatpush2.msra.mxu0 0.0
        %3646 = vmatprep.subr.mxu0 0.0
        %3647 = vmatpush2.msra.mxu0 0.0
        %3648 = vmatprep.subr.mxu0 0.0
        %3649 = vmatpush2.msra.mxu0 0.0
        %3650 = vmatprep.subr.mxu0 0.0
        %3651 = vmatpush2.msra.mxu0 0.0
        %3652 = vmatprep.subr.mxu0 0.0
        %3653 = vmatpush2.msra.mxu0 0.0
        %3654 = vmatprep.subr.mxu0 0.0
        %3655 = vmatpush2.msra.mxu0 0.0
        %3656 = vmatprep.subr.mxu0 0.0
        %3657 = vmatpush2.msra.mxu0 0.0
        %3658 = vmatprep.subr.mxu0 0.0
        %3659 = vmatpush2.msra.mxu0 0.0
        %3660 = vmatprep.subr.mxu0 0.0
        %3661 = vmatpush2.msra.mxu0 0.0
        %3662 = vmatprep.subr.mxu0 0.0
        %3663 = vmatpush2.msra.mxu0 0.0
        %3664 = vmatprep.subr.mxu0 0.0
        %3665 = vmatpush2.msra.mxu0 0.0
        %3666 = vmatprep.subr.mxu0 0.0
        %3667 = vmatpush2.msra.mxu0 0.0
        %3668 = vmatprep.subr.mxu0 0.0
        %3669 = vmatpush2.msra.mxu0 0.0
        %3670 = vmatprep.subr.mxu0 0.0
        %3671 = vmatpush2.msra.mxu0 0.0
        %3672 = vmatprep.subr.mxu0 0.0
        %3673 = vmatpush2.msra.mxu0 0.0
        %3674 = vmatprep.mubr.f32.mxu0 0.0
        %3675 = vmatmul.mubr.f32.gmra.mxu0 %v3608
        %v3676 = vpop.f32.mrf.mxu0
        %v3677 = vadd.f32 0.0, %v3676
        %v3678 = vpop.f32.mrf.mxu0
        %3679 = vdwg.mxu0
        %v3680 = vld [vmem:[#allocation16] sm:$0xff]
        %3685 = vrot.lane.b32.xlu0 %v3268, 120
        %v3686 = vpop.permute.xlu0 %3685
        %3687 = vrot.lane.b32.xlu0 %v3269, 120
        %v3688 = vpop.permute.xlu0 %3687
        %3689 = vrot.lane.b32.xlu0 %v3270, 120
        %v3690 = vpop.permute.xlu0 %3689
        %3691 = vrot.lane.b32.xlu0 %v3271, 120
        %v3692 = vpop.permute.xlu0 %3691
        %3697 = vrot.lane.b32.xlu0 %v3277, 120
        %v3698 = vpop.permute.xlu0 %3697
        %3700 = vmatprep.subr.mxu0 0.0
        %3701 = vmatpush1.msra.mxu0 0.0
        %3702 = vmatprep.subr.mxu0 0.0
        %3703 = vmatpush1.msra.mxu0 0.0
        %3704 = vmatprep.subr.mxu0 0.0
        %3705 = vmatpush1.msra.mxu0 0.0
        %3706 = vmatprep.subr.mxu0 0.0
        %3707 = vmatpush1.msra.mxu0 0.0
        %3708 = vmatprep.subr.mxu0 0.0
        %3709 = vmatpush1.msra.mxu0 0.0
        %3710 = vmatprep.subr.mxu0 0.0
        %3711 = vmatpush1.msra.mxu0 0.0
        %3712 = vmatprep.subr.mxu0 0.0
        %3713 = vmatpush1.msra.mxu0 0.0
        %3714 = vmatprep.subr.mxu0 0.0
        %3715 = vmatpush1.msra.mxu0 0.0
        %3716 = vmatprep.subr.mxu0 0.0
        %3717 = vmatpush1.msra.mxu0 0.0
        %3718 = vmatprep.subr.mxu0 0.0
        %3719 = vmatpush1.msra.mxu0 0.0
        %3720 = vmatprep.subr.mxu0 0.0
        %3721 = vmatpush1.msra.mxu0 0.0
        %3722 = vmatprep.subr.mxu0 0.0
        %3723 = vmatpush1.msra.mxu0 0.0
        %3724 = vmatprep.subr.mxu0 0.0
        %3725 = vmatpush1.msra.mxu0 %v3692
        %3726 = vmatprep.subr.mxu0 0.0
        %3727 = vmatpush1.msra.mxu0 %v3690
        %3728 = vmatprep.subr.mxu0 0.0
        %3729 = vmatpush1.msra.mxu0 %v3688
        %3730 = vmatprep.subr.mxu0 0.0
        %3731 = vmatpush1.msra.mxu0 %v3686
        %3732 = vmatprep.subr.mxu0 0.0
        %3733 = vmatpush2.msra.mxu0 0.0
        %3734 = vmatprep.subr.mxu0 0.0
        %3735 = vmatpush2.msra.mxu0 0.0
        %3736 = vmatprep.subr.mxu0 0.0
        %3737 = vmatpush2.msra.mxu0 0.0
        %3738 = vmatprep.subr.mxu0 0.0
        %3739 = vmatpush2.msra.mxu0 0.0
        %3740 = vmatprep.subr.mxu0 0.0
        %3741 = vmatpush2.msra.mxu0 0.0
        %3742 = vmatprep.subr.mxu0 0.0
        %3743 = vmatpush2.msra.mxu0 0.0
        %3744 = vmatprep.subr.mxu0 0.0
        %3745 = vmatpush2.msra.mxu0 0.0
        %3746 = vmatprep.subr.mxu0 0.0
        %3747 = vmatpush2.msra.mxu0 0.0
        %3748 = vmatprep.subr.mxu0 0.0
        %3749 = vmatpush2.msra.mxu0 0.0
        %3750 = vmatprep.subr.mxu0 0.0
        %3751 = vmatpush2.msra.mxu0 0.0
        %3752 = vmatprep.subr.mxu0 0.0
        %3753 = vmatpush2.msra.mxu0 0.0
        %3754 = vmatprep.subr.mxu0 0.0
        %3755 = vmatpush2.msra.mxu0 0.0
        %3756 = vmatprep.subr.mxu0 0.0
        %3757 = vmatpush2.msra.mxu0 0.0
        %3758 = vmatprep.subr.mxu0 0.0
        %3759 = vmatpush2.msra.mxu0 0.0
        %3760 = vmatprep.subr.mxu0 0.0
        %3761 = vmatpush2.msra.mxu0 0.0
        %3762 = vmatprep.subr.mxu0 0.0
        %3763 = vmatpush2.msra.mxu0 0.0
        %3764 = vmatprep.mubr.f32.mxu0 0.0
        %3765 = vmatmul.mubr.f32.gmra.mxu0 %v3280
        %v3766 = vpop.f32.mrf.mxu0
        %v3767 = vadd.f32 %v3698, %v3766
        %v3768 = vpop.f32.mrf.mxu0
        %3769 = vdwg.mxu0
        %3774 = vrot.lane.b32.xlu0 %v3352, 120
        %v3775 = vpop.permute.xlu0 %3774
        %3776 = vrot.lane.b32.xlu0 %v3353, 120
        %v3777 = vpop.permute.xlu0 %3776
        %3778 = vrot.lane.b32.xlu0 %v3354, 120
        %v3779 = vpop.permute.xlu0 %3778
        %3780 = vrot.lane.b32.xlu0 %v3355, 120
        %v3781 = vpop.permute.xlu0 %3780
        %3786 = vrot.lane.b32.xlu0 %v3361, 120
        %v3787 = vpop.permute.xlu0 %3786
        %3789 = vmatprep.subr.mxu0 0.0
        %3790 = vmatpush1.msra.mxu0 0.0
        %3791 = vmatprep.subr.mxu0 0.0
        %3792 = vmatpush1.msra.mxu0 0.0
        %3793 = vmatprep.subr.mxu0 0.0
        %3794 = vmatpush1.msra.mxu0 0.0
        %3795 = vmatprep.subr.mxu0 0.0
        %3796 = vmatpush1.msra.mxu0 0.0
        %3797 = vmatprep.subr.mxu0 0.0
        %3798 = vmatpush1.msra.mxu0 0.0
        %3799 = vmatprep.subr.mxu0 0.0
        %3800 = vmatpush1.msra.mxu0 0.0
        %3801 = vmatprep.subr.mxu0 0.0
        %3802 = vmatpush1.msra.mxu0 0.0
        %3803 = vmatprep.subr.mxu0 0.0
        %3804 = vmatpush1.msra.mxu0 0.0
        %3805 = vmatprep.subr.mxu0 0.0
        %3806 = vmatpush1.msra.mxu0 0.0
        %3807 = vmatprep.subr.mxu0 0.0
        %3808 = vmatpush1.msra.mxu0 0.0
        %3809 = vmatprep.subr.mxu0 0.0
        %3810 = vmatpush1.msra.mxu0 0.0
        %3811 = vmatprep.subr.mxu0 0.0
        %3812 = vmatpush1.msra.mxu0 0.0
        %3813 = vmatprep.subr.mxu0 0.0
        %3814 = vmatpush1.msra.mxu0 %v3781
        %3815 = vmatprep.subr.mxu0 0.0
        %3816 = vmatpush1.msra.mxu0 %v3779
        %3817 = vmatprep.subr.mxu0 0.0
        %3818 = vmatpush1.msra.mxu0 %v3777
        %3819 = vmatprep.subr.mxu0 0.0
        %3820 = vmatpush1.msra.mxu0 %v3775
        %3821 = vmatprep.subr.mxu0 0.0
        %3822 = vmatpush2.msra.mxu0 0.0
        %3823 = vmatprep.subr.mxu0 0.0
        %3824 = vmatpush2.msra.mxu0 0.0
        %3825 = vmatprep.subr.mxu0 0.0
        %3826 = vmatpush2.msra.mxu0 0.0
        %3827 = vmatprep.subr.mxu0 0.0
        %3828 = vmatpush2.msra.mxu0 0.0
        %3829 = vmatprep.subr.mxu0 0.0
        %3830 = vmatpush2.msra.mxu0 0.0
        %3831 = vmatprep.subr.mxu0 0.0
        %3832 = vmatpush2.msra.mxu0 0.0
        %3833 = vmatprep.subr.mxu0 0.0
        %3834 = vmatpush2.msra.mxu0 0.0
        %3835 = vmatprep.subr.mxu0 0.0
        %3836 = vmatpush2.msra.mxu0 0.0
        %3837 = vmatprep.subr.mxu0 0.0
        %3838 = vmatpush2.msra.mxu0 0.0
        %3839 = vmatprep.subr.mxu0 0.0
        %3840 = vmatpush2.msra.mxu0 0.0
        %3841 = vmatprep.subr.mxu0 0.0
        %3842 = vmatpush2.msra.mxu0 0.0
        %3843 = vmatprep.subr.mxu0 0.0
        %3844 = vmatpush2.msra.mxu0 0.0
        %3845 = vmatprep.subr.mxu0 0.0
        %3846 = vmatpush2.msra.mxu0 0.0
        %3847 = vmatprep.subr.mxu0 0.0
        %3848 = vmatpush2.msra.mxu0 0.0
        %3849 = vmatprep.subr.mxu0 0.0
        %3850 = vmatpush2.msra.mxu0 0.0
        %3851 = vmatprep.subr.mxu0 0.0
        %3852 = vmatpush2.msra.mxu0 0.0
        %3853 = vmatprep.mubr.f32.mxu0 0.0
        %3854 = vmatmul.mubr.f32.gmra.mxu0 %v3364
        %v3855 = vpop.f32.mrf.mxu0
        %v3856 = vadd.f32 %v3787, %v3855
        %v3857 = vpop.f32.mrf.mxu0
        %3858 = vdwg.mxu0
        %3863 = vrot.lane.b32.xlu0 %v3436, 120
        %v3864 = vpop.permute.xlu0 %3863
        %3865 = vrot.lane.b32.xlu0 %v3437, 120
        %v3866 = vpop.permute.xlu0 %3865
        %3867 = vrot.lane.b32.xlu0 %v3438, 120
        %v3868 = vpop.permute.xlu0 %3867
        %3869 = vrot.lane.b32.xlu0 %v3439, 120
        %v3870 = vpop.permute.xlu0 %3869
        %3875 = vrot.lane.b32.xlu0 %v3445, 120
        %v3876 = vpop.permute.xlu0 %3875
        %3878 = vmatprep.subr.mxu0 0.0
        %3879 = vmatpush1.msra.mxu0 0.0
        %3880 = vmatprep.subr.mxu0 0.0
        %3881 = vmatpush1.msra.mxu0 0.0
        %3882 = vmatprep.subr.mxu0 0.0
        %3883 = vmatpush1.msra.mxu0 0.0
        %3884 = vmatprep.subr.mxu0 0.0
        %3885 = vmatpush1.msra.mxu0 0.0
        %3886 = vmatprep.subr.mxu0 0.0
        %3887 = vmatpush1.msra.mxu0 0.0
        %3888 = vmatprep.subr.mxu0 0.0
        %3889 = vmatpush1.msra.mxu0 0.0
        %3890 = vmatprep.subr.mxu0 0.0
        %3891 = vmatpush1.msra.mxu0 0.0
        %3892 = vmatprep.subr.mxu0 0.0
        %3893 = vmatpush1.msra.mxu0 0.0
        %3894 = vmatprep.subr.mxu0 0.0
        %3895 = vmatpush1.msra.mxu0 0.0
        %3896 = vmatprep.subr.mxu0 0.0
        %3897 = vmatpush1.msra.mxu0 0.0
        %3898 = vmatprep.subr.mxu0 0.0
        %3899 = vmatpush1.msra.mxu0 0.0
        %3900 = vmatprep.subr.mxu0 0.0
        %3901 = vmatpush1.msra.mxu0 0.0
        %3902 = vmatprep.subr.mxu0 0.0
        %3903 = vmatpush1.msra.mxu0 %v3870
        %3904 = vmatprep.subr.mxu0 0.0
        %3905 = vmatpush1.msra.mxu0 %v3868
        %3906 = vmatprep.subr.mxu0 0.0
        %3907 = vmatpush1.msra.mxu0 %v3866
        %3908 = vmatprep.subr.mxu0 0.0
        %3909 = vmatpush1.msra.mxu0 %v3864
        %3910 = vmatprep.subr.mxu0 0.0
        %3911 = vmatpush2.msra.mxu0 0.0
        %3912 = vmatprep.subr.mxu0 0.0
        %3913 = vmatpush2.msra.mxu0 0.0
        %3914 = vmatprep.subr.mxu0 0.0
        %3915 = vmatpush2.msra.mxu0 0.0
        %3916 = vmatprep.subr.mxu0 0.0
        %3917 = vmatpush2.msra.mxu0 0.0
        %3918 = vmatprep.subr.mxu0 0.0
        %3919 = vmatpush2.msra.mxu0 0.0
        %3920 = vmatprep.subr.mxu0 0.0
        %3921 = vmatpush2.msra.mxu0 0.0
        %3922 = vmatprep.subr.mxu0 0.0
        %3923 = vmatpush2.msra.mxu0 0.0
        %3924 = vmatprep.subr.mxu0 0.0
        %3925 = vmatpush2.msra.mxu0 0.0
        %3926 = vmatprep.subr.mxu0 0.0
        %3927 = vmatpush2.msra.mxu0 0.0
        %3928 = vmatprep.subr.mxu0 0.0
        %3929 = vmatpush2.msra.mxu0 0.0
        %3930 = vmatprep.subr.mxu0 0.0
        %3931 = vmatpush2.msra.mxu0 0.0
        %3932 = vmatprep.subr.mxu0 0.0
        %3933 = vmatpush2.msra.mxu0 0.0
        %3934 = vmatprep.subr.mxu0 0.0
        %3935 = vmatpush2.msra.mxu0 0.0
        %3936 = vmatprep.subr.mxu0 0.0
        %3937 = vmatpush2.msra.mxu0 0.0
        %3938 = vmatprep.subr.mxu0 0.0
        %3939 = vmatpush2.msra.mxu0 0.0
        %3940 = vmatprep.subr.mxu0 0.0
        %3941 = vmatpush2.msra.mxu0 0.0
        %3942 = vmatprep.mubr.f32.mxu0 0.0
        %3943 = vmatmul.mubr.f32.gmra.mxu0 %v3364
        %v3944 = vpop.f32.mrf.mxu0
        %v3945 = vadd.f32 %v3876, %v3944
        %v3946 = vpop.f32.mrf.mxu0
        %3947 = vdwg.mxu0
        %v3949 = vsel %vm1490, %v3767, 0
        %v3952 = vsel %vm1490, %v3856, 0
        %3954 = vmatprep.subr.mxu0 0.0
        %3955 = vmatpush1.xpose.msra.mxu0 0.0
        %3956 = vmatprep.subr.mxu0 0.0
        %3957 = vmatpush1.xpose.msra.mxu0 0.0
        %3958 = vmatprep.subr.mxu0 0.0
        %3959 = vmatpush1.xpose.msra.mxu0 0.0
        %3960 = vmatprep.subr.mxu0 0.0
        %3961 = vmatpush1.xpose.msra.mxu0 0.0
        %3962 = vmatprep.subr.mxu0 0.0
        %3963 = vmatpush1.xpose.msra.mxu0 0.0
        %3964 = vmatprep.subr.mxu0 0.0
        %3965 = vmatpush1.xpose.msra.mxu0 0.0
        %3966 = vmatprep.subr.mxu0 0.0
        %3967 = vmatpush1.xpose.msra.mxu0 0.0
        %3968 = vmatprep.subr.mxu0 0.0
        %3969 = vmatpush1.xpose.msra.mxu0 0.0
        %3970 = vmatprep.subr.mxu0 0.0
        %3971 = vmatpush1.xpose.msra.mxu0 0.0
        %3972 = vmatprep.subr.mxu0 0.0
        %3973 = vmatpush1.xpose.msra.mxu0 0.0
        %3974 = vmatprep.subr.mxu0 0.0
        %3975 = vmatpush1.xpose.msra.mxu0 0.0
        %3976 = vmatprep.subr.mxu0 0.0
        %3977 = vmatpush1.xpose.msra.mxu0 0.0
        %3978 = vmatprep.subr.mxu0 0.0
        %3979 = vmatpush1.xpose.msra.mxu0 0.0
        %3980 = vmatprep.subr.mxu0 0.0
        %3981 = vmatpush1.xpose.msra.mxu0 0.0
        %3982 = vmatprep.subr.mxu0 0.0
        %3983 = vmatpush1.xpose.msra.mxu0 0.0
        %3984 = vmatprep.subr.mxu0 0.0
        %3985 = vmatpush1.xpose.msra.mxu0 %v3952
        %3986 = vmatprep.subr.mxu0 0.0
        %3987 = vmatpush2.xpose.msra.mxu0 0.0
        %3988 = vmatprep.subr.mxu0 0.0
        %3989 = vmatpush2.xpose.msra.mxu0 0.0
        %3990 = vmatprep.subr.mxu0 0.0
        %3991 = vmatpush2.xpose.msra.mxu0 0.0
        %3992 = vmatprep.subr.mxu0 0.0
        %3993 = vmatpush2.xpose.msra.mxu0 0.0
        %3994 = vmatprep.subr.mxu0 0.0
        %3995 = vmatpush2.xpose.msra.mxu0 0.0
        %3996 = vmatprep.subr.mxu0 0.0
        %3997 = vmatpush2.xpose.msra.mxu0 0.0
        %3998 = vmatprep.subr.mxu0 0.0
        %3999 = vmatpush2.xpose.msra.mxu0 0.0
        %4000 = vmatprep.subr.mxu0 0.0
        %4001 = vmatpush2.xpose.msra.mxu0 0.0
        %4002 = vmatprep.subr.mxu0 0.0
        %4003 = vmatpush2.xpose.msra.mxu0 0.0
        %4004 = vmatprep.subr.mxu0 0.0
        %4005 = vmatpush2.xpose.msra.mxu0 0.0
        %4006 = vmatprep.subr.mxu0 0.0
        %4007 = vmatpush2.xpose.msra.mxu0 0.0
        %4008 = vmatprep.subr.mxu0 0.0
        %4009 = vmatpush2.xpose.msra.mxu0 0.0
        %4010 = vmatprep.subr.mxu0 0.0
        %4011 = vmatpush2.xpose.msra.mxu0 0.0
        %4012 = vmatprep.subr.mxu0 0.0
        %4013 = vmatpush2.xpose.msra.mxu0 0.0
        %4014 = vmatprep.subr.mxu0 0.0
        %4015 = vmatpush2.xpose.msra.mxu0 0.0
        %4016 = vmatprep.subr.mxu0 0.0
        %4017 = vmatpush2.xpose.msra.mxu0 0.0
        %4018 = vmatprep.mubr.f32.mxu0 0.0
        %4019 = vmatmul.mubr.f32.gmra.mxu0 %v3949
        %v4020 = vpop.f32.mrf.mxu0
        %v4021 = vadd.f32 0.0, %v4020
        %v4022 = vpop.f32.mrf.mxu0
        %4023 = vdwg.mxu0
        %v4024 = vmul.f32 %v4021, 0.35355338
        %v4025 = vsel %vm3594, -1e+09, %v4024
        %v4026 = vsel %vm1490, %v4025, -inf
        %4027 = vmax.xlane.f32.xlu0 %v4026
        %v4028 = vpop.xlane.xlu0 %4027
        %v4029 = vsub.f32 %v4025, %v4028
        %v4030 = vmul.f32 %v4029, 1.442695
        %v4031 = vpow.pop %v4030
        %v4032 = vsel %vm1490, %v4031, 0.0
        %4033 = vadd.xlane.f32.xlu0 %v4032
        %v4034 = vpop.xlane.xlu0 %4033
        %v4035 = vrcp.pop %v4034
        %v4036 = vmul.f32 %v4031, %v4035
        %v4038 = vsel %vm1490, %v4036, 0
        %4040 = vmatprep.subr.mxu0 0.0
        %4041 = vmatpush1.msra.mxu0 0.0
        %4042 = vmatprep.subr.mxu0 0.0
        %4043 = vmatpush1.msra.mxu0 0.0
        %4044 = vmatprep.subr.mxu0 0.0
        %4045 = vmatpush1.msra.mxu0 0.0
        %4046 = vmatprep.subr.mxu0 0.0
        %4047 = vmatpush1.msra.mxu0 0.0
        %4048 = vmatprep.subr.mxu0 0.0
        %4049 = vmatpush1.msra.mxu0 0.0
        %4050 = vmatprep.subr.mxu0 0.0
        %4051 = vmatpush1.msra.mxu0 0.0
        %4052 = vmatprep.subr.mxu0 0.0
        %4053 = vmatpush1.msra.mxu0 0.0
        %4054 = vmatprep.subr.mxu0 0.0
        %4055 = vmatpush1.msra.mxu0 0.0
        %4056 = vmatprep.subr.mxu0 0.0
        %4057 = vmatpush1.msra.mxu0 0.0
        %4058 = vmatprep.subr.mxu0 0.0
        %4059 = vmatpush1.msra.mxu0 0.0
        %4060 = vmatprep.subr.mxu0 0.0
        %4061 = vmatpush1.msra.mxu0 0.0
        %4062 = vmatprep.subr.mxu0 0.0
        %4063 = vmatpush1.msra.mxu0 0.0
        %4064 = vmatprep.subr.mxu0 0.0
        %4065 = vmatpush1.msra.mxu0 0.0
        %4066 = vmatprep.subr.mxu0 0.0
        %4067 = vmatpush1.msra.mxu0 0.0
        %4068 = vmatprep.subr.mxu0 0.0
        %4069 = vmatpush1.msra.mxu0 0.0
        %4070 = vmatprep.subr.mxu0 0.0
        %4071 = vmatpush1.msra.mxu0 %v3945
        %4072 = vmatprep.subr.mxu0 0.0
        %4073 = vmatpush2.msra.mxu0 0.0
        %4074 = vmatprep.subr.mxu0 0.0
        %4075 = vmatpush2.msra.mxu0 0.0
        %4076 = vmatprep.subr.mxu0 0.0
        %4077 = vmatpush2.msra.mxu0 0.0
        %4078 = vmatprep.subr.mxu0 0.0
        %4079 = vmatpush2.msra.mxu0 0.0
        %4080 = vmatprep.subr.mxu0 0.0
        %4081 = vmatpush2.msra.mxu0 0.0
        %4082 = vmatprep.subr.mxu0 0.0
        %4083 = vmatpush2.msra.mxu0 0.0
        %4084 = vmatprep.subr.mxu0 0.0
        %4085 = vmatpush2.msra.mxu0 0.0
        %4086 = vmatprep.subr.mxu0 0.0
        %4087 = vmatpush2.msra.mxu0 0.0
        %4088 = vmatprep.subr.mxu0 0.0
        %4089 = vmatpush2.msra.mxu0 0.0
        %4090 = vmatprep.subr.mxu0 0.0
        %4091 = vmatpush2.msra.mxu0 0.0
        %4092 = vmatprep.subr.mxu0 0.0
        %4093 = vmatpush2.msra.mxu0 0.0
        %4094 = vmatprep.subr.mxu0 0.0
        %4095 = vmatpush2.msra.mxu0 0.0
        %4096 = vmatprep.subr.mxu0 0.0
        %4097 = vmatpush2.msra.mxu0 0.0
        %4098 = vmatprep.subr.mxu0 0.0
        %4099 = vmatpush2.msra.mxu0 0.0
        %4100 = vmatprep.subr.mxu0 0.0
        %4101 = vmatpush2.msra.mxu0 0.0
        %4102 = vmatprep.subr.mxu0 0.0
        %4103 = vmatpush2.msra.mxu0 0.0
        %4104 = vmatprep.mubr.f32.mxu0 0.0
        %4105 = vmatmul.mubr.f32.gmra.mxu0 %v4038
        %v4106 = vpop.f32.mrf.mxu0
        %v4107 = vadd.f32 0.0, %v4106
        %v4108 = vpop.f32.mrf.mxu0
        %4109 = vdwg.mxu0
        %v4110 = vld [vmem:[#allocation16 + $0x8] sm:$0xff]
        %v4112 = vsel %vm1490, %v4107, 0
        %4114 = vmatprep.subr.mxu0 0.0
        %4115 = vmatpush1.msra.mxu0 0.0
        %4116 = vmatprep.subr.mxu0 0.0
        %4117 = vmatpush1.msra.mxu0 0.0
        %4118 = vmatprep.subr.mxu0 0.0
        %4119 = vmatpush1.msra.mxu0 0.0
        %4120 = vmatprep.subr.mxu0 0.0
        %4121 = vmatpush1.msra.mxu0 0.0
        %4122 = vmatprep.subr.mxu0 0.0
        %4123 = vmatpush1.msra.mxu0 0.0
        %4124 = vmatprep.subr.mxu0 0.0
        %4125 = vmatpush1.msra.mxu0 0.0
        %4126 = vmatprep.subr.mxu0 0.0
        %4127 = vmatpush1.msra.mxu0 0.0
        %4128 = vmatprep.subr.mxu0 0.0
        %4129 = vmatpush1.msra.mxu0 0.0
        %4130 = vmatprep.subr.mxu0 0.0
        %4131 = vmatpush1.msra.mxu0 0.0
        %4132 = vmatprep.subr.mxu0 0.0
        %4133 = vmatpush1.msra.mxu0 0.0
        %4134 = vmatprep.subr.mxu0 0.0
        %4135 = vmatpush1.msra.mxu0 0.0
        %4136 = vmatprep.subr.mxu0 0.0
        %4137 = vmatpush1.msra.mxu0 0.0
        %4138 = vmatprep.subr.mxu0 0.0
        %4139 = vmatpush1.msra.mxu0 0.0
        %4140 = vmatprep.subr.mxu0 0.0
        %4141 = vmatpush1.msra.mxu0 0.0
        %4142 = vmatprep.subr.mxu0 0.0
        %4143 = vmatpush1.msra.mxu0 0.0
        %4144 = vmatprep.subr.mxu0 0.0
        %4145 = vmatpush1.msra.mxu0 %v4110
        %4146 = vmatprep.subr.mxu0 0.0
        %4147 = vmatpush2.msra.mxu0 0.0
        %4148 = vmatprep.subr.mxu0 0.0
        %4149 = vmatpush2.msra.mxu0 0.0
        %4150 = vmatprep.subr.mxu0 0.0
        %4151 = vmatpush2.msra.mxu0 0.0
        %4152 = vmatprep.subr.mxu0 0.0
        %4153 = vmatpush2.msra.mxu0 0.0
        %4154 = vmatprep.subr.mxu0 0.0
        %4155 = vmatpush2.msra.mxu0 0.0
        %4156 = vmatprep.subr.mxu0 0.0
        %4157 = vmatpush2.msra.mxu0 0.0
        %4158 = vmatprep.subr.mxu0 0.0
        %4159 = vmatpush2.msra.mxu0 0.0
        %4160 = vmatprep.subr.mxu0 0.0
        %4161 = vmatpush2.msra.mxu0 0.0
        %4162 = vmatprep.subr.mxu0 0.0
        %4163 = vmatpush2.msra.mxu0 0.0
        %4164 = vmatprep.subr.mxu0 0.0
        %4165 = vmatpush2.msra.mxu0 0.0
        %4166 = vmatprep.subr.mxu0 0.0
        %4167 = vmatpush2.msra.mxu0 0.0
        %4168 = vmatprep.subr.mxu0 0.0
        %4169 = vmatpush2.msra.mxu0 0.0
        %4170 = vmatprep.subr.mxu0 0.0
        %4171 = vmatpush2.msra.mxu0 0.0
        %4172 = vmatprep.subr.mxu0 0.0
        %4173 = vmatpush2.msra.mxu0 0.0
        %4174 = vmatprep.subr.mxu0 0.0
        %4175 = vmatpush2.msra.mxu0 0.0
        %4176 = vmatprep.subr.mxu0 0.0
        %4177 = vmatpush2.msra.mxu0 0.0
        %4178 = vmatprep.mubr.f32.mxu0 0.0
        %4179 = vmatmul.mubr.f32.gmra.mxu0 %v4112
        %v4180 = vpop.f32.mrf.mxu0
        %v4181 = vadd.f32 0.0, %v4180
        %v4182 = vpop.f32.mrf.mxu0
        %4183 = vdwg.mxu0
        %v4185 = vsel %vm1490, %v3677, 0
        %4187 = vmatprep.subr.mxu0 0.0
        %4188 = vmatpush1.msra.mxu0 0.0
        %4189 = vmatprep.subr.mxu0 0.0
        %4190 = vmatpush1.msra.mxu0 0.0
        %4191 = vmatprep.subr.mxu0 0.0
        %4192 = vmatpush1.msra.mxu0 0.0
        %4193 = vmatprep.subr.mxu0 0.0
        %4194 = vmatpush1.msra.mxu0 0.0
        %4195 = vmatprep.subr.mxu0 0.0
        %4196 = vmatpush1.msra.mxu0 0.0
        %4197 = vmatprep.subr.mxu0 0.0
        %4198 = vmatpush1.msra.mxu0 0.0
        %4199 = vmatprep.subr.mxu0 0.0
        %4200 = vmatpush1.msra.mxu0 0.0
        %4201 = vmatprep.subr.mxu0 0.0
        %4202 = vmatpush1.msra.mxu0 0.0
        %4203 = vmatprep.subr.mxu0 0.0
        %4204 = vmatpush1.msra.mxu0 0.0
        %4205 = vmatprep.subr.mxu0 0.0
        %4206 = vmatpush1.msra.mxu0 0.0
        %4207 = vmatprep.subr.mxu0 0.0
        %4208 = vmatpush1.msra.mxu0 0.0
        %4209 = vmatprep.subr.mxu0 0.0
        %4210 = vmatpush1.msra.mxu0 0.0
        %4211 = vmatprep.subr.mxu0 0.0
        %4212 = vmatpush1.msra.mxu0 0.0
        %4213 = vmatprep.subr.mxu0 0.0
        %4214 = vmatpush1.msra.mxu0 0.0
        %4215 = vmatprep.subr.mxu0 0.0
        %4216 = vmatpush1.msra.mxu0 0.0
        %4217 = vmatprep.subr.mxu0 0.0
        %4218 = vmatpush1.msra.mxu0 %v3680
        %4219 = vmatprep.subr.mxu0 0.0
        %4220 = vmatpush2.msra.mxu0 0.0
        %4221 = vmatprep.subr.mxu0 0.0
        %4222 = vmatpush2.msra.mxu0 0.0
        %4223 = vmatprep.subr.mxu0 0.0
        %4224 = vmatpush2.msra.mxu0 0.0
        %4225 = vmatprep.subr.mxu0 0.0
        %4226 = vmatpush2.msra.mxu0 0.0
        %4227 = vmatprep.subr.mxu0 0.0
        %4228 = vmatpush2.msra.mxu0 0.0
        %4229 = vmatprep.subr.mxu0 0.0
        %4230 = vmatpush2.msra.mxu0 0.0
        %4231 = vmatprep.subr.mxu0 0.0
        %4232 = vmatpush2.msra.mxu0 0.0
        %4233 = vmatprep.subr.mxu0 0.0
        %4234 = vmatpush2.msra.mxu0 0.0
        %4235 = vmatprep.subr.mxu0 0.0
        %4236 = vmatpush2.msra.mxu0 0.0
        %4237 = vmatprep.subr.mxu0 0.0
        %4238 = vmatpush2.msra.mxu0 0.0
        %4239 = vmatprep.subr.mxu0 0.0
        %4240 = vmatpush2.msra.mxu0 0.0
        %4241 = vmatprep.subr.mxu0 0.0
        %4242 = vmatpush2.msra.mxu0 0.0
        %4243 = vmatprep.subr.mxu0 0.0
        %4244 = vmatpush2.msra.mxu0 0.0
        %4245 = vmatprep.subr.mxu0 0.0
        %4246 = vmatpush2.msra.mxu0 0.0
        %4247 = vmatprep.subr.mxu0 0.0
        %4248 = vmatpush2.msra.mxu0 0.0
        %4249 = vmatprep.subr.mxu0 0.0
        %4250 = vmatpush2.msra.mxu0 0.0
        %4251 = vmatprep.mubr.f32.mxu0 0.0
        %4252 = vmatmul.mubr.f32.gmra.mxu0 %v4185
        %v4253 = vpop.f32.mrf.mxu0
        %v4254 = vadd.f32 %v4181, %v4253
        %v4255 = vpop.f32.mrf.mxu0
        %4256 = vdwg.mxu0
        %4257 = vrot.lane.b32.xlu0 %v3268, 112
        %v4258 = vpop.permute.xlu0 %4257
        %4259 = vrot.lane.b32.xlu0 %v3269, 112
        %v4260 = vpop.permute.xlu0 %4259
        %4261 = vrot.lane.b32.xlu0 %v3270, 112
        %v4262 = vpop.permute.xlu0 %4261
        %4263 = vrot.lane.b32.xlu0 %v3271, 112
        %v4264 = vpop.permute.xlu0 %4263
        %4269 = vrot.lane.b32.xlu0 %v3277, 112
        %v4270 = vpop.permute.xlu0 %4269
        %4272 = vmatprep.subr.mxu0 0.0
        %4273 = vmatpush1.msra.mxu0 0.0
        %4274 = vmatprep.subr.mxu0 0.0
        %4275 = vmatpush1.msra.mxu0 0.0
        %4276 = vmatprep.subr.mxu0 0.0
        %4277 = vmatpush1.msra.mxu0 0.0
        %4278 = vmatprep.subr.mxu0 0.0
        %4279 = vmatpush1.msra.mxu0 0.0
        %4280 = vmatprep.subr.mxu0 0.0
        %4281 = vmatpush1.msra.mxu0 0.0
        %4282 = vmatprep.subr.mxu0 0.0
        %4283 = vmatpush1.msra.mxu0 0.0
        %4284 = vmatprep.subr.mxu0 0.0
        %4285 = vmatpush1.msra.mxu0 0.0
        %4286 = vmatprep.subr.mxu0 0.0
        %4287 = vmatpush1.msra.mxu0 0.0
        %4288 = vmatprep.subr.mxu0 0.0
        %4289 = vmatpush1.msra.mxu0 0.0
        %4290 = vmatprep.subr.mxu0 0.0
        %4291 = vmatpush1.msra.mxu0 0.0
        %4292 = vmatprep.subr.mxu0 0.0
        %4293 = vmatpush1.msra.mxu0 0.0
        %4294 = vmatprep.subr.mxu0 0.0
        %4295 = vmatpush1.msra.mxu0 0.0
        %4296 = vmatprep.subr.mxu0 0.0
        %4297 = vmatpush1.msra.mxu0 %v4264
        %4298 = vmatprep.subr.mxu0 0.0
        %4299 = vmatpush1.msra.mxu0 %v4262
        %4300 = vmatprep.subr.mxu0 0.0
        %4301 = vmatpush1.msra.mxu0 %v4260
        %4302 = vmatprep.subr.mxu0 0.0
        %4303 = vmatpush1.msra.mxu0 %v4258
        %4304 = vmatprep.subr.mxu0 0.0
        %4305 = vmatpush2.msra.mxu0 0.0
        %4306 = vmatprep.subr.mxu0 0.0
        %4307 = vmatpush2.msra.mxu0 0.0
        %4308 = vmatprep.subr.mxu0 0.0
        %4309 = vmatpush2.msra.mxu0 0.0
        %4310 = vmatprep.subr.mxu0 0.0
        %4311 = vmatpush2.msra.mxu0 0.0
        %4312 = vmatprep.subr.mxu0 0.0
        %4313 = vmatpush2.msra.mxu0 0.0
        %4314 = vmatprep.subr.mxu0 0.0
        %4315 = vmatpush2.msra.mxu0 0.0
        %4316 = vmatprep.subr.mxu0 0.0
        %4317 = vmatpush2.msra.mxu0 0.0
        %4318 = vmatprep.subr.mxu0 0.0
        %4319 = vmatpush2.msra.mxu0 0.0
        %4320 = vmatprep.subr.mxu0 0.0
        %4321 = vmatpush2.msra.mxu0 0.0
        %4322 = vmatprep.subr.mxu0 0.0
        %4323 = vmatpush2.msra.mxu0 0.0
        %4324 = vmatprep.subr.mxu0 0.0
        %4325 = vmatpush2.msra.mxu0 0.0
        %4326 = vmatprep.subr.mxu0 0.0
        %4327 = vmatpush2.msra.mxu0 0.0
        %4328 = vmatprep.subr.mxu0 0.0
        %4329 = vmatpush2.msra.mxu0 0.0
        %4330 = vmatprep.subr.mxu0 0.0
        %4331 = vmatpush2.msra.mxu0 0.0
        %4332 = vmatprep.subr.mxu0 0.0
        %4333 = vmatpush2.msra.mxu0 0.0
        %4334 = vmatprep.subr.mxu0 0.0
        %4335 = vmatpush2.msra.mxu0 0.0
        %4336 = vmatprep.mubr.f32.mxu0 0.0
        %4337 = vmatmul.mubr.f32.gmra.mxu0 %v3280
        %v4338 = vpop.f32.mrf.mxu0
        %v4339 = vadd.f32 %v4270, %v4338
        %v4340 = vpop.f32.mrf.mxu0
        %4341 = vdwg.mxu0
        %4342 = vrot.lane.b32.xlu0 %v3352, 112
        %v4343 = vpop.permute.xlu0 %4342
        %4344 = vrot.lane.b32.xlu0 %v3353, 112
        %v4345 = vpop.permute.xlu0 %4344
        %4346 = vrot.lane.b32.xlu0 %v3354, 112
        %v4347 = vpop.permute.xlu0 %4346
        %4348 = vrot.lane.b32.xlu0 %v3355, 112
        %v4349 = vpop.permute.xlu0 %4348
        %4354 = vrot.lane.b32.xlu0 %v3361, 112
        %v4355 = vpop.permute.xlu0 %4354
        %4357 = vmatprep.subr.mxu0 0.0
        %4358 = vmatpush1.msra.mxu0 0.0
        %4359 = vmatprep.subr.mxu0 0.0
        %4360 = vmatpush1.msra.mxu0 0.0
        %4361 = vmatprep.subr.mxu0 0.0
        %4362 = vmatpush1.msra.mxu0 0.0
        %4363 = vmatprep.subr.mxu0 0.0
        %4364 = vmatpush1.msra.mxu0 0.0
        %4365 = vmatprep.subr.mxu0 0.0
        %4366 = vmatpush1.msra.mxu0 0.0
        %4367 = vmatprep.subr.mxu0 0.0
        %4368 = vmatpush1.msra.mxu0 0.0
        %4369 = vmatprep.subr.mxu0 0.0
        %4370 = vmatpush1.msra.mxu0 0.0
        %4371 = vmatprep.subr.mxu0 0.0
        %4372 = vmatpush1.msra.mxu0 0.0
        %4373 = vmatprep.subr.mxu0 0.0
        %4374 = vmatpush1.msra.mxu0 0.0
        %4375 = vmatprep.subr.mxu0 0.0
        %4376 = vmatpush1.msra.mxu0 0.0
        %4377 = vmatprep.subr.mxu0 0.0
        %4378 = vmatpush1.msra.mxu0 0.0
        %4379 = vmatprep.subr.mxu0 0.0
        %4380 = vmatpush1.msra.mxu0 0.0
        %4381 = vmatprep.subr.mxu0 0.0
        %4382 = vmatpush1.msra.mxu0 %v4349
        %4383 = vmatprep.subr.mxu0 0.0
        %4384 = vmatpush1.msra.mxu0 %v4347
        %4385 = vmatprep.subr.mxu0 0.0
        %4386 = vmatpush1.msra.mxu0 %v4345
        %4387 = vmatprep.subr.mxu0 0.0
        %4388 = vmatpush1.msra.mxu0 %v4343
        %4389 = vmatprep.subr.mxu0 0.0
        %4390 = vmatpush2.msra.mxu0 0.0
        %4391 = vmatprep.subr.mxu0 0.0
        %4392 = vmatpush2.msra.mxu0 0.0
        %4393 = vmatprep.subr.mxu0 0.0
        %4394 = vmatpush2.msra.mxu0 0.0
        %4395 = vmatprep.subr.mxu0 0.0
        %4396 = vmatpush2.msra.mxu0 0.0
        %4397 = vmatprep.subr.mxu0 0.0
        %4398 = vmatpush2.msra.mxu0 0.0
        %4399 = vmatprep.subr.mxu0 0.0
        %4400 = vmatpush2.msra.mxu0 0.0
        %4401 = vmatprep.subr.mxu0 0.0
        %4402 = vmatpush2.msra.mxu0 0.0
        %4403 = vmatprep.subr.mxu0 0.0
        %4404 = vmatpush2.msra.mxu0 0.0
        %4405 = vmatprep.subr.mxu0 0.0
        %4406 = vmatpush2.msra.mxu0 0.0
        %4407 = vmatprep.subr.mxu0 0.0
        %4408 = vmatpush2.msra.mxu0 0.0
        %4409 = vmatprep.subr.mxu0 0.0
        %4410 = vmatpush2.msra.mxu0 0.0
        %4411 = vmatprep.subr.mxu0 0.0
        %4412 = vmatpush2.msra.mxu0 0.0
        %4413 = vmatprep.subr.mxu0 0.0
        %4414 = vmatpush2.msra.mxu0 0.0
        %4415 = vmatprep.subr.mxu0 0.0
        %4416 = vmatpush2.msra.mxu0 0.0
        %4417 = vmatprep.subr.mxu0 0.0
        %4418 = vmatpush2.msra.mxu0 0.0
        %4419 = vmatprep.subr.mxu0 0.0
        %4420 = vmatpush2.msra.mxu0 0.0
        %4421 = vmatprep.mubr.f32.mxu0 0.0
        %4422 = vmatmul.mubr.f32.gmra.mxu0 %v3364
        %v4423 = vpop.f32.mrf.mxu0
        %v4424 = vadd.f32 %v4355, %v4423
        %v4425 = vpop.f32.mrf.mxu0
        %4426 = vdwg.mxu0
        %4427 = vrot.lane.b32.xlu0 %v3436, 112
        %v4428 = vpop.permute.xlu0 %4427
        %4429 = vrot.lane.b32.xlu0 %v3437, 112
        %v4430 = vpop.permute.xlu0 %4429
        %4431 = vrot.lane.b32.xlu0 %v3438, 112
        %v4432 = vpop.permute.xlu0 %4431
        %4433 = vrot.lane.b32.xlu0 %v3439, 112
        %v4434 = vpop.permute.xlu0 %4433
        %4439 = vrot.lane.b32.xlu0 %v3445, 112
        %v4440 = vpop.permute.xlu0 %4439
        %4442 = vmatprep.subr.mxu0 0.0
        %4443 = vmatpush1.msra.mxu0 0.0
        %4444 = vmatprep.subr.mxu0 0.0
        %4445 = vmatpush1.msra.mxu0 0.0
        %4446 = vmatprep.subr.mxu0 0.0
        %4447 = vmatpush1.msra.mxu0 0.0
        %4448 = vmatprep.subr.mxu0 0.0
        %4449 = vmatpush1.msra.mxu0 0.0
        %4450 = vmatprep.subr.mxu0 0.0
        %4451 = vmatpush1.msra.mxu0 0.0
        %4452 = vmatprep.subr.mxu0 0.0
        %4453 = vmatpush1.msra.mxu0 0.0
        %4454 = vmatprep.subr.mxu0 0.0
        %4455 = vmatpush1.msra.mxu0 0.0
        %4456 = vmatprep.subr.mxu0 0.0
        %4457 = vmatpush1.msra.mxu0 0.0
        %4458 = vmatprep.subr.mxu0 0.0
        %4459 = vmatpush1.msra.mxu0 0.0
        %4460 = vmatprep.subr.mxu0 0.0
        %4461 = vmatpush1.msra.mxu0 0.0
        %4462 = vmatprep.subr.mxu0 0.0
        %4463 = vmatpush1.msra.mxu0 0.0
        %4464 = vmatprep.subr.mxu0 0.0
        %4465 = vmatpush1.msra.mxu0 0.0
        %4466 = vmatprep.subr.mxu0 0.0
        %4467 = vmatpush1.msra.mxu0 %v4434
        %4468 = vmatprep.subr.mxu0 0.0
        %4469 = vmatpush1.msra.mxu0 %v4432
        %4470 = vmatprep.subr.mxu0 0.0
        %4471 = vmatpush1.msra.mxu0 %v4430
        %4472 = vmatprep.subr.mxu0 0.0
        %4473 = vmatpush1.msra.mxu0 %v4428
        %4474 = vmatprep.subr.mxu0 0.0
        %4475 = vmatpush2.msra.mxu0 0.0
        %4476 = vmatprep.subr.mxu0 0.0
        %4477 = vmatpush2.msra.mxu0 0.0
        %4478 = vmatprep.subr.mxu0 0.0
        %4479 = vmatpush2.msra.mxu0 0.0
        %4480 = vmatprep.subr.mxu0 0.0
        %4481 = vmatpush2.msra.mxu0 0.0
        %4482 = vmatprep.subr.mxu0 0.0
        %4483 = vmatpush2.msra.mxu0 0.0
        %4484 = vmatprep.subr.mxu0 0.0
        %4485 = vmatpush2.msra.mxu0 0.0
        %4486 = vmatprep.subr.mxu0 0.0
        %4487 = vmatpush2.msra.mxu0 0.0
        %4488 = vmatprep.subr.mxu0 0.0
        %4489 = vmatpush2.msra.mxu0 0.0
        %4490 = vmatprep.subr.mxu0 0.0
        %4491 = vmatpush2.msra.mxu0 0.0
        %4492 = vmatprep.subr.mxu0 0.0
        %4493 = vmatpush2.msra.mxu0 0.0
        %4494 = vmatprep.subr.mxu0 0.0
        %4495 = vmatpush2.msra.mxu0 0.0
        %4496 = vmatprep.subr.mxu0 0.0
        %4497 = vmatpush2.msra.mxu0 0.0
        %4498 = vmatprep.subr.mxu0 0.0
        %4499 = vmatpush2.msra.mxu0 0.0
        %4500 = vmatprep.subr.mxu0 0.0
        %4501 = vmatpush2.msra.mxu0 0.0
        %4502 = vmatprep.subr.mxu0 0.0
        %4503 = vmatpush2.msra.mxu0 0.0
        %4504 = vmatprep.subr.mxu0 0.0
        %4505 = vmatpush2.msra.mxu0 0.0
        %4506 = vmatprep.mubr.f32.mxu0 0.0
        %4507 = vmatmul.mubr.f32.gmra.mxu0 %v3364
        %v4508 = vpop.f32.mrf.mxu0
        %v4509 = vadd.f32 %v4440, %v4508
        %v4510 = vpop.f32.mrf.mxu0
        %4511 = vdwg.mxu0
        %v4513 = vsel %vm1490, %v4339, 0
        %v4516 = vsel %vm1490, %v4424, 0
        %4518 = vmatprep.subr.mxu0 0.0
        %4519 = vmatpush1.xpose.msra.mxu0 0.0
        %4520 = vmatprep.subr.mxu0 0.0
        %4521 = vmatpush1.xpose.msra.mxu0 0.0
        %4522 = vmatprep.subr.mxu0 0.0
        %4523 = vmatpush1.xpose.msra.mxu0 0.0
        %4524 = vmatprep.subr.mxu0 0.0
        %4525 = vmatpush1.xpose.msra.mxu0 0.0
        %4526 = vmatprep.subr.mxu0 0.0
        %4527 = vmatpush1.xpose.msra.mxu0 0.0
        %4528 = vmatprep.subr.mxu0 0.0
        %4529 = vmatpush1.xpose.msra.mxu0 0.0
        %4530 = vmatprep.subr.mxu0 0.0
        %4531 = vmatpush1.xpose.msra.mxu0 0.0
        %4532 = vmatprep.subr.mxu0 0.0
        %4533 = vmatpush1.xpose.msra.mxu0 0.0
        %4534 = vmatprep.subr.mxu0 0.0
        %4535 = vmatpush1.xpose.msra.mxu0 0.0
        %4536 = vmatprep.subr.mxu0 0.0
        %4537 = vmatpush1.xpose.msra.mxu0 0.0
        %4538 = vmatprep.subr.mxu0 0.0
        %4539 = vmatpush1.xpose.msra.mxu0 0.0
        %4540 = vmatprep.subr.mxu0 0.0
        %4541 = vmatpush1.xpose.msra.mxu0 0.0
        %4542 = vmatprep.subr.mxu0 0.0
        %4543 = vmatpush1.xpose.msra.mxu0 0.0
        %4544 = vmatprep.subr.mxu0 0.0
        %4545 = vmatpush1.xpose.msra.mxu0 0.0
        %4546 = vmatprep.subr.mxu0 0.0
        %4547 = vmatpush1.xpose.msra.mxu0 0.0
        %4548 = vmatprep.subr.mxu0 0.0
        %4549 = vmatpush1.xpose.msra.mxu0 %v4516
        %4550 = vmatprep.subr.mxu0 0.0
        %4551 = vmatpush2.xpose.msra.mxu0 0.0
        %4552 = vmatprep.subr.mxu0 0.0
        %4553 = vmatpush2.xpose.msra.mxu0 0.0
        %4554 = vmatprep.subr.mxu0 0.0
        %4555 = vmatpush2.xpose.msra.mxu0 0.0
        %4556 = vmatprep.subr.mxu0 0.0
        %4557 = vmatpush2.xpose.msra.mxu0 0.0
        %4558 = vmatprep.subr.mxu0 0.0
        %4559 = vmatpush2.xpose.msra.mxu0 0.0
        %4560 = vmatprep.subr.mxu0 0.0
        %4561 = vmatpush2.xpose.msra.mxu0 0.0
        %4562 = vmatprep.subr.mxu0 0.0
        %4563 = vmatpush2.xpose.msra.mxu0 0.0
        %4564 = vmatprep.subr.mxu0 0.0
        %4565 = vmatpush2.xpose.msra.mxu0 0.0
        %4566 = vmatprep.subr.mxu0 0.0
        %4567 = vmatpush2.xpose.msra.mxu0 0.0
        %4568 = vmatprep.subr.mxu0 0.0
        %4569 = vmatpush2.xpose.msra.mxu0 0.0
        %4570 = vmatprep.subr.mxu0 0.0
        %4571 = vmatpush2.xpose.msra.mxu0 0.0
        %4572 = vmatprep.subr.mxu0 0.0
        %4573 = vmatpush2.xpose.msra.mxu0 0.0
        %4574 = vmatprep.subr.mxu0 0.0
        %4575 = vmatpush2.xpose.msra.mxu0 0.0
        %4576 = vmatprep.subr.mxu0 0.0
        %4577 = vmatpush2.xpose.msra.mxu0 0.0
        %4578 = vmatprep.subr.mxu0 0.0
        %4579 = vmatpush2.xpose.msra.mxu0 0.0
        %4580 = vmatprep.subr.mxu0 0.0
        %4581 = vmatpush2.xpose.msra.mxu0 0.0
        %4582 = vmatprep.mubr.f32.mxu0 0.0
        %4583 = vmatmul.mubr.f32.gmra.mxu0 %v4513
        %v4584 = vpop.f32.mrf.mxu0
        %v4585 = vadd.f32 0.0, %v4584
        %v4586 = vpop.f32.mrf.mxu0
        %4587 = vdwg.mxu0
        %v4588 = vmul.f32 %v4585, 0.35355338
        %v4589 = vsel %vm3594, -1e+09, %v4588
        %v4590 = vsel %vm1490, %v4589, -inf
        %4591 = vmax.xlane.f32.xlu0 %v4590
        %v4592 = vpop.xlane.xlu0 %4591
        %v4593 = vsub.f32 %v4589, %v4592
        %v4594 = vmul.f32 %v4593, 1.442695
        %v4595 = vpow.pop %v4594
        %v4596 = vsel %vm1490, %v4595, 0.0
        %4597 = vadd.xlane.f32.xlu0 %v4596
        %v4598 = vpop.xlane.xlu0 %4597
        %v4599 = vrcp.pop %v4598
        %v4600 = vmul.f32 %v4595, %v4599
        %v4602 = vsel %vm1490, %v4600, 0
        %4604 = vmatprep.subr.mxu0 0.0
        %4605 = vmatpush1.msra.mxu0 0.0
        %4606 = vmatprep.subr.mxu0 0.0
        %4607 = vmatpush1.msra.mxu0 0.0
        %4608 = vmatprep.subr.mxu0 0.0
        %4609 = vmatpush1.msra.mxu0 0.0
        %4610 = vmatprep.subr.mxu0 0.0
        %4611 = vmatpush1.msra.mxu0 0.0
        %4612 = vmatprep.subr.mxu0 0.0
        %4613 = vmatpush1.msra.mxu0 0.0
        %4614 = vmatprep.subr.mxu0 0.0
        %4615 = vmatpush1.msra.mxu0 0.0
        %4616 = vmatprep.subr.mxu0 0.0
        %4617 = vmatpush1.msra.mxu0 0.0
        %4618 = vmatprep.subr.mxu0 0.0
        %4619 = vmatpush1.msra.mxu0 0.0
        %4620 = vmatprep.subr.mxu0 0.0
        %4621 = vmatpush1.msra.mxu0 0.0
        %4622 = vmatprep.subr.mxu0 0.0
        %4623 = vmatpush1.msra.mxu0 0.0
        %4624 = vmatprep.subr.mxu0 0.0
        %4625 = vmatpush1.msra.mxu0 0.0
        %4626 = vmatprep.subr.mxu0 0.0
        %4627 = vmatpush1.msra.mxu0 0.0
        %4628 = vmatprep.subr.mxu0 0.0
        %4629 = vmatpush1.msra.mxu0 0.0
        %4630 = vmatprep.subr.mxu0 0.0
        %4631 = vmatpush1.msra.mxu0 0.0
        %4632 = vmatprep.subr.mxu0 0.0
        %4633 = vmatpush1.msra.mxu0 0.0
        %4634 = vmatprep.subr.mxu0 0.0
        %4635 = vmatpush1.msra.mxu0 %v4509
        %4636 = vmatprep.subr.mxu0 0.0
        %4637 = vmatpush2.msra.mxu0 0.0
        %4638 = vmatprep.subr.mxu0 0.0
        %4639 = vmatpush2.msra.mxu0 0.0
        %4640 = vmatprep.subr.mxu0 0.0
        %4641 = vmatpush2.msra.mxu0 0.0
        %4642 = vmatprep.subr.mxu0 0.0
        %4643 = vmatpush2.msra.mxu0 0.0
        %4644 = vmatprep.subr.mxu0 0.0
        %4645 = vmatpush2.msra.mxu0 0.0
        %4646 = vmatprep.subr.mxu0 0.0
        %4647 = vmatpush2.msra.mxu0 0.0
        %4648 = vmatprep.subr.mxu0 0.0
        %4649 = vmatpush2.msra.mxu0 0.0
        %4650 = vmatprep.subr.mxu0 0.0
        %4651 = vmatpush2.msra.mxu0 0.0
        %4652 = vmatprep.subr.mxu0 0.0
        %4653 = vmatpush2.msra.mxu0 0.0
        %4654 = vmatprep.subr.mxu0 0.0
        %4655 = vmatpush2.msra.mxu0 0.0
        %4656 = vmatprep.subr.mxu0 0.0
        %4657 = vmatpush2.msra.mxu0 0.0
        %4658 = vmatprep.subr.mxu0 0.0
        %4659 = vmatpush2.msra.mxu0 0.0
        %4660 = vmatprep.subr.mxu0 0.0
        %4661 = vmatpush2.msra.mxu0 0.0
        %4662 = vmatprep.subr.mxu0 0.0
        %4663 = vmatpush2.msra.mxu0 0.0
        %4664 = vmatprep.subr.mxu0 0.0
        %4665 = vmatpush2.msra.mxu0 0.0
        %4666 = vmatprep.subr.mxu0 0.0
        %4667 = vmatpush2.msra.mxu0 0.0
        %4668 = vmatprep.mubr.f32.mxu0 0.0
        %4669 = vmatmul.mubr.f32.gmra.mxu0 %v4602
        %v4670 = vpop.f32.mrf.mxu0
        %v4671 = vadd.f32 0.0, %v4670
        %v4672 = vpop.f32.mrf.mxu0
        %4673 = vdwg.mxu0
        %v4674 = vld [vmem:[#allocation16 + $0x10] sm:$0xff]
        %v4676 = vsel %vm1490, %v4671, 0
        %4678 = vmatprep.subr.mxu0 0.0
        %4679 = vmatpush1.msra.mxu0 0.0
        %4680 = vmatprep.subr.mxu0 0.0
        %4681 = vmatpush1.msra.mxu0 0.0
        %4682 = vmatprep.subr.mxu0 0.0
        %4683 = vmatpush1.msra.mxu0 0.0
        %4684 = vmatprep.subr.mxu0 0.0
        %4685 = vmatpush1.msra.mxu0 0.0
        %4686 = vmatprep.subr.mxu0 0.0
        %4687 = vmatpush1.msra.mxu0 0.0
        %4688 = vmatprep.subr.mxu0 0.0
        %4689 = vmatpush1.msra.mxu0 0.0
        %4690 = vmatprep.subr.mxu0 0.0
        %4691 = vmatpush1.msra.mxu0 0.0
        %4692 = vmatprep.subr.mxu0 0.0
        %4693 = vmatpush1.msra.mxu0 0.0
        %4694 = vmatprep.subr.mxu0 0.0
        %4695 = vmatpush1.msra.mxu0 0.0
        %4696 = vmatprep.subr.mxu0 0.0
        %4697 = vmatpush1.msra.mxu0 0.0
        %4698 = vmatprep.subr.mxu0 0.0
        %4699 = vmatpush1.msra.mxu0 0.0
        %4700 = vmatprep.subr.mxu0 0.0
        %4701 = vmatpush1.msra.mxu0 0.0
        %4702 = vmatprep.subr.mxu0 0.0
        %4703 = vmatpush1.msra.mxu0 0.0
        %4704 = vmatprep.subr.mxu0 0.0
        %4705 = vmatpush1.msra.mxu0 0.0
        %4706 = vmatprep.subr.mxu0 0.0
        %4707 = vmatpush1.msra.mxu0 0.0
        %4708 = vmatprep.subr.mxu0 0.0
        %4709 = vmatpush1.msra.mxu0 %v4674
        %4710 = vmatprep.subr.mxu0 0.0
        %4711 = vmatpush2.msra.mxu0 0.0
        %4712 = vmatprep.subr.mxu0 0.0
        %4713 = vmatpush2.msra.mxu0 0.0
        %4714 = vmatprep.subr.mxu0 0.0
        %4715 = vmatpush2.msra.mxu0 0.0
        %4716 = vmatprep.subr.mxu0 0.0
        %4717 = vmatpush2.msra.mxu0 0.0
        %4718 = vmatprep.subr.mxu0 0.0
        %4719 = vmatpush2.msra.mxu0 0.0
        %4720 = vmatprep.subr.mxu0 0.0
        %4721 = vmatpush2.msra.mxu0 0.0
        %4722 = vmatprep.subr.mxu0 0.0
        %4723 = vmatpush2.msra.mxu0 0.0
        %4724 = vmatprep.subr.mxu0 0.0
        %4725 = vmatpush2.msra.mxu0 0.0
        %4726 = vmatprep.subr.mxu0 0.0
        %4727 = vmatpush2.msra.mxu0 0.0
        %4728 = vmatprep.subr.mxu0 0.0
        %4729 = vmatpush2.msra.mxu0 0.0
        %4730 = vmatprep.subr.mxu0 0.0
        %4731 = vmatpush2.msra.mxu0 0.0
        %4732 = vmatprep.subr.mxu0 0.0
        %4733 = vmatpush2.msra.mxu0 0.0
        %4734 = vmatprep.subr.mxu0 0.0
        %4735 = vmatpush2.msra.mxu0 0.0
        %4736 = vmatprep.subr.mxu0 0.0
        %4737 = vmatpush2.msra.mxu0 0.0
        %4738 = vmatprep.subr.mxu0 0.0
        %4739 = vmatpush2.msra.mxu0 0.0
        %4740 = vmatprep.subr.mxu0 0.0
        %4741 = vmatpush2.msra.mxu0 0.0
        %4742 = vmatprep.mubr.f32.mxu0 0.0
        %4743 = vmatmul.mubr.f32.gmra.mxu0 %v4676
        %v4744 = vpop.f32.mrf.mxu0
        %v4745 = vadd.f32 0.0, %v4744
        %v4746 = vpop.f32.mrf.mxu0
        %4747 = vdwg.mxu0
        %v4748 = vadd.f32 %v4254, %v4745
        %4749 = vrot.lane.b32.xlu0 %v3268, 104
        %v4750 = vpop.permute.xlu0 %4749
        %4751 = vrot.lane.b32.xlu0 %v3269, 104
        %v4752 = vpop.permute.xlu0 %4751
        %4753 = vrot.lane.b32.xlu0 %v3270, 104
        %v4754 = vpop.permute.xlu0 %4753
        %4755 = vrot.lane.b32.xlu0 %v3271, 104
        %v4756 = vpop.permute.xlu0 %4755
        %4761 = vrot.lane.b32.xlu0 %v3277, 104
        %v4762 = vpop.permute.xlu0 %4761
        %4764 = vmatprep.subr.mxu0 0.0
        %4765 = vmatpush1.msra.mxu0 0.0
        %4766 = vmatprep.subr.mxu0 0.0
        %4767 = vmatpush1.msra.mxu0 0.0
        %4768 = vmatprep.subr.mxu0 0.0
        %4769 = vmatpush1.msra.mxu0 0.0
        %4770 = vmatprep.subr.mxu0 0.0
        %4771 = vmatpush1.msra.mxu0 0.0
        %4772 = vmatprep.subr.mxu0 0.0
        %4773 = vmatpush1.msra.mxu0 0.0
        %4774 = vmatprep.subr.mxu0 0.0
        %4775 = vmatpush1.msra.mxu0 0.0
        %4776 = vmatprep.subr.mxu0 0.0
        %4777 = vmatpush1.msra.mxu0 0.0
        %4778 = vmatprep.subr.mxu0 0.0
        %4779 = vmatpush1.msra.mxu0 0.0
        %4780 = vmatprep.subr.mxu0 0.0
        %4781 = vmatpush1.msra.mxu0 0.0
        %4782 = vmatprep.subr.mxu0 0.0
        %4783 = vmatpush1.msra.mxu0 0.0
        %4784 = vmatprep.subr.mxu0 0.0
        %4785 = vmatpush1.msra.mxu0 0.0
        %4786 = vmatprep.subr.mxu0 0.0
        %4787 = vmatpush1.msra.mxu0 0.0
        %4788 = vmatprep.subr.mxu0 0.0
        %4789 = vmatpush1.msra.mxu0 %v4756
        %4790 = vmatprep.subr.mxu0 0.0
        %4791 = vmatpush1.msra.mxu0 %v4754
        %4792 = vmatprep.subr.mxu0 0.0
        %4793 = vmatpush1.msra.mxu0 %v4752
        %4794 = vmatprep.subr.mxu0 0.0
        %4795 = vmatpush1.msra.mxu0 %v4750
        %4796 = vmatprep.subr.mxu0 0.0
        %4797 = vmatpush2.msra.mxu0 0.0
        %4798 = vmatprep.subr.mxu0 0.0
        %4799 = vmatpush2.msra.mxu0 0.0
        %4800 = vmatprep.subr.mxu0 0.0
        %4801 = vmatpush2.msra.mxu0 0.0
        %4802 = vmatprep.subr.mxu0 0.0
        %4803 = vmatpush2.msra.mxu0 0.0
        %4804 = vmatprep.subr.mxu0 0.0
        %4805 = vmatpush2.msra.mxu0 0.0
        %4806 = vmatprep.subr.mxu0 0.0
        %4807 = vmatpush2.msra.mxu0 0.0
        %4808 = vmatprep.subr.mxu0 0.0
        %4809 = vmatpush2.msra.mxu0 0.0
        %4810 = vmatprep.subr.mxu0 0.0
        %4811 = vmatpush2.msra.mxu0 0.0
        %4812 = vmatprep.subr.mxu0 0.0
        %4813 = vmatpush2.msra.mxu0 0.0
        %4814 = vmatprep.subr.mxu0 0.0
        %4815 = vmatpush2.msra.mxu0 0.0
        %4816 = vmatprep.subr.mxu0 0.0
        %4817 = vmatpush2.msra.mxu0 0.0
        %4818 = vmatprep.subr.mxu0 0.0
        %4819 = vmatpush2.msra.mxu0 0.0
        %4820 = vmatprep.subr.mxu0 0.0
        %4821 = vmatpush2.msra.mxu0 0.0
        %4822 = vmatprep.subr.mxu0 0.0
        %4823 = vmatpush2.msra.mxu0 0.0
        %4824 = vmatprep.subr.mxu0 0.0
        %4825 = vmatpush2.msra.mxu0 0.0
        %4826 = vmatprep.subr.mxu0 0.0
        %4827 = vmatpush2.msra.mxu0 0.0
        %4828 = vmatprep.mubr.f32.mxu0 0.0
        %4829 = vmatmul.mubr.f32.gmra.mxu0 %v3280
        %v4830 = vpop.f32.mrf.mxu0
        %v4831 = vadd.f32 %v4762, %v4830
        %v4832 = vpop.f32.mrf.mxu0
        %4833 = vdwg.mxu0
        %4834 = vrot.lane.b32.xlu0 %v3352, 104
        %v4835 = vpop.permute.xlu0 %4834
        %4836 = vrot.lane.b32.xlu0 %v3353, 104
        %v4837 = vpop.permute.xlu0 %4836
        %4838 = vrot.lane.b32.xlu0 %v3354, 104
        %v4839 = vpop.permute.xlu0 %4838
        %4840 = vrot.lane.b32.xlu0 %v3355, 104
        %v4841 = vpop.permute.xlu0 %4840
        %4846 = vrot.lane.b32.xlu0 %v3361, 104
        %v4847 = vpop.permute.xlu0 %4846
        %4849 = vmatprep.subr.mxu0 0.0
        %4850 = vmatpush1.msra.mxu0 0.0
        %4851 = vmatprep.subr.mxu0 0.0
        %4852 = vmatpush1.msra.mxu0 0.0
        %4853 = vmatprep.subr.mxu0 0.0
        %4854 = vmatpush1.msra.mxu0 0.0
        %4855 = vmatprep.subr.mxu0 0.0
        %4856 = vmatpush1.msra.mxu0 0.0
        %4857 = vmatprep.subr.mxu0 0.0
        %4858 = vmatpush1.msra.mxu0 0.0
        %4859 = vmatprep.subr.mxu0 0.0
        %4860 = vmatpush1.msra.mxu0 0.0
        %4861 = vmatprep.subr.mxu0 0.0
        %4862 = vmatpush1.msra.mxu0 0.0
        %4863 = vmatprep.subr.mxu0 0.0
        %4864 = vmatpush1.msra.mxu0 0.0
        %4865 = vmatprep.subr.mxu0 0.0
        %4866 = vmatpush1.msra.mxu0 0.0
        %4867 = vmatprep.subr.mxu0 0.0
        %4868 = vmatpush1.msra.mxu0 0.0
        %4869 = vmatprep.subr.mxu0 0.0
        %4870 = vmatpush1.msra.mxu0 0.0
        %4871 = vmatprep.subr.mxu0 0.0
        %4872 = vmatpush1.msra.mxu0 0.0
        %4873 = vmatprep.subr.mxu0 0.0
        %4874 = vmatpush1.msra.mxu0 %v4841
        %4875 = vmatprep.subr.mxu0 0.0
        %4876 = vmatpush1.msra.mxu0 %v4839
        %4877 = vmatprep.subr.mxu0 0.0
        %4878 = vmatpush1.msra.mxu0 %v4837
        %4879 = vmatprep.subr.mxu0 0.0
        %4880 = vmatpush1.msra.mxu0 %v4835
        %4881 = vmatprep.subr.mxu0 0.0
        %4882 = vmatpush2.msra.mxu0 0.0
        %4883 = vmatprep.subr.mxu0 0.0
        %4884 = vmatpush2.msra.mxu0 0.0
        %4885 = vmatprep.subr.mxu0 0.0
        %4886 = vmatpush2.msra.mxu0 0.0
        %4887 = vmatprep.subr.mxu0 0.0
        %4888 = vmatpush2.msra.mxu0 0.0
        %4889 = vmatprep.subr.mxu0 0.0
        %4890 = vmatpush2.msra.mxu0 0.0
        %4891 = vmatprep.subr.mxu0 0.0
        %4892 = vmatpush2.msra.mxu0 0.0
        %4893 = vmatprep.subr.mxu0 0.0
        %4894 = vmatpush2.msra.mxu0 0.0
        %4895 = vmatprep.subr.mxu0 0.0
        %4896 = vmatpush2.msra.mxu0 0.0
        %4897 = vmatprep.subr.mxu0 0.0
        %4898 = vmatpush2.msra.mxu0 0.0
        %4899 = vmatprep.subr.mxu0 0.0
        %4900 = vmatpush2.msra.mxu0 0.0
        %4901 = vmatprep.subr.mxu0 0.0
        %4902 = vmatpush2.msra.mxu0 0.0
        %4903 = vmatprep.subr.mxu0 0.0
        %4904 = vmatpush2.msra.mxu0 0.0
        %4905 = vmatprep.subr.mxu0 0.0
        %4906 = vmatpush2.msra.mxu0 0.0
        %4907 = vmatprep.subr.mxu0 0.0
        %4908 = vmatpush2.msra.mxu0 0.0
        %4909 = vmatprep.subr.mxu0 0.0
        %4910 = vmatpush2.msra.mxu0 0.0
        %4911 = vmatprep.subr.mxu0 0.0
        %4912 = vmatpush2.msra.mxu0 0.0
        %4913 = vmatprep.mubr.f32.mxu0 0.0
        %4914 = vmatmul.mubr.f32.gmra.mxu0 %v3364
        %v4915 = vpop.f32.mrf.mxu0
        %v4916 = vadd.f32 %v4847, %v4915
        %v4917 = vpop.f32.mrf.mxu0
        %4918 = vdwg.mxu0
        %4919 = vrot.lane.b32.xlu0 %v3436, 104
        %v4920 = vpop.permute.xlu0 %4919
        %4921 = vrot.lane.b32.xlu0 %v3437, 104
        %v4922 = vpop.permute.xlu0 %4921
        %4923 = vrot.lane.b32.xlu0 %v3438, 104
        %v4924 = vpop.permute.xlu0 %4923
        %4925 = vrot.lane.b32.xlu0 %v3439, 104
        %v4926 = vpop.permute.xlu0 %4925
        %4931 = vrot.lane.b32.xlu0 %v3445, 104
        %v4932 = vpop.permute.xlu0 %4931
        %4934 = vmatprep.subr.mxu0 0.0
        %4935 = vmatpush1.msra.mxu0 0.0
        %4936 = vmatprep.subr.mxu0 0.0
        %4937 = vmatpush1.msra.mxu0 0.0
        %4938 = vmatprep.subr.mxu0 0.0
        %4939 = vmatpush1.msra.mxu0 0.0
        %4940 = vmatprep.subr.mxu0 0.0
        %4941 = vmatpush1.msra.mxu0 0.0
        %4942 = vmatprep.subr.mxu0 0.0
        %4943 = vmatpush1.msra.mxu0 0.0
        %4944 = vmatprep.subr.mxu0 0.0
        %4945 = vmatpush1.msra.mxu0 0.0
        %4946 = vmatprep.subr.mxu0 0.0
        %4947 = vmatpush1.msra.mxu0 0.0
        %4948 = vmatprep.subr.mxu0 0.0
        %4949 = vmatpush1.msra.mxu0 0.0
        %4950 = vmatprep.subr.mxu0 0.0
        %4951 = vmatpush1.msra.mxu0 0.0
        %4952 = vmatprep.subr.mxu0 0.0
        %4953 = vmatpush1.msra.mxu0 0.0
        %4954 = vmatprep.subr.mxu0 0.0
        %4955 = vmatpush1.msra.mxu0 0.0
        %4956 = vmatprep.subr.mxu0 0.0
        %4957 = vmatpush1.msra.mxu0 0.0
        %4958 = vmatprep.subr.mxu0 0.0
        %4959 = vmatpush1.msra.mxu0 %v4926
        %4960 = vmatprep.subr.mxu0 0.0
        %4961 = vmatpush1.msra.mxu0 %v4924
        %4962 = vmatprep.subr.mxu0 0.0
        %4963 = vmatpush1.msra.mxu0 %v4922
        %4964 = vmatprep.subr.mxu0 0.0
        %4965 = vmatpush1.msra.mxu0 %v4920
        %4966 = vmatprep.subr.mxu0 0.0
        %4967 = vmatpush2.msra.mxu0 0.0
        %4968 = vmatprep.subr.mxu0 0.0
        %4969 = vmatpush2.msra.mxu0 0.0
        %4970 = vmatprep.subr.mxu0 0.0
        %4971 = vmatpush2.msra.mxu0 0.0
        %4972 = vmatprep.subr.mxu0 0.0
        %4973 = vmatpush2.msra.mxu0 0.0
        %4974 = vmatprep.subr.mxu0 0.0
        %4975 = vmatpush2.msra.mxu0 0.0
        %4976 = vmatprep.subr.mxu0 0.0
        %4977 = vmatpush2.msra.mxu0 0.0
        %4978 = vmatprep.subr.mxu0 0.0
        %4979 = vmatpush2.msra.mxu0 0.0
        %4980 = vmatprep.subr.mxu0 0.0
        %4981 = vmatpush2.msra.mxu0 0.0
        %4982 = vmatprep.subr.mxu0 0.0
        %4983 = vmatpush2.msra.mxu0 0.0
        %4984 = vmatprep.subr.mxu0 0.0
        %4985 = vmatpush2.msra.mxu0 0.0
        %4986 = vmatprep.subr.mxu0 0.0
        %4987 = vmatpush2.msra.mxu0 0.0
        %4988 = vmatprep.subr.mxu0 0.0
        %4989 = vmatpush2.msra.mxu0 0.0
        %4990 = vmatprep.subr.mxu0 0.0
        %4991 = vmatpush2.msra.mxu0 0.0
        %4992 = vmatprep.subr.mxu0 0.0
        %4993 = vmatpush2.msra.mxu0 0.0
        %4994 = vmatprep.subr.mxu0 0.0
        %4995 = vmatpush2.msra.mxu0 0.0
        %4996 = vmatprep.subr.mxu0 0.0
        %4997 = vmatpush2.msra.mxu0 0.0
        %4998 = vmatprep.mubr.f32.mxu0 0.0
        %4999 = vmatmul.mubr.f32.gmra.mxu0 %v3364
        %v5000 = vpop.f32.mrf.mxu0
        %v5001 = vadd.f32 %v4932, %v5000
        %v5002 = vpop.f32.mrf.mxu0
        %5003 = vdwg.mxu0
        %v5005 = vsel %vm1490, %v4831, 0
        %v5008 = vsel %vm1490, %v4916, 0
        %5010 = vmatprep.subr.mxu0 0.0
        %5011 = vmatpush1.xpose.msra.mxu0 0.0
        %5012 = vmatprep.subr.mxu0 0.0
        %5013 = vmatpush1.xpose.msra.mxu0 0.0
        %5014 = vmatprep.subr.mxu0 0.0
        %5015 = vmatpush1.xpose.msra.mxu0 0.0
        %5016 = vmatprep.subr.mxu0 0.0
        %5017 = vmatpush1.xpose.msra.mxu0 0.0
        %5018 = vmatprep.subr.mxu0 0.0
        %5019 = vmatpush1.xpose.msra.mxu0 0.0
        %5020 = vmatprep.subr.mxu0 0.0
        %5021 = vmatpush1.xpose.msra.mxu0 0.0
        %5022 = vmatprep.subr.mxu0 0.0
        %5023 = vmatpush1.xpose.msra.mxu0 0.0
        %5024 = vmatprep.subr.mxu0 0.0
        %5025 = vmatpush1.xpose.msra.mxu0 0.0
        %5026 = vmatprep.subr.mxu0 0.0
        %5027 = vmatpush1.xpose.msra.mxu0 0.0
        %5028 = vmatprep.subr.mxu0 0.0
        %5029 = vmatpush1.xpose.msra.mxu0 0.0
        %5030 = vmatprep.subr.mxu0 0.0
        %5031 = vmatpush1.xpose.msra.mxu0 0.0
        %5032 = vmatprep.subr.mxu0 0.0
        %5033 = vmatpush1.xpose.msra.mxu0 0.0
        %5034 = vmatprep.subr.mxu0 0.0
        %5035 = vmatpush1.xpose.msra.mxu0 0.0
        %5036 = vmatprep.subr.mxu0 0.0
        %5037 = vmatpush1.xpose.msra.mxu0 0.0
        %5038 = vmatprep.subr.mxu0 0.0
        %5039 = vmatpush1.xpose.msra.mxu0 0.0
        %5040 = vmatprep.subr.mxu0 0.0
        %5041 = vmatpush1.xpose.msra.mxu0 %v5008
        %5042 = vmatprep.subr.mxu0 0.0
        %5043 = vmatpush2.xpose.msra.mxu0 0.0
        %5044 = vmatprep.subr.mxu0 0.0
        %5045 = vmatpush2.xpose.msra.mxu0 0.0
        %5046 = vmatprep.subr.mxu0 0.0
        %5047 = vmatpush2.xpose.msra.mxu0 0.0
        %5048 = vmatprep.subr.mxu0 0.0
        %5049 = vmatpush2.xpose.msra.mxu0 0.0
        %5050 = vmatprep.subr.mxu0 0.0
        %5051 = vmatpush2.xpose.msra.mxu0 0.0
        %5052 = vmatprep.subr.mxu0 0.0
        %5053 = vmatpush2.xpose.msra.mxu0 0.0
        %5054 = vmatprep.subr.mxu0 0.0
        %5055 = vmatpush2.xpose.msra.mxu0 0.0
        %5056 = vmatprep.subr.mxu0 0.0
        %5057 = vmatpush2.xpose.msra.mxu0 0.0
        %5058 = vmatprep.subr.mxu0 0.0
        %5059 = vmatpush2.xpose.msra.mxu0 0.0
        %5060 = vmatprep.subr.mxu0 0.0
        %5061 = vmatpush2.xpose.msra.mxu0 0.0
        %5062 = vmatprep.subr.mxu0 0.0
        %5063 = vmatpush2.xpose.msra.mxu0 0.0
        %5064 = vmatprep.subr.mxu0 0.0
        %5065 = vmatpush2.xpose.msra.mxu0 0.0
        %5066 = vmatprep.subr.mxu0 0.0
        %5067 = vmatpush2.xpose.msra.mxu0 0.0
        %5068 = vmatprep.subr.mxu0 0.0
        %5069 = vmatpush2.xpose.msra.mxu0 0.0
        %5070 = vmatprep.subr.mxu0 0.0
        %5071 = vmatpush2.xpose.msra.mxu0 0.0
        %5072 = vmatprep.subr.mxu0 0.0
        %5073 = vmatpush2.xpose.msra.mxu0 0.0
        %5074 = vmatprep.mubr.f32.mxu0 0.0
        %5075 = vmatmul.mubr.f32.gmra.mxu0 %v5005
        %v5076 = vpop.f32.mrf.mxu0
        %v5077 = vadd.f32 0.0, %v5076
        %v5078 = vpop.f32.mrf.mxu0
        %5079 = vdwg.mxu0
        %v5080 = vmul.f32 %v5077, 0.35355338
        %v5081 = vsel %vm3594, -1e+09, %v5080
        %v5082 = vsel %vm1490, %v5081, -inf
        %5083 = vmax.xlane.f32.xlu0 %v5082
        %v5084 = vpop.xlane.xlu0 %5083
        %v5085 = vsub.f32 %v5081, %v5084
        %v5086 = vmul.f32 %v5085, 1.442695
        %v5087 = vpow.pop %v5086
        %v5088 = vsel %vm1490, %v5087, 0.0
        %5089 = vadd.xlane.f32.xlu0 %v5088
        %v5090 = vpop.xlane.xlu0 %5089
        %v5091 = vrcp.pop %v5090
        %v5092 = vmul.f32 %v5087, %v5091
        %v5094 = vsel %vm1490, %v5092, 0
        %5096 = vmatprep.subr.mxu0 0.0
        %5097 = vmatpush1.msra.mxu0 0.0
        %5098 = vmatprep.subr.mxu0 0.0
        %5099 = vmatpush1.msra.mxu0 0.0
        %5100 = vmatprep.subr.mxu0 0.0
        %5101 = vmatpush1.msra.mxu0 0.0
        %5102 = vmatprep.subr.mxu0 0.0
        %5103 = vmatpush1.msra.mxu0 0.0
        %5104 = vmatprep.subr.mxu0 0.0
        %5105 = vmatpush1.msra.mxu0 0.0
        %5106 = vmatprep.subr.mxu0 0.0
        %5107 = vmatpush1.msra.mxu0 0.0
        %5108 = vmatprep.subr.mxu0 0.0
        %5109 = vmatpush1.msra.mxu0 0.0
        %5110 = vmatprep.subr.mxu0 0.0
        %5111 = vmatpush1.msra.mxu0 0.0
        %5112 = vmatprep.subr.mxu0 0.0
        %5113 = vmatpush1.msra.mxu0 0.0
        %5114 = vmatprep.subr.mxu0 0.0
        %5115 = vmatpush1.msra.mxu0 0.0
        %5116 = vmatprep.subr.mxu0 0.0
        %5117 = vmatpush1.msra.mxu0 0.0
        %5118 = vmatprep.subr.mxu0 0.0
        %5119 = vmatpush1.msra.mxu0 0.0
        %5120 = vmatprep.subr.mxu0 0.0
        %5121 = vmatpush1.msra.mxu0 0.0
        %5122 = vmatprep.subr.mxu0 0.0
        %5123 = vmatpush1.msra.mxu0 0.0
        %5124 = vmatprep.subr.mxu0 0.0
        %5125 = vmatpush1.msra.mxu0 0.0
        %5126 = vmatprep.subr.mxu0 0.0
        %5127 = vmatpush1.msra.mxu0 %v5001
        %5128 = vmatprep.subr.mxu0 0.0
        %5129 = vmatpush2.msra.mxu0 0.0
        %5130 = vmatprep.subr.mxu0 0.0
        %5131 = vmatpush2.msra.mxu0 0.0
        %5132 = vmatprep.subr.mxu0 0.0
        %5133 = vmatpush2.msra.mxu0 0.0
        %5134 = vmatprep.subr.mxu0 0.0
        %5135 = vmatpush2.msra.mxu0 0.0
        %5136 = vmatprep.subr.mxu0 0.0
        %5137 = vmatpush2.msra.mxu0 0.0
        %5138 = vmatprep.subr.mxu0 0.0
        %5139 = vmatpush2.msra.mxu0 0.0
        %5140 = vmatprep.subr.mxu0 0.0
        %5141 = vmatpush2.msra.mxu0 0.0
        %5142 = vmatprep.subr.mxu0 0.0
        %5143 = vmatpush2.msra.mxu0 0.0
        %5144 = vmatprep.subr.mxu0 0.0
        %5145 = vmatpush2.msra.mxu0 0.0
        %5146 = vmatprep.subr.mxu0 0.0
        %5147 = vmatpush2.msra.mxu0 0.0
        %5148 = vmatprep.subr.mxu0 0.0
        %5149 = vmatpush2.msra.mxu0 0.0
        %5150 = vmatprep.subr.mxu0 0.0
        %5151 = vmatpush2.msra.mxu0 0.0
        %5152 = vmatprep.subr.mxu0 0.0
        %5153 = vmatpush2.msra.mxu0 0.0
        %5154 = vmatprep.subr.mxu0 0.0
        %5155 = vmatpush2.msra.mxu0 0.0
        %5156 = vmatprep.subr.mxu0 0.0
        %5157 = vmatpush2.msra.mxu0 0.0
        %5158 = vmatprep.subr.mxu0 0.0
        %5159 = vmatpush2.msra.mxu0 0.0
        %5160 = vmatprep.mubr.f32.mxu0 0.0
        %5161 = vmatmul.mubr.f32.gmra.mxu0 %v5094
        %v5162 = vpop.f32.mrf.mxu0
        %v5163 = vadd.f32 0.0, %v5162
        %v5164 = vpop.f32.mrf.mxu0
        %5165 = vdwg.mxu0
        %v5166 = vld [vmem:[#allocation16 + $0x18] sm:$0xff]
        %v5168 = vsel %vm1490, %v5163, 0
        %5170 = vmatprep.subr.mxu0 0.0
        %5171 = vmatpush1.msra.mxu0 0.0
        %5172 = vmatprep.subr.mxu0 0.0
        %5173 = vmatpush1.msra.mxu0 0.0
        %5174 = vmatprep.subr.mxu0 0.0
        %5175 = vmatpush1.msra.mxu0 0.0
        %5176 = vmatprep.subr.mxu0 0.0
        %5177 = vmatpush1.msra.mxu0 0.0
        %5178 = vmatprep.subr.mxu0 0.0
        %5179 = vmatpush1.msra.mxu0 0.0
        %5180 = vmatprep.subr.mxu0 0.0
        %5181 = vmatpush1.msra.mxu0 0.0
        %5182 = vmatprep.subr.mxu0 0.0
        %5183 = vmatpush1.msra.mxu0 0.0
        %5184 = vmatprep.subr.mxu0 0.0
        %5185 = vmatpush1.msra.mxu0 0.0
        %5186 = vmatprep.subr.mxu0 0.0
        %5187 = vmatpush1.msra.mxu0 0.0
        %5188 = vmatprep.subr.mxu0 0.0
        %5189 = vmatpush1.msra.mxu0 0.0
        %5190 = vmatprep.subr.mxu0 0.0
        %5191 = vmatpush1.msra.mxu0 0.0
        %5192 = vmatprep.subr.mxu0 0.0
        %5193 = vmatpush1.msra.mxu0 0.0
        %5194 = vmatprep.subr.mxu0 0.0
        %5195 = vmatpush1.msra.mxu0 0.0
        %5196 = vmatprep.subr.mxu0 0.0
        %5197 = vmatpush1.msra.mxu0 0.0
        %5198 = vmatprep.subr.mxu0 0.0
        %5199 = vmatpush1.msra.mxu0 0.0
        %5200 = vmatprep.subr.mxu0 0.0
        %5201 = vmatpush1.msra.mxu0 %v5166
        %5202 = vmatprep.subr.mxu0 0.0
        %5203 = vmatpush2.msra.mxu0 0.0
        %5204 = vmatprep.subr.mxu0 0.0
        %5205 = vmatpush2.msra.mxu0 0.0
        %5206 = vmatprep.subr.mxu0 0.0
        %5207 = vmatpush2.msra.mxu0 0.0
        %5208 = vmatprep.subr.mxu0 0.0
        %5209 = vmatpush2.msra.mxu0 0.0
        %5210 = vmatprep.subr.mxu0 0.0
        %5211 = vmatpush2.msra.mxu0 0.0
        %5212 = vmatprep.subr.mxu0 0.0
        %5213 = vmatpush2.msra.mxu0 0.0
        %5214 = vmatprep.subr.mxu0 0.0
        %5215 = vmatpush2.msra.mxu0 0.0
        %5216 = vmatprep.subr.mxu0 0.0
        %5217 = vmatpush2.msra.mxu0 0.0
        %5218 = vmatprep.subr.mxu0 0.0
        %5219 = vmatpush2.msra.mxu0 0.0
        %5220 = vmatprep.subr.mxu0 0.0
        %5221 = vmatpush2.msra.mxu0 0.0
        %5222 = vmatprep.subr.mxu0 0.0
        %5223 = vmatpush2.msra.mxu0 0.0
        %5224 = vmatprep.subr.mxu0 0.0
        %5225 = vmatpush2.msra.mxu0 0.0
        %5226 = vmatprep.subr.mxu0 0.0
        %5227 = vmatpush2.msra.mxu0 0.0
        %5228 = vmatprep.subr.mxu0 0.0
        %5229 = vmatpush2.msra.mxu0 0.0
        %5230 = vmatprep.subr.mxu0 0.0
        %5231 = vmatpush2.msra.mxu0 0.0
        %5232 = vmatprep.subr.mxu0 0.0
        %5233 = vmatpush2.msra.mxu0 0.0
        %5234 = vmatprep.mubr.f32.mxu0 0.0
        %5235 = vmatmul.mubr.f32.gmra.mxu0 %v5168
        %v5236 = vpop.f32.mrf.mxu0
        %v5237 = vadd.f32 0.0, %v5236
        %v5238 = vpop.f32.mrf.mxu0
        %5239 = vdwg.mxu0
        %v5240 = vadd.f32 %v4748, %v5237
        %v5241 = vld [vmem:[%s39] sm:$0x1]
        %v5243 = vlaneseq
        %v5244 = vshrl.u32 %v5243, 7
        %v5245 = vsub.s32 0, %v5244
        %v5246 = vrot.slane %v5241, %v5245
        %v5248 = vadd.f32 %v5240, %v5246
        %v5249 = vadd.f32 %v3223, %v5248
        %v5250 = vsel %vm1213, %v5249, 0.0
        %5251 = vadd.xlane.f32.xlu0 %v5250
        %v5252 = vpop.xlane.xlu0 %5251
        %v5253 = vmul.f32 %v5252, %v1217
        %v5254 = vsub.f32 %v5249, %v5253
        %v5255 = vmul.f32 %v5254, %v5254
        %v5256 = vsel %vm1213, %v5255, 0.0
        %5257 = vadd.xlane.f32.xlu0 %v5256
        %v5258 = vpop.xlane.xlu0 %5257
        %v5259 = vmul.f32 %v5258, %v1217
        %v5260 = vadd.f32 %v5259, 1e-05
        %v5261 = vrsqrt.pop %v5260
        %v5262 = vmul.f32 %v5254, %v5261
        %v5263 = vld [vmem:[%s57] sm:$0x1]
        %v5265 = vlaneseq
        %v5266 = vshrl.u32 %v5265, 7
        %v5267 = vsub.s32 0, %v5266
        %v5268 = vrot.slane %v5263, %v5267
        %v5270 = vmul.f32 %v5262, %v5268
        %v5271 = vld [vmem:[%s59] sm:$0x1]
        %v5273 = vlaneseq
        %v5274 = vshrl.u32 %v5273, 7
        %v5275 = vsub.s32 0, %v5274
        %v5276 = vrot.slane %v5271, %v5275
        %v5278 = vadd.f32 %v5270, %v5276
        %v5279 = vld [vmem:[#allocation17] sm:$0xff]
        %v5280 = vld [vmem:[#allocation17 + $0x8] sm:$0xff]
        %v5281 = vld [vmem:[#allocation17 + $0x10] sm:$0xff]
        %v5282 = vld [vmem:[#allocation17 + $0x18] sm:$0xff]
        %v5283 = vld [vmem:[#allocation19] sm:$0x1]
        %v5285 = vlaneseq
        %v5286 = vshrl.u32 %v5285, 7
        %v5287 = vsub.s32 0, %v5286
        %v5288 = vrot.slane %v5283, %v5287
        %v5291 = vsel %vm1213, %v5278, 0
        %5293 = vmatprep.subr.mxu0 0.0
        %5294 = vmatpush1.msra.mxu0 0.0
        %5295 = vmatprep.subr.mxu0 0.0
        %5296 = vmatpush1.msra.mxu0 0.0
        %5297 = vmatprep.subr.mxu0 0.0
        %5298 = vmatpush1.msra.mxu0 0.0
        %5299 = vmatprep.subr.mxu0 0.0
        %5300 = vmatpush1.msra.mxu0 0.0
        %5301 = vmatprep.subr.mxu0 0.0
        %5302 = vmatpush1.msra.mxu0 0.0
        %5303 = vmatprep.subr.mxu0 0.0
        %5304 = vmatpush1.msra.mxu0 0.0
        %5305 = vmatprep.subr.mxu0 0.0
        %5306 = vmatpush1.msra.mxu0 0.0
        %5307 = vmatprep.subr.mxu0 0.0
        %5308 = vmatpush1.msra.mxu0 0.0
        %5309 = vmatprep.subr.mxu0 0.0
        %5310 = vmatpush1.msra.mxu0 0.0
        %5311 = vmatprep.subr.mxu0 0.0
        %5312 = vmatpush1.msra.mxu0 0.0
        %5313 = vmatprep.subr.mxu0 0.0
        %5314 = vmatpush1.msra.mxu0 0.0
        %5315 = vmatprep.subr.mxu0 0.0
        %5316 = vmatpush1.msra.mxu0 0.0
        %5317 = vmatprep.subr.mxu0 0.0
        %5318 = vmatpush1.msra.mxu0 %v5282
        %5319 = vmatprep.subr.mxu0 0.0
        %5320 = vmatpush1.msra.mxu0 %v5281
        %5321 = vmatprep.subr.mxu0 0.0
        %5322 = vmatpush1.msra.mxu0 %v5280
        %5323 = vmatprep.subr.mxu0 0.0
        %5324 = vmatpush1.msra.mxu0 %v5279
        %5325 = vmatprep.subr.mxu0 0.0
        %5326 = vmatpush2.msra.mxu0 0.0
        %5327 = vmatprep.subr.mxu0 0.0
        %5328 = vmatpush2.msra.mxu0 0.0
        %5329 = vmatprep.subr.mxu0 0.0
        %5330 = vmatpush2.msra.mxu0 0.0
        %5331 = vmatprep.subr.mxu0 0.0
        %5332 = vmatpush2.msra.mxu0 0.0
        %5333 = vmatprep.subr.mxu0 0.0
        %5334 = vmatpush2.msra.mxu0 0.0
        %5335 = vmatprep.subr.mxu0 0.0
        %5336 = vmatpush2.msra.mxu0 0.0
        %5337 = vmatprep.subr.mxu0 0.0
        %5338 = vmatpush2.msra.mxu0 0.0
        %5339 = vmatprep.subr.mxu0 0.0
        %5340 = vmatpush2.msra.mxu0 0.0
        %5341 = vmatprep.subr.mxu0 0.0
        %5342 = vmatpush2.msra.mxu0 0.0
        %5343 = vmatprep.subr.mxu0 0.0
        %5344 = vmatpush2.msra.mxu0 0.0
        %5345 = vmatprep.subr.mxu0 0.0
        %5346 = vmatpush2.msra.mxu0 0.0
        %5347 = vmatprep.subr.mxu0 0.0
        %5348 = vmatpush2.msra.mxu0 0.0
        %5349 = vmatprep.subr.mxu0 0.0
        %5350 = vmatpush2.msra.mxu0 0.0
        %5351 = vmatprep.subr.mxu0 0.0
        %5352 = vmatpush2.msra.mxu0 0.0
        %5353 = vmatprep.subr.mxu0 0.0
        %5354 = vmatpush2.msra.mxu0 0.0
        %5355 = vmatprep.subr.mxu0 0.0
        %5356 = vmatpush2.msra.mxu0 0.0
        %5357 = vmatprep.mubr.f32.mxu0 0.0
        %5358 = vmatmul.mubr.f32.gmra.mxu0 %v5291
        %v5359 = vpop.f32.mrf.mxu0
        %v5360 = vadd.f32 %v5288, %v5359
        %v5361 = vpop.f32.mrf.mxu0
        %5362 = vdwg.mxu0
        %v5363 = vmax.f32 %v5360, 0.0
        %v5364 = vld [vmem:[%s45] sm:$0xff]
        %v5365 = vld [vmem:[%s45 + $0x8] sm:$0xff]
        %v5366 = vld [vmem:[%s45 + $0x10] sm:$0xff]
        %v5367 = vld [vmem:[%s45 + $0x18] sm:$0xff]
        %v5368 = vld [vmem:[%s45 + $0x20] sm:$0xff]
        %v5369 = vld [vmem:[%s45 + $0x28] sm:$0xff]
        %v5370 = vld [vmem:[%s45 + $0x30] sm:$0xff]
        %v5371 = vld [vmem:[%s45 + $0x38] sm:$0xff]
        %v5372 = vld [vmem:[%s47] sm:$0x1]
        %v5374 = vlaneseq
        %v5375 = vshrl.u32 %v5374, 7
        %v5376 = vsub.s32 0, %v5375
        %v5377 = vrot.slane %v5372, %v5376
        %vm5379 = vcmask 523264
        %v5381 = vsel %vm5379, %v5363, 0
        %5383 = vmatprep.subr.mxu0 0.0
        %5384 = vmatpush1.msra.mxu0 0.0
        %5385 = vmatprep.subr.mxu0 0.0
        %5386 = vmatpush1.msra.mxu0 0.0
        %5387 = vmatprep.subr.mxu0 0.0
        %5388 = vmatpush1.msra.mxu0 0.0
        %5389 = vmatprep.subr.mxu0 0.0
        %5390 = vmatpush1.msra.mxu0 0.0
        %5391 = vmatprep.subr.mxu0 0.0
        %5392 = vmatpush1.msra.mxu0 0.0
        %5393 = vmatprep.subr.mxu0 0.0
        %5394 = vmatpush1.msra.mxu0 0.0
        %5395 = vmatprep.subr.mxu0 0.0
        %5396 = vmatpush1.msra.mxu0 0.0
        %5397 = vmatprep.subr.mxu0 0.0
        %5398 = vmatpush1.msra.mxu0 0.0
        %5399 = vmatprep.subr.mxu0 0.0
        %5400 = vmatpush1.msra.mxu0 %v5371
        %5401 = vmatprep.subr.mxu0 0.0
        %5402 = vmatpush1.msra.mxu0 %v5370
        %5403 = vmatprep.subr.mxu0 0.0
        %5404 = vmatpush1.msra.mxu0 %v5369
        %5405 = vmatprep.subr.mxu0 0.0
        %5406 = vmatpush1.msra.mxu0 %v5368
        %5407 = vmatprep.subr.mxu0 0.0
        %5408 = vmatpush1.msra.mxu0 %v5367
        %5409 = vmatprep.subr.mxu0 0.0
        %5410 = vmatpush1.msra.mxu0 %v5366
        %5411 = vmatprep.subr.mxu0 0.0
        %5412 = vmatpush1.msra.mxu0 %v5365
        %5413 = vmatprep.subr.mxu0 0.0
        %5414 = vmatpush1.msra.mxu0 %v5364
        %5415 = vmatprep.subr.mxu0 0.0
        %5416 = vmatpush2.msra.mxu0 0.0
        %5417 = vmatprep.subr.mxu0 0.0
        %5418 = vmatpush2.msra.mxu0 0.0
        %5419 = vmatprep.subr.mxu0 0.0
        %5420 = vmatpush2.msra.mxu0 0.0
        %5421 = vmatprep.subr.mxu0 0.0
        %5422 = vmatpush2.msra.mxu0 0.0
        %5423 = vmatprep.subr.mxu0 0.0
        %5424 = vmatpush2.msra.mxu0 0.0
        %5425 = vmatprep.subr.mxu0 0.0
        %5426 = vmatpush2.msra.mxu0 0.0
        %5427 = vmatprep.subr.mxu0 0.0
        %5428 = vmatpush2.msra.mxu0 0.0
        %5429 = vmatprep.subr.mxu0 0.0
        %5430 = vmatpush2.msra.mxu0 0.0
        %5431 = vmatprep.subr.mxu0 0.0
        %5432 = vmatpush2.msra.mxu0 0.0
        %5433 = vmatprep.subr.mxu0 0.0
        %5434 = vmatpush2.msra.mxu0 0.0
        %5435 = vmatprep.subr.mxu0 0.0
        %5436 = vmatpush2.msra.mxu0 0.0
        %5437 = vmatprep.subr.mxu0 0.0
        %5438 = vmatpush2.msra.mxu0 0.0
        %5439 = vmatprep.subr.mxu0 0.0
        %5440 = vmatpush2.msra.mxu0 0.0
        %5441 = vmatprep.subr.mxu0 0.0
        %5442 = vmatpush2.msra.mxu0 0.0
        %5443 = vmatprep.subr.mxu0 0.0
        %5444 = vmatpush2.msra.mxu0 0.0
        %5445 = vmatprep.subr.mxu0 0.0
        %5446 = vmatpush2.msra.mxu0 0.0
        %5447 = vmatprep.mubr.f32.mxu0 0.0
        %5448 = vmatmul.mubr.f32.gmra.mxu0 %v5381
        %v5449 = vpop.f32.mrf.mxu0
        %v5450 = vadd.f32 %v5377, %v5449
        %v5451 = vpop.f32.mrf.mxu0
        %5452 = vdwg.mxu0
        %v5453 = vadd.f32 %v5278, %v5450
        %v5454 = vsel %vm1213, %v5453, 0.0
        %5455 = vadd.xlane.f32.xlu0 %v5454
        %v5456 = vpop.xlane.xlu0 %5455
        %v5457 = vmul.f32 %v5456, %v1217
        %v5458 = vsub.f32 %v5453, %v5457
        %v5459 = vmul.f32 %v5458, %v5458
        %v5460 = vsel %vm1213, %v5459, 0.0
        %5461 = vadd.xlane.f32.xlu0 %v5460
        %v5462 = vpop.xlane.xlu0 %5461
        %v5463 = vmul.f32 %v5462, %v1217
        %v5464 = vadd.f32 %v5463, 1e-05
        %v5465 = vrsqrt.pop %v5464
        %v5466 = vmul.f32 %v5458, %v5465
        %v5467 = vld [vmem:[%s61] sm:$0x1]
        %v5469 = vlaneseq
        %v5470 = vshrl.u32 %v5469, 7
        %v5471 = vsub.s32 0, %v5470
        %v5472 = vrot.slane %v5467, %v5471
        %v5474 = vmul.f32 %v5466, %v5472
        %v5475 = vld [vmem:[%s63] sm:$0x1]
        %v5477 = vlaneseq
        %v5478 = vshrl.u32 %v5477, 7
        %v5479 = vsub.s32 0, %v5478
        %v5480 = vrot.slane %v5475, %v5479
        %v5482 = vadd.f32 %v5474, %v5480
        %5483 = vst.msk [vmem:[%s1208] sm:$0xff] %vm1213, %v5482
        %s5484 = sand.u32 %s791, 1
        %s5485 = scalar_lea.sflag [#allocation4], %s5484
        %s5486 = sand.u32 %s791, 1
        %s5487 = smul.addr %s5486, 8
        %s5488 = scalar_lea.vmem [#allocation20], %s5487
        // Predicated region
        $region193: #{tpu_custom_call.1} parent=147 // pred_check
          %p5489 = pneg %p801
        $region194: #{tpu_custom_call.1} parent=147 // pred_check_branch
          %5491 = sbr.rel (%p5489) target = $region196
        $region195: #{tpu_custom_call.1} parent=147 // pred_region
          %s5493 = ssub.s32 128, 128
          %5494 = vsyncadd %s5485, %s5493
          %s5495 = smul.addr %s91, 128
          %s5496 = scalar_lea.hbm %s65, %s5495
          %s5498 = sshll.u32 %s5488, 4
          %s5499 = int_to_ptr.vmem [resolvable:$true] %s5498
          %5501 = dma.vmem_to_hbm [thread:$0]  %s5499, 128, %s5496, %s5485
        $region196: #{tpu_custom_call.1} parent=147 // pred_fallthru
          _
      $region148: #{tpu_custom_call.1} parent=5 // pred_fallthru
        _
      %p5502 = scmp.le.s32.totalorder 2, %s86
      // Predicated region
      $region197: #{tpu_custom_call.1} parent=5 // pred_check
        %p5503 = pneg %p5502
      $region198: #{tpu_custom_call.1} parent=5 // pred_check_branch
        %5505 = sbr.rel (%p5503) target = $region200
      $region199: #{tpu_custom_call.1} parent=5 // pred_region
        %s5506 = ssub.s32 %s86, 2
        // Predicated region
        $region201: #{tpu_custom_call.1} parent=199 // pred_check
          %p5507 = pneg %p807
        $region202: #{tpu_custom_call.1} parent=199 // pred_check_branch
          %5509 = sbr.rel (%p5507) target = $region204
        $region203: #{tpu_custom_call.1} parent=199 // pred_region
          %s5510 = sand.u32 %s792, 1
          %s5511 = scalar_lea.sflag [#allocation4], %s5510
          %s5512 = sand.u32 %s792, 1
          %s5513 = smul.addr %s5512, 8
          %s5514 = scalar_lea.vmem [#allocation20], %s5513
          %5515 = dma.done %s5511, 128
        $region204: #{tpu_custom_call.1} parent=199 // pred_fallthru
          _
      $region200: #{tpu_custom_call.1} parent=5 // pred_fallthru
        _
    $region6: #{tpu_custom_call.1} parent=1 // loop_footer
      %s90 = sadd.s32 1, %s86
    $region7: #{tpu_custom_call.1} parent=1 // loop_footer_branch
      %85 = sbr.rel target = $region3
    $region8: #{tpu_custom_call.1} parent=1 // loop_exit
      _
    %5516 = vsyncpa [#allocation3], 1
    %s5517 = scalar_lea.sflag [#allocation3], 1
    %5518 = vsyncpa %s5517, 1
    %5519 = vsyncpa [#allocation6], 1
    %s5520 = scalar_lea.sflag [#allocation6], 1
    %5521 = vsyncpa %s5520, 1
    %5522 = vsyncpa [#allocation9], 1
    %s5523 = scalar_lea.sflag [#allocation9], 1
    %5524 = vsyncpa %s5523, 1
    %5525 = vsyncpa [#allocation12], 1
    %5526 = vsyncpa [#allocation15], 1
    %5527 = vsyncpa [#allocation18], 1
    %5528 = vsyncpa [#allocation4], 1
    %s5529 = scalar_lea.sflag [#allocation4], 1
    %5530 = vsyncpa %s5529, 1

</llo_original>
